<compile_context>
chip_gen: v6e
topology: v6e:2x2x1
jax: 0.10.0
libtpu: 0.0.40
codegen_flags: <defaults>
</compile_context>

<pallas_src>
import functools

import jax
import jax.numpy as jnp
from jax import lax
from jax.experimental import pallas as pl
from jax.experimental.pallas import tpu as pltpu

NEG_INF = -1e30  # applied on f32 scores only (never cast to bf16)

_BUFFERED_WEIGHTS_OK = True  # flipped off if pl.Buffered(1) is unsupported


def _split_heads(x2, num_heads, head_dim):
    """(R, H*hd) -> (H, R, hd): per-head lane slices stacked on a NEW LEADING axis.

    Stacking along a major axis is a cheap tile placement (no lane-dim concat,
    no (1,0,2) transpose); the sub-128-lane slices are the only relayout.
    """
    return jnp.stack(
        [x2[:, h * head_dim:(h + 1) * head_dim] for h in range(num_heads)], axis=0)


# ----------------------------- fused flash-attention kernel -----------------------------
def _flash_attn_kernel(is_causal,
                       xq_ref, xkv_ref, wq_ref, wkv_ref, wproj_ref, bproj_ref,
                       o_ref,
                       q_sc, m_sc, l_sc, acc_sc):
    _, tq, E = xq_ref.shape
    _, tk, _ = xkv_ref.shape
    H, hd, _ = wproj_ref.shape
    cdt = wq_ref.dtype                  # MXU operand dtype (f32 or bf16); accum f32

    qi = pl.program_id(1)
    ki = pl.program_id(2)
    n_kv = pl.num_programs(2)

    # ---- init (once per (batch, q block)): project q, reset online-softmax state.
    @pl.when(ki == 0)
    def _init():
        xq = xq_ref[0].astype(cdt)                                        # (tq, E)
        q2 = jnp.dot(xq, wq_ref[...], preferred_element_type=jnp.float32)  # scale folded
        q_sc[...] = _split_heads(q2, H, hd).astype(cdt)                   # (H, tq, hd)
        m_sc[...] = jnp.full_like(m_sc, -jnp.inf)
        l_sc[...] = jnp.zeros_like(l_sc)
        acc_sc[...] = jnp.zeros_like(acc_sc)

    # ---- one KV tile: fused kv projection + batched-head online-softmax update.
    def _process_kv_tile():
        xkv = xkv_ref[0].astype(cdt)                                      # (tk, E)
        kv2 = jnp.dot(xkv, wkv_ref[...], preferred_element_type=jnp.float32)  # (tk, 2E)
        k_h = _split_heads(kv2[:, :E], H, hd).astype(cdt)                 # (H, tk, hd)
        v_h = _split_heads(kv2[:, E:], H, hd).astype(cdt)                 # (H, tk, hd)
        q_h = q_sc[...]
        s = jnp.einsum("hqd,hkd->hqk", q_h, k_h,
                       preferred_element_type=jnp.float32)                # (H,tq,tk) f32
        if is_causal:
            rows = qi * tq + lax.broadcasted_iota(jnp.int32, (tq, tk), 0)
            cols = ki * tk + lax.broadcasted_iota(jnp.int32, (tq, tk), 1)
            s = jnp.where((rows >= cols)[None], s, NEG_INF)
        m_prev = m_sc[...]
        m_new = jnp.maximum(m_prev, jnp.max(s, axis=-1, keepdims=True))
        alpha = jnp.exp(m_prev - m_new)
        p = jnp.exp(s - m_new)
        l_sc[...] = alpha * l_sc[...] + jnp.sum(p, axis=-1, keepdims=True)
        acc_sc[...] = alpha * acc_sc[...] + jnp.einsum(
            "hqk,hkd->hqd", p.astype(cdt), v_h, preferred_element_type=jnp.float32)
        m_sc[...] = m_new

    if is_causal:
        # Skip KV tiles entirely above the diagonal for this q block.
        @pl.when(ki * tk <= qi * tq + (tq - 1))
        def _():
            _process_kv_tile()
    else:
        _process_kv_tile()

    # ---- finalize (once per (batch, q block)): normalize + output projection.
    @pl.when(ki == n_kv - 1)
    def _finalize():
        o_h = (acc_sc[...] * pl.reciprocal(l_sc[...], approx=True)).astype(cdt)
        # sum_h (o_h @ Wproj[h]) == concat_heads(o) @ Wproj, with no lane concat or
        # transpose.  TODO(synk): at realistic head_dim a single full-width (tq,E)x(E,E)
        # projection (heads interleaved back into lanes) fills the MXU depth better.
        part = jnp.einsum("hqd,hde->hqe", o_h, wproj_ref[...],
                          preferred_element_type=jnp.float32)             # (H, tq, E)
        out = jnp.sum(part, axis=0) + bproj_ref[...]                      # (tq, E) f32
        o_ref[0] = out.astype(o_ref.dtype)


# ----------------------------- pallas_call wrapper -----------------------------
def attention_call(x, context, prep, num_heads, *, is_causal,
                   q_block=128, kv_block=128, out_dtype=None):
    global _BUFFERED_WEIGHTS_OK
    B, N, E = x.shape
    M = context.shape[1]
    hd = E // num_heads
    tq = min(q_block, N)
    tk = min(kv_block, M)
    assert N % tq == 0 and M % tk == 0, "sequence lengths must be multiples of the block sizes"
    assert (tq % 8 == 0 or tq == N) and (tk % 8 == 0 or tk == M)
    n_q, n_kv = N // tq, M // tk
    out_dtype = x.dtype if out_dtype is None else out_dtype
    cdt = prep["wq_t"].dtype

    kernel = functools.partial(_flash_attn_kernel, is_causal)

    def build_and_call(buffered):
        def w_spec(shape):
            zeros = (0,) * len(shape)
            if buffered:
                # Grid-invariant weights: single-buffer to halve their VMEM footprint.
                return pl.BlockSpec(shape, lambda b, qi, ki: zeros,
                                    pipeline_mode=pl.Buffered(1))
            return pl.BlockSpec(shape, lambda b, qi, ki: zeros)

        return pl.pallas_call(
            kernel,
            out_shape=jax.ShapeDtypeStruct((B, N, E), out_dtype),
            grid=(B, n_q, n_kv),
            in_specs=[
                pl.BlockSpec((1, tq, E), lambda b, qi, ki: (b, qi, 0)),   # query rows
                pl.BlockSpec((1, tk, E), lambda b, qi, ki: (b, ki, 0)),   # key/value rows
                w_spec((E, E)),              # Wq^T (1/sqrt(hd) pre-folded)
                w_spec((E, 2 * E)),          # Wkv^T = [Wk^T | Wv^T]
                w_spec((num_heads, hd, E)),  # Wproj^T split per head
                w_spec((1, E)),              # proj bias (f32)
            ],
            out_specs=pl.BlockSpec((1, tq, E), lambda b, qi, ki: (b, qi, 0)),
            scratch_shapes=[
                pltpu.VMEM((num_heads, tq, hd), cdt),          # q cached across KV tiles
                pltpu.VMEM((num_heads, tq, 1), jnp.float32),   # running max
                pltpu.VMEM((num_heads, tq, 1), jnp.float32),   # running denominator
                pltpu.VMEM((num_heads, tq, hd), jnp.float32),  # output accumulator
            ],
            compiler_params=pltpu.CompilerParams(
                dimension_semantics=("parallel", "parallel", "arbitrary"),
                # sized against v7x's 64 MiB physical VMEM (v5e/v6e have 128 MiB)
                vmem_limit_bytes=64 * 1024 * 1024),
        )(x, context, prep["wq_t"], prep["wkv_t"], prep["wproj_h"], prep["bproj"])

    if _BUFFERED_WEIGHTS_OK:
        try:
            return build_and_call(buffered=True)
        except Exception:
            # pl.Buffered(1) not supported on this build -> default double-buffering.
            _BUFFERED_WEIGHTS_OK = False
    return build_and_call(buffered=False)


# ----------------------------- parameter prep (runs ONCE, off the hot path) -----------------------------
def prepare_attention_params(params, num_heads, compute_dtype=jnp.float32):
    """Transpose weights to [in, out], fold 1/sqrt(head_dim) into Wq, keep Wkv fused
    as [Wk | Wv], split Wproj per head, cast MXU operands to compute_dtype."""
    E = params["wq"].shape[1]
    assert E % num_heads == 0
    hd = E // num_heads
    scale = hd ** -0.5
    return {
        "wq_t": (params["wq"].T * scale).astype(compute_dtype),             # (E, E)
        "wkv_t": params["wkv"].T.astype(compute_dtype),                     # (E, 2E)
        "wproj_h": params["wproj"].T.reshape(num_heads, hd, E).astype(compute_dtype),
        "bproj": params["bproj"].reshape(1, E).astype(jnp.float32),
    }


def attention_forward(x, prep, num_heads, *, context=None, is_causal=False,
                      q_block=128, kv_block=128, out_dtype=None):
    """Attention.forward: q from x, k/v from context (context=None -> self-attention)."""
    if context is None:
        context = x
    B, N, E = x.shape
    assert context.shape[0] == B and context.shape[2] == E
    assert E % 128 == 0 and N % 8 == 0 and context.shape[1] % 8 == 0, \
        "pad dim to a multiple of 128 and sequence lengths to multiples of 8"
    # TODO(synk): if sequences are actually zero-padded, padded key positions must be
    #             masked to -inf (not done here: exact multiples are required instead).
    # TODO(synk): attn_mask tensors, kv_cache/return_kv, qk_norm and dropout paths are
    #             not exercised (module defaults / eval).
    return attention_call(x, context, prep, num_heads, is_causal=is_causal,
                          q_block=q_block, kv_block=kv_block, out_dtype=out_dtype)


# ----------------------------- pure-JAX reference -----------------------------
def ref_attention(x, params, num_heads, *, context=None, is_causal=False):
    if context is None:
        context = x
    B, N, E = x.shape
    M = context.shape[1]
    hd = E // num_heads
    q = jnp.einsum("bne,oe->bno", x, params["wq"])
    q = q.reshape(B, N, num_heads, hd).transpose(0, 2, 1, 3)               # (B,H,N,hd)
    kv = jnp.einsum("bme,oe->bmo", context, params["wkv"])
    kv = kv.reshape(B, M, 2, num_heads, hd).transpose(2, 0, 3, 1, 4)       # (2,B,H,M,hd)
    k, v = kv[0], kv[1]
    s = jnp.einsum("bhld,bhmd->bhlm", q, k) * (hd ** -0.5)
    if is_causal:
        mask = jnp.tril(jnp.ones((N, M), bool))
        s = jnp.where(mask[None, None], s, NEG_INF)
    p = jax.nn.softmax(s, axis=-1)
    o = jnp.einsum("bhlm,bhmd->bhld", p, v).transpose(0, 2, 1, 3).reshape(B, N, E)
    return jnp.einsum("bne,oe->bno", o, params["wproj"]) + params["bproj"]


# ----------------------------- main -----------------------------
if __name__ == "__main__":
    B, N, H, E = 4, 16, 8, 128   # batch, seq, heads, dim (lane/sublane aligned)
    M = 24                       # cross-attention context length

    key = jax.random.PRNGKey(0)
    kx, kc, kq, kkv, kp, kb = jax.random.split(key, 6)
    x = jax.random.normal(kx, (B, N, E), jnp.float32)
    ctx = jax.random.normal(kc, (B, M, E), jnp.float32)
    params = {
        "wq": 0.02 * jax.random.normal(kq, (E, E), jnp.float32),
        "wkv": 0.02 * jax.random.normal(kkv, (2 * E, E), jnp.float32),
        "wproj": 0.02 * jax.random.normal(kp, (E, E), jnp.float32),
        "bproj": 0.02 * jax.random.normal(kb, (E,), jnp.float32),
    }

    # One-time parameter prep (reused across every forward call below).
    prep_f32 = prepare_attention_params(params, H, jnp.float32)
    prep_bf16 = prepare_attention_params(params, H, jnp.bfloat16)

    def check(out, ref, atol, rtol, name):
        out = out.astype(jnp.float32)
        if not jnp.allclose(out, ref, atol=atol, rtol=rtol):
            raise AssertionError(
                f"{name} mismatch, max abs err={jnp.max(jnp.abs(out - ref))}")

    # 1) causal self-attention, f32, 8x8 tiles (exercises init / causal-skip /
    #    diagonal-mask / fully-unmasked-tile / finalize paths on a 2x2 tile grid).
    ref_c = ref_attention(x, params, H, is_causal=True)
    out_c = jax.block_until_ready(
        attention_forward(x, prep_f32, H, is_causal=True, q_block=8, kv_block=8))
    assert out_c.shape == (B, N, E), out_c.shape
    check(out_c, ref_c, 2e-3, 2e-3, "causal f32 (tiled)")

    # 2) non-causal self-attention (module default), f32, tiled.
    ref_nc = ref_attention(x, params, H, is_causal=False)
    out_nc = jax.block_until_ready(
        attention_forward(x, prep_f32, H, is_causal=False, q_block=8, kv_block=8))
    check(out_nc, ref_nc, 2e-3, 2e-3, "non-causal f32 (tiled)")

    # 3) non-causal self-attention, f32, untiled (single KV step per q block).
    out_nc1 = jax.block_until_ready(
        attention_forward(x, prep_f32, H, is_causal=False))
    check(out_nc1, ref_nc, 2e-3, 2e-3, "non-causal f32 (untiled)")

    # 4) cross-attention (context != x), non-causal, f32, tiled (n_kv=3).
    ref_x = ref_attention(x, params, H, context=ctx, is_causal=False)
    out_x = jax.block_until_ready(
        attention_forward(x, prep_f32, H, context=ctx, is_causal=False,
                          q_block=8, kv_block=8))
    check(out_x, ref_x, 2e-3, 2e-3, "cross-attention f32")

    # 5) causal, bf16 MXU operands (fast path on v5e/v6e/v7x), f32 output.
    out_bf = jax.block_until_ready(
        attention_forward(x, prep_bf16, H, is_causal=True, q_block=8, kv_block=8,
                          out_dtype=jnp.float32))
    check(out_bf, ref_c, 2e-2, 2e-2, "causal bf16-compute")

    # 6) causal, bf16 operands AND bf16 output writeback (halved output HBM bytes).
    out_bfo = jax.block_until_ready(
        attention_forward(x, prep_bf16, H, is_causal=True, q_block=8, kv_block=8,
                          out_dtype=jnp.bfloat16))
    assert out_bfo.dtype == jnp.bfloat16
    check(out_bfo, ref_c, 3e-2, 3e-2, "causal bf16-compute bf16-out")

    print("KERNEL_OK")
</pallas_src>

<mosaic_0001>
module attributes {stable_mosaic.version = 11 : i64} {
  func.func @_flash_attn_kernel(%arg0: i32, %arg1: i32, %arg2: i32, %arg3: memref<1x8x128xf32, #tpu.memory_space<vmem>>, %arg4: memref<1x8x128xf32, #tpu.memory_space<vmem>>, %arg5: memref<128x128xf32, #tpu.memory_space<vmem>>, %arg6: memref<128x256xf32, #tpu.memory_space<vmem>>, %arg7: memref<8x16x128xf32, #tpu.memory_space<vmem>>, %arg8: memref<1x128xf32, #tpu.memory_space<vmem>>, %arg9: memref<1x8x128xf32, #tpu.memory_space<vmem>>, %arg10: memref<8x8x16xf32, #tpu.memory_space<vmem>>, %arg11: memref<8x8x1xf32, #tpu.memory_space<vmem>>, %arg12: memref<8x8x1xf32, #tpu.memory_space<vmem>>, %arg13: memref<8x8x16xf32, #tpu.memory_space<vmem>>) attributes {dimension_semantics = [#tpu.dimension_semantics<parallel>, #tpu.dimension_semantics<parallel>, #tpu.dimension_semantics<arbitrary>], iteration_bounds = array<i64: 4, 2, 2>, scalar_prefetch = 0 : i64, scratch_operands = 4 : i64, tpu.core_type = #tpu.core_type<tc>, window_params = [{transform_indices = @transform_0, window_bounds = array<i64: 1, 8, 128>}, {transform_indices = @transform_1, window_bounds = array<i64: 1, 8, 128>}, {pipeline_mode = #tpu.pipeline_mode<synchronous>, transform_indices = @transform_2, window_bounds = array<i64: 128, 128>}, {pipeline_mode = #tpu.pipeline_mode<synchronous>, transform_indices = @transform_3, window_bounds = array<i64: 128, 256>}, {pipeline_mode = #tpu.pipeline_mode<synchronous>, transform_indices = @transform_4, window_bounds = array<i64: 8, 16, 128>}, {pipeline_mode = #tpu.pipeline_mode<synchronous>, transform_indices = @transform_5, window_bounds = array<i64: 1, 128>}, {transform_indices = @transform_6, window_bounds = array<i64: 1, 8, 128>}]} {
    %c0_i32 = arith.constant 0 : i32
    %0 = arith.cmpi eq, %arg2, %c0_i32 : i32
    %1 = arith.extui %0 : i1 to i32
    %c0_i32_0 = arith.constant 0 : i32
    %2 = arith.cmpi ne, %1, %c0_i32_0 : i32
    scf.if %2 {
      %c0 = arith.constant 0 : index
      %c0_4 = arith.constant 0 : index
      %c0_5 = arith.constant 0 : index
      %12 = vector.load %arg3[%c0, %c0_4, %c0_5] : memref<1x8x128xf32, #tpu.memory_space<vmem>>, vector<1x8x128xf32>
      %13 = vector.shape_cast %12 : vector<1x8x128xf32> to vector<8x128xf32>
      %c0_6 = arith.constant 0 : index
      %c0_7 = arith.constant 0 : index
      %14 = vector.load %arg5[%c0_6, %c0_7] : memref<128x128xf32, #tpu.memory_space<vmem>>, vector<128x128xf32>
      %cst = arith.constant dense<0.000000e+00> : vector<8x128xf32>
      %15 = tpu.matmul %13, %14, %cst {dimension_numbers = #tpu.dot_dimension_numbers<[1], [0], [0], [1], [0, 0, 1, 1], [], []>} : vector<8x128xf32>, vector<128x128xf32>, vector<8x128xf32> -> vector<8x128xf32>
      %16 = vector.extract_strided_slice %15 {offsets = [0, 0], sizes = [8, 16], strides = [1, 1]} : vector<8x128xf32> to vector<8x16xf32>
      %17 = vector.extract_strided_slice %15 {offsets = [0, 16], sizes = [8, 16], strides = [1, 1]} : vector<8x128xf32> to vector<8x16xf32>
      %18 = vector.extract_strided_slice %15 {offsets = [0, 32], sizes = [8, 16], strides = [1, 1]} : vector<8x128xf32> to vector<8x16xf32>
      %19 = vector.extract_strided_slice %15 {offsets = [0, 48], sizes = [8, 16], strides = [1, 1]} : vector<8x128xf32> to vector<8x16xf32>
      %20 = vector.extract_strided_slice %15 {offsets = [0, 64], sizes = [8, 16], strides = [1, 1]} : vector<8x128xf32> to vector<8x16xf32>
      %21 = vector.extract_strided_slice %15 {offsets = [0, 80], sizes = [8, 16], strides = [1, 1]} : vector<8x128xf32> to vector<8x16xf32>
      %22 = vector.extract_strided_slice %15 {offsets = [0, 96], sizes = [8, 16], strides = [1, 1]} : vector<8x128xf32> to vector<8x16xf32>
      %23 = vector.extract_strided_slice %15 {offsets = [0, 112], sizes = [8, 16], strides = [1, 1]} : vector<8x128xf32> to vector<8x16xf32>
      %24 = vector.shape_cast %16 : vector<8x16xf32> to vector<1x8x16xf32>
      %25 = vector.shape_cast %17 : vector<8x16xf32> to vector<1x8x16xf32>
      %26 = vector.shape_cast %18 : vector<8x16xf32> to vector<1x8x16xf32>
      %27 = vector.shape_cast %19 : vector<8x16xf32> to vector<1x8x16xf32>
      %28 = vector.shape_cast %20 : vector<8x16xf32> to vector<1x8x16xf32>
      %29 = vector.shape_cast %21 : vector<8x16xf32> to vector<1x8x16xf32>
      %30 = vector.shape_cast %22 : vector<8x16xf32> to vector<1x8x16xf32>
      %31 = vector.shape_cast %23 : vector<8x16xf32> to vector<1x8x16xf32>
      %32 = tpu.concatenate %24, %25, %26, %27, %28, %29, %30, %31 in 0 : vector<1x8x16xf32>, vector<1x8x16xf32>, vector<1x8x16xf32>, vector<1x8x16xf32>, vector<1x8x16xf32>, vector<1x8x16xf32>, vector<1x8x16xf32>, vector<1x8x16xf32> -> vector<8x8x16xf32>
      %c0_8 = arith.constant 0 : index
      %c0_9 = arith.constant 0 : index
      %c0_10 = arith.constant 0 : index
      %33 = vector.load %arg10[%c0_8, %c0_9, %c0_10] : memref<8x8x16xf32, #tpu.memory_space<vmem>>, vector<8x8x16xf32>
      tpu.vector_store %arg10[%c0_8, %c0_9, %c0_10], %32 {strides = array<i32>} : memref<8x8x16xf32, #tpu.memory_space<vmem>>, vector<8x8x16xf32>,
      %cst_11 = arith.constant 0xFF800000 : f32
      %34 = vector.broadcast %cst_11 : f32 to vector<8x8x1xf32>
      %c0_12 = arith.constant 0 : index
      %c0_13 = arith.constant 0 : index
      %c0_14 = arith.constant 0 : index
      %35 = vector.load %arg11[%c0_12, %c0_13, %c0_14] : memref<8x8x1xf32, #tpu.memory_space<vmem>>, vector<8x8x1xf32>
      tpu.vector_store %arg11[%c0_12, %c0_13, %c0_14], %34 {strides = array<i32>} : memref<8x8x1xf32, #tpu.memory_space<vmem>>, vector<8x8x1xf32>,
      %cst_15 = arith.constant 0.000000e+00 : f32
      %36 = vector.broadcast %cst_15 : f32 to vector<8x8x1xf32>
      %c0_16 = arith.constant 0 : index
      %c0_17 = arith.constant 0 : index
      %c0_18 = arith.constant 0 : index
      %37 = vector.load %arg12[%c0_16, %c0_17, %c0_18] : memref<8x8x1xf32, #tpu.memory_space<vmem>>, vector<8x8x1xf32>
      tpu.vector_store %arg12[%c0_16, %c0_17, %c0_18], %36 {strides = array<i32>} : memref<8x8x1xf32, #tpu.memory_space<vmem>>, vector<8x8x1xf32>,
      %cst_19 = arith.constant 0.000000e+00 : f32
      %38 = vector.broadcast %cst_19 : f32 to vector<8x8x16xf32>
      %c0_20 = arith.constant 0 : index
      %c0_21 = arith.constant 0 : index
      %c0_22 = arith.constant 0 : index
      %39 = vector.load %arg13[%c0_20, %c0_21, %c0_22] : memref<8x8x16xf32, #tpu.memory_space<vmem>>, vector<8x8x16xf32>
      tpu.vector_store %arg13[%c0_20, %c0_21, %c0_22], %38 {strides = array<i32>} : memref<8x8x16xf32, #tpu.memory_space<vmem>>, vector<8x8x16xf32>,
    } else {
    }
    %c8_i32 = arith.constant 8 : i32
    %3 = arith.muli %arg2, %c8_i32 : i32
    %c8_i32_1 = arith.constant 8 : i32
    %4 = arith.muli %arg1, %c8_i32_1 : i32
    %c7_i32 = arith.constant 7 : i32
    %5 = arith.addi %4, %c7_i32 : i32
    %6 = arith.cmpi sle, %3, %5 : i32
    %7 = arith.extui %6 : i1 to i32
    %c0_i32_2 = arith.constant 0 : i32
    %8 = arith.cmpi ne, %7, %c0_i32_2 : i32
    scf.if %8 {
      %c0 = arith.constant 0 : index
      %c0_4 = arith.constant 0 : index
      %c0_5 = arith.constant 0 : index
      %12 = vector.load %arg4[%c0, %c0_4, %c0_5] : memref<1x8x128xf32, #tpu.memory_space<vmem>>, vector<1x8x128xf32>
      %13 = vector.shape_cast %12 : vector<1x8x128xf32> to vector<8x128xf32>
      %c0_6 = arith.constant 0 : index
      %c0_7 = arith.constant 0 : index
      %14 = vector.load %arg6[%c0_6, %c0_7] : memref<128x256xf32, #tpu.memory_space<vmem>>, vector<128x256xf32>
      %cst = arith.constant dense<0.000000e+00> : vector<8x256xf32>
      %15 = tpu.matmul %13, %14, %cst {dimension_numbers = #tpu.dot_dimension_numbers<[1], [0], [0], [1], [0, 0, 1, 1], [], []>} : vector<8x128xf32>, vector<128x256xf32>, vector<8x256xf32> -> vector<8x256xf32>
      %16 = vector.extract_strided_slice %15 {offsets = [0, 0], sizes = [8, 128], strides = [1, 1]} : vector<8x256xf32> to vector<8x128xf32>
      %17 = vector.extract_strided_slice %16 {offsets = [0, 0], sizes = [8, 16], strides = [1, 1]} : vector<8x128xf32> to vector<8x16xf32>
      %18 = vector.extract_strided_slice %16 {offsets = [0, 16], sizes = [8, 16], strides = [1, 1]} : vector<8x128xf32> to vector<8x16xf32>
      %19 = vector.extract_strided_slice %16 {offsets = [0, 32], sizes = [8, 16], strides = [1, 1]} : vector<8x128xf32> to vector<8x16xf32>
      %20 = vector.extract_strided_slice %16 {offsets = [0, 48], sizes = [8, 16], strides = [1, 1]} : vector<8x128xf32> to vector<8x16xf32>
      %21 = vector.extract_strided_slice %16 {offsets = [0, 64], sizes = [8, 16], strides = [1, 1]} : vector<8x128xf32> to vector<8x16xf32>
      %22 = vector.extract_strided_slice %16 {offsets = [0, 80], sizes = [8, 16], strides = [1, 1]} : vector<8x128xf32> to vector<8x16xf32>
      %23 = vector.extract_strided_slice %16 {offsets = [0, 96], sizes = [8, 16], strides = [1, 1]} : vector<8x128xf32> to vector<8x16xf32>
      %24 = vector.extract_strided_slice %16 {offsets = [0, 112], sizes = [8, 16], strides = [1, 1]} : vector<8x128xf32> to vector<8x16xf32>
      %25 = vector.shape_cast %17 : vector<8x16xf32> to vector<1x8x16xf32>
      %26 = vector.shape_cast %18 : vector<8x16xf32> to vector<1x8x16xf32>
      %27 = vector.shape_cast %19 : vector<8x16xf32> to vector<1x8x16xf32>
      %28 = vector.shape_cast %20 : vector<8x16xf32> to vector<1x8x16xf32>
      %29 = vector.shape_cast %21 : vector<8x16xf32> to vector<1x8x16xf32>
      %30 = vector.shape_cast %22 : vector<8x16xf32> to vector<1x8x16xf32>
      %31 = vector.shape_cast %23 : vector<8x16xf32> to vector<1x8x16xf32>
      %32 = vector.shape_cast %24 : vector<8x16xf32> to vector<1x8x16xf32>
      %33 = tpu.concatenate %25, %26, %27, %28, %29, %30, %31, %32 in 0 : vector<1x8x16xf32>, vector<1x8x16xf32>, vector<1x8x16xf32>, vector<1x8x16xf32>, vector<1x8x16xf32>, vector<1x8x16xf32>, vector<1x8x16xf32>, vector<1x8x16xf32> -> vector<8x8x16xf32>
      %34 = vector.extract_strided_slice %15 {offsets = [0, 128], sizes = [8, 128], strides = [1, 1]} : vector<8x256xf32> to vector<8x128xf32>
      %35 = vector.extract_strided_slice %34 {offsets = [0, 0], sizes = [8, 16], strides = [1, 1]} : vector<8x128xf32> to vector<8x16xf32>
      %36 = vector.extract_strided_slice %34 {offsets = [0, 16], sizes = [8, 16], strides = [1, 1]} : vector<8x128xf32> to vector<8x16xf32>
      %37 = vector.extract_strided_slice %34 {offsets = [0, 32], sizes = [8, 16], strides = [1, 1]} : vector<8x128xf32> to vector<8x16xf32>
      %38 = vector.extract_strided_slice %34 {offsets = [0, 48], sizes = [8, 16], strides = [1, 1]} : vector<8x128xf32> to vector<8x16xf32>
      %39 = vector.extract_strided_slice %34 {offsets = [0, 64], sizes = [8, 16], strides = [1, 1]} : vector<8x128xf32> to vector<8x16xf32>
      %40 = vector.extract_strided_slice %34 {offsets = [0, 80], sizes = [8, 16], strides = [1, 1]} : vector<8x128xf32> to vector<8x16xf32>
      %41 = vector.extract_strided_slice %34 {offsets = [0, 96], sizes = [8, 16], strides = [1, 1]} : vector<8x128xf32> to vector<8x16xf32>
      %42 = vector.extract_strided_slice %34 {offsets = [0, 112], sizes = [8, 16], strides = [1, 1]} : vector<8x128xf32> to vector<8x16xf32>
      %43 = vector.shape_cast %35 : vector<8x16xf32> to vector<1x8x16xf32>
      %44 = vector.shape_cast %36 : vector<8x16xf32> to vector<1x8x16xf32>
      %45 = vector.shape_cast %37 : vector<8x16xf32> to vector<1x8x16xf32>
      %46 = vector.shape_cast %38 : vector<8x16xf32> to vector<1x8x16xf32>
      %47 = vector.shape_cast %39 : vector<8x16xf32> to vector<1x8x16xf32>
      %48 = vector.shape_cast %40 : vector<8x16xf32> to vector<1x8x16xf32>
      %49 = vector.shape_cast %41 : vector<8x16xf32> to vector<1x8x16xf32>
      %50 = vector.shape_cast %42 : vector<8x16xf32> to vector<1x8x16xf32>
      %51 = tpu.concatenate %43, %44, %45, %46, %47, %48, %49, %50 in 0 : vector<1x8x16xf32>, vector<1x8x16xf32>, vector<1x8x16xf32>, vector<1x8x16xf32>, vector<1x8x16xf32>, vector<1x8x16xf32>, vector<1x8x16xf32>, vector<1x8x16xf32> -> vector<8x8x16xf32>
      %c0_8 = arith.constant 0 : index
      %c0_9 = arith.constant 0 : index
      %c0_10 = arith.constant 0 : index
      %52 = vector.load %arg10[%c0_8, %c0_9, %c0_10] : memref<8x8x16xf32, #tpu.memory_space<vmem>>, vector<8x8x16xf32>
      "tpu.trace_start"() <{level = 10 : i32, message = "hqd,hkd->hqk"}> : () -> ()
      %cst_11 = arith.constant dense<0.000000e+00> : vector<8x8x8xf32>
      %53 = tpu.matmul %52, %33, %cst_11 {dimension_numbers = #tpu.dot_dimension_numbers<[2], [2], [1], [1], [0, 0, 0, 1, 1, 1], [0], [0]>} : vector<8x8x16xf32>, vector<8x8x16xf32>, vector<8x8x8xf32> -> vector<8x8x8xf32>
      "tpu.trace_stop"() : () -> ()
      %c8_i32_12 = arith.constant 8 : i32
      %54 = arith.muli %arg1, %c8_i32_12 : i32
      %55 = tpu.iota {dimensions = array<i32: 0>} : vector<8x8xi32>
      %56 = vector.broadcast %54 : i32 to vector<8x8xi32>
      %57 = arith.addi %56, %55 : vector<8x8xi32>
      %c8_i32_13 = arith.constant 8 : i32
      %58 = arith.muli %arg2, %c8_i32_13 : i32
      %59 = tpu.iota {dimensions = array<i32: 1>} : vector<8x8xi32>
      %60 = vector.broadcast %58 : i32 to vector<8x8xi32>
      %61 = arith.addi %60, %59 : vector<8x8xi32>
      %62 = arith.cmpi sge, %57, %61 : vector<8x8xi32>
      %63 = vector.shape_cast %62 : vector<8x8xi1> to vector<1x8x8xi1>
      %cst_14 = arith.constant -1.000000e+30 : f32
      %64 = vector.shape_cast %63 : vector<1x8x8xi1> to vector<1x8x8xi1>
      %65 = vector.broadcast %64 : vector<1x8x8xi1> to vector<8x8x8xi1>
      %66 = vector.broadcast %cst_14 : f32 to vector<8x8x8xf32>
      %67 = arith.select %65, %53, %66 : vector<8x8x8xi1>, vector<8x8x8xf32>
      %c0_15 = arith.constant 0 : index
      %c0_16 = arith.constant 0 : index
      %c0_17 = arith.constant 0 : index
      %68 = vector.load %arg11[%c0_15, %c0_16, %c0_17] : memref<8x8x1xf32, #tpu.memory_space<vmem>>, vector<8x8x1xf32>
      %cst_18 = arith.constant dense<0xFF800000> : vector<8x8xf32>
      %69 = vector.multi_reduction <maximumf>, %67, %cst_18 [2] : vector<8x8x8xf32> to vector<8x8xf32>
      %70 = vector.shape_cast %69 : vector<8x8xf32> to vector<8x8x1xf32>
      %71 = arith.maximumf %68, %70 : vector<8x8x1xf32>
      %72 = arith.subf %68, %71 : vector<8x8x1xf32>
      %73 = math.exp %72 : vector<8x8x1xf32>
      %74 = vector.broadcast %71 : vector<8x8x1xf32> to vector<8x8x8xf32>
      %75 = arith.subf %67, %74 : vector<8x8x8xf32>
      %76 = math.exp %75 : vector<8x8x8xf32>
      %c0_19 = arith.constant 0 : index
      %c0_20 = arith.constant 0 : index
      %c0_21 = arith.constant 0 : index
      %77 = vector.load %arg12[%c0_19, %c0_20, %c0_21] : memref<8x8x1xf32, #tpu.memory_space<vmem>>, vector<8x8x1xf32>
      %78 = arith.mulf %73, %77 : vector<8x8x1xf32>
      %cst_22 = arith.constant dense<0.000000e+00> : vector<8x8xf32>
      %79 = vector.multi_reduction <add>, %76, %cst_22 [2] : vector<8x8x8xf32> to vector<8x8xf32>
      %80 = vector.shape_cast %79 : vector<8x8xf32> to vector<8x8x1xf32>
      %81 = arith.addf %78, %80 : vector<8x8x1xf32>
      %c0_23 = arith.constant 0 : index
      %c0_24 = arith.constant 0 : index
      %c0_25 = arith.constant 0 : index
      %82 = vector.load %arg12[%c0_23, %c0_24, %c0_25] : memref<8x8x1xf32, #tpu.memory_space<vmem>>, vector<8x8x1xf32>
      tpu.vector_store %arg12[%c0_23, %c0_24, %c0_25], %81 {strides = array<i32>} : memref<8x8x1xf32, #tpu.memory_space<vmem>>, vector<8x8x1xf32>,
      %c0_26 = arith.constant 0 : index
      %c0_27 = arith.constant 0 : index
      %c0_28 = arith.constant 0 : index
      %83 = vector.load %arg13[%c0_26, %c0_27, %c0_28] : memref<8x8x16xf32, #tpu.memory_space<vmem>>, vector<8x8x16xf32>
      %84 = vector.broadcast %73 : vector<8x8x1xf32> to vector<8x8x16xf32>
      %85 = arith.mulf %84, %83 : vector<8x8x16xf32>
      "tpu.trace_start"() <{level = 10 : i32, message = "hqk,hkd->hqd"}> : () -> ()
      %cst_29 = arith.constant dense<0.000000e+00> : vector<8x8x16xf32>
      %86 = tpu.matmul %76, %51, %cst_29 {dimension_numbers = #tpu.dot_dimension_numbers<[2], [1], [1], [2], [0, 0, 0, 1, 1, 2], [0], [0]>} : vector<8x8x8xf32>, vector<8x8x16xf32>, vector<8x8x16xf32> -> vector<8x8x16xf32>
      "tpu.trace_stop"() : () -> ()
      %87 = arith.addf %85, %86 : vector<8x8x16xf32>
      %c0_30 = arith.constant 0 : index
      %c0_31 = arith.constant 0 : index
      %c0_32 = arith.constant 0 : index
      %88 = vector.load %arg13[%c0_30, %c0_31, %c0_32] : memref<8x8x16xf32, #tpu.memory_space<vmem>>, vector<8x8x16xf32>
      tpu.vector_store %arg13[%c0_30, %c0_31, %c0_32], %87 {strides = array<i32>} : memref<8x8x16xf32, #tpu.memory_space<vmem>>, vector<8x8x16xf32>,
      %c0_33 = arith.constant 0 : index
      %c0_34 = arith.constant 0 : index
      %c0_35 = arith.constant 0 : index
      %89 = vector.load %arg11[%c0_33, %c0_34, %c0_35] : memref<8x8x1xf32, #tpu.memory_space<vmem>>, vector<8x8x1xf32>
      tpu.vector_store %arg11[%c0_33, %c0_34, %c0_35], %71 {strides = array<i32>} : memref<8x8x1xf32, #tpu.memory_space<vmem>>, vector<8x8x1xf32>,
    } else {
    }
    %c1_i32 = arith.constant 1 : i32
    %9 = arith.cmpi eq, %arg2, %c1_i32 : i32
    %10 = arith.extui %9 : i1 to i32
    %c0_i32_3 = arith.constant 0 : i32
    %11 = arith.cmpi ne, %10, %c0_i32_3 : i32
    scf.if %11 {
      %c0 = arith.constant 0 : index
      %c0_4 = arith.constant 0 : index
      %c0_5 = arith.constant 0 : index
      %12 = vector.load %arg13[%c0, %c0_4, %c0_5] : memref<8x8x16xf32, #tpu.memory_space<vmem>>, vector<8x8x16xf32>
      %c0_6 = arith.constant 0 : index
      %c0_7 = arith.constant 0 : index
      %c0_8 = arith.constant 0 : index
      %13 = vector.load %arg12[%c0_6, %c0_7, %c0_8] : memref<8x8x1xf32, #tpu.memory_space<vmem>>, vector<8x8x1xf32>
      %14 = tpu.reciprocal %13 {approx = true} : vector<8x8x1xf32> -> vector<8x8x1xf32>
      %15 = vector.broadcast %14 : vector<8x8x1xf32> to vector<8x8x16xf32>
      %16 = arith.mulf %12, %15 : vector<8x8x16xf32>
      %c0_9 = arith.constant 0 : index
      %c0_10 = arith.constant 0 : index
      %c0_11 = arith.constant 0 : index
      %17 = vector.load %arg7[%c0_9, %c0_10, %c0_11] : memref<8x16x128xf32, #tpu.memory_space<vmem>>, vector<8x16x128xf32>
      "tpu.trace_start"() <{level = 10 : i32, message = "hqd,hde->hqe"}> : () -> ()
      %cst = arith.constant dense<0.000000e+00> : vector<8x8x128xf32>
      %18 = tpu.matmul %16, %17, %cst {dimension_numbers = #tpu.dot_dimension_numbers<[2], [1], [1], [2], [0, 0, 0, 1, 1, 2], [0], [0]>} : vector<8x8x16xf32>, vector<8x16x128xf32>, vector<8x8x128xf32> -> vector<8x8x128xf32>
      "tpu.trace_stop"() : () -> ()
      %cst_12 = arith.constant dense<0.000000e+00> : vector<8x128xf32>
      %19 = vector.multi_reduction <add>, %18, %cst_12 [0] : vector<8x8x128xf32> to vector<8x128xf32>
      %c0_13 = arith.constant 0 : index
      %c0_14 = arith.constant 0 : index
      %20 = vector.load %arg8[%c0_13, %c0_14] : memref<1x128xf32, #tpu.memory_space<vmem>>, vector<1x128xf32>
      %21 = vector.broadcast %20 : vector<1x128xf32> to vector<8x128xf32>
      %22 = arith.addf %19, %21 : vector<8x128xf32>
      %c0_15 = arith.constant 0 : index
      %c0_16 = arith.constant 0 : index
      %c0_17 = arith.constant 0 : index
      %23 = vector.load %arg9[%c0_15, %c0_16, %c0_17] : memref<1x8x128xf32, #tpu.memory_space<vmem>>, vector<1x8x128xf32>
      %24 = vector.shape_cast %23 : vector<1x8x128xf32> to vector<8x128xf32>
      %25 = vector.shape_cast %22 : vector<8x128xf32> to vector<1x8x128xf32>
      tpu.vector_store %arg9[%c0_15, %c0_16, %c0_17], %25 {strides = array<i32>} : memref<1x8x128xf32, #tpu.memory_space<vmem>>, vector<1x8x128xf32>,
    } else {
    }
    return
  }
  func.func @transform_0(%arg0: i32, %arg1: i32, %arg2: i32) -> (i32, i32, i32) {
    %c0_i32 = arith.constant 0 : i32
    %c0_i32_0 = arith.constant 0 : i32
    return %arg0, %arg1, %c0_i32 : i32, i32, i32
  }
  func.func @transform_1(%arg0: i32, %arg1: i32, %arg2: i32) -> (i32, i32, i32) {
    %c0_i32 = arith.constant 0 : i32
    %c0_i32_0 = arith.constant 0 : i32
    return %arg0, %arg2, %c0_i32 : i32, i32, i32
  }
  func.func @transform_2(%arg0: i32, %arg1: i32, %arg2: i32) -> (i32, i32) {
    %c0_i32 = arith.constant 0 : i32
    %c0_i32_0 = arith.constant 0 : i32
    %c0_i32_1 = arith.constant 0 : i32
    return %c0_i32, %c0_i32_0 : i32, i32
  }
  func.func @transform_3(%arg0: i32, %arg1: i32, %arg2: i32) -> (i32, i32) {
    %c0_i32 = arith.constant 0 : i32
    %c0_i32_0 = arith.constant 0 : i32
    %c0_i32_1 = arith.constant 0 : i32
    return %c0_i32, %c0_i32_0 : i32, i32
  }
  func.func @transform_4(%arg0: i32, %arg1: i32, %arg2: i32) -> (i32, i32, i32) {
    %c0_i32 = arith.constant 0 : i32
    %c0_i32_0 = arith.constant 0 : i32
    %c0_i32_1 = arith.constant 0 : i32
    %c0_i32_2 = arith.constant 0 : i32
    return %c0_i32, %c0_i32_0, %c0_i32_1 : i32, i32, i32
  }
  func.func @transform_5(%arg0: i32, %arg1: i32, %arg2: i32) -> (i32, i32) {
    %c0_i32 = arith.constant 0 : i32
    %c0_i32_0 = arith.constant 0 : i32
    %c0_i32_1 = arith.constant 0 : i32
    return %c0_i32, %c0_i32_0 : i32, i32
  }
  func.func @transform_6(%arg0: i32, %arg1: i32, %arg2: i32) -> (i32, i32, i32) {
    %c0_i32 = arith.constant 0 : i32
    %c0_i32_0 = arith.constant 0 : i32
    return %arg0, %arg1, %c0_i32 : i32, i32, i32
  }
}

module attributes {stable_mosaic.version = 11 : i64} {
  func.func @_flash_attn_kernel(%arg0: i32, %arg1: i32, %arg2: i32, %arg3: memref<1x8x128xf32, #tpu.memory_space<vmem>>, %arg4: memref<1x8x128xf32, #tpu.memory_space<vmem>>, %arg5: memref<128x128xf32, #tpu.memory_space<vmem>>, %arg6: memref<128x256xf32, #tpu.memory_space<vmem>>, %arg7: memref<8x16x128xf32, #tpu.memory_space<vmem>>, %arg8: memref<1x128xf32, #tpu.memory_space<vmem>>, %arg9: memref<1x8x128xf32, #tpu.memory_space<vmem>>, %arg10: memref<8x8x16xf32, #tpu.memory_space<vmem>>, %arg11: memref<8x8x1xf32, #tpu.memory_space<vmem>>, %arg12: memref<8x8x1xf32, #tpu.memory_space<vmem>>, %arg13: memref<8x8x16xf32, #tpu.memory_space<vmem>>) attributes {dimension_semantics = [#tpu.dimension_semantics<parallel>, #tpu.dimension_semantics<parallel>, #tpu.dimension_semantics<arbitrary>], iteration_bounds = array<i64: 4, 2, 2>, scalar_prefetch = 0 : i64, scratch_operands = 4 : i64, tpu.core_type = #tpu.core_type<tc>, window_params = [{transform_indices = @transform_0, window_bounds = array<i64: 1, 8, 128>}, {transform_indices = @transform_1, window_bounds = array<i64: 1, 8, 128>}, {pipeline_mode = #tpu.pipeline_mode<synchronous>, transform_indices = @transform_2, window_bounds = array<i64: 128, 128>}, {pipeline_mode = #tpu.pipeline_mode<synchronous>, transform_indices = @transform_3, window_bounds = array<i64: 128, 256>}, {pipeline_mode = #tpu.pipeline_mode<synchronous>, transform_indices = @transform_4, window_bounds = array<i64: 8, 16, 128>}, {pipeline_mode = #tpu.pipeline_mode<synchronous>, transform_indices = @transform_5, window_bounds = array<i64: 1, 128>}, {transform_indices = @transform_6, window_bounds = array<i64: 1, 8, 128>}]} {
    %c0_i32 = arith.constant 0 : i32
    %0 = arith.cmpi eq, %arg2, %c0_i32 : i32
    %1 = arith.extui %0 : i1 to i32
    %c0_i32_0 = arith.constant 0 : i32
    %2 = arith.cmpi ne, %1, %c0_i32_0 : i32
    scf.if %2 {
      %c0 = arith.constant 0 : index
      %c0_4 = arith.constant 0 : index
      %c0_5 = arith.constant 0 : index
      %12 = vector.load %arg3[%c0, %c0_4, %c0_5] : memref<1x8x128xf32, #tpu.memory_space<vmem>>, vector<1x8x128xf32>
      %13 = vector.shape_cast %12 : vector<1x8x128xf32> to vector<8x128xf32>
      %c0_6 = arith.constant 0 : index
      %c0_7 = arith.constant 0 : index
      %14 = vector.load %arg5[%c0_6, %c0_7] : memref<128x128xf32, #tpu.memory_space<vmem>>, vector<128x128xf32>
      %cst = arith.constant dense<0.000000e+00> : vector<8x128xf32>
      %15 = tpu.matmul %13, %14, %cst {dimension_numbers = #tpu.dot_dimension_numbers<[1], [0], [0], [1], [0, 0, 1, 1], [], []>} : vector<8x128xf32>, vector<128x128xf32>, vector<8x128xf32> -> vector<8x128xf32>
      %16 = vector.extract_strided_slice %15 {offsets = [0, 0], sizes = [8, 16], strides = [1, 1]} : vector<8x128xf32> to vector<8x16xf32>
      %17 = vector.extract_strided_slice %15 {offsets = [0, 16], sizes = [8, 16], strides = [1, 1]} : vector<8x128xf32> to vector<8x16xf32>
      %18 = vector.extract_strided_slice %15 {offsets = [0, 32], sizes = [8, 16], strides = [1, 1]} : vector<8x128xf32> to vector<8x16xf32>
      %19 = vector.extract_strided_slice %15 {offsets = [0, 48], sizes = [8, 16], strides = [1, 1]} : vector<8x128xf32> to vector<8x16xf32>
      %20 = vector.extract_strided_slice %15 {offsets = [0, 64], sizes = [8, 16], strides = [1, 1]} : vector<8x128xf32> to vector<8x16xf32>
      %21 = vector.extract_strided_slice %15 {offsets = [0, 80], sizes = [8, 16], strides = [1, 1]} : vector<8x128xf32> to vector<8x16xf32>
      %22 = vector.extract_strided_slice %15 {offsets = [0, 96], sizes = [8, 16], strides = [1, 1]} : vector<8x128xf32> to vector<8x16xf32>
      %23 = vector.extract_strided_slice %15 {offsets = [0, 112], sizes = [8, 16], strides = [1, 1]} : vector<8x128xf32> to vector<8x16xf32>
      %24 = vector.shape_cast %16 : vector<8x16xf32> to vector<1x8x16xf32>
      %25 = vector.shape_cast %17 : vector<8x16xf32> to vector<1x8x16xf32>
      %26 = vector.shape_cast %18 : vector<8x16xf32> to vector<1x8x16xf32>
      %27 = vector.shape_cast %19 : vector<8x16xf32> to vector<1x8x16xf32>
      %28 = vector.shape_cast %20 : vector<8x16xf32> to vector<1x8x16xf32>
      %29 = vector.shape_cast %21 : vector<8x16xf32> to vector<1x8x16xf32>
      %30 = vector.shape_cast %22 : vector<8x16xf32> to vector<1x8x16xf32>
      %31 = vector.shape_cast %23 : vector<8x16xf32> to vector<1x8x16xf32>
      %32 = tpu.concatenate %24, %25, %26, %27, %28, %29, %30, %31 in 0 : vector<1x8x16xf32>, vector<1x8x16xf32>, vector<1x8x16xf32>, vector<1x8x16xf32>, vector<1x8x16xf32>, vector<1x8x16xf32>, vector<1x8x16xf32>, vector<1x8x16xf32> -> vector<8x8x16xf32>
      %c0_8 = arith.constant 0 : index
      %c0_9 = arith.constant 0 : index
      %c0_10 = arith.constant 0 : index
      %33 = vector.load %arg10[%c0_8, %c0_9, %c0_10] : memref<8x8x16xf32, #tpu.memory_space<vmem>>, vector<8x8x16xf32>
      tpu.vector_store %arg10[%c0_8, %c0_9, %c0_10], %32 {strides = array<i32>} : memref<8x8x16xf32, #tpu.memory_space<vmem>>, vector<8x8x16xf32>,
      %cst_11 = arith.constant 0xFF800000 : f32
      %34 = vector.broadcast %cst_11 : f32 to vector<8x8x1xf32>
      %c0_12 = arith.constant 0 : index
      %c0_13 = arith.constant 0 : index
      %c0_14 = arith.constant 0 : index
      %35 = vector.load %arg11[%c0_12, %c0_13, %c0_14] : memref<8x8x1xf32, #tpu.memory_space<vmem>>, vector<8x8x1xf32>
      tpu.vector_store %arg11[%c0_12, %c0_13, %c0_14], %34 {strides = array<i32>} : memref<8x8x1xf32, #tpu.memory_space<vmem>>, vector<8x8x1xf32>,
      %cst_15 = arith.constant 0.000000e+00 : f32
      %36 = vector.broadcast %cst_15 : f32 to vector<8x8x1xf32>
      %c0_16 = arith.constant 0 : index
      %c0_17 = arith.constant 0 : index
      %c0_18 = arith.constant 0 : index
      %37 = vector.load %arg12[%c0_16, %c0_17, %c0_18] : memref<8x8x1xf32, #tpu.memory_space<vmem>>, vector<8x8x1xf32>
      tpu.vector_store %arg12[%c0_16, %c0_17, %c0_18], %36 {strides = array<i32>} : memref<8x8x1xf32, #tpu.memory_space<vmem>>, vector<8x8x1xf32>,
      %cst_19 = arith.constant 0.000000e+00 : f32
      %38 = vector.broadcast %cst_19 : f32 to vector<8x8x16xf32>
      %c0_20 = arith.constant 0 : index
      %c0_21 = arith.constant 0 : index
      %c0_22 = arith.constant 0 : index
      %39 = vector.load %arg13[%c0_20, %c0_21, %c0_22] : memref<8x8x16xf32, #tpu.memory_space<vmem>>, vector<8x8x16xf32>
      tpu.vector_store %arg13[%c0_20, %c0_21, %c0_22], %38 {strides = array<i32>} : memref<8x8x16xf32, #tpu.memory_space<vmem>>, vector<8x8x16xf32>,
    } else {
    }
    %c8_i32 = arith.constant 8 : i32
    %3 = arith.muli %arg2, %c8_i32 : i32
    %c8_i32_1 = arith.constant 8 : i32
    %4 = arith.muli %arg1, %c8_i32_1 : i32
    %c7_i32 = arith.constant 7 : i32
    %5 = arith.addi %4, %c7_i32 : i32
    %6 = arith.cmpi sle, %3, %5 : i32
    %7 = arith.extui %6 : i1 to i32
    %c0_i32_2 = arith.constant 0 : i32
    %8 = arith.cmpi ne, %7, %c0_i32_2 : i32
    scf.if %8 {
      %c0 = arith.constant 0 : index
      %c0_4 = arith.constant 0 : index
      %c0_5 = arith.constant 0 : index
      %12 = vector.load %arg4[%c0, %c0_4, %c0_5] : memref<1x8x128xf32, #tpu.memory_space<vmem>>, vector<1x8x128xf32>
      %13 = vector.shape_cast %12 : vector<1x8x128xf32> to vector<8x128xf32>
      %c0_6 = arith.constant 0 : index
      %c0_7 = arith.constant 0 : index
      %14 = vector.load %arg6[%c0_6, %c0_7] : memref<128x256xf32, #tpu.memory_space<vmem>>, vector<128x256xf32>
      %cst = arith.constant dense<0.000000e+00> : vector<8x256xf32>
      %15 = tpu.matmul %13, %14, %cst {dimension_numbers = #tpu.dot_dimension_numbers<[1], [0], [0], [1], [0, 0, 1, 1], [], []>} : vector<8x128xf32>, vector<128x256xf32>, vector<8x256xf32> -> vector<8x256xf32>
      %16 = vector.extract_strided_slice %15 {offsets = [0, 0], sizes = [8, 128], strides = [1, 1]} : vector<8x256xf32> to vector<8x128xf32>
      %17 = vector.extract_strided_slice %16 {offsets = [0, 0], sizes = [8, 16], strides = [1, 1]} : vector<8x128xf32> to vector<8x16xf32>
      %18 = vector.extract_strided_slice %16 {offsets = [0, 16], sizes = [8, 16], strides = [1, 1]} : vector<8x128xf32> to vector<8x16xf32>
      %19 = vector.extract_strided_slice %16 {offsets = [0, 32], sizes = [8, 16], strides = [1, 1]} : vector<8x128xf32> to vector<8x16xf32>
      %20 = vector.extract_strided_slice %16 {offsets = [0, 48], sizes = [8, 16], strides = [1, 1]} : vector<8x128xf32> to vector<8x16xf32>
      %21 = vector.extract_strided_slice %16 {offsets = [0, 64], sizes = [8, 16], strides = [1, 1]} : vector<8x128xf32> to vector<8x16xf32>
      %22 = vector.extract_strided_slice %16 {offsets = [0, 80], sizes = [8, 16], strides = [1, 1]} : vector<8x128xf32> to vector<8x16xf32>
      %23 = vector.extract_strided_slice %16 {offsets = [0, 96], sizes = [8, 16], strides = [1, 1]} : vector<8x128xf32> to vector<8x16xf32>
      %24 = vector.extract_strided_slice %16 {offsets = [0, 112], sizes = [8, 16], strides = [1, 1]} : vector<8x128xf32> to vector<8x16xf32>
      %25 = vector.shape_cast %17 : vector<8x16xf32> to vector<1x8x16xf32>
      %26 = vector.shape_cast %18 : vector<8x16xf32> to vector<1x8x16xf32>
      %27 = vector.shape_cast %19 : vector<8x16xf32> to vector<1x8x16xf32>
      %28 = vector.shape_cast %20 : vector<8x16xf32> to vector<1x8x16xf32>
      %29 = vector.shape_cast %21 : vector<8x16xf32> to vector<1x8x16xf32>
      %30 = vector.shape_cast %22 : vector<8x16xf32> to vector<1x8x16xf32>
      %31 = vector.shape_cast %23 : vector<8x16xf32> to vector<1x8x16xf32>
      %32 = vector.shape_cast %24 : vector<8x16xf32> to vector<1x8x16xf32>
      %33 = tpu.concatenate %25, %26, %27, %28, %29, %30, %31, %32 in 0 : vector<1x8x16xf32>, vector<1x8x16xf32>, vector<1x8x16xf32>, vector<1x8x16xf32>, vector<1x8x16xf32>, vector<1x8x16xf32>, vector<1x8x16xf32>, vector<1x8x16xf32> -> vector<8x8x16xf32>
      %34 = vector.extract_strided_slice %15 {offsets = [0, 128], sizes = [8, 128], strides = [1, 1]} : vector<8x256xf32> to vector<8x128xf32>
      %35 = vector.extract_strided_slice %34 {offsets = [0, 0], sizes = [8, 16], strides = [1, 1]} : vector<8x128xf32> to vector<8x16xf32>
      %36 = vector.extract_strided_slice %34 {offsets = [0, 16], sizes = [8, 16], strides = [1, 1]} : vector<8x128xf32> to vector<8x16xf32>
      %37 = vector.extract_strided_slice %34 {offsets = [0, 32], sizes = [8, 16], strides = [1, 1]} : vector<8x128xf32> to vector<8x16xf32>
      %38 = vector.extract_strided_slice %34 {offsets = [0, 48], sizes = [8, 16], strides = [1, 1]} : vector<8x128xf32> to vector<8x16xf32>
      %39 = vector.extract_strided_slice %34 {offsets = [0, 64], sizes = [8, 16], strides = [1, 1]} : vector<8x128xf32> to vector<8x16xf32>
      %40 = vector.extract_strided_slice %34 {offsets = [0, 80], sizes = [8, 16], strides = [1, 1]} : vector<8x128xf32> to vector<8x16xf32>
      %41 = vector.extract_strided_slice %34 {offsets = [0, 96], sizes = [8, 16], strides = [1, 1]} : vector<8x128xf32> to vector<8x16xf32>
      %42 = vector.extract_strided_slice %34 {offsets = [0, 112], sizes = [8, 16], strides = [1, 1]} : vector<8x128xf32> to vector<8x16xf32>
      %43 = vector.shape_cast %35 : vector<8x16xf32> to vector<1x8x16xf32>
      %44 = vector.shape_cast %36 : vector<8x16xf32> to vector<1x8x16xf32>
      %45 = vector.shape_cast %37 : vector<8x16xf32> to vector<1x8x16xf32>
      %46 = vector.shape_cast %38 : vector<8x16xf32> to vector<1x8x16xf32>
      %47 = vector.shape_cast %39 : vector<8x16xf32> to vector<1x8x16xf32>
      %48 = vector.shape_cast %40 : vector<8x16xf32> to vector<1x8x16xf32>
      %49 = vector.shape_cast %41 : vector<8x16xf32> to vector<1x8x16xf32>
      %50 = vector.shape_cast %42 : vector<8x16xf32> to vector<1x8x16xf32>
      %51 = tpu.concatenate %43, %44, %45, %46, %47, %48, %49, %50 in 0 : vector<1x8x16xf32>, vector<1x8x16xf32>, vector<1x8x16xf32>, vector<1x8x16xf32>, vector<1x8x16xf32>, vector<1x8x16xf32>, vector<1x8x16xf32>, vector<1x8x16xf32> -> vector<8x8x16xf32>
      %c0_8 = arith.constant 0 : index
      %c0_9 = arith.constant 0 : index
      %c0_10 = arith.constant 0 : index
      %52 = vector.load %arg10[%c0_8, %c0_9, %c0_10] : memref<8x8x16xf32, #tpu.memory_space<vmem>>, vector<8x8x16xf32>
      "tpu.trace_start"() <{level = 10 : i32, message = "hqd,hkd->hqk"}> : () -> ()
      %cst_11 = arith.constant dense<0.000000e+00> : vector<8x8x8xf32>
      %53 = tpu.matmul %52, %33, %cst_11 {dimension_numbers = #tpu.dot_dimension_numbers<[2], [2], [1], [1], [0, 0, 0, 1, 1, 1], [0], [0]>} : vector<8x8x16xf32>, vector<8x8x16xf32>, vector<8x8x8xf32> -> vector<8x8x8xf32>
      "tpu.trace_stop"() : () -> ()
      %c8_i32_12 = arith.constant 8 : i32
      %54 = arith.muli %arg1, %c8_i32_12 : i32
      %55 = tpu.iota {dimensions = array<i32: 0>} : vector<8x8xi32>
      %56 = vector.broadcast %54 : i32 to vector<8x8xi32>
      %57 = arith.addi %56, %55 : vector<8x8xi32>
      %c8_i32_13 = arith.constant 8 : i32
      %58 = arith.muli %arg2, %c8_i32_13 : i32
      %59 = tpu.iota {dimensions = array<i32: 1>} : vector<8x8xi32>
      %60 = vector.broadcast %58 : i32 to vector<8x8xi32>
      %61 = arith.addi %60, %59 : vector<8x8xi32>
      %62 = arith.cmpi sge, %57, %61 : vector<8x8xi32>
      %63 = vector.shape_cast %62 : vector<8x8xi1> to vector<1x8x8xi1>
      %cst_14 = arith.constant -1.000000e+30 : f32
      %64 = vector.shape_cast %63 : vector<1x8x8xi1> to vector<1x8x8xi1>
      %65 = vector.broadcast %64 : vector<1x8x8xi1> to vector<8x8x8xi1>
      %66 = vector.broadcast %cst_14 : f32 to vector<8x8x8xf32>
      %67 = arith.select %65, %53, %66 : vector<8x8x8xi1>, vector<8x8x8xf32>
      %c0_15 = arith.constant 0 : index
      %c0_16 = arith.constant 0 : index
      %c0_17 = arith.constant 0 : index
      %68 = vector.load %arg11[%c0_15, %c0_16, %c0_17] : memref<8x8x1xf32, #tpu.memory_space<vmem>>, vector<8x8x1xf32>
      %cst_18 = arith.constant dense<0xFF800000> : vector<8x8xf32>
      %69 = vector.multi_reduction <maximumf>, %67, %cst_18 [2] : vector<8x8x8xf32> to vector<8x8xf32>
      %70 = vector.shape_cast %69 : vector<8x8xf32> to vector<8x8x1xf32>
      %71 = arith.maximumf %68, %70 : vector<8x8x1xf32>
      %72 = arith.subf %68, %71 : vector<8x8x1xf32>
      %73 = math.exp %72 : vector<8x8x1xf32>
      %74 = vector.broadcast %71 : vector<8x8x1xf32> to vector<8x8x8xf32>
      %75 = arith.subf %67, %74 : vector<8x8x8xf32>
      %76 = math.exp %75 : vector<8x8x8xf32>
      %c0_19 = arith.constant 0 : index
      %c0_20 = arith.constant 0 : index
      %c0_21 = arith.constant 0 : index
      %77 = vector.load %arg12[%c0_19, %c0_20, %c0_21] : memref<8x8x1xf32, #tpu.memory_space<vmem>>, vector<8x8x1xf32>
      %78 = arith.mulf %73, %77 : vector<8x8x1xf32>
      %cst_22 = arith.constant dense<0.000000e+00> : vector<8x8xf32>
      %79 = vector.multi_reduction <add>, %76, %cst_22 [2] : vector<8x8x8xf32> to vector<8x8xf32>
      %80 = vector.shape_cast %79 : vector<8x8xf32> to vector<8x8x1xf32>
      %81 = arith.addf %78, %80 : vector<8x8x1xf32>
      %c0_23 = arith.constant 0 : index
      %c0_24 = arith.constant 0 : index
      %c0_25 = arith.constant 0 : index
      %82 = vector.load %arg12[%c0_23, %c0_24, %c0_25] : memref<8x8x1xf32, #tpu.memory_space<vmem>>, vector<8x8x1xf32>
      tpu.vector_store %arg12[%c0_23, %c0_24, %c0_25], %81 {strides = array<i32>} : memref<8x8x1xf32, #tpu.memory_space<vmem>>, vector<8x8x1xf32>,
      %c0_26 = arith.constant 0 : index
      %c0_27 = arith.constant 0 : index
      %c0_28 = arith.constant 0 : index
      %83 = vector.load %arg13[%c0_26, %c0_27, %c0_28] : memref<8x8x16xf32, #tpu.memory_space<vmem>>, vector<8x8x16xf32>
      %84 = vector.broadcast %73 : vector<8x8x1xf32> to vector<8x8x16xf32>
      %85 = arith.mulf %84, %83 : vector<8x8x16xf32>
      "tpu.trace_start"() <{level = 10 : i32, message = "hqk,hkd->hqd"}> : () -> ()
      %cst_29 = arith.constant dense<0.000000e+00> : vector<8x8x16xf32>
      %86 = tpu.matmul %76, %51, %cst_29 {dimension_numbers = #tpu.dot_dimension_numbers<[2], [1], [1], [2], [0, 0, 0, 1, 1, 2], [0], [0]>} : vector<8x8x8xf32>, vector<8x8x16xf32>, vector<8x8x16xf32> -> vector<8x8x16xf32>
      "tpu.trace_stop"() : () -> ()
      %87 = arith.addf %85, %86 : vector<8x8x16xf32>
      %c0_30 = arith.constant 0 : index
      %c0_31 = arith.constant 0 : index
      %c0_32 = arith.constant 0 : index
      %88 = vector.load %arg13[%c0_30, %c0_31, %c0_32] : memref<8x8x16xf32, #tpu.memory_space<vmem>>, vector<8x8x16xf32>
      tpu.vector_store %arg13[%c0_30, %c0_31, %c0_32], %87 {strides = array<i32>} : memref<8x8x16xf32, #tpu.memory_space<vmem>>, vector<8x8x16xf32>,
      %c0_33 = arith.constant 0 : index
      %c0_34 = arith.constant 0 : index
      %c0_35 = arith.constant 0 : index
      %89 = vector.load %arg11[%c0_33, %c0_34, %c0_35] : memref<8x8x1xf32, #tpu.memory_space<vmem>>, vector<8x8x1xf32>
      tpu.vector_store %arg11[%c0_33, %c0_34, %c0_35], %71 {strides = array<i32>} : memref<8x8x1xf32, #tpu.memory_space<vmem>>, vector<8x8x1xf32>,
    } else {
    }
    %c1_i32 = arith.constant 1 : i32
    %9 = arith.cmpi eq, %arg2, %c1_i32 : i32
    %10 = arith.extui %9 : i1 to i32
    %c0_i32_3 = arith.constant 0 : i32
    %11 = arith.cmpi ne, %10, %c0_i32_3 : i32
    scf.if %11 {
      %c0 = arith.constant 0 : index
      %c0_4 = arith.constant 0 : index
      %c0_5 = arith.constant 0 : index
      %12 = vector.load %arg13[%c0, %c0_4, %c0_5] : memref<8x8x16xf32, #tpu.memory_space<vmem>>, vector<8x8x16xf32>
      %c0_6 = arith.constant 0 : index
      %c0_7 = arith.constant 0 : index
      %c0_8 = arith.constant 0 : index
      %13 = vector.load %arg12[%c0_6, %c0_7, %c0_8] : memref<8x8x1xf32, #tpu.memory_space<vmem>>, vector<8x8x1xf32>
      %14 = tpu.reciprocal %13 {approx = true} : vector<8x8x1xf32> -> vector<8x8x1xf32>
      %15 = vector.broadcast %14 : vector<8x8x1xf32> to vector<8x8x16xf32>
      %16 = arith.mulf %12, %15 : vector<8x8x16xf32>
      %c0_9 = arith.constant 0 : index
      %c0_10 = arith.constant 0 : index
      %c0_11 = arith.constant 0 : index
      %17 = vector.load %arg7[%c0_9, %c0_10, %c0_11] : memref<8x16x128xf32, #tpu.memory_space<vmem>>, vector<8x16x128xf32>
      "tpu.trace_start"() <{level = 10 : i32, message = "hqd,hde->hqe"}> : () -> ()
      %cst = arith.constant dense<0.000000e+00> : vector<8x8x128xf32>
      %18 = tpu.matmul %16, %17, %cst {dimension_numbers = #tpu.dot_dimension_numbers<[2], [1], [1], [2], [0, 0, 0, 1, 1, 2], [0], [0]>} : vector<8x8x16xf32>, vector<8x16x128xf32>, vector<8x8x128xf32> -> vector<8x8x128xf32>
      "tpu.trace_stop"() : () -> ()
      %cst_12 = arith.constant dense<0.000000e+00> : vector<8x128xf32>
      %19 = vector.multi_reduction <add>, %18, %cst_12 [0] : vector<8x8x128xf32> to vector<8x128xf32>
      %c0_13 = arith.constant 0 : index
      %c0_14 = arith.constant 0 : index
      %20 = vector.load %arg8[%c0_13, %c0_14] : memref<1x128xf32, #tpu.memory_space<vmem>>, vector<1x128xf32>
      %21 = vector.broadcast %20 : vector<1x128xf32> to vector<8x128xf32>
      %22 = arith.addf %19, %21 : vector<8x128xf32>
      %c0_15 = arith.constant 0 : index
      %c0_16 = arith.constant 0 : index
      %c0_17 = arith.constant 0 : index
      %23 = vector.load %arg9[%c0_15, %c0_16, %c0_17] : memref<1x8x128xf32, #tpu.memory_space<vmem>>, vector<1x8x128xf32>
      %24 = vector.shape_cast %23 : vector<1x8x128xf32> to vector<8x128xf32>
      %25 = vector.shape_cast %22 : vector<8x128xf32> to vector<1x8x128xf32>
      tpu.vector_store %arg9[%c0_15, %c0_16, %c0_17], %25 {strides = array<i32>} : memref<1x8x128xf32, #tpu.memory_space<vmem>>, vector<1x8x128xf32>,
    } else {
    }
    return
  }
  func.func @transform_0(%arg0: i32, %arg1: i32, %arg2: i32) -> (i32, i32, i32) {
    %c0_i32 = arith.constant 0 : i32
    %c0_i32_0 = arith.constant 0 : i32
    return %arg0, %arg1, %c0_i32 : i32, i32, i32
  }
  func.func @transform_1(%arg0: i32, %arg1: i32, %arg2: i32) -> (i32, i32, i32) {
    %c0_i32 = arith.constant 0 : i32
    %c0_i32_0 = arith.constant 0 : i32
    return %arg0, %arg2, %c0_i32 : i32, i32, i32
  }
  func.func @transform_2(%arg0: i32, %arg1: i32, %arg2: i32) -> (i32, i32) {
    %c0_i32 = arith.constant 0 : i32
    %c0_i32_0 = arith.constant 0 : i32
    %c0_i32_1 = arith.constant 0 : i32
    return %c0_i32, %c0_i32_0 : i32, i32
  }
  func.func @transform_3(%arg0: i32, %arg1: i32, %arg2: i32) -> (i32, i32) {
    %c0_i32 = arith.constant 0 : i32
    %c0_i32_0 = arith.constant 0 : i32
    %c0_i32_1 = arith.constant 0 : i32
    return %c0_i32, %c0_i32_0 : i32, i32
  }
  func.func @transform_4(%arg0: i32, %arg1: i32, %arg2: i32) -> (i32, i32, i32) {
    %c0_i32 = arith.constant 0 : i32
    %c0_i32_0 = arith.constant 0 : i32
    %c0_i32_1 = arith.constant 0 : i32
    %c0_i32_2 = arith.constant 0 : i32
    return %c0_i32, %c0_i32_0, %c0_i32_1 : i32, i32, i32
  }
  func.func @transform_5(%arg0: i32, %arg1: i32, %arg2: i32) -> (i32, i32) {
    %c0_i32 = arith.constant 0 : i32
    %c0_i32_0 = arith.constant 0 : i32
    %c0_i32_1 = arith.constant 0 : i32
    return %c0_i32, %c0_i32_0 : i32, i32
  }
  func.func @transform_6(%arg0: i32, %arg1: i32, %arg2: i32) -> (i32, i32, i32) {
    %c0_i32 = arith.constant 0 : i32
    %c0_i32_0 = arith.constant 0 : i32
    return %arg0, %arg1, %c0_i32 : i32, i32, i32
  }
}

</mosaic_0001>

<llo_original>
// kernel: tpu_custom_call.1
$region0: #{tpu_custom_call.1}
  #allocation0 [shape = 'u32[]', space=smem, size = 0x4, offset = 0x4, fixed_abs, tag = 'smem constant byte address 0x4 - core index']
  #allocation1 [shape = 'u32[144,128]{1,0:T(1,128)}', space=vmem, size = 0x12000, scoped, tag = 'internal scratch']
  #allocation2 [shape = 'f32[8,8,16]{2,1,0:T(8,128)}', space=vmem, size = 0x8000, scoped, tag = 'scratch operand']
  #allocation3 [shape = 'f32[8,8,1]{2,1,0:T(8,128)}', space=vmem, size = 0x8000, scoped, tag = 'scratch operand']
  #allocation4 [shape = 'f32[8,8,1]{2,1,0:T(8,128)}', space=vmem, size = 0x8000, scoped, tag = 'scratch operand']
  #allocation5 [shape = 'f32[8,8,16]{2,1,0:T(8,128)}', space=vmem, size = 0x8000, scoped, tag = 'scratch operand']
  %s0 = inlined_call_operand.hbm [shape: f32[4,16,128], index: 0, kind: input, shape index: {}]
  %s1 = inlined_call_operand.hbm [shape: f32[4,16,128], index: 1, kind: input, shape index: {}]
  %s2 = inlined_call_operand.hbm [shape: f32[128,128], index: 2, kind: input, shape index: {}]
  %s3 = inlined_call_operand.hbm [shape: f32[128,256], index: 3, kind: input, shape index: {}]
  %s4 = inlined_call_operand.hbm [shape: f32[8,16,128], index: 4, kind: input, shape index: {}]
  %s5 = inlined_call_operand.vmem [shape: f32[1,128], index: 5, kind: input, shape index: {}]
  %s6 = inlined_call_operand.hbm [shape: f32[4,16,128], index: 6, kind: output, shape index: {}]
  %s7 = sld [smem:[#allocation0]]
  $region89: #{tpu_custom_call.1} parent=0
    _
  %s9 = ssub.s32 1, %s7
  %s10 = scalar_select 0, %s9, %s7
  $region1: #{tpu_custom_call.1} parent=0
    #allocation6 [shape = 'u8[8192]{0}', space=vmem, size = 0x2000, scoped, tag = 'input window, operand 0']
    #allocation7 [shape = 's32[2]{0}', space=sflag, size = 0x8, scoped, tag = 'scoped memory for tpu_custom_call.1']
    #allocation8 [shape = 's32[2]{0}', space=sflag, size = 0x8, scoped, tag = 'scoped memory for tpu_custom_call.1']
    #allocation9 [shape = 'u8[8192]{0}', space=vmem, size = 0x2000, scoped, tag = 'input window, operand 1']
    #allocation10 [shape = 's32[2]{0}', space=sflag, size = 0x8, scoped, tag = 'scoped memory for tpu_custom_call.1']
    #allocation11 [shape = 'u8[65536]{0}', space=vmem, size = 0x10000, scoped, tag = 'input window, operand 2, single buffered']
    #allocation12 [shape = 'u8[131072]{0}', space=vmem, size = 0x20000, scoped, tag = 'input window, operand 3, single buffered']
    #allocation13 [shape = 's32[1]{0}', space=sflag, size = 0x4, scoped, tag = 'scoped memory for tpu_custom_call.1']
    #allocation14 [shape = 'u8[65536]{0}', space=vmem, size = 0x10000, scoped, tag = 'input window, operand 4, single buffered']
    #allocation15 [shape = 'u8[8192]{0}', space=vmem, size = 0x2000, scoped, tag = 'output window, operand 0']
    %11 = vsyncpa [#allocation7], 0
    %s12 = scalar_lea.sflag [#allocation7], 1
    %13 = vsyncpa %s12, 0
    %14 = vsyncpa [#allocation10], 0
    %s15 = scalar_lea.sflag [#allocation10], 1
    %16 = vsyncpa %s15, 0
    %17 = vsyncpa [#allocation13], 0
    %18 = vsyncpa [#allocation8], 0
    %s19 = scalar_lea.sflag [#allocation8], 1
    %20 = vsyncpa %s19, 0
    loop: start=0, step=1, limit=18
    $region2: #{tpu_custom_call.1} parent=1 // loop_pre_header
      _
    $region3: #{tpu_custom_call.1} parent=1 // loop_header
      %s22 = sphi 0, %s26
      %p23 = scmp.ge.s32.totalorder %s22, 18
      %s29 = sphi 0, %s48
      %s30 = sphi 0, %s44
      %s31 = sphi 0, %s40
      %s32 = sphi 0, %s29
      %s33 = sphi 0, %s30
      %s34 = sphi 0, %s31
      %s35 = sphi 0, %s32
      %s36 = sphi 0, %s33
      %s37 = sphi 0, %s34
      %s53 = sphi 0, %s55
      %s56 = sphi 0, %s53
      %s57 = sphi 0, %s56
      %s73 = sphi 0, %s57
      %s81 = sphi 0, %s83
      %s84 = sphi 0, %s81
      %s85 = sphi 0, %s84
      %s101 = sphi 0, %s85
      %s105 = sphi 0, %s105
      %s107 = sphi 0, %s105
      %s108 = sphi 0, %s107
      %s122 = sphi 0, %s108
      %s126 = sphi 0, %s126
      %s128 = sphi 0, %s126
      %s129 = sphi 0, %s128
      %s143 = sphi 0, %s129
      %s147 = sphi 0, %s147
      %s149 = sphi 0, %s147
      %s150 = sphi 0, %s149
      %s164 = sphi 0, %s150
      %s168 = sphi 0, %s168
      %s170 = sphi 0, %s168
      %s171 = sphi 0, %s170
      %s185 = sphi 0, %s171
      %s193 = sphi 0, %s195
      %s196 = sphi 0, %s193
      %s197 = sphi 0, %s196
      %s213 = sphi 0, %s197
    $region4: #{tpu_custom_call.1} parent=1 // loop_header_branch
      %25 = sbr.rel (%p23) target = $region8
    $region5: #{tpu_custom_call.1} parent=1 // loop_body
      %s27 = ssub.s32 %s22, 1
      %s28 = ssub.s32 %s22, 2
      %s38 = sadd.s32 1, %s31
      %p39 = scmp.ge.s32.totalorder %s38, 2
      %s40 = scalar_select %p39, 0, %s38
      %s41 = sadd.s32 1, %s30
      %s42 = scalar_select %p39, %s41, %s30
      %p43 = scmp.ge.s32.totalorder %s42, 2
      %s44 = scalar_select %p43, 0, %s42
      %s45 = sadd.s32 1, %s29
      %s46 = scalar_select %p43, %s45, %s29
      %p47 = scmp.ge.s32.totalorder %s46, 4
      %s48 = scalar_select %p47, 0, %s46
      %s49 = ssub.s32 %s29, %s48
      %s50 = ssub.s32 %s30, %s44
      %s51 = sor.u32 %s49, %s50
      %p52 = scmp.eq.s32.totalorder %s51, 0
      %s54 = sadd.s32 %s53, 1
      %s55 = scalar_select %p52, %s53, %s54
      %p58 = pneg %p52
      %p59 = scmp.eq.s32.totalorder %s22, 15
      %p60 = por %p58, %p59
      %p61 = scmp.ne.s32.totalorder %s53, %s56
      %p62 = scmp.eq.s32.totalorder %s22, 0
      %p63 = por %p61, %p62
      %p64 = scmp.ne.s32.totalorder %s53, %s56
      %p65 = scmp.eq.s32.totalorder %s27, 15
      %p66 = por %p64, %p65
      %p67 = scmp.ne.s32.totalorder %s56, %s57
      %p68 = scmp.eq.s32.totalorder %s27, 0
      %p69 = por %p67, %p68
      %p70 = scmp.ne.s32.totalorder %s56, %s57
      %p71 = scmp.eq.s32.totalorder %s28, 15
      %p72 = por %p70, %p71
      %p74 = scmp.ne.s32.totalorder %s57, %s73
      %p75 = scmp.eq.s32.totalorder %s28, 0
      %p76 = por %p74, %p75
      %s77 = ssub.s32 %s29, %s48
      %s78 = ssub.s32 %s31, %s40
      %s79 = sor.u32 %s77, %s78
      %p80 = scmp.eq.s32.totalorder %s79, 0
      %s82 = sadd.s32 %s81, 1
      %s83 = scalar_select %p80, %s81, %s82
      %p86 = pneg %p80
      %p87 = scmp.eq.s32.totalorder %s22, 15
      %p88 = por %p86, %p87
      %p89 = scmp.ne.s32.totalorder %s81, %s84
      %p90 = scmp.eq.s32.totalorder %s22, 0
      %p91 = por %p89, %p90
      %p92 = scmp.ne.s32.totalorder %s81, %s84
      %p93 = scmp.eq.s32.totalorder %s27, 15
      %p94 = por %p92, %p93
      %p95 = scmp.ne.s32.totalorder %s84, %s85
      %p96 = scmp.eq.s32.totalorder %s27, 0
      %p97 = por %p95, %p96
      %p98 = scmp.ne.s32.totalorder %s84, %s85
      %p99 = scmp.eq.s32.totalorder %s28, 15
      %p100 = por %p98, %p99
      %p102 = scmp.ne.s32.totalorder %s85, %s101
      %p103 = scmp.eq.s32.totalorder %s28, 0
      %p104 = por %p102, %p103
      %s106 = sadd.s32 %s105, 1
      %p109 = scmp.eq.s32.totalorder %s22, 15
      %p110 = scmp.ne.s32.totalorder %s105, %s107
      %p111 = scmp.eq.s32.totalorder %s22, 0
      %p112 = por %p110, %p111
      %p113 = scmp.ne.s32.totalorder %s105, %s107
      %p114 = scmp.eq.s32.totalorder %s27, 15
      %p115 = por %p113, %p114
      %p116 = scmp.ne.s32.totalorder %s107, %s108
      %p117 = scmp.eq.s32.totalorder %s27, 0
      %p118 = por %p116, %p117
      %p119 = scmp.ne.s32.totalorder %s107, %s108
      %p120 = scmp.eq.s32.totalorder %s28, 15
      %p121 = por %p119, %p120
      %p123 = scmp.ne.s32.totalorder %s108, %s122
      %p124 = scmp.eq.s32.totalorder %s28, 0
      %p125 = por %p123, %p124
      %s127 = sadd.s32 %s126, 1
      %p130 = scmp.eq.s32.totalorder %s22, 15
      %p131 = scmp.ne.s32.totalorder %s126, %s128
      %p132 = scmp.eq.s32.totalorder %s22, 0
      %p133 = por %p131, %p132
      %p134 = scmp.ne.s32.totalorder %s126, %s128
      %p135 = scmp.eq.s32.totalorder %s27, 15
      %p136 = por %p134, %p135
      %p137 = scmp.ne.s32.totalorder %s128, %s129
      %p138 = scmp.eq.s32.totalorder %s27, 0
      %p139 = por %p137, %p138
      %p140 = scmp.ne.s32.totalorder %s128, %s129
      %p141 = scmp.eq.s32.totalorder %s28, 15
      %p142 = por %p140, %p141
      %p144 = scmp.ne.s32.totalorder %s129, %s143
      %p145 = scmp.eq.s32.totalorder %s28, 0
      %p146 = por %p144, %p145
      %s148 = sadd.s32 %s147, 1
      %p151 = scmp.eq.s32.totalorder %s22, 15
      %p152 = scmp.ne.s32.totalorder %s147, %s149
      %p153 = scmp.eq.s32.totalorder %s22, 0
      %p154 = por %p152, %p153
      %p155 = scmp.ne.s32.totalorder %s147, %s149
      %p156 = scmp.eq.s32.totalorder %s27, 15
      %p157 = por %p155, %p156
      %p158 = scmp.ne.s32.totalorder %s149, %s150
      %p159 = scmp.eq.s32.totalorder %s27, 0
      %p160 = por %p158, %p159
      %p161 = scmp.ne.s32.totalorder %s149, %s150
      %p162 = scmp.eq.s32.totalorder %s28, 15
      %p163 = por %p161, %p162
      %p165 = scmp.ne.s32.totalorder %s150, %s164
      %p166 = scmp.eq.s32.totalorder %s28, 0
      %p167 = por %p165, %p166
      %s169 = sadd.s32 %s168, 1
      %p172 = scmp.eq.s32.totalorder %s22, 15
      %p173 = scmp.ne.s32.totalorder %s168, %s170
      %p174 = scmp.eq.s32.totalorder %s22, 0
      %p175 = por %p173, %p174
      %p176 = scmp.ne.s32.totalorder %s168, %s170
      %p177 = scmp.eq.s32.totalorder %s27, 15
      %p178 = por %p176, %p177
      %p179 = scmp.ne.s32.totalorder %s170, %s171
      %p180 = scmp.eq.s32.totalorder %s27, 0
      %p181 = por %p179, %p180
      %p182 = scmp.ne.s32.totalorder %s170, %s171
      %p183 = scmp.eq.s32.totalorder %s28, 15
      %p184 = por %p182, %p183
      %p186 = scmp.ne.s32.totalorder %s171, %s185
      %p187 = scmp.eq.s32.totalorder %s28, 0
      %p188 = por %p186, %p187
      %s189 = ssub.s32 %s29, %s48
      %s190 = ssub.s32 %s30, %s44
      %s191 = sor.u32 %s189, %s190
      %p192 = scmp.eq.s32.totalorder %s191, 0
      %s194 = sadd.s32 %s193, 1
      %s195 = scalar_select %p192, %s193, %s194
      %p198 = pneg %p192
      %p199 = scmp.eq.s32.totalorder %s22, 15
      %p200 = por %p198, %p199
      %p201 = scmp.ne.s32.totalorder %s193, %s196
      %p202 = scmp.eq.s32.totalorder %s22, 0
      %p203 = por %p201, %p202
      %p204 = scmp.ne.s32.totalorder %s193, %s196
      %p205 = scmp.eq.s32.totalorder %s27, 15
      %p206 = por %p204, %p205
      %p207 = scmp.ne.s32.totalorder %s196, %s197
      %p208 = scmp.eq.s32.totalorder %s27, 0
      %p209 = por %p207, %p208
      %p210 = scmp.ne.s32.totalorder %s196, %s197
      %p211 = scmp.eq.s32.totalorder %s28, 15
      %p212 = por %p210, %p211
      %p214 = scmp.ne.s32.totalorder %s197, %s213
      %p215 = scmp.eq.s32.totalorder %s28, 0
      %p216 = por %p214, %p215
      %p217 = scmp.le.s32.totalorder 1, %s22
      %p218 = scmp.lt.s32.totalorder %s22, 17
      %p219 = pnand %p217, %p218
      %p220 = pneg %p219
      // Predicated region
      $region9: #{tpu_custom_call.1} parent=5 // pred_check
        _
      $region10: #{tpu_custom_call.1} parent=5 // pred_check_branch
        %222 = sbr.rel (%p219) target = $region12
      $region11: #{tpu_custom_call.1} parent=5 // pred_region
        %s223 = ssub.s32 %s22, 1
        // Predicated region
        $region13: #{tpu_custom_call.1} parent=11 // pred_check
          %p224 = pneg %p118
        $region14: #{tpu_custom_call.1} parent=11 // pred_check_branch
          %226 = sbr.rel (%p224) target = $region16
        $region15: #{tpu_custom_call.1} parent=11 // pred_region
          %s228 = ssub.s32 2048, 2048
          %229 = vsyncadd [#allocation10], %s228
          %s230 = sshll.u32 [#allocation11], 4
          %s231 = int_to_ptr.vmem [resolvable:$true] %s230
          %236 = dma.hbm_to_vmem [thread:$0]  %s2, 2048, %s231, [#allocation10], 128, 128, 8
        $region16: #{tpu_custom_call.1} parent=11 // pred_fallthru
          _
        // Predicated region
        $region17: #{tpu_custom_call.1} parent=11 // pred_check
          %p237 = pneg %p139
        $region18: #{tpu_custom_call.1} parent=11 // pred_check_branch
          %239 = sbr.rel (%p237) target = $region20
        $region19: #{tpu_custom_call.1} parent=11 // pred_region
          %s241 = ssub.s32 4096, 4096
          %242 = vsyncadd [#allocation13], %s241
          %s243 = sshll.u32 [#allocation12], 4
          %s244 = int_to_ptr.vmem [resolvable:$true] %s243
          %249 = dma.hbm_to_vmem [thread:$0]  %s3, 4096, %s244, [#allocation13], 256, 256, 16
        $region20: #{tpu_custom_call.1} parent=11 // pred_fallthru
          _
        // Predicated region
        $region21: #{tpu_custom_call.1} parent=11 // pred_check
          %p250 = pneg %p160
        $region22: #{tpu_custom_call.1} parent=11 // pred_check_branch
          %252 = sbr.rel (%p250) target = $region24
        $region23: #{tpu_custom_call.1} parent=11 // pred_region
          %s254 = ssub.s32 2048, 2048
          %255 = vsyncadd [#allocation13], %s254
          %s256 = sshll.u32 [#allocation14], 4
          %s257 = int_to_ptr.vmem [resolvable:$true] %s256
          %262 = dma.hbm_to_vmem [thread:$0]  %s4, 2048, %s257, [#allocation13], 128, 128, 8
        $region24: #{tpu_custom_call.1} parent=11 // pred_fallthru
          _
        // Predicated region
        $region25: #{tpu_custom_call.1} parent=11 // pred_check
          %p263 = pneg %p181
        $region26: #{tpu_custom_call.1} parent=11 // pred_check_branch
          %265 = sbr.rel (%p263) target = $region28
        $region27: #{tpu_custom_call.1} parent=11 // pred_region
          _
        $region28: #{tpu_custom_call.1} parent=11 // pred_fallthru
          _
      $region12: #{tpu_custom_call.1} parent=5 // pred_fallthru
        _
      %p266 = scmp.lt.s32.totalorder %s22, 16
      // Predicated region
      $region29: #{tpu_custom_call.1} parent=5 // pred_check
        %p267 = pneg %p266
      $region30: #{tpu_custom_call.1} parent=5 // pred_check_branch
        %269 = sbr.rel (%p267) target = $region32
      $region31: #{tpu_custom_call.1} parent=5 // pred_region
        // Predicated region
        $region33: #{tpu_custom_call.1} parent=31 // pred_check
          %p270 = pneg %p63
        $region34: #{tpu_custom_call.1} parent=31 // pred_check_branch
          %272 = sbr.rel (%p270) target = $region36
        $region35: #{tpu_custom_call.1} parent=31 // pred_region
          %s273 = sand.u32 %s53, 1
          %s274 = scalar_lea.sflag [#allocation7], %s273
          %s275 = sand.u32 %s53, 1
          %s276 = smul.addr %s275, 8
          %s277 = scalar_lea.vmem [#allocation6], %s276
          %s279 = ssub.s32 128, 128
          %280 = vsyncadd %s274, %s279
          %s281 = smul.addr %s29, 2
          %s282 = sadd.s32 %s30, %s281
          %s283 = smul.addr %s282, 128
          %s284 = scalar_lea.hbm %s0, %s283
          %s286 = sshll.u32 %s277, 4
          %s287 = int_to_ptr.vmem [resolvable:$true] %s286
          %289 = dma.hbm_to_vmem [thread:$0]  %s284, 128, %s287, %s274
        $region36: #{tpu_custom_call.1} parent=31 // pred_fallthru
          _
        // Predicated region
        $region37: #{tpu_custom_call.1} parent=31 // pred_check
          %p290 = pneg %p91
        $region38: #{tpu_custom_call.1} parent=31 // pred_check_branch
          %292 = sbr.rel (%p290) target = $region40
        $region39: #{tpu_custom_call.1} parent=31 // pred_region
          %s293 = sand.u32 %s22, 1
          %s294 = scalar_lea.sflag [#allocation10], %s293
          %s295 = sand.u32 %s81, 1
          %s296 = smul.addr %s295, 8
          %s297 = scalar_lea.vmem [#allocation9], %s296
          %s299 = ssub.s32 128, 128
          %300 = vsyncadd %s294, %s299
          %s301 = smul.addr %s29, 2
          %s302 = sadd.s32 %s31, %s301
          %s303 = smul.addr %s302, 128
          %s304 = scalar_lea.hbm %s1, %s303
          %s306 = sshll.u32 %s297, 4
          %s307 = int_to_ptr.vmem [resolvable:$true] %s306
          %309 = dma.hbm_to_vmem [thread:$0]  %s304, 128, %s307, %s294
        $region40: #{tpu_custom_call.1} parent=31 // pred_fallthru
          _
      $region32: #{tpu_custom_call.1} parent=5 // pred_fallthru
        _
      %p310 = scmp.le.s32.totalorder 1, %s22
      %p311 = scmp.lt.s32.totalorder %s22, 17
      %p312 = pnand %p310, %p311
      %p313 = pneg %p312
      // Predicated region
      $region41: #{tpu_custom_call.1} parent=5 // pred_check
        _
      $region42: #{tpu_custom_call.1} parent=5 // pred_check_branch
        %315 = sbr.rel (%p312) target = $region44
      $region43: #{tpu_custom_call.1} parent=5 // pred_region
        %s316 = ssub.s32 %s22, 1
        %s317 = sand.u32 %s56, 1
        %s318 = scalar_lea.sflag [#allocation7], %s317
        %s319 = sand.u32 %s56, 1
        %s320 = smul.addr %s319, 8
        %s321 = scalar_lea.vmem [#allocation6], %s320
        // Predicated region
        $region45: #{tpu_custom_call.1} parent=43 // pred_check
          %p322 = pneg %p69
        $region46: #{tpu_custom_call.1} parent=43 // pred_check_branch
          %324 = sbr.rel (%p322) target = $region48
        $region47: #{tpu_custom_call.1} parent=43 // pred_region
          %325 = dma.done %s318, 128
        $region48: #{tpu_custom_call.1} parent=43 // pred_fallthru
          _
        %s326 = sand.u32 %s27, 1
        %s327 = scalar_lea.sflag [#allocation10], %s326
        %s328 = sand.u32 %s84, 1
        %s329 = smul.addr %s328, 8
        %s330 = scalar_lea.vmem [#allocation9], %s329
        // Predicated region
        $region49: #{tpu_custom_call.1} parent=43 // pred_check
          %p331 = pneg %p97
        $region50: #{tpu_custom_call.1} parent=43 // pred_check_branch
          %333 = sbr.rel (%p331) target = $region52
        $region51: #{tpu_custom_call.1} parent=43 // pred_region
          %334 = dma.done %s327, 128
        $region52: #{tpu_custom_call.1} parent=43 // pred_fallthru
          _
        // Predicated region
        $region53: #{tpu_custom_call.1} parent=43 // pred_check
          %p335 = pneg %p118
        $region54: #{tpu_custom_call.1} parent=43 // pred_check_branch
          %337 = sbr.rel (%p335) target = $region56
        $region55: #{tpu_custom_call.1} parent=43 // pred_region
          %338 = dma.done [#allocation10], 2048
        $region56: #{tpu_custom_call.1} parent=43 // pred_fallthru
          _
        // Predicated region
        $region57: #{tpu_custom_call.1} parent=43 // pred_check
          %p339 = pneg %p139
        $region58: #{tpu_custom_call.1} parent=43 // pred_check_branch
          %341 = sbr.rel (%p339) target = $region60
        $region59: #{tpu_custom_call.1} parent=43 // pred_region
          %342 = dma.done [#allocation13], 4096
        $region60: #{tpu_custom_call.1} parent=43 // pred_fallthru
          _
        // Predicated region
        $region61: #{tpu_custom_call.1} parent=43 // pred_check
          %p343 = pneg %p160
        $region62: #{tpu_custom_call.1} parent=43 // pred_check_branch
          %345 = sbr.rel (%p343) target = $region64
        $region63: #{tpu_custom_call.1} parent=43 // pred_region
          %346 = dma.done [#allocation13], 2048
        $region64: #{tpu_custom_call.1} parent=43 // pred_fallthru
          _
        %s347 = sand.u32 %s56, 1
        %s348 = scalar_lea.sflag [#allocation7], %s347
        %s349 = sand.u32 %s56, 1
        %s350 = smul.addr %s349, 8
        %s351 = scalar_lea.vmem [#allocation6], %s350
        %p352 = pneg %p69
        %p353 = pneg %p66
        %s354 = sand.u32 %s27, 1
        %s355 = scalar_lea.sflag [#allocation10], %s354
        %s356 = sand.u32 %s84, 1
        %s357 = smul.addr %s356, 8
        %s358 = scalar_lea.vmem [#allocation9], %s357
        %p359 = pneg %p97
        %p360 = pneg %p94
        %p361 = pneg %p118
        %p362 = pneg %p115
        %p363 = pneg %p139
        %p364 = pneg %p136
        %p365 = pneg %p160
        %p366 = pneg %p157
        %p367 = pneg %p181
        %p368 = pneg %p178
        %p369 = pneg %p209
        %p370 = pneg %p206
        %s371 = sand.u32 %s196, 1
        %s372 = scalar_lea.sflag [#allocation8], %s371
        %s373 = sand.u32 %s196, 1
        %s374 = smul.addr %s373, 8
        %s375 = scalar_lea.vmem [#allocation15], %s374
        %p376 = scmp.eq.s32.totalorder %s34, 0
        // Predicated region
        $region65: #{tpu_custom_call.1} parent=43 // pred_check
          %p377 = pneg %p376
        $region66: #{tpu_custom_call.1} parent=43 // pred_check_branch
          %379 = sbr.rel (%p377) target = $region68
        $region67: #{tpu_custom_call.1} parent=43 // pred_region
          %v380 = vld [vmem:[%s321] sm:$0xff]
          %v381 = vld [vmem:[#allocation11] sm:$0xff]
          %v382 = vld [vmem:[#allocation11 + $0x8] sm:$0xff]
          %v383 = vld [vmem:[#allocation11 + $0x10] sm:$0xff]
          %v384 = vld [vmem:[#allocation11 + $0x18] sm:$0xff]
          %v385 = vld [vmem:[#allocation11 + $0x20] sm:$0xff]
          %v386 = vld [vmem:[#allocation11 + $0x28] sm:$0xff]
          %v387 = vld [vmem:[#allocation11 + $0x30] sm:$0xff]
          %v388 = vld [vmem:[#allocation11 + $0x38] sm:$0xff]
          %v389 = vld [vmem:[#allocation11 + $0x40] sm:$0xff]
          %v390 = vld [vmem:[#allocation11 + $0x48] sm:$0xff]
          %v391 = vld [vmem:[#allocation11 + $0x50] sm:$0xff]
          %v392 = vld [vmem:[#allocation11 + $0x58] sm:$0xff]
          %v393 = vld [vmem:[#allocation11 + $0x60] sm:$0xff]
          %v394 = vld [vmem:[#allocation11 + $0x68] sm:$0xff]
          %v395 = vld [vmem:[#allocation11 + $0x70] sm:$0xff]
          %v396 = vld [vmem:[#allocation11 + $0x78] sm:$0xff]
          %397 = vmatprep.subr.mxu0 0.0
          %398 = vmatpush1.msra.mxu0 %v396
          %399 = vmatprep.subr.mxu0 0.0
          %400 = vmatpush1.msra.mxu0 %v395
          %401 = vmatprep.subr.mxu0 0.0
          %402 = vmatpush1.msra.mxu0 %v394
          %403 = vmatprep.subr.mxu0 0.0
          %404 = vmatpush1.msra.mxu0 %v393
          %405 = vmatprep.subr.mxu0 0.0
          %406 = vmatpush1.msra.mxu0 %v392
          %407 = vmatprep.subr.mxu0 0.0
          %408 = vmatpush1.msra.mxu0 %v391
          %409 = vmatprep.subr.mxu0 0.0
          %410 = vmatpush1.msra.mxu0 %v390
          %411 = vmatprep.subr.mxu0 0.0
          %412 = vmatpush1.msra.mxu0 %v389
          %413 = vmatprep.subr.mxu0 0.0
          %414 = vmatpush1.msra.mxu0 %v388
          %415 = vmatprep.subr.mxu0 0.0
          %416 = vmatpush1.msra.mxu0 %v387
          %417 = vmatprep.subr.mxu0 0.0
          %418 = vmatpush1.msra.mxu0 %v386
          %419 = vmatprep.subr.mxu0 0.0
          %420 = vmatpush1.msra.mxu0 %v385
          %421 = vmatprep.subr.mxu0 0.0
          %422 = vmatpush1.msra.mxu0 %v384
          %423 = vmatprep.subr.mxu0 0.0
          %424 = vmatpush1.msra.mxu0 %v383
          %425 = vmatprep.subr.mxu0 0.0
          %426 = vmatpush1.msra.mxu0 %v382
          %427 = vmatprep.subr.mxu0 0.0
          %428 = vmatpush1.msra.mxu0 %v381
          %429 = vmatprep.subr.mxu0 0.0
          %430 = vmatpush2.msra.mxu0 0.0
          %431 = vmatprep.subr.mxu0 0.0
          %432 = vmatpush2.msra.mxu0 0.0
          %433 = vmatprep.subr.mxu0 0.0
          %434 = vmatpush2.msra.mxu0 0.0
          %435 = vmatprep.subr.mxu0 0.0
          %436 = vmatpush2.msra.mxu0 0.0
          %437 = vmatprep.subr.mxu0 0.0
          %438 = vmatpush2.msra.mxu0 0.0
          %439 = vmatprep.subr.mxu0 0.0
          %440 = vmatpush2.msra.mxu0 0.0
          %441 = vmatprep.subr.mxu0 0.0
          %442 = vmatpush2.msra.mxu0 0.0
          %443 = vmatprep.subr.mxu0 0.0
          %444 = vmatpush2.msra.mxu0 0.0
          %445 = vmatprep.subr.mxu0 0.0
          %446 = vmatpush2.msra.mxu0 0.0
          %447 = vmatprep.subr.mxu0 0.0
          %448 = vmatpush2.msra.mxu0 0.0
          %449 = vmatprep.subr.mxu0 0.0
          %450 = vmatpush2.msra.mxu0 0.0
          %451 = vmatprep.subr.mxu0 0.0
          %452 = vmatpush2.msra.mxu0 0.0
          %453 = vmatprep.subr.mxu0 0.0
          %454 = vmatpush2.msra.mxu0 0.0
          %455 = vmatprep.subr.mxu0 0.0
          %456 = vmatpush2.msra.mxu0 0.0
          %457 = vmatprep.subr.mxu0 0.0
          %458 = vmatpush2.msra.mxu0 0.0
          %459 = vmatprep.subr.mxu0 0.0
          %460 = vmatpush2.msra.mxu0 0.0
          %461 = vmatprep.mubr.f32.mxu0 0.0
          %462 = vmatmul.mubr.f32.gmra.mxu0 %v380
          %v463 = vpop.f32.mrf.mxu0
          %v464 = vadd.f32 0.0, %v463
          %v465 = vpop.f32.mrf.mxu0
          %466 = vdwg.mxu0
          %468 = vrot.lane.b32.xlu0 %v464, 112
          %v469 = vpop.permute.xlu0 %468
          %471 = vrot.lane.b32.xlu0 %v464, 96
          %v472 = vpop.permute.xlu0 %471
          %474 = vrot.lane.b32.xlu0 %v464, 80
          %v475 = vpop.permute.xlu0 %474
          %477 = vrot.lane.b32.xlu0 %v464, 64
          %v478 = vpop.permute.xlu0 %477
          %480 = vrot.lane.b32.xlu0 %v464, 48
          %v481 = vpop.permute.xlu0 %480
          %483 = vrot.lane.b32.xlu0 %v464, 32
          %v484 = vpop.permute.xlu0 %483
          %486 = vrot.lane.b32.xlu0 %v464, 16
          %v487 = vpop.permute.xlu0 %486
          %vm489 = vcmask 130048
          %490 = vst.msk [vmem:[#allocation2] sm:$0xff] %vm489, %v464
          %491 = vst.msk [vmem:[#allocation2 + $0x8] sm:$0xff] %vm489, %v469
          %492 = vst.msk [vmem:[#allocation2 + $0x10] sm:$0xff] %vm489, %v472
          %493 = vst.msk [vmem:[#allocation2 + $0x18] sm:$0xff] %vm489, %v475
          %494 = vst.msk [vmem:[#allocation2 + $0x20] sm:$0xff] %vm489, %v478
          %495 = vst.msk [vmem:[#allocation2 + $0x28] sm:$0xff] %vm489, %v481
          %496 = vst.msk [vmem:[#allocation2 + $0x30] sm:$0xff] %vm489, %v484
          %497 = vst.msk [vmem:[#allocation2 + $0x38] sm:$0xff] %vm489, %v487
          %vm498 = vcmask 7168
          %499 = vst.msk [vmem:[#allocation3] sm:$0xff] %vm498, -inf
          %500 = vst.msk [vmem:[#allocation3 + $0x8] sm:$0xff] %vm498, -inf
          %501 = vst.msk [vmem:[#allocation3 + $0x10] sm:$0xff] %vm498, -inf
          %502 = vst.msk [vmem:[#allocation3 + $0x18] sm:$0xff] %vm498, -inf
          %503 = vst.msk [vmem:[#allocation3 + $0x20] sm:$0xff] %vm498, -inf
          %504 = vst.msk [vmem:[#allocation3 + $0x28] sm:$0xff] %vm498, -inf
          %505 = vst.msk [vmem:[#allocation3 + $0x30] sm:$0xff] %vm498, -inf
          %506 = vst.msk [vmem:[#allocation3 + $0x38] sm:$0xff] %vm498, -inf
          %507 = vst.msk [vmem:[#allocation4] sm:$0xff] %vm498, 0.0
          %508 = vst.msk [vmem:[#allocation4 + $0x8] sm:$0xff] %vm498, 0.0
          %509 = vst.msk [vmem:[#allocation4 + $0x10] sm:$0xff] %vm498, 0.0
          %510 = vst.msk [vmem:[#allocation4 + $0x18] sm:$0xff] %vm498, 0.0
          %511 = vst.msk [vmem:[#allocation4 + $0x20] sm:$0xff] %vm498, 0.0
          %512 = vst.msk [vmem:[#allocation4 + $0x28] sm:$0xff] %vm498, 0.0
          %513 = vst.msk [vmem:[#allocation4 + $0x30] sm:$0xff] %vm498, 0.0
          %514 = vst.msk [vmem:[#allocation4 + $0x38] sm:$0xff] %vm498, 0.0
          %515 = vst.msk [vmem:[#allocation5] sm:$0xff] %vm489, 0.0
          %516 = vst.msk [vmem:[#allocation5 + $0x8] sm:$0xff] %vm489, 0.0
          %517 = vst.msk [vmem:[#allocation5 + $0x10] sm:$0xff] %vm489, 0.0
          %518 = vst.msk [vmem:[#allocation5 + $0x18] sm:$0xff] %vm489, 0.0
          %519 = vst.msk [vmem:[#allocation5 + $0x20] sm:$0xff] %vm489, 0.0
          %520 = vst.msk [vmem:[#allocation5 + $0x28] sm:$0xff] %vm489, 0.0
          %521 = vst.msk [vmem:[#allocation5 + $0x30] sm:$0xff] %vm489, 0.0
          %522 = vst.msk [vmem:[#allocation5 + $0x38] sm:$0xff] %vm489, 0.0
        $region68: #{tpu_custom_call.1} parent=43 // pred_fallthru
          _
        %s523 = smul.u32 %s34, 8
        %s524 = smul.u32 %s33, 8
        %s525 = sadd.s32 %s524, 7
        %p526 = scmp.le.s32.totalorder %s523, %s525
        // Predicated region
        $region69: #{tpu_custom_call.1} parent=43 // pred_check
          %p527 = pneg %p526
        $region70: #{tpu_custom_call.1} parent=43 // pred_check_branch
          %529 = sbr.rel (%p527) target = $region72
        $region71: #{tpu_custom_call.1} parent=43 // pred_region
          %v530 = vld [vmem:[%s330] sm:$0xff]
          %v531 = vld [vmem:[#allocation12] sm:$0xff]
          %v532 = vld [vmem:[#allocation12 + $0x8] sm:$0xff]
          %v533 = vld [vmem:[#allocation12 + $0x10] sm:$0xff]
          %v534 = vld [vmem:[#allocation12 + $0x18] sm:$0xff]
          %v535 = vld [vmem:[#allocation12 + $0x20] sm:$0xff]
          %v536 = vld [vmem:[#allocation12 + $0x28] sm:$0xff]
          %v537 = vld [vmem:[#allocation12 + $0x30] sm:$0xff]
          %v538 = vld [vmem:[#allocation12 + $0x38] sm:$0xff]
          %v539 = vld [vmem:[#allocation12 + $0x40] sm:$0xff]
          %v540 = vld [vmem:[#allocation12 + $0x48] sm:$0xff]
          %v541 = vld [vmem:[#allocation12 + $0x50] sm:$0xff]
          %v542 = vld [vmem:[#allocation12 + $0x58] sm:$0xff]
          %v543 = vld [vmem:[#allocation12 + $0x60] sm:$0xff]
          %v544 = vld [vmem:[#allocation12 + $0x68] sm:$0xff]
          %v545 = vld [vmem:[#allocation12 + $0x70] sm:$0xff]
          %v546 = vld [vmem:[#allocation12 + $0x78] sm:$0xff]
          %v547 = vld [vmem:[#allocation12 + $0x80] sm:$0xff]
          %v548 = vld [vmem:[#allocation12 + $0x88] sm:$0xff]
          %v549 = vld [vmem:[#allocation12 + $0x90] sm:$0xff]
          %v550 = vld [vmem:[#allocation12 + $0x98] sm:$0xff]
          %v551 = vld [vmem:[#allocation12 + $0xa0] sm:$0xff]
          %v552 = vld [vmem:[#allocation12 + $0xa8] sm:$0xff]
          %v553 = vld [vmem:[#allocation12 + $0xb0] sm:$0xff]
          %v554 = vld [vmem:[#allocation12 + $0xb8] sm:$0xff]
          %v555 = vld [vmem:[#allocation12 + $0xc0] sm:$0xff]
          %v556 = vld [vmem:[#allocation12 + $0xc8] sm:$0xff]
          %v557 = vld [vmem:[#allocation12 + $0xd0] sm:$0xff]
          %v558 = vld [vmem:[#allocation12 + $0xd8] sm:$0xff]
          %v559 = vld [vmem:[#allocation12 + $0xe0] sm:$0xff]
          %v560 = vld [vmem:[#allocation12 + $0xe8] sm:$0xff]
          %v561 = vld [vmem:[#allocation12 + $0xf0] sm:$0xff]
          %v562 = vld [vmem:[#allocation12 + $0xf8] sm:$0xff]
          %563 = vmatprep.subr.mxu0 %v562
          %564 = vmatpush1.msra.mxu0 %v561
          %565 = vmatprep.subr.mxu0 %v560
          %566 = vmatpush1.msra.mxu0 %v559
          %567 = vmatprep.subr.mxu0 %v558
          %568 = vmatpush1.msra.mxu0 %v557
          %569 = vmatprep.subr.mxu0 %v556
          %570 = vmatpush1.msra.mxu0 %v555
          %571 = vmatprep.subr.mxu0 %v554
          %572 = vmatpush1.msra.mxu0 %v553
          %573 = vmatprep.subr.mxu0 %v552
          %574 = vmatpush1.msra.mxu0 %v551
          %575 = vmatprep.subr.mxu0 %v550
          %576 = vmatpush1.msra.mxu0 %v549
          %577 = vmatprep.subr.mxu0 %v548
          %578 = vmatpush1.msra.mxu0 %v547
          %579 = vmatprep.subr.mxu0 %v546
          %580 = vmatpush1.msra.mxu0 %v545
          %581 = vmatprep.subr.mxu0 %v544
          %582 = vmatpush1.msra.mxu0 %v543
          %583 = vmatprep.subr.mxu0 %v542
          %584 = vmatpush1.msra.mxu0 %v541
          %585 = vmatprep.subr.mxu0 %v540
          %586 = vmatpush1.msra.mxu0 %v539
          %587 = vmatprep.subr.mxu0 %v538
          %588 = vmatpush1.msra.mxu0 %v537
          %589 = vmatprep.subr.mxu0 %v536
          %590 = vmatpush1.msra.mxu0 %v535
          %591 = vmatprep.subr.mxu0 %v534
          %592 = vmatpush1.msra.mxu0 %v533
          %593 = vmatprep.subr.mxu0 %v532
          %594 = vmatpush1.msra.mxu0 %v531
          %595 = vmatprep.subr.mxu0 0.0
          %596 = vmatpush2.msra.mxu0 0.0
          %597 = vmatprep.subr.mxu0 0.0
          %598 = vmatpush2.msra.mxu0 0.0
          %599 = vmatprep.subr.mxu0 0.0
          %600 = vmatpush2.msra.mxu0 0.0
          %601 = vmatprep.subr.mxu0 0.0
          %602 = vmatpush2.msra.mxu0 0.0
          %603 = vmatprep.subr.mxu0 0.0
          %604 = vmatpush2.msra.mxu0 0.0
          %605 = vmatprep.subr.mxu0 0.0
          %606 = vmatpush2.msra.mxu0 0.0
          %607 = vmatprep.subr.mxu0 0.0
          %608 = vmatpush2.msra.mxu0 0.0
          %609 = vmatprep.subr.mxu0 0.0
          %610 = vmatpush2.msra.mxu0 0.0
          %611 = vmatprep.subr.mxu0 0.0
          %612 = vmatpush2.msra.mxu0 0.0
          %613 = vmatprep.subr.mxu0 0.0
          %614 = vmatpush2.msra.mxu0 0.0
          %615 = vmatprep.subr.mxu0 0.0
          %616 = vmatpush2.msra.mxu0 0.0
          %617 = vmatprep.subr.mxu0 0.0
          %618 = vmatpush2.msra.mxu0 0.0
          %619 = vmatprep.subr.mxu0 0.0
          %620 = vmatpush2.msra.mxu0 0.0
          %621 = vmatprep.subr.mxu0 0.0
          %622 = vmatpush2.msra.mxu0 0.0
          %623 = vmatprep.subr.mxu0 0.0
          %624 = vmatpush2.msra.mxu0 0.0
          %625 = vmatprep.subr.mxu0 0.0
          %626 = vmatpush2.msra.mxu0 0.0
          %627 = vmatprep.mubr.f32.mxu0 0.0
          %628 = vmatmul.mubr.f32.gmra.mxu0 %v530
          %v629 = vpop.f32.mrf.mxu0
          %v630 = vadd.f32 0.0, %v629
          %v631 = vpop.f32.mrf.mxu0
          %v632 = vadd.f32 0.0, %v631
          %633 = vdwg.mxu0
          %635 = vrot.lane.b32.xlu0 %v630, 112
          %v636 = vpop.permute.xlu0 %635
          %637 = vrot.lane.b32.xlu0 %v630, 96
          %v638 = vpop.permute.xlu0 %637
          %639 = vrot.lane.b32.xlu0 %v630, 80
          %v640 = vpop.permute.xlu0 %639
          %641 = vrot.lane.b32.xlu0 %v630, 64
          %v642 = vpop.permute.xlu0 %641
          %643 = vrot.lane.b32.xlu0 %v630, 48
          %v644 = vpop.permute.xlu0 %643
          %645 = vrot.lane.b32.xlu0 %v630, 32
          %v646 = vpop.permute.xlu0 %645
          %647 = vrot.lane.b32.xlu0 %v630, 16
          %v648 = vpop.permute.xlu0 %647
          %650 = vrot.lane.b32.xlu0 %v632, 112
          %v651 = vpop.permute.xlu0 %650
          %653 = vrot.lane.b32.xlu0 %v632, 96
          %v654 = vpop.permute.xlu0 %653
          %656 = vrot.lane.b32.xlu0 %v632, 80
          %v657 = vpop.permute.xlu0 %656
          %659 = vrot.lane.b32.xlu0 %v632, 64
          %v660 = vpop.permute.xlu0 %659
          %662 = vrot.lane.b32.xlu0 %v632, 48
          %v663 = vpop.permute.xlu0 %662
          %665 = vrot.lane.b32.xlu0 %v632, 32
          %v666 = vpop.permute.xlu0 %665
          %668 = vrot.lane.b32.xlu0 %v632, 16
          %v669 = vpop.permute.xlu0 %668
          %v671 = vld [vmem:[#allocation2] sm:$0xff]
          %v672 = vld [vmem:[#allocation2 + $0x8] sm:$0xff]
          %v673 = vld [vmem:[#allocation2 + $0x10] sm:$0xff]
          %v674 = vld [vmem:[#allocation2 + $0x18] sm:$0xff]
          %v675 = vld [vmem:[#allocation2 + $0x20] sm:$0xff]
          %v676 = vld [vmem:[#allocation2 + $0x28] sm:$0xff]
          %v677 = vld [vmem:[#allocation2 + $0x30] sm:$0xff]
          %v678 = vld [vmem:[#allocation2 + $0x38] sm:$0xff]
          %vm679 = vcmask 130048
          %v681 = vsel %vm679, %v671, 0
          %v683 = vsel %vm679, %v630, 0
          %685 = vmatprep.subr.mxu0 0.0
          %686 = vmatpush1.xpose.msra.mxu0 0.0
          %687 = vmatprep.subr.mxu0 0.0
          %688 = vmatpush1.xpose.msra.mxu0 0.0
          %689 = vmatprep.subr.mxu0 0.0
          %690 = vmatpush1.xpose.msra.mxu0 0.0
          %691 = vmatprep.subr.mxu0 0.0
          %692 = vmatpush1.xpose.msra.mxu0 0.0
          %693 = vmatprep.subr.mxu0 0.0
          %694 = vmatpush1.xpose.msra.mxu0 0.0
          %695 = vmatprep.subr.mxu0 0.0
          %696 = vmatpush1.xpose.msra.mxu0 0.0
          %697 = vmatprep.subr.mxu0 0.0
          %698 = vmatpush1.xpose.msra.mxu0 0.0
          %699 = vmatprep.subr.mxu0 0.0
          %700 = vmatpush1.xpose.msra.mxu0 0.0
          %701 = vmatprep.subr.mxu0 0.0
          %702 = vmatpush1.xpose.msra.mxu0 0.0
          %703 = vmatprep.subr.mxu0 0.0
          %704 = vmatpush1.xpose.msra.mxu0 0.0
          %705 = vmatprep.subr.mxu0 0.0
          %706 = vmatpush1.xpose.msra.mxu0 0.0
          %707 = vmatprep.subr.mxu0 0.0
          %708 = vmatpush1.xpose.msra.mxu0 0.0
          %709 = vmatprep.subr.mxu0 0.0
          %710 = vmatpush1.xpose.msra.mxu0 0.0
          %711 = vmatprep.subr.mxu0 0.0
          %712 = vmatpush1.xpose.msra.mxu0 0.0
          %713 = vmatprep.subr.mxu0 0.0
          %714 = vmatpush1.xpose.msra.mxu0 0.0
          %715 = vmatprep.subr.mxu0 0.0
          %716 = vmatpush1.xpose.msra.mxu0 %v683
          %717 = vmatprep.subr.mxu0 0.0
          %718 = vmatpush2.xpose.msra.mxu0 0.0
          %719 = vmatprep.subr.mxu0 0.0
          %720 = vmatpush2.xpose.msra.mxu0 0.0
          %721 = vmatprep.subr.mxu0 0.0
          %722 = vmatpush2.xpose.msra.mxu0 0.0
          %723 = vmatprep.subr.mxu0 0.0
          %724 = vmatpush2.xpose.msra.mxu0 0.0
          %725 = vmatprep.subr.mxu0 0.0
          %726 = vmatpush2.xpose.msra.mxu0 0.0
          %727 = vmatprep.subr.mxu0 0.0
          %728 = vmatpush2.xpose.msra.mxu0 0.0
          %729 = vmatprep.subr.mxu0 0.0
          %730 = vmatpush2.xpose.msra.mxu0 0.0
          %731 = vmatprep.subr.mxu0 0.0
          %732 = vmatpush2.xpose.msra.mxu0 0.0
          %733 = vmatprep.subr.mxu0 0.0
          %734 = vmatpush2.xpose.msra.mxu0 0.0
          %735 = vmatprep.subr.mxu0 0.0
          %736 = vmatpush2.xpose.msra.mxu0 0.0
          %737 = vmatprep.subr.mxu0 0.0
          %738 = vmatpush2.xpose.msra.mxu0 0.0
          %739 = vmatprep.subr.mxu0 0.0
          %740 = vmatpush2.xpose.msra.mxu0 0.0
          %741 = vmatprep.subr.mxu0 0.0
          %742 = vmatpush2.xpose.msra.mxu0 0.0
          %743 = vmatprep.subr.mxu0 0.0
          %744 = vmatpush2.xpose.msra.mxu0 0.0
          %745 = vmatprep.subr.mxu0 0.0
          %746 = vmatpush2.xpose.msra.mxu0 0.0
          %747 = vmatprep.subr.mxu0 0.0
          %748 = vmatpush2.xpose.msra.mxu0 0.0
          %749 = vmatprep.mubr.f32.mxu0 0.0
          %750 = vmatmul.mubr.f32.gmra.mxu0 %v681
          %v751 = vpop.f32.mrf.mxu0
          %v752 = vadd.f32 0.0, %v751
          %v753 = vpop.f32.mrf.mxu0
          %754 = vdwg.mxu0
          %v756 = vsel %vm679, %v672, 0
          %v758 = vsel %vm679, %v636, 0
          %760 = vmatprep.subr.mxu0 0.0
          %761 = vmatpush1.xpose.msra.mxu0 0.0
          %762 = vmatprep.subr.mxu0 0.0
          %763 = vmatpush1.xpose.msra.mxu0 0.0
          %764 = vmatprep.subr.mxu0 0.0
          %765 = vmatpush1.xpose.msra.mxu0 0.0
          %766 = vmatprep.subr.mxu0 0.0
          %767 = vmatpush1.xpose.msra.mxu0 0.0
          %768 = vmatprep.subr.mxu0 0.0
          %769 = vmatpush1.xpose.msra.mxu0 0.0
          %770 = vmatprep.subr.mxu0 0.0
          %771 = vmatpush1.xpose.msra.mxu0 0.0
          %772 = vmatprep.subr.mxu0 0.0
          %773 = vmatpush1.xpose.msra.mxu0 0.0
          %774 = vmatprep.subr.mxu0 0.0
          %775 = vmatpush1.xpose.msra.mxu0 0.0
          %776 = vmatprep.subr.mxu0 0.0
          %777 = vmatpush1.xpose.msra.mxu0 0.0
          %778 = vmatprep.subr.mxu0 0.0
          %779 = vmatpush1.xpose.msra.mxu0 0.0
          %780 = vmatprep.subr.mxu0 0.0
          %781 = vmatpush1.xpose.msra.mxu0 0.0
          %782 = vmatprep.subr.mxu0 0.0
          %783 = vmatpush1.xpose.msra.mxu0 0.0
          %784 = vmatprep.subr.mxu0 0.0
          %785 = vmatpush1.xpose.msra.mxu0 0.0
          %786 = vmatprep.subr.mxu0 0.0
          %787 = vmatpush1.xpose.msra.mxu0 0.0
          %788 = vmatprep.subr.mxu0 0.0
          %789 = vmatpush1.xpose.msra.mxu0 0.0
          %790 = vmatprep.subr.mxu0 0.0
          %791 = vmatpush1.xpose.msra.mxu0 %v758
          %792 = vmatprep.subr.mxu0 0.0
          %793 = vmatpush2.xpose.msra.mxu0 0.0
          %794 = vmatprep.subr.mxu0 0.0
          %795 = vmatpush2.xpose.msra.mxu0 0.0
          %796 = vmatprep.subr.mxu0 0.0
          %797 = vmatpush2.xpose.msra.mxu0 0.0
          %798 = vmatprep.subr.mxu0 0.0
          %799 = vmatpush2.xpose.msra.mxu0 0.0
          %800 = vmatprep.subr.mxu0 0.0
          %801 = vmatpush2.xpose.msra.mxu0 0.0
          %802 = vmatprep.subr.mxu0 0.0
          %803 = vmatpush2.xpose.msra.mxu0 0.0
          %804 = vmatprep.subr.mxu0 0.0
          %805 = vmatpush2.xpose.msra.mxu0 0.0
          %806 = vmatprep.subr.mxu0 0.0
          %807 = vmatpush2.xpose.msra.mxu0 0.0
          %808 = vmatprep.subr.mxu0 0.0
          %809 = vmatpush2.xpose.msra.mxu0 0.0
          %810 = vmatprep.subr.mxu0 0.0
          %811 = vmatpush2.xpose.msra.mxu0 0.0
          %812 = vmatprep.subr.mxu0 0.0
          %813 = vmatpush2.xpose.msra.mxu0 0.0
          %814 = vmatprep.subr.mxu0 0.0
          %815 = vmatpush2.xpose.msra.mxu0 0.0
          %816 = vmatprep.subr.mxu0 0.0
          %817 = vmatpush2.xpose.msra.mxu0 0.0
          %818 = vmatprep.subr.mxu0 0.0
          %819 = vmatpush2.xpose.msra.mxu0 0.0
          %820 = vmatprep.subr.mxu0 0.0
          %821 = vmatpush2.xpose.msra.mxu0 0.0
          %822 = vmatprep.subr.mxu0 0.0
          %823 = vmatpush2.xpose.msra.mxu0 0.0
          %824 = vmatprep.mubr.f32.mxu0 0.0
          %825 = vmatmul.mubr.f32.gmra.mxu0 %v756
          %v826 = vpop.f32.mrf.mxu0
          %v827 = vadd.f32 0.0, %v826
          %v828 = vpop.f32.mrf.mxu0
          %829 = vdwg.mxu0
          %v831 = vsel %vm679, %v673, 0
          %v833 = vsel %vm679, %v638, 0
          %835 = vmatprep.subr.mxu0 0.0
          %836 = vmatpush1.xpose.msra.mxu0 0.0
          %837 = vmatprep.subr.mxu0 0.0
          %838 = vmatpush1.xpose.msra.mxu0 0.0
          %839 = vmatprep.subr.mxu0 0.0
          %840 = vmatpush1.xpose.msra.mxu0 0.0
          %841 = vmatprep.subr.mxu0 0.0
          %842 = vmatpush1.xpose.msra.mxu0 0.0
          %843 = vmatprep.subr.mxu0 0.0
          %844 = vmatpush1.xpose.msra.mxu0 0.0
          %845 = vmatprep.subr.mxu0 0.0
          %846 = vmatpush1.xpose.msra.mxu0 0.0
          %847 = vmatprep.subr.mxu0 0.0
          %848 = vmatpush1.xpose.msra.mxu0 0.0
          %849 = vmatprep.subr.mxu0 0.0
          %850 = vmatpush1.xpose.msra.mxu0 0.0
          %851 = vmatprep.subr.mxu0 0.0
          %852 = vmatpush1.xpose.msra.mxu0 0.0
          %853 = vmatprep.subr.mxu0 0.0
          %854 = vmatpush1.xpose.msra.mxu0 0.0
          %855 = vmatprep.subr.mxu0 0.0
          %856 = vmatpush1.xpose.msra.mxu0 0.0
          %857 = vmatprep.subr.mxu0 0.0
          %858 = vmatpush1.xpose.msra.mxu0 0.0
          %859 = vmatprep.subr.mxu0 0.0
          %860 = vmatpush1.xpose.msra.mxu0 0.0
          %861 = vmatprep.subr.mxu0 0.0
          %862 = vmatpush1.xpose.msra.mxu0 0.0
          %863 = vmatprep.subr.mxu0 0.0
          %864 = vmatpush1.xpose.msra.mxu0 0.0
          %865 = vmatprep.subr.mxu0 0.0
          %866 = vmatpush1.xpose.msra.mxu0 %v833
          %867 = vmatprep.subr.mxu0 0.0
          %868 = vmatpush2.xpose.msra.mxu0 0.0
          %869 = vmatprep.subr.mxu0 0.0
          %870 = vmatpush2.xpose.msra.mxu0 0.0
          %871 = vmatprep.subr.mxu0 0.0
          %872 = vmatpush2.xpose.msra.mxu0 0.0
          %873 = vmatprep.subr.mxu0 0.0
          %874 = vmatpush2.xpose.msra.mxu0 0.0
          %875 = vmatprep.subr.mxu0 0.0
          %876 = vmatpush2.xpose.msra.mxu0 0.0
          %877 = vmatprep.subr.mxu0 0.0
          %878 = vmatpush2.xpose.msra.mxu0 0.0
          %879 = vmatprep.subr.mxu0 0.0
          %880 = vmatpush2.xpose.msra.mxu0 0.0
          %881 = vmatprep.subr.mxu0 0.0
          %882 = vmatpush2.xpose.msra.mxu0 0.0
          %883 = vmatprep.subr.mxu0 0.0
          %884 = vmatpush2.xpose.msra.mxu0 0.0
          %885 = vmatprep.subr.mxu0 0.0
          %886 = vmatpush2.xpose.msra.mxu0 0.0
          %887 = vmatprep.subr.mxu0 0.0
          %888 = vmatpush2.xpose.msra.mxu0 0.0
          %889 = vmatprep.subr.mxu0 0.0
          %890 = vmatpush2.xpose.msra.mxu0 0.0
          %891 = vmatprep.subr.mxu0 0.0
          %892 = vmatpush2.xpose.msra.mxu0 0.0
          %893 = vmatprep.subr.mxu0 0.0
          %894 = vmatpush2.xpose.msra.mxu0 0.0
          %895 = vmatprep.subr.mxu0 0.0
          %896 = vmatpush2.xpose.msra.mxu0 0.0
          %897 = vmatprep.subr.mxu0 0.0
          %898 = vmatpush2.xpose.msra.mxu0 0.0
          %899 = vmatprep.mubr.f32.mxu0 0.0
          %900 = vmatmul.mubr.f32.gmra.mxu0 %v831
          %v901 = vpop.f32.mrf.mxu0
          %v902 = vadd.f32 0.0, %v901
          %v903 = vpop.f32.mrf.mxu0
          %904 = vdwg.mxu0
          %v906 = vsel %vm679, %v674, 0
          %v908 = vsel %vm679, %v640, 0
          %910 = vmatprep.subr.mxu0 0.0
          %911 = vmatpush1.xpose.msra.mxu0 0.0
          %912 = vmatprep.subr.mxu0 0.0
          %913 = vmatpush1.xpose.msra.mxu0 0.0
          %914 = vmatprep.subr.mxu0 0.0
          %915 = vmatpush1.xpose.msra.mxu0 0.0
          %916 = vmatprep.subr.mxu0 0.0
          %917 = vmatpush1.xpose.msra.mxu0 0.0
          %918 = vmatprep.subr.mxu0 0.0
          %919 = vmatpush1.xpose.msra.mxu0 0.0
          %920 = vmatprep.subr.mxu0 0.0
          %921 = vmatpush1.xpose.msra.mxu0 0.0
          %922 = vmatprep.subr.mxu0 0.0
          %923 = vmatpush1.xpose.msra.mxu0 0.0
          %924 = vmatprep.subr.mxu0 0.0
          %925 = vmatpush1.xpose.msra.mxu0 0.0
          %926 = vmatprep.subr.mxu0 0.0
          %927 = vmatpush1.xpose.msra.mxu0 0.0
          %928 = vmatprep.subr.mxu0 0.0
          %929 = vmatpush1.xpose.msra.mxu0 0.0
          %930 = vmatprep.subr.mxu0 0.0
          %931 = vmatpush1.xpose.msra.mxu0 0.0
          %932 = vmatprep.subr.mxu0 0.0
          %933 = vmatpush1.xpose.msra.mxu0 0.0
          %934 = vmatprep.subr.mxu0 0.0
          %935 = vmatpush1.xpose.msra.mxu0 0.0
          %936 = vmatprep.subr.mxu0 0.0
          %937 = vmatpush1.xpose.msra.mxu0 0.0
          %938 = vmatprep.subr.mxu0 0.0
          %939 = vmatpush1.xpose.msra.mxu0 0.0
          %940 = vmatprep.subr.mxu0 0.0
          %941 = vmatpush1.xpose.msra.mxu0 %v908
          %942 = vmatprep.subr.mxu0 0.0
          %943 = vmatpush2.xpose.msra.mxu0 0.0
          %944 = vmatprep.subr.mxu0 0.0
          %945 = vmatpush2.xpose.msra.mxu0 0.0
          %946 = vmatprep.subr.mxu0 0.0
          %947 = vmatpush2.xpose.msra.mxu0 0.0
          %948 = vmatprep.subr.mxu0 0.0
          %949 = vmatpush2.xpose.msra.mxu0 0.0
          %950 = vmatprep.subr.mxu0 0.0
          %951 = vmatpush2.xpose.msra.mxu0 0.0
          %952 = vmatprep.subr.mxu0 0.0
          %953 = vmatpush2.xpose.msra.mxu0 0.0
          %954 = vmatprep.subr.mxu0 0.0
          %955 = vmatpush2.xpose.msra.mxu0 0.0
          %956 = vmatprep.subr.mxu0 0.0
          %957 = vmatpush2.xpose.msra.mxu0 0.0
          %958 = vmatprep.subr.mxu0 0.0
          %959 = vmatpush2.xpose.msra.mxu0 0.0
          %960 = vmatprep.subr.mxu0 0.0
          %961 = vmatpush2.xpose.msra.mxu0 0.0
          %962 = vmatprep.subr.mxu0 0.0
          %963 = vmatpush2.xpose.msra.mxu0 0.0
          %964 = vmatprep.subr.mxu0 0.0
          %965 = vmatpush2.xpose.msra.mxu0 0.0
          %966 = vmatprep.subr.mxu0 0.0
          %967 = vmatpush2.xpose.msra.mxu0 0.0
          %968 = vmatprep.subr.mxu0 0.0
          %969 = vmatpush2.xpose.msra.mxu0 0.0
          %970 = vmatprep.subr.mxu0 0.0
          %971 = vmatpush2.xpose.msra.mxu0 0.0
          %972 = vmatprep.subr.mxu0 0.0
          %973 = vmatpush2.xpose.msra.mxu0 0.0
          %974 = vmatprep.mubr.f32.mxu0 0.0
          %975 = vmatmul.mubr.f32.gmra.mxu0 %v906
          %v976 = vpop.f32.mrf.mxu0
          %v977 = vadd.f32 0.0, %v976
          %v978 = vpop.f32.mrf.mxu0
          %979 = vdwg.mxu0
          %v981 = vsel %vm679, %v675, 0
          %v983 = vsel %vm679, %v642, 0
          %985 = vmatprep.subr.mxu0 0.0
          %986 = vmatpush1.xpose.msra.mxu0 0.0
          %987 = vmatprep.subr.mxu0 0.0
          %988 = vmatpush1.xpose.msra.mxu0 0.0
          %989 = vmatprep.subr.mxu0 0.0
          %990 = vmatpush1.xpose.msra.mxu0 0.0
          %991 = vmatprep.subr.mxu0 0.0
          %992 = vmatpush1.xpose.msra.mxu0 0.0
          %993 = vmatprep.subr.mxu0 0.0
          %994 = vmatpush1.xpose.msra.mxu0 0.0
          %995 = vmatprep.subr.mxu0 0.0
          %996 = vmatpush1.xpose.msra.mxu0 0.0
          %997 = vmatprep.subr.mxu0 0.0
          %998 = vmatpush1.xpose.msra.mxu0 0.0
          %999 = vmatprep.subr.mxu0 0.0
          %1000 = vmatpush1.xpose.msra.mxu0 0.0
          %1001 = vmatprep.subr.mxu0 0.0
          %1002 = vmatpush1.xpose.msra.mxu0 0.0
          %1003 = vmatprep.subr.mxu0 0.0
          %1004 = vmatpush1.xpose.msra.mxu0 0.0
          %1005 = vmatprep.subr.mxu0 0.0
          %1006 = vmatpush1.xpose.msra.mxu0 0.0
          %1007 = vmatprep.subr.mxu0 0.0
          %1008 = vmatpush1.xpose.msra.mxu0 0.0
          %1009 = vmatprep.subr.mxu0 0.0
          %1010 = vmatpush1.xpose.msra.mxu0 0.0
          %1011 = vmatprep.subr.mxu0 0.0
          %1012 = vmatpush1.xpose.msra.mxu0 0.0
          %1013 = vmatprep.subr.mxu0 0.0
          %1014 = vmatpush1.xpose.msra.mxu0 0.0
          %1015 = vmatprep.subr.mxu0 0.0
          %1016 = vmatpush1.xpose.msra.mxu0 %v983
          %1017 = vmatprep.subr.mxu0 0.0
          %1018 = vmatpush2.xpose.msra.mxu0 0.0
          %1019 = vmatprep.subr.mxu0 0.0
          %1020 = vmatpush2.xpose.msra.mxu0 0.0
          %1021 = vmatprep.subr.mxu0 0.0
          %1022 = vmatpush2.xpose.msra.mxu0 0.0
          %1023 = vmatprep.subr.mxu0 0.0
          %1024 = vmatpush2.xpose.msra.mxu0 0.0
          %1025 = vmatprep.subr.mxu0 0.0
          %1026 = vmatpush2.xpose.msra.mxu0 0.0
          %1027 = vmatprep.subr.mxu0 0.0
          %1028 = vmatpush2.xpose.msra.mxu0 0.0
          %1029 = vmatprep.subr.mxu0 0.0
          %1030 = vmatpush2.xpose.msra.mxu0 0.0
          %1031 = vmatprep.subr.mxu0 0.0
          %1032 = vmatpush2.xpose.msra.mxu0 0.0
          %1033 = vmatprep.subr.mxu0 0.0
          %1034 = vmatpush2.xpose.msra.mxu0 0.0
          %1035 = vmatprep.subr.mxu0 0.0
          %1036 = vmatpush2.xpose.msra.mxu0 0.0
          %1037 = vmatprep.subr.mxu0 0.0
          %1038 = vmatpush2.xpose.msra.mxu0 0.0
          %1039 = vmatprep.subr.mxu0 0.0
          %1040 = vmatpush2.xpose.msra.mxu0 0.0
          %1041 = vmatprep.subr.mxu0 0.0
          %1042 = vmatpush2.xpose.msra.mxu0 0.0
          %1043 = vmatprep.subr.mxu0 0.0
          %1044 = vmatpush2.xpose.msra.mxu0 0.0
          %1045 = vmatprep.subr.mxu0 0.0
          %1046 = vmatpush2.xpose.msra.mxu0 0.0
          %1047 = vmatprep.subr.mxu0 0.0
          %1048 = vmatpush2.xpose.msra.mxu0 0.0
          %1049 = vmatprep.mubr.f32.mxu0 0.0
          %1050 = vmatmul.mubr.f32.gmra.mxu0 %v981
          %v1051 = vpop.f32.mrf.mxu0
          %v1052 = vadd.f32 0.0, %v1051
          %v1053 = vpop.f32.mrf.mxu0
          %1054 = vdwg.mxu0
          %v1056 = vsel %vm679, %v676, 0
          %v1058 = vsel %vm679, %v644, 0
          %1060 = vmatprep.subr.mxu0 0.0
          %1061 = vmatpush1.xpose.msra.mxu0 0.0
          %1062 = vmatprep.subr.mxu0 0.0
          %1063 = vmatpush1.xpose.msra.mxu0 0.0
          %1064 = vmatprep.subr.mxu0 0.0
          %1065 = vmatpush1.xpose.msra.mxu0 0.0
          %1066 = vmatprep.subr.mxu0 0.0
          %1067 = vmatpush1.xpose.msra.mxu0 0.0
          %1068 = vmatprep.subr.mxu0 0.0
          %1069 = vmatpush1.xpose.msra.mxu0 0.0
          %1070 = vmatprep.subr.mxu0 0.0
          %1071 = vmatpush1.xpose.msra.mxu0 0.0
          %1072 = vmatprep.subr.mxu0 0.0
          %1073 = vmatpush1.xpose.msra.mxu0 0.0
          %1074 = vmatprep.subr.mxu0 0.0
          %1075 = vmatpush1.xpose.msra.mxu0 0.0
          %1076 = vmatprep.subr.mxu0 0.0
          %1077 = vmatpush1.xpose.msra.mxu0 0.0
          %1078 = vmatprep.subr.mxu0 0.0
          %1079 = vmatpush1.xpose.msra.mxu0 0.0
          %1080 = vmatprep.subr.mxu0 0.0
          %1081 = vmatpush1.xpose.msra.mxu0 0.0
          %1082 = vmatprep.subr.mxu0 0.0
          %1083 = vmatpush1.xpose.msra.mxu0 0.0
          %1084 = vmatprep.subr.mxu0 0.0
          %1085 = vmatpush1.xpose.msra.mxu0 0.0
          %1086 = vmatprep.subr.mxu0 0.0
          %1087 = vmatpush1.xpose.msra.mxu0 0.0
          %1088 = vmatprep.subr.mxu0 0.0
          %1089 = vmatpush1.xpose.msra.mxu0 0.0
          %1090 = vmatprep.subr.mxu0 0.0
          %1091 = vmatpush1.xpose.msra.mxu0 %v1058
          %1092 = vmatprep.subr.mxu0 0.0
          %1093 = vmatpush2.xpose.msra.mxu0 0.0
          %1094 = vmatprep.subr.mxu0 0.0
          %1095 = vmatpush2.xpose.msra.mxu0 0.0
          %1096 = vmatprep.subr.mxu0 0.0
          %1097 = vmatpush2.xpose.msra.mxu0 0.0
          %1098 = vmatprep.subr.mxu0 0.0
          %1099 = vmatpush2.xpose.msra.mxu0 0.0
          %1100 = vmatprep.subr.mxu0 0.0
          %1101 = vmatpush2.xpose.msra.mxu0 0.0
          %1102 = vmatprep.subr.mxu0 0.0
          %1103 = vmatpush2.xpose.msra.mxu0 0.0
          %1104 = vmatprep.subr.mxu0 0.0
          %1105 = vmatpush2.xpose.msra.mxu0 0.0
          %1106 = vmatprep.subr.mxu0 0.0
          %1107 = vmatpush2.xpose.msra.mxu0 0.0
          %1108 = vmatprep.subr.mxu0 0.0
          %1109 = vmatpush2.xpose.msra.mxu0 0.0
          %1110 = vmatprep.subr.mxu0 0.0
          %1111 = vmatpush2.xpose.msra.mxu0 0.0
          %1112 = vmatprep.subr.mxu0 0.0
          %1113 = vmatpush2.xpose.msra.mxu0 0.0
          %1114 = vmatprep.subr.mxu0 0.0
          %1115 = vmatpush2.xpose.msra.mxu0 0.0
          %1116 = vmatprep.subr.mxu0 0.0
          %1117 = vmatpush2.xpose.msra.mxu0 0.0
          %1118 = vmatprep.subr.mxu0 0.0
          %1119 = vmatpush2.xpose.msra.mxu0 0.0
          %1120 = vmatprep.subr.mxu0 0.0
          %1121 = vmatpush2.xpose.msra.mxu0 0.0
          %1122 = vmatprep.subr.mxu0 0.0
          %1123 = vmatpush2.xpose.msra.mxu0 0.0
          %1124 = vmatprep.mubr.f32.mxu0 0.0
          %1125 = vmatmul.mubr.f32.gmra.mxu0 %v1056
          %v1126 = vpop.f32.mrf.mxu0
          %v1127 = vadd.f32 0.0, %v1126
          %v1128 = vpop.f32.mrf.mxu0
          %1129 = vdwg.mxu0
          %v1131 = vsel %vm679, %v677, 0
          %v1133 = vsel %vm679, %v646, 0
          %1135 = vmatprep.subr.mxu0 0.0
          %1136 = vmatpush1.xpose.msra.mxu0 0.0
          %1137 = vmatprep.subr.mxu0 0.0
          %1138 = vmatpush1.xpose.msra.mxu0 0.0
          %1139 = vmatprep.subr.mxu0 0.0
          %1140 = vmatpush1.xpose.msra.mxu0 0.0
          %1141 = vmatprep.subr.mxu0 0.0
          %1142 = vmatpush1.xpose.msra.mxu0 0.0
          %1143 = vmatprep.subr.mxu0 0.0
          %1144 = vmatpush1.xpose.msra.mxu0 0.0
          %1145 = vmatprep.subr.mxu0 0.0
          %1146 = vmatpush1.xpose.msra.mxu0 0.0
          %1147 = vmatprep.subr.mxu0 0.0
          %1148 = vmatpush1.xpose.msra.mxu0 0.0
          %1149 = vmatprep.subr.mxu0 0.0
          %1150 = vmatpush1.xpose.msra.mxu0 0.0
          %1151 = vmatprep.subr.mxu0 0.0
          %1152 = vmatpush1.xpose.msra.mxu0 0.0
          %1153 = vmatprep.subr.mxu0 0.0
          %1154 = vmatpush1.xpose.msra.mxu0 0.0
          %1155 = vmatprep.subr.mxu0 0.0
          %1156 = vmatpush1.xpose.msra.mxu0 0.0
          %1157 = vmatprep.subr.mxu0 0.0
          %1158 = vmatpush1.xpose.msra.mxu0 0.0
          %1159 = vmatprep.subr.mxu0 0.0
          %1160 = vmatpush1.xpose.msra.mxu0 0.0
          %1161 = vmatprep.subr.mxu0 0.0
          %1162 = vmatpush1.xpose.msra.mxu0 0.0
          %1163 = vmatprep.subr.mxu0 0.0
          %1164 = vmatpush1.xpose.msra.mxu0 0.0
          %1165 = vmatprep.subr.mxu0 0.0
          %1166 = vmatpush1.xpose.msra.mxu0 %v1133
          %1167 = vmatprep.subr.mxu0 0.0
          %1168 = vmatpush2.xpose.msra.mxu0 0.0
          %1169 = vmatprep.subr.mxu0 0.0
          %1170 = vmatpush2.xpose.msra.mxu0 0.0
          %1171 = vmatprep.subr.mxu0 0.0
          %1172 = vmatpush2.xpose.msra.mxu0 0.0
          %1173 = vmatprep.subr.mxu0 0.0
          %1174 = vmatpush2.xpose.msra.mxu0 0.0
          %1175 = vmatprep.subr.mxu0 0.0
          %1176 = vmatpush2.xpose.msra.mxu0 0.0
          %1177 = vmatprep.subr.mxu0 0.0
          %1178 = vmatpush2.xpose.msra.mxu0 0.0
          %1179 = vmatprep.subr.mxu0 0.0
          %1180 = vmatpush2.xpose.msra.mxu0 0.0
          %1181 = vmatprep.subr.mxu0 0.0
          %1182 = vmatpush2.xpose.msra.mxu0 0.0
          %1183 = vmatprep.subr.mxu0 0.0
          %1184 = vmatpush2.xpose.msra.mxu0 0.0
          %1185 = vmatprep.subr.mxu0 0.0
          %1186 = vmatpush2.xpose.msra.mxu0 0.0
          %1187 = vmatprep.subr.mxu0 0.0
          %1188 = vmatpush2.xpose.msra.mxu0 0.0
          %1189 = vmatprep.subr.mxu0 0.0
          %1190 = vmatpush2.xpose.msra.mxu0 0.0
          %1191 = vmatprep.subr.mxu0 0.0
          %1192 = vmatpush2.xpose.msra.mxu0 0.0
          %1193 = vmatprep.subr.mxu0 0.0
          %1194 = vmatpush2.xpose.msra.mxu0 0.0
          %1195 = vmatprep.subr.mxu0 0.0
          %1196 = vmatpush2.xpose.msra.mxu0 0.0
          %1197 = vmatprep.subr.mxu0 0.0
          %1198 = vmatpush2.xpose.msra.mxu0 0.0
          %1199 = vmatprep.mubr.f32.mxu0 0.0
          %1200 = vmatmul.mubr.f32.gmra.mxu0 %v1131
          %v1201 = vpop.f32.mrf.mxu0
          %v1202 = vadd.f32 0.0, %v1201
          %v1203 = vpop.f32.mrf.mxu0
          %1204 = vdwg.mxu0
          %v1206 = vsel %vm679, %v678, 0
          %v1208 = vsel %vm679, %v648, 0
          %1210 = vmatprep.subr.mxu0 0.0
          %1211 = vmatpush1.xpose.msra.mxu0 0.0
          %1212 = vmatprep.subr.mxu0 0.0
          %1213 = vmatpush1.xpose.msra.mxu0 0.0
          %1214 = vmatprep.subr.mxu0 0.0
          %1215 = vmatpush1.xpose.msra.mxu0 0.0
          %1216 = vmatprep.subr.mxu0 0.0
          %1217 = vmatpush1.xpose.msra.mxu0 0.0
          %1218 = vmatprep.subr.mxu0 0.0
          %1219 = vmatpush1.xpose.msra.mxu0 0.0
          %1220 = vmatprep.subr.mxu0 0.0
          %1221 = vmatpush1.xpose.msra.mxu0 0.0
          %1222 = vmatprep.subr.mxu0 0.0
          %1223 = vmatpush1.xpose.msra.mxu0 0.0
          %1224 = vmatprep.subr.mxu0 0.0
          %1225 = vmatpush1.xpose.msra.mxu0 0.0
          %1226 = vmatprep.subr.mxu0 0.0
          %1227 = vmatpush1.xpose.msra.mxu0 0.0
          %1228 = vmatprep.subr.mxu0 0.0
          %1229 = vmatpush1.xpose.msra.mxu0 0.0
          %1230 = vmatprep.subr.mxu0 0.0
          %1231 = vmatpush1.xpose.msra.mxu0 0.0
          %1232 = vmatprep.subr.mxu0 0.0
          %1233 = vmatpush1.xpose.msra.mxu0 0.0
          %1234 = vmatprep.subr.mxu0 0.0
          %1235 = vmatpush1.xpose.msra.mxu0 0.0
          %1236 = vmatprep.subr.mxu0 0.0
          %1237 = vmatpush1.xpose.msra.mxu0 0.0
          %1238 = vmatprep.subr.mxu0 0.0
          %1239 = vmatpush1.xpose.msra.mxu0 0.0
          %1240 = vmatprep.subr.mxu0 0.0
          %1241 = vmatpush1.xpose.msra.mxu0 %v1208
          %1242 = vmatprep.subr.mxu0 0.0
          %1243 = vmatpush2.xpose.msra.mxu0 0.0
          %1244 = vmatprep.subr.mxu0 0.0
          %1245 = vmatpush2.xpose.msra.mxu0 0.0
          %1246 = vmatprep.subr.mxu0 0.0
          %1247 = vmatpush2.xpose.msra.mxu0 0.0
          %1248 = vmatprep.subr.mxu0 0.0
          %1249 = vmatpush2.xpose.msra.mxu0 0.0
          %1250 = vmatprep.subr.mxu0 0.0
          %1251 = vmatpush2.xpose.msra.mxu0 0.0
          %1252 = vmatprep.subr.mxu0 0.0
          %1253 = vmatpush2.xpose.msra.mxu0 0.0
          %1254 = vmatprep.subr.mxu0 0.0
          %1255 = vmatpush2.xpose.msra.mxu0 0.0
          %1256 = vmatprep.subr.mxu0 0.0
          %1257 = vmatpush2.xpose.msra.mxu0 0.0
          %1258 = vmatprep.subr.mxu0 0.0
          %1259 = vmatpush2.xpose.msra.mxu0 0.0
          %1260 = vmatprep.subr.mxu0 0.0
          %1261 = vmatpush2.xpose.msra.mxu0 0.0
          %1262 = vmatprep.subr.mxu0 0.0
          %1263 = vmatpush2.xpose.msra.mxu0 0.0
          %1264 = vmatprep.subr.mxu0 0.0
          %1265 = vmatpush2.xpose.msra.mxu0 0.0
          %1266 = vmatprep.subr.mxu0 0.0
          %1267 = vmatpush2.xpose.msra.mxu0 0.0
          %1268 = vmatprep.subr.mxu0 0.0
          %1269 = vmatpush2.xpose.msra.mxu0 0.0
          %1270 = vmatprep.subr.mxu0 0.0
          %1271 = vmatpush2.xpose.msra.mxu0 0.0
          %1272 = vmatprep.subr.mxu0 0.0
          %1273 = vmatpush2.xpose.msra.mxu0 0.0
          %1274 = vmatprep.mubr.f32.mxu0 0.0
          %1275 = vmatmul.mubr.f32.gmra.mxu0 %v1206
          %v1276 = vpop.f32.mrf.mxu0
          %v1277 = vadd.f32 0.0, %v1276
          %v1278 = vpop.f32.mrf.mxu0
          %1279 = vdwg.mxu0
          %v1280 = vlaneseq
          %v1281 = vshrl.u32 %v1280, 7
          %v1282 = vstv %s524
          %v1283 = vadd.s32 %v1282, %v1281
          %v1284 = vlaneseq
          %v1285 = vand.u32 %v1284, 127
          %v1286 = vstv %s523
          %v1287 = vadd.s32 %v1286, %v1285
          %vm1288 = vcmp.ge.s32.totalorder %v1283, %v1287
          %v1289 = vsel %vm1288, 1, 0
          %vm1290 = vcmp.eq.s32.totalorder %v1289, 1
          %v1291 = vsel %vm1290, %v752, -1e+30
          %v1292 = vsel %vm1290, %v827, -1e+30
          %v1293 = vsel %vm1290, %v902, -1e+30
          %v1294 = vsel %vm1290, %v977, -1e+30
          %v1295 = vsel %vm1290, %v1052, -1e+30
          %v1296 = vsel %vm1290, %v1127, -1e+30
          %v1297 = vsel %vm1290, %v1202, -1e+30
          %v1298 = vsel %vm1290, %v1277, -1e+30
          %v1299 = vld [vmem:[#allocation3] sm:$0xff]
          %v1300 = vld [vmem:[#allocation3 + $0x8] sm:$0xff]
          %v1301 = vld [vmem:[#allocation3 + $0x10] sm:$0xff]
          %v1302 = vld [vmem:[#allocation3 + $0x18] sm:$0xff]
          %v1303 = vld [vmem:[#allocation3 + $0x20] sm:$0xff]
          %v1304 = vld [vmem:[#allocation3 + $0x28] sm:$0xff]
          %v1305 = vld [vmem:[#allocation3 + $0x30] sm:$0xff]
          %v1306 = vld [vmem:[#allocation3 + $0x38] sm:$0xff]
          %vm1307 = vcmask 64512
          %v1308 = vsel %vm1307, %v1291, -inf
          %1309 = vmax.xlane.f32.xlu0 %v1308
          %v1310 = vpop.xlane.xlu0 %1309
          %v1311 = vsel %vm1307, %v1292, -inf
          %1312 = vmax.xlane.f32.xlu0 %v1311
          %v1313 = vpop.xlane.xlu0 %1312
          %v1314 = vsel %vm1307, %v1293, -inf
          %1315 = vmax.xlane.f32.xlu0 %v1314
          %v1316 = vpop.xlane.xlu0 %1315
          %v1317 = vsel %vm1307, %v1294, -inf
          %1318 = vmax.xlane.f32.xlu0 %v1317
          %v1319 = vpop.xlane.xlu0 %1318
          %v1320 = vsel %vm1307, %v1295, -inf
          %1321 = vmax.xlane.f32.xlu0 %v1320
          %v1322 = vpop.xlane.xlu0 %1321
          %v1323 = vsel %vm1307, %v1296, -inf
          %1324 = vmax.xlane.f32.xlu0 %v1323
          %v1325 = vpop.xlane.xlu0 %1324
          %v1326 = vsel %vm1307, %v1297, -inf
          %1327 = vmax.xlane.f32.xlu0 %v1326
          %v1328 = vpop.xlane.xlu0 %1327
          %v1329 = vsel %vm1307, %v1298, -inf
          %1330 = vmax.xlane.f32.xlu0 %v1329
          %v1331 = vpop.xlane.xlu0 %1330
          %v1332 = vmax.f32 %v1299, %v1310
          %v1333 = vmax.f32 %v1300, %v1313
          %v1334 = vmax.f32 %v1301, %v1316
          %v1335 = vmax.f32 %v1302, %v1319
          %v1336 = vmax.f32 %v1303, %v1322
          %v1337 = vmax.f32 %v1304, %v1325
          %v1338 = vmax.f32 %v1305, %v1328
          %v1339 = vmax.f32 %v1306, %v1331
          %v1340 = vsub.f32 %v1299, %v1332
          %v1341 = vsub.f32 %v1300, %v1333
          %v1342 = vsub.f32 %v1301, %v1334
          %v1343 = vsub.f32 %v1302, %v1335
          %v1344 = vsub.f32 %v1303, %v1336
          %v1345 = vsub.f32 %v1304, %v1337
          %v1346 = vsub.f32 %v1305, %v1338
          %v1347 = vsub.f32 %v1306, %v1339
          %v1348 = vmul.f32 %v1340, 1.442695
          %v1349 = vpow.pop %v1348
          %v1350 = vmul.f32 %v1341, 1.442695
          %v1351 = vpow.pop %v1350
          %v1352 = vmul.f32 %v1342, 1.442695
          %v1353 = vpow.pop %v1352
          %v1354 = vmul.f32 %v1343, 1.442695
          %v1355 = vpow.pop %v1354
          %v1356 = vmul.f32 %v1344, 1.442695
          %v1357 = vpow.pop %v1356
          %v1358 = vmul.f32 %v1345, 1.442695
          %v1359 = vpow.pop %v1358
          %v1360 = vmul.f32 %v1346, 1.442695
          %v1361 = vpow.pop %v1360
          %v1362 = vmul.f32 %v1347, 1.442695
          %v1363 = vpow.pop %v1362
          %1365 = vset.pattern.permute.xlu0 0
          %1366 = vperm.xlu0 %1365, %v1332
          %v1367 = vpop.permute.xlu0 %1366
          %1370 = vset.pattern.permute.xlu0 0
          %1371 = vperm.xlu0 %1370, %v1333
          %v1372 = vpop.permute.xlu0 %1371
          %1375 = vset.pattern.permute.xlu0 0
          %1376 = vperm.xlu0 %1375, %v1334
          %v1377 = vpop.permute.xlu0 %1376
          %1380 = vset.pattern.permute.xlu0 0
          %1381 = vperm.xlu0 %1380, %v1335
          %v1382 = vpop.permute.xlu0 %1381
          %1385 = vset.pattern.permute.xlu0 0
          %1386 = vperm.xlu0 %1385, %v1336
          %v1387 = vpop.permute.xlu0 %1386
          %1390 = vset.pattern.permute.xlu0 0
          %1391 = vperm.xlu0 %1390, %v1337
          %v1392 = vpop.permute.xlu0 %1391
          %1395 = vset.pattern.permute.xlu0 0
          %1396 = vperm.xlu0 %1395, %v1338
          %v1397 = vpop.permute.xlu0 %1396
          %1400 = vset.pattern.permute.xlu0 0
          %1401 = vperm.xlu0 %1400, %v1339
          %v1402 = vpop.permute.xlu0 %1401
          %v1404 = vsub.f32 %v1291, %v1367
          %v1405 = vsub.f32 %v1292, %v1372
          %v1406 = vsub.f32 %v1293, %v1377
          %v1407 = vsub.f32 %v1294, %v1382
          %v1408 = vsub.f32 %v1295, %v1387
          %v1409 = vsub.f32 %v1296, %v1392
          %v1410 = vsub.f32 %v1297, %v1397
          %v1411 = vsub.f32 %v1298, %v1402
          %v1412 = vmul.f32 %v1404, 1.442695
          %v1413 = vpow.pop %v1412
          %v1414 = vmul.f32 %v1405, 1.442695
          %v1415 = vpow.pop %v1414
          %v1416 = vmul.f32 %v1406, 1.442695
          %v1417 = vpow.pop %v1416
          %v1418 = vmul.f32 %v1407, 1.442695
          %v1419 = vpow.pop %v1418
          %v1420 = vmul.f32 %v1408, 1.442695
          %v1421 = vpow.pop %v1420
          %v1422 = vmul.f32 %v1409, 1.442695
          %v1423 = vpow.pop %v1422
          %v1424 = vmul.f32 %v1410, 1.442695
          %v1425 = vpow.pop %v1424
          %v1426 = vmul.f32 %v1411, 1.442695
          %v1427 = vpow.pop %v1426
          %v1428 = vld [vmem:[#allocation4] sm:$0xff]
          %v1429 = vld [vmem:[#allocation4 + $0x8] sm:$0xff]
          %v1430 = vld [vmem:[#allocation4 + $0x10] sm:$0xff]
          %v1431 = vld [vmem:[#allocation4 + $0x18] sm:$0xff]
          %v1432 = vld [vmem:[#allocation4 + $0x20] sm:$0xff]
          %v1433 = vld [vmem:[#allocation4 + $0x28] sm:$0xff]
          %v1434 = vld [vmem:[#allocation4 + $0x30] sm:$0xff]
          %v1435 = vld [vmem:[#allocation4 + $0x38] sm:$0xff]
          %v1436 = vmul.f32 %v1349, %v1428
          %v1437 = vmul.f32 %v1351, %v1429
          %v1438 = vmul.f32 %v1353, %v1430
          %v1439 = vmul.f32 %v1355, %v1431
          %v1440 = vmul.f32 %v1357, %v1432
          %v1441 = vmul.f32 %v1359, %v1433
          %v1442 = vmul.f32 %v1361, %v1434
          %v1443 = vmul.f32 %v1363, %v1435
          %v1444 = vsel %vm1307, %v1413, 0.0
          %1445 = vadd.xlane.f32.xlu0 %v1444
          %v1446 = vpop.xlane.xlu0 %1445
          %v1447 = vsel %vm1307, %v1415, 0.0
          %1448 = vadd.xlane.f32.xlu0 %v1447
          %v1449 = vpop.xlane.xlu0 %1448
          %v1450 = vsel %vm1307, %v1417, 0.0
          %1451 = vadd.xlane.f32.xlu0 %v1450
          %v1452 = vpop.xlane.xlu0 %1451
          %v1453 = vsel %vm1307, %v1419, 0.0
          %1454 = vadd.xlane.f32.xlu0 %v1453
          %v1455 = vpop.xlane.xlu0 %1454
          %v1456 = vsel %vm1307, %v1421, 0.0
          %1457 = vadd.xlane.f32.xlu0 %v1456
          %v1458 = vpop.xlane.xlu0 %1457
          %v1459 = vsel %vm1307, %v1423, 0.0
          %1460 = vadd.xlane.f32.xlu0 %v1459
          %v1461 = vpop.xlane.xlu0 %1460
          %v1462 = vsel %vm1307, %v1425, 0.0
          %1463 = vadd.xlane.f32.xlu0 %v1462
          %v1464 = vpop.xlane.xlu0 %1463
          %v1465 = vsel %vm1307, %v1427, 0.0
          %1466 = vadd.xlane.f32.xlu0 %v1465
          %v1467 = vpop.xlane.xlu0 %1466
          %v1468 = vadd.f32 %v1436, %v1446
          %v1469 = vadd.f32 %v1437, %v1449
          %v1470 = vadd.f32 %v1438, %v1452
          %v1471 = vadd.f32 %v1439, %v1455
          %v1472 = vadd.f32 %v1440, %v1458
          %v1473 = vadd.f32 %v1441, %v1461
          %v1474 = vadd.f32 %v1442, %v1464
          %v1475 = vadd.f32 %v1443, %v1467
          %vm1476 = vcmask 7168
          %1477 = vst.msk [vmem:[#allocation4] sm:$0xff] %vm1476, %v1468
          %1478 = vst.msk [vmem:[#allocation4 + $0x8] sm:$0xff] %vm1476, %v1469
          %1479 = vst.msk [vmem:[#allocation4 + $0x10] sm:$0xff] %vm1476, %v1470
          %1480 = vst.msk [vmem:[#allocation4 + $0x18] sm:$0xff] %vm1476, %v1471
          %1481 = vst.msk [vmem:[#allocation4 + $0x20] sm:$0xff] %vm1476, %v1472
          %1482 = vst.msk [vmem:[#allocation4 + $0x28] sm:$0xff] %vm1476, %v1473
          %1483 = vst.msk [vmem:[#allocation4 + $0x30] sm:$0xff] %vm1476, %v1474
          %1484 = vst.msk [vmem:[#allocation4 + $0x38] sm:$0xff] %vm1476, %v1475
          %v1485 = vld [vmem:[#allocation5] sm:$0xff]
          %v1486 = vld [vmem:[#allocation5 + $0x8] sm:$0xff]
          %v1487 = vld [vmem:[#allocation5 + $0x10] sm:$0xff]
          %v1488 = vld [vmem:[#allocation5 + $0x18] sm:$0xff]
          %v1489 = vld [vmem:[#allocation5 + $0x20] sm:$0xff]
          %v1490 = vld [vmem:[#allocation5 + $0x28] sm:$0xff]
          %v1491 = vld [vmem:[#allocation5 + $0x30] sm:$0xff]
          %v1492 = vld [vmem:[#allocation5 + $0x38] sm:$0xff]
          %1494 = vset.pattern.permute.xlu0 0
          %1495 = vperm.xlu0 %1494, %v1349
          %v1496 = vpop.permute.xlu0 %1495
          %1499 = vset.pattern.permute.xlu0 0
          %1500 = vperm.xlu0 %1499, %v1351
          %v1501 = vpop.permute.xlu0 %1500
          %1504 = vset.pattern.permute.xlu0 0
          %1505 = vperm.xlu0 %1504, %v1353
          %v1506 = vpop.permute.xlu0 %1505
          %1509 = vset.pattern.permute.xlu0 0
          %1510 = vperm.xlu0 %1509, %v1355
          %v1511 = vpop.permute.xlu0 %1510
          %1514 = vset.pattern.permute.xlu0 0
          %1515 = vperm.xlu0 %1514, %v1357
          %v1516 = vpop.permute.xlu0 %1515
          %1519 = vset.pattern.permute.xlu0 0
          %1520 = vperm.xlu0 %1519, %v1359
          %v1521 = vpop.permute.xlu0 %1520
          %1524 = vset.pattern.permute.xlu0 0
          %1525 = vperm.xlu0 %1524, %v1361
          %v1526 = vpop.permute.xlu0 %1525
          %1529 = vset.pattern.permute.xlu0 0
          %1530 = vperm.xlu0 %1529, %v1363
          %v1531 = vpop.permute.xlu0 %1530
          %v1533 = vmul.f32 %v1496, %v1485
          %v1534 = vmul.f32 %v1501, %v1486
          %v1535 = vmul.f32 %v1506, %v1487
          %v1536 = vmul.f32 %v1511, %v1488
          %v1537 = vmul.f32 %v1516, %v1489
          %v1538 = vmul.f32 %v1521, %v1490
          %v1539 = vmul.f32 %v1526, %v1491
          %v1540 = vmul.f32 %v1531, %v1492
          %v1542 = vsel %vm1307, %v1413, 0
          %1544 = vmatprep.subr.mxu0 0.0
          %1545 = vmatpush1.msra.mxu0 0.0
          %1546 = vmatprep.subr.mxu0 0.0
          %1547 = vmatpush1.msra.mxu0 0.0
          %1548 = vmatprep.subr.mxu0 0.0
          %1549 = vmatpush1.msra.mxu0 0.0
          %1550 = vmatprep.subr.mxu0 0.0
          %1551 = vmatpush1.msra.mxu0 0.0
          %1552 = vmatprep.subr.mxu0 0.0
          %1553 = vmatpush1.msra.mxu0 0.0
          %1554 = vmatprep.subr.mxu0 0.0
          %1555 = vmatpush1.msra.mxu0 0.0
          %1556 = vmatprep.subr.mxu0 0.0
          %1557 = vmatpush1.msra.mxu0 0.0
          %1558 = vmatprep.subr.mxu0 0.0
          %1559 = vmatpush1.msra.mxu0 0.0
          %1560 = vmatprep.subr.mxu0 0.0
          %1561 = vmatpush1.msra.mxu0 0.0
          %1562 = vmatprep.subr.mxu0 0.0
          %1563 = vmatpush1.msra.mxu0 0.0
          %1564 = vmatprep.subr.mxu0 0.0
          %1565 = vmatpush1.msra.mxu0 0.0
          %1566 = vmatprep.subr.mxu0 0.0
          %1567 = vmatpush1.msra.mxu0 0.0
          %1568 = vmatprep.subr.mxu0 0.0
          %1569 = vmatpush1.msra.mxu0 0.0
          %1570 = vmatprep.subr.mxu0 0.0
          %1571 = vmatpush1.msra.mxu0 0.0
          %1572 = vmatprep.subr.mxu0 0.0
          %1573 = vmatpush1.msra.mxu0 0.0
          %1574 = vmatprep.subr.mxu0 0.0
          %1575 = vmatpush1.msra.mxu0 %v632
          %1576 = vmatprep.subr.mxu0 0.0
          %1577 = vmatpush2.msra.mxu0 0.0
          %1578 = vmatprep.subr.mxu0 0.0
          %1579 = vmatpush2.msra.mxu0 0.0
          %1580 = vmatprep.subr.mxu0 0.0
          %1581 = vmatpush2.msra.mxu0 0.0
          %1582 = vmatprep.subr.mxu0 0.0
          %1583 = vmatpush2.msra.mxu0 0.0
          %1584 = vmatprep.subr.mxu0 0.0
          %1585 = vmatpush2.msra.mxu0 0.0
          %1586 = vmatprep.subr.mxu0 0.0
          %1587 = vmatpush2.msra.mxu0 0.0
          %1588 = vmatprep.subr.mxu0 0.0
          %1589 = vmatpush2.msra.mxu0 0.0
          %1590 = vmatprep.subr.mxu0 0.0
          %1591 = vmatpush2.msra.mxu0 0.0
          %1592 = vmatprep.subr.mxu0 0.0
          %1593 = vmatpush2.msra.mxu0 0.0
          %1594 = vmatprep.subr.mxu0 0.0
          %1595 = vmatpush2.msra.mxu0 0.0
          %1596 = vmatprep.subr.mxu0 0.0
          %1597 = vmatpush2.msra.mxu0 0.0
          %1598 = vmatprep.subr.mxu0 0.0
          %1599 = vmatpush2.msra.mxu0 0.0
          %1600 = vmatprep.subr.mxu0 0.0
          %1601 = vmatpush2.msra.mxu0 0.0
          %1602 = vmatprep.subr.mxu0 0.0
          %1603 = vmatpush2.msra.mxu0 0.0
          %1604 = vmatprep.subr.mxu0 0.0
          %1605 = vmatpush2.msra.mxu0 0.0
          %1606 = vmatprep.subr.mxu0 0.0
          %1607 = vmatpush2.msra.mxu0 0.0
          %1608 = vmatprep.mubr.f32.mxu0 0.0
          %1609 = vmatmul.mubr.f32.gmra.mxu0 %v1542
          %v1610 = vpop.f32.mrf.mxu0
          %v1611 = vadd.f32 0.0, %v1610
          %v1612 = vpop.f32.mrf.mxu0
          %1613 = vdwg.mxu0
          %v1615 = vsel %vm1307, %v1415, 0
          %1617 = vmatprep.subr.mxu0 0.0
          %1618 = vmatpush1.msra.mxu0 0.0
          %1619 = vmatprep.subr.mxu0 0.0
          %1620 = vmatpush1.msra.mxu0 0.0
          %1621 = vmatprep.subr.mxu0 0.0
          %1622 = vmatpush1.msra.mxu0 0.0
          %1623 = vmatprep.subr.mxu0 0.0
          %1624 = vmatpush1.msra.mxu0 0.0
          %1625 = vmatprep.subr.mxu0 0.0
          %1626 = vmatpush1.msra.mxu0 0.0
          %1627 = vmatprep.subr.mxu0 0.0
          %1628 = vmatpush1.msra.mxu0 0.0
          %1629 = vmatprep.subr.mxu0 0.0
          %1630 = vmatpush1.msra.mxu0 0.0
          %1631 = vmatprep.subr.mxu0 0.0
          %1632 = vmatpush1.msra.mxu0 0.0
          %1633 = vmatprep.subr.mxu0 0.0
          %1634 = vmatpush1.msra.mxu0 0.0
          %1635 = vmatprep.subr.mxu0 0.0
          %1636 = vmatpush1.msra.mxu0 0.0
          %1637 = vmatprep.subr.mxu0 0.0
          %1638 = vmatpush1.msra.mxu0 0.0
          %1639 = vmatprep.subr.mxu0 0.0
          %1640 = vmatpush1.msra.mxu0 0.0
          %1641 = vmatprep.subr.mxu0 0.0
          %1642 = vmatpush1.msra.mxu0 0.0
          %1643 = vmatprep.subr.mxu0 0.0
          %1644 = vmatpush1.msra.mxu0 0.0
          %1645 = vmatprep.subr.mxu0 0.0
          %1646 = vmatpush1.msra.mxu0 0.0
          %1647 = vmatprep.subr.mxu0 0.0
          %1648 = vmatpush1.msra.mxu0 %v651
          %1649 = vmatprep.subr.mxu0 0.0
          %1650 = vmatpush2.msra.mxu0 0.0
          %1651 = vmatprep.subr.mxu0 0.0
          %1652 = vmatpush2.msra.mxu0 0.0
          %1653 = vmatprep.subr.mxu0 0.0
          %1654 = vmatpush2.msra.mxu0 0.0
          %1655 = vmatprep.subr.mxu0 0.0
          %1656 = vmatpush2.msra.mxu0 0.0
          %1657 = vmatprep.subr.mxu0 0.0
          %1658 = vmatpush2.msra.mxu0 0.0
          %1659 = vmatprep.subr.mxu0 0.0
          %1660 = vmatpush2.msra.mxu0 0.0
          %1661 = vmatprep.subr.mxu0 0.0
          %1662 = vmatpush2.msra.mxu0 0.0
          %1663 = vmatprep.subr.mxu0 0.0
          %1664 = vmatpush2.msra.mxu0 0.0
          %1665 = vmatprep.subr.mxu0 0.0
          %1666 = vmatpush2.msra.mxu0 0.0
          %1667 = vmatprep.subr.mxu0 0.0
          %1668 = vmatpush2.msra.mxu0 0.0
          %1669 = vmatprep.subr.mxu0 0.0
          %1670 = vmatpush2.msra.mxu0 0.0
          %1671 = vmatprep.subr.mxu0 0.0
          %1672 = vmatpush2.msra.mxu0 0.0
          %1673 = vmatprep.subr.mxu0 0.0
          %1674 = vmatpush2.msra.mxu0 0.0
          %1675 = vmatprep.subr.mxu0 0.0
          %1676 = vmatpush2.msra.mxu0 0.0
          %1677 = vmatprep.subr.mxu0 0.0
          %1678 = vmatpush2.msra.mxu0 0.0
          %1679 = vmatprep.subr.mxu0 0.0
          %1680 = vmatpush2.msra.mxu0 0.0
          %1681 = vmatprep.mubr.f32.mxu0 0.0
          %1682 = vmatmul.mubr.f32.gmra.mxu0 %v1615
          %v1683 = vpop.f32.mrf.mxu0
          %v1684 = vadd.f32 0.0, %v1683
          %v1685 = vpop.f32.mrf.mxu0
          %1686 = vdwg.mxu0
          %v1688 = vsel %vm1307, %v1417, 0
          %1690 = vmatprep.subr.mxu0 0.0
          %1691 = vmatpush1.msra.mxu0 0.0
          %1692 = vmatprep.subr.mxu0 0.0
          %1693 = vmatpush1.msra.mxu0 0.0
          %1694 = vmatprep.subr.mxu0 0.0
          %1695 = vmatpush1.msra.mxu0 0.0
          %1696 = vmatprep.subr.mxu0 0.0
          %1697 = vmatpush1.msra.mxu0 0.0
          %1698 = vmatprep.subr.mxu0 0.0
          %1699 = vmatpush1.msra.mxu0 0.0
          %1700 = vmatprep.subr.mxu0 0.0
          %1701 = vmatpush1.msra.mxu0 0.0
          %1702 = vmatprep.subr.mxu0 0.0
          %1703 = vmatpush1.msra.mxu0 0.0
          %1704 = vmatprep.subr.mxu0 0.0
          %1705 = vmatpush1.msra.mxu0 0.0
          %1706 = vmatprep.subr.mxu0 0.0
          %1707 = vmatpush1.msra.mxu0 0.0
          %1708 = vmatprep.subr.mxu0 0.0
          %1709 = vmatpush1.msra.mxu0 0.0
          %1710 = vmatprep.subr.mxu0 0.0
          %1711 = vmatpush1.msra.mxu0 0.0
          %1712 = vmatprep.subr.mxu0 0.0
          %1713 = vmatpush1.msra.mxu0 0.0
          %1714 = vmatprep.subr.mxu0 0.0
          %1715 = vmatpush1.msra.mxu0 0.0
          %1716 = vmatprep.subr.mxu0 0.0
          %1717 = vmatpush1.msra.mxu0 0.0
          %1718 = vmatprep.subr.mxu0 0.0
          %1719 = vmatpush1.msra.mxu0 0.0
          %1720 = vmatprep.subr.mxu0 0.0
          %1721 = vmatpush1.msra.mxu0 %v654
          %1722 = vmatprep.subr.mxu0 0.0
          %1723 = vmatpush2.msra.mxu0 0.0
          %1724 = vmatprep.subr.mxu0 0.0
          %1725 = vmatpush2.msra.mxu0 0.0
          %1726 = vmatprep.subr.mxu0 0.0
          %1727 = vmatpush2.msra.mxu0 0.0
          %1728 = vmatprep.subr.mxu0 0.0
          %1729 = vmatpush2.msra.mxu0 0.0
          %1730 = vmatprep.subr.mxu0 0.0
          %1731 = vmatpush2.msra.mxu0 0.0
          %1732 = vmatprep.subr.mxu0 0.0
          %1733 = vmatpush2.msra.mxu0 0.0
          %1734 = vmatprep.subr.mxu0 0.0
          %1735 = vmatpush2.msra.mxu0 0.0
          %1736 = vmatprep.subr.mxu0 0.0
          %1737 = vmatpush2.msra.mxu0 0.0
          %1738 = vmatprep.subr.mxu0 0.0
          %1739 = vmatpush2.msra.mxu0 0.0
          %1740 = vmatprep.subr.mxu0 0.0
          %1741 = vmatpush2.msra.mxu0 0.0
          %1742 = vmatprep.subr.mxu0 0.0
          %1743 = vmatpush2.msra.mxu0 0.0
          %1744 = vmatprep.subr.mxu0 0.0
          %1745 = vmatpush2.msra.mxu0 0.0
          %1746 = vmatprep.subr.mxu0 0.0
          %1747 = vmatpush2.msra.mxu0 0.0
          %1748 = vmatprep.subr.mxu0 0.0
          %1749 = vmatpush2.msra.mxu0 0.0
          %1750 = vmatprep.subr.mxu0 0.0
          %1751 = vmatpush2.msra.mxu0 0.0
          %1752 = vmatprep.subr.mxu0 0.0
          %1753 = vmatpush2.msra.mxu0 0.0
          %1754 = vmatprep.mubr.f32.mxu0 0.0
          %1755 = vmatmul.mubr.f32.gmra.mxu0 %v1688
          %v1756 = vpop.f32.mrf.mxu0
          %v1757 = vadd.f32 0.0, %v1756
          %v1758 = vpop.f32.mrf.mxu0
          %1759 = vdwg.mxu0
          %v1761 = vsel %vm1307, %v1419, 0
          %1763 = vmatprep.subr.mxu0 0.0
          %1764 = vmatpush1.msra.mxu0 0.0
          %1765 = vmatprep.subr.mxu0 0.0
          %1766 = vmatpush1.msra.mxu0 0.0
          %1767 = vmatprep.subr.mxu0 0.0
          %1768 = vmatpush1.msra.mxu0 0.0
          %1769 = vmatprep.subr.mxu0 0.0
          %1770 = vmatpush1.msra.mxu0 0.0
          %1771 = vmatprep.subr.mxu0 0.0
          %1772 = vmatpush1.msra.mxu0 0.0
          %1773 = vmatprep.subr.mxu0 0.0
          %1774 = vmatpush1.msra.mxu0 0.0
          %1775 = vmatprep.subr.mxu0 0.0
          %1776 = vmatpush1.msra.mxu0 0.0
          %1777 = vmatprep.subr.mxu0 0.0
          %1778 = vmatpush1.msra.mxu0 0.0
          %1779 = vmatprep.subr.mxu0 0.0
          %1780 = vmatpush1.msra.mxu0 0.0
          %1781 = vmatprep.subr.mxu0 0.0
          %1782 = vmatpush1.msra.mxu0 0.0
          %1783 = vmatprep.subr.mxu0 0.0
          %1784 = vmatpush1.msra.mxu0 0.0
          %1785 = vmatprep.subr.mxu0 0.0
          %1786 = vmatpush1.msra.mxu0 0.0
          %1787 = vmatprep.subr.mxu0 0.0
          %1788 = vmatpush1.msra.mxu0 0.0
          %1789 = vmatprep.subr.mxu0 0.0
          %1790 = vmatpush1.msra.mxu0 0.0
          %1791 = vmatprep.subr.mxu0 0.0
          %1792 = vmatpush1.msra.mxu0 0.0
          %1793 = vmatprep.subr.mxu0 0.0
          %1794 = vmatpush1.msra.mxu0 %v657
          %1795 = vmatprep.subr.mxu0 0.0
          %1796 = vmatpush2.msra.mxu0 0.0
          %1797 = vmatprep.subr.mxu0 0.0
          %1798 = vmatpush2.msra.mxu0 0.0
          %1799 = vmatprep.subr.mxu0 0.0
          %1800 = vmatpush2.msra.mxu0 0.0
          %1801 = vmatprep.subr.mxu0 0.0
          %1802 = vmatpush2.msra.mxu0 0.0
          %1803 = vmatprep.subr.mxu0 0.0
          %1804 = vmatpush2.msra.mxu0 0.0
          %1805 = vmatprep.subr.mxu0 0.0
          %1806 = vmatpush2.msra.mxu0 0.0
          %1807 = vmatprep.subr.mxu0 0.0
          %1808 = vmatpush2.msra.mxu0 0.0
          %1809 = vmatprep.subr.mxu0 0.0
          %1810 = vmatpush2.msra.mxu0 0.0
          %1811 = vmatprep.subr.mxu0 0.0
          %1812 = vmatpush2.msra.mxu0 0.0
          %1813 = vmatprep.subr.mxu0 0.0
          %1814 = vmatpush2.msra.mxu0 0.0
          %1815 = vmatprep.subr.mxu0 0.0
          %1816 = vmatpush2.msra.mxu0 0.0
          %1817 = vmatprep.subr.mxu0 0.0
          %1818 = vmatpush2.msra.mxu0 0.0
          %1819 = vmatprep.subr.mxu0 0.0
          %1820 = vmatpush2.msra.mxu0 0.0
          %1821 = vmatprep.subr.mxu0 0.0
          %1822 = vmatpush2.msra.mxu0 0.0
          %1823 = vmatprep.subr.mxu0 0.0
          %1824 = vmatpush2.msra.mxu0 0.0
          %1825 = vmatprep.subr.mxu0 0.0
          %1826 = vmatpush2.msra.mxu0 0.0
          %1827 = vmatprep.mubr.f32.mxu0 0.0
          %1828 = vmatmul.mubr.f32.gmra.mxu0 %v1761
          %v1829 = vpop.f32.mrf.mxu0
          %v1830 = vadd.f32 0.0, %v1829
          %v1831 = vpop.f32.mrf.mxu0
          %1832 = vdwg.mxu0
          %v1834 = vsel %vm1307, %v1421, 0
          %1836 = vmatprep.subr.mxu0 0.0
          %1837 = vmatpush1.msra.mxu0 0.0
          %1838 = vmatprep.subr.mxu0 0.0
          %1839 = vmatpush1.msra.mxu0 0.0
          %1840 = vmatprep.subr.mxu0 0.0
          %1841 = vmatpush1.msra.mxu0 0.0
          %1842 = vmatprep.subr.mxu0 0.0
          %1843 = vmatpush1.msra.mxu0 0.0
          %1844 = vmatprep.subr.mxu0 0.0
          %1845 = vmatpush1.msra.mxu0 0.0
          %1846 = vmatprep.subr.mxu0 0.0
          %1847 = vmatpush1.msra.mxu0 0.0
          %1848 = vmatprep.subr.mxu0 0.0
          %1849 = vmatpush1.msra.mxu0 0.0
          %1850 = vmatprep.subr.mxu0 0.0
          %1851 = vmatpush1.msra.mxu0 0.0
          %1852 = vmatprep.subr.mxu0 0.0
          %1853 = vmatpush1.msra.mxu0 0.0
          %1854 = vmatprep.subr.mxu0 0.0
          %1855 = vmatpush1.msra.mxu0 0.0
          %1856 = vmatprep.subr.mxu0 0.0
          %1857 = vmatpush1.msra.mxu0 0.0
          %1858 = vmatprep.subr.mxu0 0.0
          %1859 = vmatpush1.msra.mxu0 0.0
          %1860 = vmatprep.subr.mxu0 0.0
          %1861 = vmatpush1.msra.mxu0 0.0
          %1862 = vmatprep.subr.mxu0 0.0
          %1863 = vmatpush1.msra.mxu0 0.0
          %1864 = vmatprep.subr.mxu0 0.0
          %1865 = vmatpush1.msra.mxu0 0.0
          %1866 = vmatprep.subr.mxu0 0.0
          %1867 = vmatpush1.msra.mxu0 %v660
          %1868 = vmatprep.subr.mxu0 0.0
          %1869 = vmatpush2.msra.mxu0 0.0
          %1870 = vmatprep.subr.mxu0 0.0
          %1871 = vmatpush2.msra.mxu0 0.0
          %1872 = vmatprep.subr.mxu0 0.0
          %1873 = vmatpush2.msra.mxu0 0.0
          %1874 = vmatprep.subr.mxu0 0.0
          %1875 = vmatpush2.msra.mxu0 0.0
          %1876 = vmatprep.subr.mxu0 0.0
          %1877 = vmatpush2.msra.mxu0 0.0
          %1878 = vmatprep.subr.mxu0 0.0
          %1879 = vmatpush2.msra.mxu0 0.0
          %1880 = vmatprep.subr.mxu0 0.0
          %1881 = vmatpush2.msra.mxu0 0.0
          %1882 = vmatprep.subr.mxu0 0.0
          %1883 = vmatpush2.msra.mxu0 0.0
          %1884 = vmatprep.subr.mxu0 0.0
          %1885 = vmatpush2.msra.mxu0 0.0
          %1886 = vmatprep.subr.mxu0 0.0
          %1887 = vmatpush2.msra.mxu0 0.0
          %1888 = vmatprep.subr.mxu0 0.0
          %1889 = vmatpush2.msra.mxu0 0.0
          %1890 = vmatprep.subr.mxu0 0.0
          %1891 = vmatpush2.msra.mxu0 0.0
          %1892 = vmatprep.subr.mxu0 0.0
          %1893 = vmatpush2.msra.mxu0 0.0
          %1894 = vmatprep.subr.mxu0 0.0
          %1895 = vmatpush2.msra.mxu0 0.0
          %1896 = vmatprep.subr.mxu0 0.0
          %1897 = vmatpush2.msra.mxu0 0.0
          %1898 = vmatprep.subr.mxu0 0.0
          %1899 = vmatpush2.msra.mxu0 0.0
          %1900 = vmatprep.mubr.f32.mxu0 0.0
          %1901 = vmatmul.mubr.f32.gmra.mxu0 %v1834
          %v1902 = vpop.f32.mrf.mxu0
          %v1903 = vadd.f32 0.0, %v1902
          %v1904 = vpop.f32.mrf.mxu0
          %1905 = vdwg.mxu0
          %v1907 = vsel %vm1307, %v1423, 0
          %1909 = vmatprep.subr.mxu0 0.0
          %1910 = vmatpush1.msra.mxu0 0.0
          %1911 = vmatprep.subr.mxu0 0.0
          %1912 = vmatpush1.msra.mxu0 0.0
          %1913 = vmatprep.subr.mxu0 0.0
          %1914 = vmatpush1.msra.mxu0 0.0
          %1915 = vmatprep.subr.mxu0 0.0
          %1916 = vmatpush1.msra.mxu0 0.0
          %1917 = vmatprep.subr.mxu0 0.0
          %1918 = vmatpush1.msra.mxu0 0.0
          %1919 = vmatprep.subr.mxu0 0.0
          %1920 = vmatpush1.msra.mxu0 0.0
          %1921 = vmatprep.subr.mxu0 0.0
          %1922 = vmatpush1.msra.mxu0 0.0
          %1923 = vmatprep.subr.mxu0 0.0
          %1924 = vmatpush1.msra.mxu0 0.0
          %1925 = vmatprep.subr.mxu0 0.0
          %1926 = vmatpush1.msra.mxu0 0.0
          %1927 = vmatprep.subr.mxu0 0.0
          %1928 = vmatpush1.msra.mxu0 0.0
          %1929 = vmatprep.subr.mxu0 0.0
          %1930 = vmatpush1.msra.mxu0 0.0
          %1931 = vmatprep.subr.mxu0 0.0
          %1932 = vmatpush1.msra.mxu0 0.0
          %1933 = vmatprep.subr.mxu0 0.0
          %1934 = vmatpush1.msra.mxu0 0.0
          %1935 = vmatprep.subr.mxu0 0.0
          %1936 = vmatpush1.msra.mxu0 0.0
          %1937 = vmatprep.subr.mxu0 0.0
          %1938 = vmatpush1.msra.mxu0 0.0
          %1939 = vmatprep.subr.mxu0 0.0
          %1940 = vmatpush1.msra.mxu0 %v663
          %1941 = vmatprep.subr.mxu0 0.0
          %1942 = vmatpush2.msra.mxu0 0.0
          %1943 = vmatprep.subr.mxu0 0.0
          %1944 = vmatpush2.msra.mxu0 0.0
          %1945 = vmatprep.subr.mxu0 0.0
          %1946 = vmatpush2.msra.mxu0 0.0
          %1947 = vmatprep.subr.mxu0 0.0
          %1948 = vmatpush2.msra.mxu0 0.0
          %1949 = vmatprep.subr.mxu0 0.0
          %1950 = vmatpush2.msra.mxu0 0.0
          %1951 = vmatprep.subr.mxu0 0.0
          %1952 = vmatpush2.msra.mxu0 0.0
          %1953 = vmatprep.subr.mxu0 0.0
          %1954 = vmatpush2.msra.mxu0 0.0
          %1955 = vmatprep.subr.mxu0 0.0
          %1956 = vmatpush2.msra.mxu0 0.0
          %1957 = vmatprep.subr.mxu0 0.0
          %1958 = vmatpush2.msra.mxu0 0.0
          %1959 = vmatprep.subr.mxu0 0.0
          %1960 = vmatpush2.msra.mxu0 0.0
          %1961 = vmatprep.subr.mxu0 0.0
          %1962 = vmatpush2.msra.mxu0 0.0
          %1963 = vmatprep.subr.mxu0 0.0
          %1964 = vmatpush2.msra.mxu0 0.0
          %1965 = vmatprep.subr.mxu0 0.0
          %1966 = vmatpush2.msra.mxu0 0.0
          %1967 = vmatprep.subr.mxu0 0.0
          %1968 = vmatpush2.msra.mxu0 0.0
          %1969 = vmatprep.subr.mxu0 0.0
          %1970 = vmatpush2.msra.mxu0 0.0
          %1971 = vmatprep.subr.mxu0 0.0
          %1972 = vmatpush2.msra.mxu0 0.0
          %1973 = vmatprep.mubr.f32.mxu0 0.0
          %1974 = vmatmul.mubr.f32.gmra.mxu0 %v1907
          %v1975 = vpop.f32.mrf.mxu0
          %v1976 = vadd.f32 0.0, %v1975
          %v1977 = vpop.f32.mrf.mxu0
          %1978 = vdwg.mxu0
          %v1980 = vsel %vm1307, %v1425, 0
          %1982 = vmatprep.subr.mxu0 0.0
          %1983 = vmatpush1.msra.mxu0 0.0
          %1984 = vmatprep.subr.mxu0 0.0
          %1985 = vmatpush1.msra.mxu0 0.0
          %1986 = vmatprep.subr.mxu0 0.0
          %1987 = vmatpush1.msra.mxu0 0.0
          %1988 = vmatprep.subr.mxu0 0.0
          %1989 = vmatpush1.msra.mxu0 0.0
          %1990 = vmatprep.subr.mxu0 0.0
          %1991 = vmatpush1.msra.mxu0 0.0
          %1992 = vmatprep.subr.mxu0 0.0
          %1993 = vmatpush1.msra.mxu0 0.0
          %1994 = vmatprep.subr.mxu0 0.0
          %1995 = vmatpush1.msra.mxu0 0.0
          %1996 = vmatprep.subr.mxu0 0.0
          %1997 = vmatpush1.msra.mxu0 0.0
          %1998 = vmatprep.subr.mxu0 0.0
          %1999 = vmatpush1.msra.mxu0 0.0
          %2000 = vmatprep.subr.mxu0 0.0
          %2001 = vmatpush1.msra.mxu0 0.0
          %2002 = vmatprep.subr.mxu0 0.0
          %2003 = vmatpush1.msra.mxu0 0.0
          %2004 = vmatprep.subr.mxu0 0.0
          %2005 = vmatpush1.msra.mxu0 0.0
          %2006 = vmatprep.subr.mxu0 0.0
          %2007 = vmatpush1.msra.mxu0 0.0
          %2008 = vmatprep.subr.mxu0 0.0
          %2009 = vmatpush1.msra.mxu0 0.0
          %2010 = vmatprep.subr.mxu0 0.0
          %2011 = vmatpush1.msra.mxu0 0.0
          %2012 = vmatprep.subr.mxu0 0.0
          %2013 = vmatpush1.msra.mxu0 %v666
          %2014 = vmatprep.subr.mxu0 0.0
          %2015 = vmatpush2.msra.mxu0 0.0
          %2016 = vmatprep.subr.mxu0 0.0
          %2017 = vmatpush2.msra.mxu0 0.0
          %2018 = vmatprep.subr.mxu0 0.0
          %2019 = vmatpush2.msra.mxu0 0.0
          %2020 = vmatprep.subr.mxu0 0.0
          %2021 = vmatpush2.msra.mxu0 0.0
          %2022 = vmatprep.subr.mxu0 0.0
          %2023 = vmatpush2.msra.mxu0 0.0
          %2024 = vmatprep.subr.mxu0 0.0
          %2025 = vmatpush2.msra.mxu0 0.0
          %2026 = vmatprep.subr.mxu0 0.0
          %2027 = vmatpush2.msra.mxu0 0.0
          %2028 = vmatprep.subr.mxu0 0.0
          %2029 = vmatpush2.msra.mxu0 0.0
          %2030 = vmatprep.subr.mxu0 0.0
          %2031 = vmatpush2.msra.mxu0 0.0
          %2032 = vmatprep.subr.mxu0 0.0
          %2033 = vmatpush2.msra.mxu0 0.0
          %2034 = vmatprep.subr.mxu0 0.0
          %2035 = vmatpush2.msra.mxu0 0.0
          %2036 = vmatprep.subr.mxu0 0.0
          %2037 = vmatpush2.msra.mxu0 0.0
          %2038 = vmatprep.subr.mxu0 0.0
          %2039 = vmatpush2.msra.mxu0 0.0
          %2040 = vmatprep.subr.mxu0 0.0
          %2041 = vmatpush2.msra.mxu0 0.0
          %2042 = vmatprep.subr.mxu0 0.0
          %2043 = vmatpush2.msra.mxu0 0.0
          %2044 = vmatprep.subr.mxu0 0.0
          %2045 = vmatpush2.msra.mxu0 0.0
          %2046 = vmatprep.mubr.f32.mxu0 0.0
          %2047 = vmatmul.mubr.f32.gmra.mxu0 %v1980
          %v2048 = vpop.f32.mrf.mxu0
          %v2049 = vadd.f32 0.0, %v2048
          %v2050 = vpop.f32.mrf.mxu0
          %2051 = vdwg.mxu0
          %v2053 = vsel %vm1307, %v1427, 0
          %2055 = vmatprep.subr.mxu0 0.0
          %2056 = vmatpush1.msra.mxu0 0.0
          %2057 = vmatprep.subr.mxu0 0.0
          %2058 = vmatpush1.msra.mxu0 0.0
          %2059 = vmatprep.subr.mxu0 0.0
          %2060 = vmatpush1.msra.mxu0 0.0
          %2061 = vmatprep.subr.mxu0 0.0
          %2062 = vmatpush1.msra.mxu0 0.0
          %2063 = vmatprep.subr.mxu0 0.0
          %2064 = vmatpush1.msra.mxu0 0.0
          %2065 = vmatprep.subr.mxu0 0.0
          %2066 = vmatpush1.msra.mxu0 0.0
          %2067 = vmatprep.subr.mxu0 0.0
          %2068 = vmatpush1.msra.mxu0 0.0
          %2069 = vmatprep.subr.mxu0 0.0
          %2070 = vmatpush1.msra.mxu0 0.0
          %2071 = vmatprep.subr.mxu0 0.0
          %2072 = vmatpush1.msra.mxu0 0.0
          %2073 = vmatprep.subr.mxu0 0.0
          %2074 = vmatpush1.msra.mxu0 0.0
          %2075 = vmatprep.subr.mxu0 0.0
          %2076 = vmatpush1.msra.mxu0 0.0
          %2077 = vmatprep.subr.mxu0 0.0
          %2078 = vmatpush1.msra.mxu0 0.0
          %2079 = vmatprep.subr.mxu0 0.0
          %2080 = vmatpush1.msra.mxu0 0.0
          %2081 = vmatprep.subr.mxu0 0.0
          %2082 = vmatpush1.msra.mxu0 0.0
          %2083 = vmatprep.subr.mxu0 0.0
          %2084 = vmatpush1.msra.mxu0 0.0
          %2085 = vmatprep.subr.mxu0 0.0
          %2086 = vmatpush1.msra.mxu0 %v669
          %2087 = vmatprep.subr.mxu0 0.0
          %2088 = vmatpush2.msra.mxu0 0.0
          %2089 = vmatprep.subr.mxu0 0.0
          %2090 = vmatpush2.msra.mxu0 0.0
          %2091 = vmatprep.subr.mxu0 0.0
          %2092 = vmatpush2.msra.mxu0 0.0
          %2093 = vmatprep.subr.mxu0 0.0
          %2094 = vmatpush2.msra.mxu0 0.0
          %2095 = vmatprep.subr.mxu0 0.0
          %2096 = vmatpush2.msra.mxu0 0.0
          %2097 = vmatprep.subr.mxu0 0.0
          %2098 = vmatpush2.msra.mxu0 0.0
          %2099 = vmatprep.subr.mxu0 0.0
          %2100 = vmatpush2.msra.mxu0 0.0
          %2101 = vmatprep.subr.mxu0 0.0
          %2102 = vmatpush2.msra.mxu0 0.0
          %2103 = vmatprep.subr.mxu0 0.0
          %2104 = vmatpush2.msra.mxu0 0.0
          %2105 = vmatprep.subr.mxu0 0.0
          %2106 = vmatpush2.msra.mxu0 0.0
          %2107 = vmatprep.subr.mxu0 0.0
          %2108 = vmatpush2.msra.mxu0 0.0
          %2109 = vmatprep.subr.mxu0 0.0
          %2110 = vmatpush2.msra.mxu0 0.0
          %2111 = vmatprep.subr.mxu0 0.0
          %2112 = vmatpush2.msra.mxu0 0.0
          %2113 = vmatprep.subr.mxu0 0.0
          %2114 = vmatpush2.msra.mxu0 0.0
          %2115 = vmatprep.subr.mxu0 0.0
          %2116 = vmatpush2.msra.mxu0 0.0
          %2117 = vmatprep.subr.mxu0 0.0
          %2118 = vmatpush2.msra.mxu0 0.0
          %2119 = vmatprep.mubr.f32.mxu0 0.0
          %2120 = vmatmul.mubr.f32.gmra.mxu0 %v2053
          %v2121 = vpop.f32.mrf.mxu0
          %v2122 = vadd.f32 0.0, %v2121
          %v2123 = vpop.f32.mrf.mxu0
          %2124 = vdwg.mxu0
          %v2125 = vadd.f32 %v1533, %v1611
          %v2126 = vadd.f32 %v1534, %v1684
          %v2127 = vadd.f32 %v1535, %v1757
          %v2128 = vadd.f32 %v1536, %v1830
          %v2129 = vadd.f32 %v1537, %v1903
          %v2130 = vadd.f32 %v1538, %v1976
          %v2131 = vadd.f32 %v1539, %v2049
          %v2132 = vadd.f32 %v1540, %v2122
          %2133 = vst.msk [vmem:[#allocation5] sm:$0xff] %vm679, %v2125
          %2134 = vst.msk [vmem:[#allocation5 + $0x8] sm:$0xff] %vm679, %v2126
          %2135 = vst.msk [vmem:[#allocation5 + $0x10] sm:$0xff] %vm679, %v2127
          %2136 = vst.msk [vmem:[#allocation5 + $0x18] sm:$0xff] %vm679, %v2128
          %2137 = vst.msk [vmem:[#allocation5 + $0x20] sm:$0xff] %vm679, %v2129
          %2138 = vst.msk [vmem:[#allocation5 + $0x28] sm:$0xff] %vm679, %v2130
          %2139 = vst.msk [vmem:[#allocation5 + $0x30] sm:$0xff] %vm679, %v2131
          %2140 = vst.msk [vmem:[#allocation5 + $0x38] sm:$0xff] %vm679, %v2132
          %2141 = vst.msk [vmem:[#allocation3] sm:$0xff] %vm1476, %v1332
          %2142 = vst.msk [vmem:[#allocation3 + $0x8] sm:$0xff] %vm1476, %v1333
          %2143 = vst.msk [vmem:[#allocation3 + $0x10] sm:$0xff] %vm1476, %v1334
          %2144 = vst.msk [vmem:[#allocation3 + $0x18] sm:$0xff] %vm1476, %v1335
          %2145 = vst.msk [vmem:[#allocation3 + $0x20] sm:$0xff] %vm1476, %v1336
          %2146 = vst.msk [vmem:[#allocation3 + $0x28] sm:$0xff] %vm1476, %v1337
          %2147 = vst.msk [vmem:[#allocation3 + $0x30] sm:$0xff] %vm1476, %v1338
          %2148 = vst.msk [vmem:[#allocation3 + $0x38] sm:$0xff] %vm1476, %v1339
        $region72: #{tpu_custom_call.1} parent=43 // pred_fallthru
          _
        %p2149 = scmp.eq.s32.totalorder %s34, 1
        // Predicated region
        $region73: #{tpu_custom_call.1} parent=43 // pred_check
          %p2150 = pneg %p2149
        $region74: #{tpu_custom_call.1} parent=43 // pred_check_branch
          %2152 = sbr.rel (%p2150) target = $region76
        $region75: #{tpu_custom_call.1} parent=43 // pred_region
          %v2153 = vld [vmem:[#allocation5] sm:$0xff]
          %v2154 = vld [vmem:[#allocation5 + $0x8] sm:$0xff]
          %v2155 = vld [vmem:[#allocation5 + $0x10] sm:$0xff]
          %v2156 = vld [vmem:[#allocation5 + $0x18] sm:$0xff]
          %v2157 = vld [vmem:[#allocation5 + $0x20] sm:$0xff]
          %v2158 = vld [vmem:[#allocation5 + $0x28] sm:$0xff]
          %v2159 = vld [vmem:[#allocation5 + $0x30] sm:$0xff]
          %v2160 = vld [vmem:[#allocation5 + $0x38] sm:$0xff]
          %v2161 = vld [vmem:[#allocation4] sm:$0xff]
          %v2162 = vld [vmem:[#allocation4 + $0x8] sm:$0xff]
          %v2163 = vld [vmem:[#allocation4 + $0x10] sm:$0xff]
          %v2164 = vld [vmem:[#allocation4 + $0x18] sm:$0xff]
          %v2165 = vld [vmem:[#allocation4 + $0x20] sm:$0xff]
          %v2166 = vld [vmem:[#allocation4 + $0x28] sm:$0xff]
          %v2167 = vld [vmem:[#allocation4 + $0x30] sm:$0xff]
          %v2168 = vld [vmem:[#allocation4 + $0x38] sm:$0xff]
          %v2169 = vrcp.pop %v2161
          %v2170 = vrcp.pop %v2162
          %v2171 = vrcp.pop %v2163
          %v2172 = vrcp.pop %v2164
          %v2173 = vrcp.pop %v2165
          %v2174 = vrcp.pop %v2166
          %v2175 = vrcp.pop %v2167
          %v2176 = vrcp.pop %v2168
          %2178 = vset.pattern.permute.xlu0 0
          %2179 = vperm.xlu0 %2178, %v2169
          %v2180 = vpop.permute.xlu0 %2179
          %2183 = vset.pattern.permute.xlu0 0
          %2184 = vperm.xlu0 %2183, %v2170
          %v2185 = vpop.permute.xlu0 %2184
          %2188 = vset.pattern.permute.xlu0 0
          %2189 = vperm.xlu0 %2188, %v2171
          %v2190 = vpop.permute.xlu0 %2189
          %2193 = vset.pattern.permute.xlu0 0
          %2194 = vperm.xlu0 %2193, %v2172
          %v2195 = vpop.permute.xlu0 %2194
          %2198 = vset.pattern.permute.xlu0 0
          %2199 = vperm.xlu0 %2198, %v2173
          %v2200 = vpop.permute.xlu0 %2199
          %2203 = vset.pattern.permute.xlu0 0
          %2204 = vperm.xlu0 %2203, %v2174
          %v2205 = vpop.permute.xlu0 %2204
          %2208 = vset.pattern.permute.xlu0 0
          %2209 = vperm.xlu0 %2208, %v2175
          %v2210 = vpop.permute.xlu0 %2209
          %2213 = vset.pattern.permute.xlu0 0
          %2214 = vperm.xlu0 %2213, %v2176
          %v2215 = vpop.permute.xlu0 %2214
          %v2217 = vmul.f32 %v2153, %v2180
          %v2218 = vmul.f32 %v2154, %v2185
          %v2219 = vmul.f32 %v2155, %v2190
          %v2220 = vmul.f32 %v2156, %v2195
          %v2221 = vmul.f32 %v2157, %v2200
          %v2222 = vmul.f32 %v2158, %v2205
          %v2223 = vmul.f32 %v2159, %v2210
          %v2224 = vmul.f32 %v2160, %v2215
          %v2225 = vld [vmem:[#allocation14] sm:$0xff]
          %v2226 = vld [vmem:[#allocation14 + $0x8] sm:$0xff]
          %v2227 = vld [vmem:[#allocation14 + $0x10] sm:$0xff]
          %v2228 = vld [vmem:[#allocation14 + $0x18] sm:$0xff]
          %v2229 = vld [vmem:[#allocation14 + $0x20] sm:$0xff]
          %v2230 = vld [vmem:[#allocation14 + $0x28] sm:$0xff]
          %v2231 = vld [vmem:[#allocation14 + $0x30] sm:$0xff]
          %v2232 = vld [vmem:[#allocation14 + $0x38] sm:$0xff]
          %v2233 = vld [vmem:[#allocation14 + $0x40] sm:$0xff]
          %v2234 = vld [vmem:[#allocation14 + $0x48] sm:$0xff]
          %v2235 = vld [vmem:[#allocation14 + $0x50] sm:$0xff]
          %v2236 = vld [vmem:[#allocation14 + $0x58] sm:$0xff]
          %v2237 = vld [vmem:[#allocation14 + $0x60] sm:$0xff]
          %v2238 = vld [vmem:[#allocation14 + $0x68] sm:$0xff]
          %v2239 = vld [vmem:[#allocation14 + $0x70] sm:$0xff]
          %v2240 = vld [vmem:[#allocation14 + $0x78] sm:$0xff]
          %vm2241 = vcmask 130048
          %v2243 = vsel %vm2241, %v2217, 0
          %2245 = vmatprep.subr.mxu0 0.0
          %2246 = vmatpush1.msra.mxu0 0.0
          %2247 = vmatprep.subr.mxu0 0.0
          %2248 = vmatpush1.msra.mxu0 0.0
          %2249 = vmatprep.subr.mxu0 0.0
          %2250 = vmatpush1.msra.mxu0 0.0
          %2251 = vmatprep.subr.mxu0 0.0
          %2252 = vmatpush1.msra.mxu0 0.0
          %2253 = vmatprep.subr.mxu0 0.0
          %2254 = vmatpush1.msra.mxu0 0.0
          %2255 = vmatprep.subr.mxu0 0.0
          %2256 = vmatpush1.msra.mxu0 0.0
          %2257 = vmatprep.subr.mxu0 0.0
          %2258 = vmatpush1.msra.mxu0 0.0
          %2259 = vmatprep.subr.mxu0 0.0
          %2260 = vmatpush1.msra.mxu0 0.0
          %2261 = vmatprep.subr.mxu0 0.0
          %2262 = vmatpush1.msra.mxu0 0.0
          %2263 = vmatprep.subr.mxu0 0.0
          %2264 = vmatpush1.msra.mxu0 0.0
          %2265 = vmatprep.subr.mxu0 0.0
          %2266 = vmatpush1.msra.mxu0 0.0
          %2267 = vmatprep.subr.mxu0 0.0
          %2268 = vmatpush1.msra.mxu0 0.0
          %2269 = vmatprep.subr.mxu0 0.0
          %2270 = vmatpush1.msra.mxu0 0.0
          %2271 = vmatprep.subr.mxu0 0.0
          %2272 = vmatpush1.msra.mxu0 0.0
          %2273 = vmatprep.subr.mxu0 0.0
          %2274 = vmatpush1.msra.mxu0 %v2226
          %2275 = vmatprep.subr.mxu0 0.0
          %2276 = vmatpush1.msra.mxu0 %v2225
          %2277 = vmatprep.subr.mxu0 0.0
          %2278 = vmatpush2.msra.mxu0 0.0
          %2279 = vmatprep.subr.mxu0 0.0
          %2280 = vmatpush2.msra.mxu0 0.0
          %2281 = vmatprep.subr.mxu0 0.0
          %2282 = vmatpush2.msra.mxu0 0.0
          %2283 = vmatprep.subr.mxu0 0.0
          %2284 = vmatpush2.msra.mxu0 0.0
          %2285 = vmatprep.subr.mxu0 0.0
          %2286 = vmatpush2.msra.mxu0 0.0
          %2287 = vmatprep.subr.mxu0 0.0
          %2288 = vmatpush2.msra.mxu0 0.0
          %2289 = vmatprep.subr.mxu0 0.0
          %2290 = vmatpush2.msra.mxu0 0.0
          %2291 = vmatprep.subr.mxu0 0.0
          %2292 = vmatpush2.msra.mxu0 0.0
          %2293 = vmatprep.subr.mxu0 0.0
          %2294 = vmatpush2.msra.mxu0 0.0
          %2295 = vmatprep.subr.mxu0 0.0
          %2296 = vmatpush2.msra.mxu0 0.0
          %2297 = vmatprep.subr.mxu0 0.0
          %2298 = vmatpush2.msra.mxu0 0.0
          %2299 = vmatprep.subr.mxu0 0.0
          %2300 = vmatpush2.msra.mxu0 0.0
          %2301 = vmatprep.subr.mxu0 0.0
          %2302 = vmatpush2.msra.mxu0 0.0
          %2303 = vmatprep.subr.mxu0 0.0
          %2304 = vmatpush2.msra.mxu0 0.0
          %2305 = vmatprep.subr.mxu0 0.0
          %2306 = vmatpush2.msra.mxu0 0.0
          %2307 = vmatprep.subr.mxu0 0.0
          %2308 = vmatpush2.msra.mxu0 0.0
          %2309 = vmatprep.mubr.f32.mxu0 0.0
          %2310 = vmatmul.mubr.f32.gmra.mxu0 %v2243
          %v2311 = vpop.f32.mrf.mxu0
          %v2312 = vadd.f32 0.0, %v2311
          %v2313 = vpop.f32.mrf.mxu0
          %2314 = vdwg.mxu0
          %v2316 = vsel %vm2241, %v2218, 0
          %2318 = vmatprep.subr.mxu0 0.0
          %2319 = vmatpush1.msra.mxu0 0.0
          %2320 = vmatprep.subr.mxu0 0.0
          %2321 = vmatpush1.msra.mxu0 0.0
          %2322 = vmatprep.subr.mxu0 0.0
          %2323 = vmatpush1.msra.mxu0 0.0
          %2324 = vmatprep.subr.mxu0 0.0
          %2325 = vmatpush1.msra.mxu0 0.0
          %2326 = vmatprep.subr.mxu0 0.0
          %2327 = vmatpush1.msra.mxu0 0.0
          %2328 = vmatprep.subr.mxu0 0.0
          %2329 = vmatpush1.msra.mxu0 0.0
          %2330 = vmatprep.subr.mxu0 0.0
          %2331 = vmatpush1.msra.mxu0 0.0
          %2332 = vmatprep.subr.mxu0 0.0
          %2333 = vmatpush1.msra.mxu0 0.0
          %2334 = vmatprep.subr.mxu0 0.0
          %2335 = vmatpush1.msra.mxu0 0.0
          %2336 = vmatprep.subr.mxu0 0.0
          %2337 = vmatpush1.msra.mxu0 0.0
          %2338 = vmatprep.subr.mxu0 0.0
          %2339 = vmatpush1.msra.mxu0 0.0
          %2340 = vmatprep.subr.mxu0 0.0
          %2341 = vmatpush1.msra.mxu0 0.0
          %2342 = vmatprep.subr.mxu0 0.0
          %2343 = vmatpush1.msra.mxu0 0.0
          %2344 = vmatprep.subr.mxu0 0.0
          %2345 = vmatpush1.msra.mxu0 0.0
          %2346 = vmatprep.subr.mxu0 0.0
          %2347 = vmatpush1.msra.mxu0 %v2228
          %2348 = vmatprep.subr.mxu0 0.0
          %2349 = vmatpush1.msra.mxu0 %v2227
          %2350 = vmatprep.subr.mxu0 0.0
          %2351 = vmatpush2.msra.mxu0 0.0
          %2352 = vmatprep.subr.mxu0 0.0
          %2353 = vmatpush2.msra.mxu0 0.0
          %2354 = vmatprep.subr.mxu0 0.0
          %2355 = vmatpush2.msra.mxu0 0.0
          %2356 = vmatprep.subr.mxu0 0.0
          %2357 = vmatpush2.msra.mxu0 0.0
          %2358 = vmatprep.subr.mxu0 0.0
          %2359 = vmatpush2.msra.mxu0 0.0
          %2360 = vmatprep.subr.mxu0 0.0
          %2361 = vmatpush2.msra.mxu0 0.0
          %2362 = vmatprep.subr.mxu0 0.0
          %2363 = vmatpush2.msra.mxu0 0.0
          %2364 = vmatprep.subr.mxu0 0.0
          %2365 = vmatpush2.msra.mxu0 0.0
          %2366 = vmatprep.subr.mxu0 0.0
          %2367 = vmatpush2.msra.mxu0 0.0
          %2368 = vmatprep.subr.mxu0 0.0
          %2369 = vmatpush2.msra.mxu0 0.0
          %2370 = vmatprep.subr.mxu0 0.0
          %2371 = vmatpush2.msra.mxu0 0.0
          %2372 = vmatprep.subr.mxu0 0.0
          %2373 = vmatpush2.msra.mxu0 0.0
          %2374 = vmatprep.subr.mxu0 0.0
          %2375 = vmatpush2.msra.mxu0 0.0
          %2376 = vmatprep.subr.mxu0 0.0
          %2377 = vmatpush2.msra.mxu0 0.0
          %2378 = vmatprep.subr.mxu0 0.0
          %2379 = vmatpush2.msra.mxu0 0.0
          %2380 = vmatprep.subr.mxu0 0.0
          %2381 = vmatpush2.msra.mxu0 0.0
          %2382 = vmatprep.mubr.f32.mxu0 0.0
          %2383 = vmatmul.mubr.f32.gmra.mxu0 %v2316
          %v2384 = vpop.f32.mrf.mxu0
          %v2385 = vadd.f32 0.0, %v2384
          %v2386 = vpop.f32.mrf.mxu0
          %2387 = vdwg.mxu0
          %v2389 = vsel %vm2241, %v2219, 0
          %2391 = vmatprep.subr.mxu0 0.0
          %2392 = vmatpush1.msra.mxu0 0.0
          %2393 = vmatprep.subr.mxu0 0.0
          %2394 = vmatpush1.msra.mxu0 0.0
          %2395 = vmatprep.subr.mxu0 0.0
          %2396 = vmatpush1.msra.mxu0 0.0
          %2397 = vmatprep.subr.mxu0 0.0
          %2398 = vmatpush1.msra.mxu0 0.0
          %2399 = vmatprep.subr.mxu0 0.0
          %2400 = vmatpush1.msra.mxu0 0.0
          %2401 = vmatprep.subr.mxu0 0.0
          %2402 = vmatpush1.msra.mxu0 0.0
          %2403 = vmatprep.subr.mxu0 0.0
          %2404 = vmatpush1.msra.mxu0 0.0
          %2405 = vmatprep.subr.mxu0 0.0
          %2406 = vmatpush1.msra.mxu0 0.0
          %2407 = vmatprep.subr.mxu0 0.0
          %2408 = vmatpush1.msra.mxu0 0.0
          %2409 = vmatprep.subr.mxu0 0.0
          %2410 = vmatpush1.msra.mxu0 0.0
          %2411 = vmatprep.subr.mxu0 0.0
          %2412 = vmatpush1.msra.mxu0 0.0
          %2413 = vmatprep.subr.mxu0 0.0
          %2414 = vmatpush1.msra.mxu0 0.0
          %2415 = vmatprep.subr.mxu0 0.0
          %2416 = vmatpush1.msra.mxu0 0.0
          %2417 = vmatprep.subr.mxu0 0.0
          %2418 = vmatpush1.msra.mxu0 0.0
          %2419 = vmatprep.subr.mxu0 0.0
          %2420 = vmatpush1.msra.mxu0 %v2230
          %2421 = vmatprep.subr.mxu0 0.0
          %2422 = vmatpush1.msra.mxu0 %v2229
          %2423 = vmatprep.subr.mxu0 0.0
          %2424 = vmatpush2.msra.mxu0 0.0
          %2425 = vmatprep.subr.mxu0 0.0
          %2426 = vmatpush2.msra.mxu0 0.0
          %2427 = vmatprep.subr.mxu0 0.0
          %2428 = vmatpush2.msra.mxu0 0.0
          %2429 = vmatprep.subr.mxu0 0.0
          %2430 = vmatpush2.msra.mxu0 0.0
          %2431 = vmatprep.subr.mxu0 0.0
          %2432 = vmatpush2.msra.mxu0 0.0
          %2433 = vmatprep.subr.mxu0 0.0
          %2434 = vmatpush2.msra.mxu0 0.0
          %2435 = vmatprep.subr.mxu0 0.0
          %2436 = vmatpush2.msra.mxu0 0.0
          %2437 = vmatprep.subr.mxu0 0.0
          %2438 = vmatpush2.msra.mxu0 0.0
          %2439 = vmatprep.subr.mxu0 0.0
          %2440 = vmatpush2.msra.mxu0 0.0
          %2441 = vmatprep.subr.mxu0 0.0
          %2442 = vmatpush2.msra.mxu0 0.0
          %2443 = vmatprep.subr.mxu0 0.0
          %2444 = vmatpush2.msra.mxu0 0.0
          %2445 = vmatprep.subr.mxu0 0.0
          %2446 = vmatpush2.msra.mxu0 0.0
          %2447 = vmatprep.subr.mxu0 0.0
          %2448 = vmatpush2.msra.mxu0 0.0
          %2449 = vmatprep.subr.mxu0 0.0
          %2450 = vmatpush2.msra.mxu0 0.0
          %2451 = vmatprep.subr.mxu0 0.0
          %2452 = vmatpush2.msra.mxu0 0.0
          %2453 = vmatprep.subr.mxu0 0.0
          %2454 = vmatpush2.msra.mxu0 0.0
          %2455 = vmatprep.mubr.f32.mxu0 0.0
          %2456 = vmatmul.mubr.f32.gmra.mxu0 %v2389
          %v2457 = vpop.f32.mrf.mxu0
          %v2458 = vadd.f32 0.0, %v2457
          %v2459 = vpop.f32.mrf.mxu0
          %2460 = vdwg.mxu0
          %v2462 = vsel %vm2241, %v2220, 0
          %2464 = vmatprep.subr.mxu0 0.0
          %2465 = vmatpush1.msra.mxu0 0.0
          %2466 = vmatprep.subr.mxu0 0.0
          %2467 = vmatpush1.msra.mxu0 0.0
          %2468 = vmatprep.subr.mxu0 0.0
          %2469 = vmatpush1.msra.mxu0 0.0
          %2470 = vmatprep.subr.mxu0 0.0
          %2471 = vmatpush1.msra.mxu0 0.0
          %2472 = vmatprep.subr.mxu0 0.0
          %2473 = vmatpush1.msra.mxu0 0.0
          %2474 = vmatprep.subr.mxu0 0.0
          %2475 = vmatpush1.msra.mxu0 0.0
          %2476 = vmatprep.subr.mxu0 0.0
          %2477 = vmatpush1.msra.mxu0 0.0
          %2478 = vmatprep.subr.mxu0 0.0
          %2479 = vmatpush1.msra.mxu0 0.0
          %2480 = vmatprep.subr.mxu0 0.0
          %2481 = vmatpush1.msra.mxu0 0.0
          %2482 = vmatprep.subr.mxu0 0.0
          %2483 = vmatpush1.msra.mxu0 0.0
          %2484 = vmatprep.subr.mxu0 0.0
          %2485 = vmatpush1.msra.mxu0 0.0
          %2486 = vmatprep.subr.mxu0 0.0
          %2487 = vmatpush1.msra.mxu0 0.0
          %2488 = vmatprep.subr.mxu0 0.0
          %2489 = vmatpush1.msra.mxu0 0.0
          %2490 = vmatprep.subr.mxu0 0.0
          %2491 = vmatpush1.msra.mxu0 0.0
          %2492 = vmatprep.subr.mxu0 0.0
          %2493 = vmatpush1.msra.mxu0 %v2232
          %2494 = vmatprep.subr.mxu0 0.0
          %2495 = vmatpush1.msra.mxu0 %v2231
          %2496 = vmatprep.subr.mxu0 0.0
          %2497 = vmatpush2.msra.mxu0 0.0
          %2498 = vmatprep.subr.mxu0 0.0
          %2499 = vmatpush2.msra.mxu0 0.0
          %2500 = vmatprep.subr.mxu0 0.0
          %2501 = vmatpush2.msra.mxu0 0.0
          %2502 = vmatprep.subr.mxu0 0.0
          %2503 = vmatpush2.msra.mxu0 0.0
          %2504 = vmatprep.subr.mxu0 0.0
          %2505 = vmatpush2.msra.mxu0 0.0
          %2506 = vmatprep.subr.mxu0 0.0
          %2507 = vmatpush2.msra.mxu0 0.0
          %2508 = vmatprep.subr.mxu0 0.0
          %2509 = vmatpush2.msra.mxu0 0.0
          %2510 = vmatprep.subr.mxu0 0.0
          %2511 = vmatpush2.msra.mxu0 0.0
          %2512 = vmatprep.subr.mxu0 0.0
          %2513 = vmatpush2.msra.mxu0 0.0
          %2514 = vmatprep.subr.mxu0 0.0
          %2515 = vmatpush2.msra.mxu0 0.0
          %2516 = vmatprep.subr.mxu0 0.0
          %2517 = vmatpush2.msra.mxu0 0.0
          %2518 = vmatprep.subr.mxu0 0.0
          %2519 = vmatpush2.msra.mxu0 0.0
          %2520 = vmatprep.subr.mxu0 0.0
          %2521 = vmatpush2.msra.mxu0 0.0
          %2522 = vmatprep.subr.mxu0 0.0
          %2523 = vmatpush2.msra.mxu0 0.0
          %2524 = vmatprep.subr.mxu0 0.0
          %2525 = vmatpush2.msra.mxu0 0.0
          %2526 = vmatprep.subr.mxu0 0.0
          %2527 = vmatpush2.msra.mxu0 0.0
          %2528 = vmatprep.mubr.f32.mxu0 0.0
          %2529 = vmatmul.mubr.f32.gmra.mxu0 %v2462
          %v2530 = vpop.f32.mrf.mxu0
          %v2531 = vadd.f32 0.0, %v2530
          %v2532 = vpop.f32.mrf.mxu0
          %2533 = vdwg.mxu0
          %v2535 = vsel %vm2241, %v2221, 0
          %2537 = vmatprep.subr.mxu0 0.0
          %2538 = vmatpush1.msra.mxu0 0.0
          %2539 = vmatprep.subr.mxu0 0.0
          %2540 = vmatpush1.msra.mxu0 0.0
          %2541 = vmatprep.subr.mxu0 0.0
          %2542 = vmatpush1.msra.mxu0 0.0
          %2543 = vmatprep.subr.mxu0 0.0
          %2544 = vmatpush1.msra.mxu0 0.0
          %2545 = vmatprep.subr.mxu0 0.0
          %2546 = vmatpush1.msra.mxu0 0.0
          %2547 = vmatprep.subr.mxu0 0.0
          %2548 = vmatpush1.msra.mxu0 0.0
          %2549 = vmatprep.subr.mxu0 0.0
          %2550 = vmatpush1.msra.mxu0 0.0
          %2551 = vmatprep.subr.mxu0 0.0
          %2552 = vmatpush1.msra.mxu0 0.0
          %2553 = vmatprep.subr.mxu0 0.0
          %2554 = vmatpush1.msra.mxu0 0.0
          %2555 = vmatprep.subr.mxu0 0.0
          %2556 = vmatpush1.msra.mxu0 0.0
          %2557 = vmatprep.subr.mxu0 0.0
          %2558 = vmatpush1.msra.mxu0 0.0
          %2559 = vmatprep.subr.mxu0 0.0
          %2560 = vmatpush1.msra.mxu0 0.0
          %2561 = vmatprep.subr.mxu0 0.0
          %2562 = vmatpush1.msra.mxu0 0.0
          %2563 = vmatprep.subr.mxu0 0.0
          %2564 = vmatpush1.msra.mxu0 0.0
          %2565 = vmatprep.subr.mxu0 0.0
          %2566 = vmatpush1.msra.mxu0 %v2234
          %2567 = vmatprep.subr.mxu0 0.0
          %2568 = vmatpush1.msra.mxu0 %v2233
          %2569 = vmatprep.subr.mxu0 0.0
          %2570 = vmatpush2.msra.mxu0 0.0
          %2571 = vmatprep.subr.mxu0 0.0
          %2572 = vmatpush2.msra.mxu0 0.0
          %2573 = vmatprep.subr.mxu0 0.0
          %2574 = vmatpush2.msra.mxu0 0.0
          %2575 = vmatprep.subr.mxu0 0.0
          %2576 = vmatpush2.msra.mxu0 0.0
          %2577 = vmatprep.subr.mxu0 0.0
          %2578 = vmatpush2.msra.mxu0 0.0
          %2579 = vmatprep.subr.mxu0 0.0
          %2580 = vmatpush2.msra.mxu0 0.0
          %2581 = vmatprep.subr.mxu0 0.0
          %2582 = vmatpush2.msra.mxu0 0.0
          %2583 = vmatprep.subr.mxu0 0.0
          %2584 = vmatpush2.msra.mxu0 0.0
          %2585 = vmatprep.subr.mxu0 0.0
          %2586 = vmatpush2.msra.mxu0 0.0
          %2587 = vmatprep.subr.mxu0 0.0
          %2588 = vmatpush2.msra.mxu0 0.0
          %2589 = vmatprep.subr.mxu0 0.0
          %2590 = vmatpush2.msra.mxu0 0.0
          %2591 = vmatprep.subr.mxu0 0.0
          %2592 = vmatpush2.msra.mxu0 0.0
          %2593 = vmatprep.subr.mxu0 0.0
          %2594 = vmatpush2.msra.mxu0 0.0
          %2595 = vmatprep.subr.mxu0 0.0
          %2596 = vmatpush2.msra.mxu0 0.0
          %2597 = vmatprep.subr.mxu0 0.0
          %2598 = vmatpush2.msra.mxu0 0.0
          %2599 = vmatprep.subr.mxu0 0.0
          %2600 = vmatpush2.msra.mxu0 0.0
          %2601 = vmatprep.mubr.f32.mxu0 0.0
          %2602 = vmatmul.mubr.f32.gmra.mxu0 %v2535
          %v2603 = vpop.f32.mrf.mxu0
          %v2604 = vadd.f32 0.0, %v2603
          %v2605 = vpop.f32.mrf.mxu0
          %2606 = vdwg.mxu0
          %v2608 = vsel %vm2241, %v2222, 0
          %2610 = vmatprep.subr.mxu0 0.0
          %2611 = vmatpush1.msra.mxu0 0.0
          %2612 = vmatprep.subr.mxu0 0.0
          %2613 = vmatpush1.msra.mxu0 0.0
          %2614 = vmatprep.subr.mxu0 0.0
          %2615 = vmatpush1.msra.mxu0 0.0
          %2616 = vmatprep.subr.mxu0 0.0
          %2617 = vmatpush1.msra.mxu0 0.0
          %2618 = vmatprep.subr.mxu0 0.0
          %2619 = vmatpush1.msra.mxu0 0.0
          %2620 = vmatprep.subr.mxu0 0.0
          %2621 = vmatpush1.msra.mxu0 0.0
          %2622 = vmatprep.subr.mxu0 0.0
          %2623 = vmatpush1.msra.mxu0 0.0
          %2624 = vmatprep.subr.mxu0 0.0
          %2625 = vmatpush1.msra.mxu0 0.0
          %2626 = vmatprep.subr.mxu0 0.0
          %2627 = vmatpush1.msra.mxu0 0.0
          %2628 = vmatprep.subr.mxu0 0.0
          %2629 = vmatpush1.msra.mxu0 0.0
          %2630 = vmatprep.subr.mxu0 0.0
          %2631 = vmatpush1.msra.mxu0 0.0
          %2632 = vmatprep.subr.mxu0 0.0
          %2633 = vmatpush1.msra.mxu0 0.0
          %2634 = vmatprep.subr.mxu0 0.0
          %2635 = vmatpush1.msra.mxu0 0.0
          %2636 = vmatprep.subr.mxu0 0.0
          %2637 = vmatpush1.msra.mxu0 0.0
          %2638 = vmatprep.subr.mxu0 0.0
          %2639 = vmatpush1.msra.mxu0 %v2236
          %2640 = vmatprep.subr.mxu0 0.0
          %2641 = vmatpush1.msra.mxu0 %v2235
          %2642 = vmatprep.subr.mxu0 0.0
          %2643 = vmatpush2.msra.mxu0 0.0
          %2644 = vmatprep.subr.mxu0 0.0
          %2645 = vmatpush2.msra.mxu0 0.0
          %2646 = vmatprep.subr.mxu0 0.0
          %2647 = vmatpush2.msra.mxu0 0.0
          %2648 = vmatprep.subr.mxu0 0.0
          %2649 = vmatpush2.msra.mxu0 0.0
          %2650 = vmatprep.subr.mxu0 0.0
          %2651 = vmatpush2.msra.mxu0 0.0
          %2652 = vmatprep.subr.mxu0 0.0
          %2653 = vmatpush2.msra.mxu0 0.0
          %2654 = vmatprep.subr.mxu0 0.0
          %2655 = vmatpush2.msra.mxu0 0.0
          %2656 = vmatprep.subr.mxu0 0.0
          %2657 = vmatpush2.msra.mxu0 0.0
          %2658 = vmatprep.subr.mxu0 0.0
          %2659 = vmatpush2.msra.mxu0 0.0
          %2660 = vmatprep.subr.mxu0 0.0
          %2661 = vmatpush2.msra.mxu0 0.0
          %2662 = vmatprep.subr.mxu0 0.0
          %2663 = vmatpush2.msra.mxu0 0.0
          %2664 = vmatprep.subr.mxu0 0.0
          %2665 = vmatpush2.msra.mxu0 0.0
          %2666 = vmatprep.subr.mxu0 0.0
          %2667 = vmatpush2.msra.mxu0 0.0
          %2668 = vmatprep.subr.mxu0 0.0
          %2669 = vmatpush2.msra.mxu0 0.0
          %2670 = vmatprep.subr.mxu0 0.0
          %2671 = vmatpush2.msra.mxu0 0.0
          %2672 = vmatprep.subr.mxu0 0.0
          %2673 = vmatpush2.msra.mxu0 0.0
          %2674 = vmatprep.mubr.f32.mxu0 0.0
          %2675 = vmatmul.mubr.f32.gmra.mxu0 %v2608
          %v2676 = vpop.f32.mrf.mxu0
          %v2677 = vadd.f32 0.0, %v2676
          %v2678 = vpop.f32.mrf.mxu0
          %2679 = vdwg.mxu0
          %v2681 = vsel %vm2241, %v2223, 0
          %2683 = vmatprep.subr.mxu0 0.0
          %2684 = vmatpush1.msra.mxu0 0.0
          %2685 = vmatprep.subr.mxu0 0.0
          %2686 = vmatpush1.msra.mxu0 0.0
          %2687 = vmatprep.subr.mxu0 0.0
          %2688 = vmatpush1.msra.mxu0 0.0
          %2689 = vmatprep.subr.mxu0 0.0
          %2690 = vmatpush1.msra.mxu0 0.0
          %2691 = vmatprep.subr.mxu0 0.0
          %2692 = vmatpush1.msra.mxu0 0.0
          %2693 = vmatprep.subr.mxu0 0.0
          %2694 = vmatpush1.msra.mxu0 0.0
          %2695 = vmatprep.subr.mxu0 0.0
          %2696 = vmatpush1.msra.mxu0 0.0
          %2697 = vmatprep.subr.mxu0 0.0
          %2698 = vmatpush1.msra.mxu0 0.0
          %2699 = vmatprep.subr.mxu0 0.0
          %2700 = vmatpush1.msra.mxu0 0.0
          %2701 = vmatprep.subr.mxu0 0.0
          %2702 = vmatpush1.msra.mxu0 0.0
          %2703 = vmatprep.subr.mxu0 0.0
          %2704 = vmatpush1.msra.mxu0 0.0
          %2705 = vmatprep.subr.mxu0 0.0
          %2706 = vmatpush1.msra.mxu0 0.0
          %2707 = vmatprep.subr.mxu0 0.0
          %2708 = vmatpush1.msra.mxu0 0.0
          %2709 = vmatprep.subr.mxu0 0.0
          %2710 = vmatpush1.msra.mxu0 0.0
          %2711 = vmatprep.subr.mxu0 0.0
          %2712 = vmatpush1.msra.mxu0 %v2238
          %2713 = vmatprep.subr.mxu0 0.0
          %2714 = vmatpush1.msra.mxu0 %v2237
          %2715 = vmatprep.subr.mxu0 0.0
          %2716 = vmatpush2.msra.mxu0 0.0
          %2717 = vmatprep.subr.mxu0 0.0
          %2718 = vmatpush2.msra.mxu0 0.0
          %2719 = vmatprep.subr.mxu0 0.0
          %2720 = vmatpush2.msra.mxu0 0.0
          %2721 = vmatprep.subr.mxu0 0.0
          %2722 = vmatpush2.msra.mxu0 0.0
          %2723 = vmatprep.subr.mxu0 0.0
          %2724 = vmatpush2.msra.mxu0 0.0
          %2725 = vmatprep.subr.mxu0 0.0
          %2726 = vmatpush2.msra.mxu0 0.0
          %2727 = vmatprep.subr.mxu0 0.0
          %2728 = vmatpush2.msra.mxu0 0.0
          %2729 = vmatprep.subr.mxu0 0.0
          %2730 = vmatpush2.msra.mxu0 0.0
          %2731 = vmatprep.subr.mxu0 0.0
          %2732 = vmatpush2.msra.mxu0 0.0
          %2733 = vmatprep.subr.mxu0 0.0
          %2734 = vmatpush2.msra.mxu0 0.0
          %2735 = vmatprep.subr.mxu0 0.0
          %2736 = vmatpush2.msra.mxu0 0.0
          %2737 = vmatprep.subr.mxu0 0.0
          %2738 = vmatpush2.msra.mxu0 0.0
          %2739 = vmatprep.subr.mxu0 0.0
          %2740 = vmatpush2.msra.mxu0 0.0
          %2741 = vmatprep.subr.mxu0 0.0
          %2742 = vmatpush2.msra.mxu0 0.0
          %2743 = vmatprep.subr.mxu0 0.0
          %2744 = vmatpush2.msra.mxu0 0.0
          %2745 = vmatprep.subr.mxu0 0.0
          %2746 = vmatpush2.msra.mxu0 0.0
          %2747 = vmatprep.mubr.f32.mxu0 0.0
          %2748 = vmatmul.mubr.f32.gmra.mxu0 %v2681
          %v2749 = vpop.f32.mrf.mxu0
          %v2750 = vadd.f32 0.0, %v2749
          %v2751 = vpop.f32.mrf.mxu0
          %2752 = vdwg.mxu0
          %v2754 = vsel %vm2241, %v2224, 0
          %2756 = vmatprep.subr.mxu0 0.0
          %2757 = vmatpush1.msra.mxu0 0.0
          %2758 = vmatprep.subr.mxu0 0.0
          %2759 = vmatpush1.msra.mxu0 0.0
          %2760 = vmatprep.subr.mxu0 0.0
          %2761 = vmatpush1.msra.mxu0 0.0
          %2762 = vmatprep.subr.mxu0 0.0
          %2763 = vmatpush1.msra.mxu0 0.0
          %2764 = vmatprep.subr.mxu0 0.0
          %2765 = vmatpush1.msra.mxu0 0.0
          %2766 = vmatprep.subr.mxu0 0.0
          %2767 = vmatpush1.msra.mxu0 0.0
          %2768 = vmatprep.subr.mxu0 0.0
          %2769 = vmatpush1.msra.mxu0 0.0
          %2770 = vmatprep.subr.mxu0 0.0
          %2771 = vmatpush1.msra.mxu0 0.0
          %2772 = vmatprep.subr.mxu0 0.0
          %2773 = vmatpush1.msra.mxu0 0.0
          %2774 = vmatprep.subr.mxu0 0.0
          %2775 = vmatpush1.msra.mxu0 0.0
          %2776 = vmatprep.subr.mxu0 0.0
          %2777 = vmatpush1.msra.mxu0 0.0
          %2778 = vmatprep.subr.mxu0 0.0
          %2779 = vmatpush1.msra.mxu0 0.0
          %2780 = vmatprep.subr.mxu0 0.0
          %2781 = vmatpush1.msra.mxu0 0.0
          %2782 = vmatprep.subr.mxu0 0.0
          %2783 = vmatpush1.msra.mxu0 0.0
          %2784 = vmatprep.subr.mxu0 0.0
          %2785 = vmatpush1.msra.mxu0 %v2240
          %2786 = vmatprep.subr.mxu0 0.0
          %2787 = vmatpush1.msra.mxu0 %v2239
          %2788 = vmatprep.subr.mxu0 0.0
          %2789 = vmatpush2.msra.mxu0 0.0
          %2790 = vmatprep.subr.mxu0 0.0
          %2791 = vmatpush2.msra.mxu0 0.0
          %2792 = vmatprep.subr.mxu0 0.0
          %2793 = vmatpush2.msra.mxu0 0.0
          %2794 = vmatprep.subr.mxu0 0.0
          %2795 = vmatpush2.msra.mxu0 0.0
          %2796 = vmatprep.subr.mxu0 0.0
          %2797 = vmatpush2.msra.mxu0 0.0
          %2798 = vmatprep.subr.mxu0 0.0
          %2799 = vmatpush2.msra.mxu0 0.0
          %2800 = vmatprep.subr.mxu0 0.0
          %2801 = vmatpush2.msra.mxu0 0.0
          %2802 = vmatprep.subr.mxu0 0.0
          %2803 = vmatpush2.msra.mxu0 0.0
          %2804 = vmatprep.subr.mxu0 0.0
          %2805 = vmatpush2.msra.mxu0 0.0
          %2806 = vmatprep.subr.mxu0 0.0
          %2807 = vmatpush2.msra.mxu0 0.0
          %2808 = vmatprep.subr.mxu0 0.0
          %2809 = vmatpush2.msra.mxu0 0.0
          %2810 = vmatprep.subr.mxu0 0.0
          %2811 = vmatpush2.msra.mxu0 0.0
          %2812 = vmatprep.subr.mxu0 0.0
          %2813 = vmatpush2.msra.mxu0 0.0
          %2814 = vmatprep.subr.mxu0 0.0
          %2815 = vmatpush2.msra.mxu0 0.0
          %2816 = vmatprep.subr.mxu0 0.0
          %2817 = vmatpush2.msra.mxu0 0.0
          %2818 = vmatprep.subr.mxu0 0.0
          %2819 = vmatpush2.msra.mxu0 0.0
          %2820 = vmatprep.mubr.f32.mxu0 0.0
          %2821 = vmatmul.mubr.f32.gmra.mxu0 %v2754
          %v2822 = vpop.f32.mrf.mxu0
          %v2823 = vadd.f32 0.0, %v2822
          %v2824 = vpop.f32.mrf.mxu0
          %2825 = vdwg.mxu0
          %v2826 = vadd.f32 %v2312, %v2385
          %v2827 = vadd.f32 %v2826, %v2458
          %v2828 = vadd.f32 %v2827, %v2531
          %v2829 = vadd.f32 %v2828, %v2604
          %v2830 = vadd.f32 %v2829, %v2677
          %v2831 = vadd.f32 %v2830, %v2750
          %v2832 = vadd.f32 %v2831, %v2823
          %v2833 = vld [vmem:[%s5] sm:$0x1]
          %v2835 = vlaneseq
          %v2836 = vshrl.u32 %v2835, 7
          %v2837 = vsub.s32 0, %v2836
          %v2838 = vrot.slane %v2833, %v2837
          %v2840 = vadd.f32 %v2832, %v2838
          %2841 = vst [vmem:[%s375] sm:$0xff] %v2840
        $region76: #{tpu_custom_call.1} parent=43 // pred_fallthru
          _
        %s2842 = sand.u32 %s196, 1
        %s2843 = scalar_lea.sflag [#allocation8], %s2842
        %s2844 = sand.u32 %s196, 1
        %s2845 = smul.addr %s2844, 8
        %s2846 = scalar_lea.vmem [#allocation15], %s2845
        // Predicated region
        $region77: #{tpu_custom_call.1} parent=43 // pred_check
          %p2847 = pneg %p206
        $region78: #{tpu_custom_call.1} parent=43 // pred_check_branch
          %2849 = sbr.rel (%p2847) target = $region80
        $region79: #{tpu_custom_call.1} parent=43 // pred_region
          %s2851 = ssub.s32 128, 128
          %2852 = vsyncadd %s2843, %s2851
          %s2853 = smul.addr %s32, 2
          %s2854 = sadd.s32 %s33, %s2853
          %s2855 = smul.addr %s2854, 128
          %s2856 = scalar_lea.hbm %s6, %s2855
          %s2858 = sshll.u32 %s2846, 4
          %s2859 = int_to_ptr.vmem [resolvable:$true] %s2858
          %2861 = dma.vmem_to_hbm [thread:$0]  %s2859, 128, %s2856, %s2843
        $region80: #{tpu_custom_call.1} parent=43 // pred_fallthru
          _
      $region44: #{tpu_custom_call.1} parent=5 // pred_fallthru
        _
      %p2862 = scmp.le.s32.totalorder 2, %s22
      // Predicated region
      $region81: #{tpu_custom_call.1} parent=5 // pred_check
        %p2863 = pneg %p2862
      $region82: #{tpu_custom_call.1} parent=5 // pred_check_branch
        %2865 = sbr.rel (%p2863) target = $region84
      $region83: #{tpu_custom_call.1} parent=5 // pred_region
        %s2866 = ssub.s32 %s22, 2
        // Predicated region
        $region85: #{tpu_custom_call.1} parent=83 // pred_check
          %p2867 = pneg %p212
        $region86: #{tpu_custom_call.1} parent=83 // pred_check_branch
          %2869 = sbr.rel (%p2867) target = $region88
        $region87: #{tpu_custom_call.1} parent=83 // pred_region
          %s2870 = sand.u32 %s197, 1
          %s2871 = scalar_lea.sflag [#allocation8], %s2870
          %s2872 = sand.u32 %s197, 1
          %s2873 = smul.addr %s2872, 8
          %s2874 = scalar_lea.vmem [#allocation15], %s2873
          %2875 = dma.done %s2871, 128
        $region88: #{tpu_custom_call.1} parent=83 // pred_fallthru
          _
      $region84: #{tpu_custom_call.1} parent=5 // pred_fallthru
        _
    $region6: #{tpu_custom_call.1} parent=1 // loop_footer
      %s26 = sadd.s32 1, %s22
    $region7: #{tpu_custom_call.1} parent=1 // loop_footer_branch
      %21 = sbr.rel target = $region3
    $region8: #{tpu_custom_call.1} parent=1 // loop_exit
      _
    %2876 = vsyncpa [#allocation7], 1
    %s2877 = scalar_lea.sflag [#allocation7], 1
    %2878 = vsyncpa %s2877, 1
    %2879 = vsyncpa [#allocation10], 1
    %s2880 = scalar_lea.sflag [#allocation10], 1
    %2881 = vsyncpa %s2880, 1
    %2882 = vsyncpa [#allocation13], 1
    %2883 = vsyncpa [#allocation8], 1
    %s2884 = scalar_lea.sflag [#allocation8], 1
    %2885 = vsyncpa %s2884, 1

// kernel: tpu_custom_call.1
$region0: #{tpu_custom_call.1}
  #allocation0 [shape = 'u32[]', space=smem, size = 0x4, offset = 0x4, fixed_abs, tag = 'smem constant byte address 0x4 - core index']
  #allocation1 [shape = 'u32[144,128]{1,0:T(1,128)}', space=vmem, size = 0x12000, scoped, tag = 'internal scratch']
  #allocation2 [shape = 'f32[8,8,16]{2,1,0:T(8,128)}', space=vmem, size = 0x8000, scoped, tag = 'scratch operand']
  #allocation3 [shape = 'f32[8,8,1]{2,1,0:T(8,128)}', space=vmem, size = 0x8000, scoped, tag = 'scratch operand']
  #allocation4 [shape = 'f32[8,8,1]{2,1,0:T(8,128)}', space=vmem, size = 0x8000, scoped, tag = 'scratch operand']
  #allocation5 [shape = 'f32[8,8,16]{2,1,0:T(8,128)}', space=vmem, size = 0x8000, scoped, tag = 'scratch operand']
  %s0 = inlined_call_operand.hbm [shape: f32[4,16,128], index: 0, kind: input, shape index: {}]
  %s1 = inlined_call_operand.hbm [shape: f32[4,16,128], index: 1, kind: input, shape index: {}]
  %s2 = inlined_call_operand.hbm [shape: f32[128,128], index: 2, kind: input, shape index: {}]
  %s3 = inlined_call_operand.hbm [shape: f32[128,256], index: 3, kind: input, shape index: {}]
  %s4 = inlined_call_operand.hbm [shape: f32[8,16,128], index: 4, kind: input, shape index: {}]
  %s5 = inlined_call_operand.vmem [shape: f32[1,128], index: 5, kind: input, shape index: {}]
  %s6 = inlined_call_operand.hbm [shape: f32[4,16,128], index: 6, kind: output, shape index: {}]
  %s7 = sld [smem:[#allocation0]]
  $region89: #{tpu_custom_call.1} parent=0
    _
  %s9 = ssub.s32 1, %s7
  %s10 = scalar_select 0, %s9, %s7
  $region1: #{tpu_custom_call.1} parent=0
    #allocation6 [shape = 'u8[8192]{0}', space=vmem, size = 0x2000, scoped, tag = 'input window, operand 0']
    #allocation7 [shape = 's32[2]{0}', space=sflag, size = 0x8, scoped, tag = 'scoped memory for tpu_custom_call.1']
    #allocation8 [shape = 's32[2]{0}', space=sflag, size = 0x8, scoped, tag = 'scoped memory for tpu_custom_call.1']
    #allocation9 [shape = 'u8[8192]{0}', space=vmem, size = 0x2000, scoped, tag = 'input window, operand 1']
    #allocation10 [shape = 's32[2]{0}', space=sflag, size = 0x8, scoped, tag = 'scoped memory for tpu_custom_call.1']
    #allocation11 [shape = 'u8[65536]{0}', space=vmem, size = 0x10000, scoped, tag = 'input window, operand 2, single buffered']
    #allocation12 [shape = 'u8[131072]{0}', space=vmem, size = 0x20000, scoped, tag = 'input window, operand 3, single buffered']
    #allocation13 [shape = 's32[1]{0}', space=sflag, size = 0x4, scoped, tag = 'scoped memory for tpu_custom_call.1']
    #allocation14 [shape = 'u8[65536]{0}', space=vmem, size = 0x10000, scoped, tag = 'input window, operand 4, single buffered']
    #allocation15 [shape = 'u8[8192]{0}', space=vmem, size = 0x2000, scoped, tag = 'output window, operand 0']
    %11 = vsyncpa [#allocation7], 0
    %s12 = scalar_lea.sflag [#allocation7], 1
    %13 = vsyncpa %s12, 0
    %14 = vsyncpa [#allocation10], 0
    %s15 = scalar_lea.sflag [#allocation10], 1
    %16 = vsyncpa %s15, 0
    %17 = vsyncpa [#allocation13], 0
    %18 = vsyncpa [#allocation8], 0
    %s19 = scalar_lea.sflag [#allocation8], 1
    %20 = vsyncpa %s19, 0
    loop: start=0, step=1, limit=18
    $region2: #{tpu_custom_call.1} parent=1 // loop_pre_header
      _
    $region3: #{tpu_custom_call.1} parent=1 // loop_header
      %s22 = sphi 0, %s26
      %p23 = scmp.ge.s32.totalorder %s22, 18
      %s29 = sphi 0, %s48
      %s30 = sphi 0, %s44
      %s31 = sphi 0, %s40
      %s32 = sphi 0, %s29
      %s33 = sphi 0, %s30
      %s34 = sphi 0, %s31
      %s35 = sphi 0, %s32
      %s36 = sphi 0, %s33
      %s37 = sphi 0, %s34
      %s53 = sphi 0, %s55
      %s56 = sphi 0, %s53
      %s57 = sphi 0, %s56
      %s73 = sphi 0, %s57
      %s81 = sphi 0, %s83
      %s84 = sphi 0, %s81
      %s85 = sphi 0, %s84
      %s101 = sphi 0, %s85
      %s105 = sphi 0, %s105
      %s107 = sphi 0, %s105
      %s108 = sphi 0, %s107
      %s122 = sphi 0, %s108
      %s126 = sphi 0, %s126
      %s128 = sphi 0, %s126
      %s129 = sphi 0, %s128
      %s143 = sphi 0, %s129
      %s147 = sphi 0, %s147
      %s149 = sphi 0, %s147
      %s150 = sphi 0, %s149
      %s164 = sphi 0, %s150
      %s168 = sphi 0, %s168
      %s170 = sphi 0, %s168
      %s171 = sphi 0, %s170
      %s185 = sphi 0, %s171
      %s193 = sphi 0, %s195
      %s196 = sphi 0, %s193
      %s197 = sphi 0, %s196
      %s213 = sphi 0, %s197
    $region4: #{tpu_custom_call.1} parent=1 // loop_header_branch
      %25 = sbr.rel (%p23) target = $region8
    $region5: #{tpu_custom_call.1} parent=1 // loop_body
      %s27 = ssub.s32 %s22, 1
      %s28 = ssub.s32 %s22, 2
      %s38 = sadd.s32 1, %s31
      %p39 = scmp.ge.s32.totalorder %s38, 2
      %s40 = scalar_select %p39, 0, %s38
      %s41 = sadd.s32 1, %s30
      %s42 = scalar_select %p39, %s41, %s30
      %p43 = scmp.ge.s32.totalorder %s42, 2
      %s44 = scalar_select %p43, 0, %s42
      %s45 = sadd.s32 1, %s29
      %s46 = scalar_select %p43, %s45, %s29
      %p47 = scmp.ge.s32.totalorder %s46, 4
      %s48 = scalar_select %p47, 0, %s46
      %s49 = ssub.s32 %s29, %s48
      %s50 = ssub.s32 %s30, %s44
      %s51 = sor.u32 %s49, %s50
      %p52 = scmp.eq.s32.totalorder %s51, 0
      %s54 = sadd.s32 %s53, 1
      %s55 = scalar_select %p52, %s53, %s54
      %p58 = pneg %p52
      %p59 = scmp.eq.s32.totalorder %s22, 15
      %p60 = por %p58, %p59
      %p61 = scmp.ne.s32.totalorder %s53, %s56
      %p62 = scmp.eq.s32.totalorder %s22, 0
      %p63 = por %p61, %p62
      %p64 = scmp.ne.s32.totalorder %s53, %s56
      %p65 = scmp.eq.s32.totalorder %s27, 15
      %p66 = por %p64, %p65
      %p67 = scmp.ne.s32.totalorder %s56, %s57
      %p68 = scmp.eq.s32.totalorder %s27, 0
      %p69 = por %p67, %p68
      %p70 = scmp.ne.s32.totalorder %s56, %s57
      %p71 = scmp.eq.s32.totalorder %s28, 15
      %p72 = por %p70, %p71
      %p74 = scmp.ne.s32.totalorder %s57, %s73
      %p75 = scmp.eq.s32.totalorder %s28, 0
      %p76 = por %p74, %p75
      %s77 = ssub.s32 %s29, %s48
      %s78 = ssub.s32 %s31, %s40
      %s79 = sor.u32 %s77, %s78
      %p80 = scmp.eq.s32.totalorder %s79, 0
      %s82 = sadd.s32 %s81, 1
      %s83 = scalar_select %p80, %s81, %s82
      %p86 = pneg %p80
      %p87 = scmp.eq.s32.totalorder %s22, 15
      %p88 = por %p86, %p87
      %p89 = scmp.ne.s32.totalorder %s81, %s84
      %p90 = scmp.eq.s32.totalorder %s22, 0
      %p91 = por %p89, %p90
      %p92 = scmp.ne.s32.totalorder %s81, %s84
      %p93 = scmp.eq.s32.totalorder %s27, 15
      %p94 = por %p92, %p93
      %p95 = scmp.ne.s32.totalorder %s84, %s85
      %p96 = scmp.eq.s32.totalorder %s27, 0
      %p97 = por %p95, %p96
      %p98 = scmp.ne.s32.totalorder %s84, %s85
      %p99 = scmp.eq.s32.totalorder %s28, 15
      %p100 = por %p98, %p99
      %p102 = scmp.ne.s32.totalorder %s85, %s101
      %p103 = scmp.eq.s32.totalorder %s28, 0
      %p104 = por %p102, %p103
      %s106 = sadd.s32 %s105, 1
      %p109 = scmp.eq.s32.totalorder %s22, 15
      %p110 = scmp.ne.s32.totalorder %s105, %s107
      %p111 = scmp.eq.s32.totalorder %s22, 0
      %p112 = por %p110, %p111
      %p113 = scmp.ne.s32.totalorder %s105, %s107
      %p114 = scmp.eq.s32.totalorder %s27, 15
      %p115 = por %p113, %p114
      %p116 = scmp.ne.s32.totalorder %s107, %s108
      %p117 = scmp.eq.s32.totalorder %s27, 0
      %p118 = por %p116, %p117
      %p119 = scmp.ne.s32.totalorder %s107, %s108
      %p120 = scmp.eq.s32.totalorder %s28, 15
      %p121 = por %p119, %p120
      %p123 = scmp.ne.s32.totalorder %s108, %s122
      %p124 = scmp.eq.s32.totalorder %s28, 0
      %p125 = por %p123, %p124
      %s127 = sadd.s32 %s126, 1
      %p130 = scmp.eq.s32.totalorder %s22, 15
      %p131 = scmp.ne.s32.totalorder %s126, %s128
      %p132 = scmp.eq.s32.totalorder %s22, 0
      %p133 = por %p131, %p132
      %p134 = scmp.ne.s32.totalorder %s126, %s128
      %p135 = scmp.eq.s32.totalorder %s27, 15
      %p136 = por %p134, %p135
      %p137 = scmp.ne.s32.totalorder %s128, %s129
      %p138 = scmp.eq.s32.totalorder %s27, 0
      %p139 = por %p137, %p138
      %p140 = scmp.ne.s32.totalorder %s128, %s129
      %p141 = scmp.eq.s32.totalorder %s28, 15
      %p142 = por %p140, %p141
      %p144 = scmp.ne.s32.totalorder %s129, %s143
      %p145 = scmp.eq.s32.totalorder %s28, 0
      %p146 = por %p144, %p145
      %s148 = sadd.s32 %s147, 1
      %p151 = scmp.eq.s32.totalorder %s22, 15
      %p152 = scmp.ne.s32.totalorder %s147, %s149
      %p153 = scmp.eq.s32.totalorder %s22, 0
      %p154 = por %p152, %p153
      %p155 = scmp.ne.s32.totalorder %s147, %s149
      %p156 = scmp.eq.s32.totalorder %s27, 15
      %p157 = por %p155, %p156
      %p158 = scmp.ne.s32.totalorder %s149, %s150
      %p159 = scmp.eq.s32.totalorder %s27, 0
      %p160 = por %p158, %p159
      %p161 = scmp.ne.s32.totalorder %s149, %s150
      %p162 = scmp.eq.s32.totalorder %s28, 15
      %p163 = por %p161, %p162
      %p165 = scmp.ne.s32.totalorder %s150, %s164
      %p166 = scmp.eq.s32.totalorder %s28, 0
      %p167 = por %p165, %p166
      %s169 = sadd.s32 %s168, 1
      %p172 = scmp.eq.s32.totalorder %s22, 15
      %p173 = scmp.ne.s32.totalorder %s168, %s170
      %p174 = scmp.eq.s32.totalorder %s22, 0
      %p175 = por %p173, %p174
      %p176 = scmp.ne.s32.totalorder %s168, %s170
      %p177 = scmp.eq.s32.totalorder %s27, 15
      %p178 = por %p176, %p177
      %p179 = scmp.ne.s32.totalorder %s170, %s171
      %p180 = scmp.eq.s32.totalorder %s27, 0
      %p181 = por %p179, %p180
      %p182 = scmp.ne.s32.totalorder %s170, %s171
      %p183 = scmp.eq.s32.totalorder %s28, 15
      %p184 = por %p182, %p183
      %p186 = scmp.ne.s32.totalorder %s171, %s185
      %p187 = scmp.eq.s32.totalorder %s28, 0
      %p188 = por %p186, %p187
      %s189 = ssub.s32 %s29, %s48
      %s190 = ssub.s32 %s30, %s44
      %s191 = sor.u32 %s189, %s190
      %p192 = scmp.eq.s32.totalorder %s191, 0
      %s194 = sadd.s32 %s193, 1
      %s195 = scalar_select %p192, %s193, %s194
      %p198 = pneg %p192
      %p199 = scmp.eq.s32.totalorder %s22, 15
      %p200 = por %p198, %p199
      %p201 = scmp.ne.s32.totalorder %s193, %s196
      %p202 = scmp.eq.s32.totalorder %s22, 0
      %p203 = por %p201, %p202
      %p204 = scmp.ne.s32.totalorder %s193, %s196
      %p205 = scmp.eq.s32.totalorder %s27, 15
      %p206 = por %p204, %p205
      %p207 = scmp.ne.s32.totalorder %s196, %s197
      %p208 = scmp.eq.s32.totalorder %s27, 0
      %p209 = por %p207, %p208
      %p210 = scmp.ne.s32.totalorder %s196, %s197
      %p211 = scmp.eq.s32.totalorder %s28, 15
      %p212 = por %p210, %p211
      %p214 = scmp.ne.s32.totalorder %s197, %s213
      %p215 = scmp.eq.s32.totalorder %s28, 0
      %p216 = por %p214, %p215
      %p217 = scmp.le.s32.totalorder 1, %s22
      %p218 = scmp.lt.s32.totalorder %s22, 17
      %p219 = pnand %p217, %p218
      %p220 = pneg %p219
      // Predicated region
      $region9: #{tpu_custom_call.1} parent=5 // pred_check
        _
      $region10: #{tpu_custom_call.1} parent=5 // pred_check_branch
        %222 = sbr.rel (%p219) target = $region12
      $region11: #{tpu_custom_call.1} parent=5 // pred_region
        %s223 = ssub.s32 %s22, 1
        // Predicated region
        $region13: #{tpu_custom_call.1} parent=11 // pred_check
          %p224 = pneg %p118
        $region14: #{tpu_custom_call.1} parent=11 // pred_check_branch
          %226 = sbr.rel (%p224) target = $region16
        $region15: #{tpu_custom_call.1} parent=11 // pred_region
          %s228 = ssub.s32 2048, 2048
          %229 = vsyncadd [#allocation10], %s228
          %s230 = sshll.u32 [#allocation11], 4
          %s231 = int_to_ptr.vmem [resolvable:$true] %s230
          %236 = dma.hbm_to_vmem [thread:$0]  %s2, 2048, %s231, [#allocation10], 128, 128, 8
        $region16: #{tpu_custom_call.1} parent=11 // pred_fallthru
          _
        // Predicated region
        $region17: #{tpu_custom_call.1} parent=11 // pred_check
          %p237 = pneg %p139
        $region18: #{tpu_custom_call.1} parent=11 // pred_check_branch
          %239 = sbr.rel (%p237) target = $region20
        $region19: #{tpu_custom_call.1} parent=11 // pred_region
          %s241 = ssub.s32 4096, 4096
          %242 = vsyncadd [#allocation13], %s241
          %s243 = sshll.u32 [#allocation12], 4
          %s244 = int_to_ptr.vmem [resolvable:$true] %s243
          %249 = dma.hbm_to_vmem [thread:$0]  %s3, 4096, %s244, [#allocation13], 256, 256, 16
        $region20: #{tpu_custom_call.1} parent=11 // pred_fallthru
          _
        // Predicated region
        $region21: #{tpu_custom_call.1} parent=11 // pred_check
          %p250 = pneg %p160
        $region22: #{tpu_custom_call.1} parent=11 // pred_check_branch
          %252 = sbr.rel (%p250) target = $region24
        $region23: #{tpu_custom_call.1} parent=11 // pred_region
          %s254 = ssub.s32 2048, 2048
          %255 = vsyncadd [#allocation13], %s254
          %s256 = sshll.u32 [#allocation14], 4
          %s257 = int_to_ptr.vmem [resolvable:$true] %s256
          %262 = dma.hbm_to_vmem [thread:$0]  %s4, 2048, %s257, [#allocation13], 128, 128, 8
        $region24: #{tpu_custom_call.1} parent=11 // pred_fallthru
          _
        // Predicated region
        $region25: #{tpu_custom_call.1} parent=11 // pred_check
          %p263 = pneg %p181
        $region26: #{tpu_custom_call.1} parent=11 // pred_check_branch
          %265 = sbr.rel (%p263) target = $region28
        $region27: #{tpu_custom_call.1} parent=11 // pred_region
          _
        $region28: #{tpu_custom_call.1} parent=11 // pred_fallthru
          _
      $region12: #{tpu_custom_call.1} parent=5 // pred_fallthru
        _
      %p266 = scmp.lt.s32.totalorder %s22, 16
      // Predicated region
      $region29: #{tpu_custom_call.1} parent=5 // pred_check
        %p267 = pneg %p266
      $region30: #{tpu_custom_call.1} parent=5 // pred_check_branch
        %269 = sbr.rel (%p267) target = $region32
      $region31: #{tpu_custom_call.1} parent=5 // pred_region
        // Predicated region
        $region33: #{tpu_custom_call.1} parent=31 // pred_check
          %p270 = pneg %p63
        $region34: #{tpu_custom_call.1} parent=31 // pred_check_branch
          %272 = sbr.rel (%p270) target = $region36
        $region35: #{tpu_custom_call.1} parent=31 // pred_region
          %s273 = sand.u32 %s53, 1
          %s274 = scalar_lea.sflag [#allocation7], %s273
          %s275 = sand.u32 %s53, 1
          %s276 = smul.addr %s275, 8
          %s277 = scalar_lea.vmem [#allocation6], %s276
          %s279 = ssub.s32 128, 128
          %280 = vsyncadd %s274, %s279
          %s281 = smul.addr %s29, 2
          %s282 = sadd.s32 %s30, %s281
          %s283 = smul.addr %s282, 128
          %s284 = scalar_lea.hbm %s0, %s283
          %s286 = sshll.u32 %s277, 4
          %s287 = int_to_ptr.vmem [resolvable:$true] %s286
          %289 = dma.hbm_to_vmem [thread:$0]  %s284, 128, %s287, %s274
        $region36: #{tpu_custom_call.1} parent=31 // pred_fallthru
          _
        // Predicated region
        $region37: #{tpu_custom_call.1} parent=31 // pred_check
          %p290 = pneg %p91
        $region38: #{tpu_custom_call.1} parent=31 // pred_check_branch
          %292 = sbr.rel (%p290) target = $region40
        $region39: #{tpu_custom_call.1} parent=31 // pred_region
          %s293 = sand.u32 %s22, 1
          %s294 = scalar_lea.sflag [#allocation10], %s293
          %s295 = sand.u32 %s81, 1
          %s296 = smul.addr %s295, 8
          %s297 = scalar_lea.vmem [#allocation9], %s296
          %s299 = ssub.s32 128, 128
          %300 = vsyncadd %s294, %s299
          %s301 = smul.addr %s29, 2
          %s302 = sadd.s32 %s31, %s301
          %s303 = smul.addr %s302, 128
          %s304 = scalar_lea.hbm %s1, %s303
          %s306 = sshll.u32 %s297, 4
          %s307 = int_to_ptr.vmem [resolvable:$true] %s306
          %309 = dma.hbm_to_vmem [thread:$0]  %s304, 128, %s307, %s294
        $region40: #{tpu_custom_call.1} parent=31 // pred_fallthru
          _
      $region32: #{tpu_custom_call.1} parent=5 // pred_fallthru
        _
      %p310 = scmp.le.s32.totalorder 1, %s22
      %p311 = scmp.lt.s32.totalorder %s22, 17
      %p312 = pnand %p310, %p311
      %p313 = pneg %p312
      // Predicated region
      $region41: #{tpu_custom_call.1} parent=5 // pred_check
        _
      $region42: #{tpu_custom_call.1} parent=5 // pred_check_branch
        %315 = sbr.rel (%p312) target = $region44
      $region43: #{tpu_custom_call.1} parent=5 // pred_region
        %s316 = ssub.s32 %s22, 1
        %s317 = sand.u32 %s56, 1
        %s318 = scalar_lea.sflag [#allocation7], %s317
        %s319 = sand.u32 %s56, 1
        %s320 = smul.addr %s319, 8
        %s321 = scalar_lea.vmem [#allocation6], %s320
        // Predicated region
        $region45: #{tpu_custom_call.1} parent=43 // pred_check
          %p322 = pneg %p69
        $region46: #{tpu_custom_call.1} parent=43 // pred_check_branch
          %324 = sbr.rel (%p322) target = $region48
        $region47: #{tpu_custom_call.1} parent=43 // pred_region
          %325 = dma.done %s318, 128
        $region48: #{tpu_custom_call.1} parent=43 // pred_fallthru
          _
        %s326 = sand.u32 %s27, 1
        %s327 = scalar_lea.sflag [#allocation10], %s326
        %s328 = sand.u32 %s84, 1
        %s329 = smul.addr %s328, 8
        %s330 = scalar_lea.vmem [#allocation9], %s329
        // Predicated region
        $region49: #{tpu_custom_call.1} parent=43 // pred_check
          %p331 = pneg %p97
        $region50: #{tpu_custom_call.1} parent=43 // pred_check_branch
          %333 = sbr.rel (%p331) target = $region52
        $region51: #{tpu_custom_call.1} parent=43 // pred_region
          %334 = dma.done %s327, 128
        $region52: #{tpu_custom_call.1} parent=43 // pred_fallthru
          _
        // Predicated region
        $region53: #{tpu_custom_call.1} parent=43 // pred_check
          %p335 = pneg %p118
        $region54: #{tpu_custom_call.1} parent=43 // pred_check_branch
          %337 = sbr.rel (%p335) target = $region56
        $region55: #{tpu_custom_call.1} parent=43 // pred_region
          %338 = dma.done [#allocation10], 2048
        $region56: #{tpu_custom_call.1} parent=43 // pred_fallthru
          _
        // Predicated region
        $region57: #{tpu_custom_call.1} parent=43 // pred_check
          %p339 = pneg %p139
        $region58: #{tpu_custom_call.1} parent=43 // pred_check_branch
          %341 = sbr.rel (%p339) target = $region60
        $region59: #{tpu_custom_call.1} parent=43 // pred_region
          %342 = dma.done [#allocation13], 4096
        $region60: #{tpu_custom_call.1} parent=43 // pred_fallthru
          _
        // Predicated region
        $region61: #{tpu_custom_call.1} parent=43 // pred_check
          %p343 = pneg %p160
        $region62: #{tpu_custom_call.1} parent=43 // pred_check_branch
          %345 = sbr.rel (%p343) target = $region64
        $region63: #{tpu_custom_call.1} parent=43 // pred_region
          %346 = dma.done [#allocation13], 2048
        $region64: #{tpu_custom_call.1} parent=43 // pred_fallthru
          _
        %s347 = sand.u32 %s56, 1
        %s348 = scalar_lea.sflag [#allocation7], %s347
        %s349 = sand.u32 %s56, 1
        %s350 = smul.addr %s349, 8
        %s351 = scalar_lea.vmem [#allocation6], %s350
        %p352 = pneg %p69
        %p353 = pneg %p66
        %s354 = sand.u32 %s27, 1
        %s355 = scalar_lea.sflag [#allocation10], %s354
        %s356 = sand.u32 %s84, 1
        %s357 = smul.addr %s356, 8
        %s358 = scalar_lea.vmem [#allocation9], %s357
        %p359 = pneg %p97
        %p360 = pneg %p94
        %p361 = pneg %p118
        %p362 = pneg %p115
        %p363 = pneg %p139
        %p364 = pneg %p136
        %p365 = pneg %p160
        %p366 = pneg %p157
        %p367 = pneg %p181
        %p368 = pneg %p178
        %p369 = pneg %p209
        %p370 = pneg %p206
        %s371 = sand.u32 %s196, 1
        %s372 = scalar_lea.sflag [#allocation8], %s371
        %s373 = sand.u32 %s196, 1
        %s374 = smul.addr %s373, 8
        %s375 = scalar_lea.vmem [#allocation15], %s374
        %p376 = scmp.eq.s32.totalorder %s34, 0
        // Predicated region
        $region65: #{tpu_custom_call.1} parent=43 // pred_check
          %p377 = pneg %p376
        $region66: #{tpu_custom_call.1} parent=43 // pred_check_branch
          %379 = sbr.rel (%p377) target = $region68
        $region67: #{tpu_custom_call.1} parent=43 // pred_region
          %v380 = vld [vmem:[%s321] sm:$0xff]
          %v381 = vld [vmem:[#allocation11] sm:$0xff]
          %v382 = vld [vmem:[#allocation11 + $0x8] sm:$0xff]
          %v383 = vld [vmem:[#allocation11 + $0x10] sm:$0xff]
          %v384 = vld [vmem:[#allocation11 + $0x18] sm:$0xff]
          %v385 = vld [vmem:[#allocation11 + $0x20] sm:$0xff]
          %v386 = vld [vmem:[#allocation11 + $0x28] sm:$0xff]
          %v387 = vld [vmem:[#allocation11 + $0x30] sm:$0xff]
          %v388 = vld [vmem:[#allocation11 + $0x38] sm:$0xff]
          %v389 = vld [vmem:[#allocation11 + $0x40] sm:$0xff]
          %v390 = vld [vmem:[#allocation11 + $0x48] sm:$0xff]
          %v391 = vld [vmem:[#allocation11 + $0x50] sm:$0xff]
          %v392 = vld [vmem:[#allocation11 + $0x58] sm:$0xff]
          %v393 = vld [vmem:[#allocation11 + $0x60] sm:$0xff]
          %v394 = vld [vmem:[#allocation11 + $0x68] sm:$0xff]
          %v395 = vld [vmem:[#allocation11 + $0x70] sm:$0xff]
          %v396 = vld [vmem:[#allocation11 + $0x78] sm:$0xff]
          %397 = vmatprep.subr.mxu0 0.0
          %398 = vmatpush1.msra.mxu0 %v396
          %399 = vmatprep.subr.mxu0 0.0
          %400 = vmatpush1.msra.mxu0 %v395
          %401 = vmatprep.subr.mxu0 0.0
          %402 = vmatpush1.msra.mxu0 %v394
          %403 = vmatprep.subr.mxu0 0.0
          %404 = vmatpush1.msra.mxu0 %v393
          %405 = vmatprep.subr.mxu0 0.0
          %406 = vmatpush1.msra.mxu0 %v392
          %407 = vmatprep.subr.mxu0 0.0
          %408 = vmatpush1.msra.mxu0 %v391
          %409 = vmatprep.subr.mxu0 0.0
          %410 = vmatpush1.msra.mxu0 %v390
          %411 = vmatprep.subr.mxu0 0.0
          %412 = vmatpush1.msra.mxu0 %v389
          %413 = vmatprep.subr.mxu0 0.0
          %414 = vmatpush1.msra.mxu0 %v388
          %415 = vmatprep.subr.mxu0 0.0
          %416 = vmatpush1.msra.mxu0 %v387
          %417 = vmatprep.subr.mxu0 0.0
          %418 = vmatpush1.msra.mxu0 %v386
          %419 = vmatprep.subr.mxu0 0.0
          %420 = vmatpush1.msra.mxu0 %v385
          %421 = vmatprep.subr.mxu0 0.0
          %422 = vmatpush1.msra.mxu0 %v384
          %423 = vmatprep.subr.mxu0 0.0
          %424 = vmatpush1.msra.mxu0 %v383
          %425 = vmatprep.subr.mxu0 0.0
          %426 = vmatpush1.msra.mxu0 %v382
          %427 = vmatprep.subr.mxu0 0.0
          %428 = vmatpush1.msra.mxu0 %v381
          %429 = vmatprep.subr.mxu0 0.0
          %430 = vmatpush2.msra.mxu0 0.0
          %431 = vmatprep.subr.mxu0 0.0
          %432 = vmatpush2.msra.mxu0 0.0
          %433 = vmatprep.subr.mxu0 0.0
          %434 = vmatpush2.msra.mxu0 0.0
          %435 = vmatprep.subr.mxu0 0.0
          %436 = vmatpush2.msra.mxu0 0.0
          %437 = vmatprep.subr.mxu0 0.0
          %438 = vmatpush2.msra.mxu0 0.0
          %439 = vmatprep.subr.mxu0 0.0
          %440 = vmatpush2.msra.mxu0 0.0
          %441 = vmatprep.subr.mxu0 0.0
          %442 = vmatpush2.msra.mxu0 0.0
          %443 = vmatprep.subr.mxu0 0.0
          %444 = vmatpush2.msra.mxu0 0.0
          %445 = vmatprep.subr.mxu0 0.0
          %446 = vmatpush2.msra.mxu0 0.0
          %447 = vmatprep.subr.mxu0 0.0
          %448 = vmatpush2.msra.mxu0 0.0
          %449 = vmatprep.subr.mxu0 0.0
          %450 = vmatpush2.msra.mxu0 0.0
          %451 = vmatprep.subr.mxu0 0.0
          %452 = vmatpush2.msra.mxu0 0.0
          %453 = vmatprep.subr.mxu0 0.0
          %454 = vmatpush2.msra.mxu0 0.0
          %455 = vmatprep.subr.mxu0 0.0
          %456 = vmatpush2.msra.mxu0 0.0
          %457 = vmatprep.subr.mxu0 0.0
          %458 = vmatpush2.msra.mxu0 0.0
          %459 = vmatprep.subr.mxu0 0.0
          %460 = vmatpush2.msra.mxu0 0.0
          %461 = vmatprep.mubr.f32.mxu0 0.0
          %462 = vmatmul.mubr.f32.gmra.mxu0 %v380
          %v463 = vpop.f32.mrf.mxu0
          %v464 = vadd.f32 0.0, %v463
          %v465 = vpop.f32.mrf.mxu0
          %466 = vdwg.mxu0
          %468 = vrot.lane.b32.xlu0 %v464, 112
          %v469 = vpop.permute.xlu0 %468
          %471 = vrot.lane.b32.xlu0 %v464, 96
          %v472 = vpop.permute.xlu0 %471
          %474 = vrot.lane.b32.xlu0 %v464, 80
          %v475 = vpop.permute.xlu0 %474
          %477 = vrot.lane.b32.xlu0 %v464, 64
          %v478 = vpop.permute.xlu0 %477
          %480 = vrot.lane.b32.xlu0 %v464, 48
          %v481 = vpop.permute.xlu0 %480
          %483 = vrot.lane.b32.xlu0 %v464, 32
          %v484 = vpop.permute.xlu0 %483
          %486 = vrot.lane.b32.xlu0 %v464, 16
          %v487 = vpop.permute.xlu0 %486
          %vm489 = vcmask 130048
          %490 = vst.msk [vmem:[#allocation2] sm:$0xff] %vm489, %v464
          %491 = vst.msk [vmem:[#allocation2 + $0x8] sm:$0xff] %vm489, %v469
          %492 = vst.msk [vmem:[#allocation2 + $0x10] sm:$0xff] %vm489, %v472
          %493 = vst.msk [vmem:[#allocation2 + $0x18] sm:$0xff] %vm489, %v475
          %494 = vst.msk [vmem:[#allocation2 + $0x20] sm:$0xff] %vm489, %v478
          %495 = vst.msk [vmem:[#allocation2 + $0x28] sm:$0xff] %vm489, %v481
          %496 = vst.msk [vmem:[#allocation2 + $0x30] sm:$0xff] %vm489, %v484
          %497 = vst.msk [vmem:[#allocation2 + $0x38] sm:$0xff] %vm489, %v487
          %vm498 = vcmask 7168
          %499 = vst.msk [vmem:[#allocation3] sm:$0xff] %vm498, -inf
          %500 = vst.msk [vmem:[#allocation3 + $0x8] sm:$0xff] %vm498, -inf
          %501 = vst.msk [vmem:[#allocation3 + $0x10] sm:$0xff] %vm498, -inf
          %502 = vst.msk [vmem:[#allocation3 + $0x18] sm:$0xff] %vm498, -inf
          %503 = vst.msk [vmem:[#allocation3 + $0x20] sm:$0xff] %vm498, -inf
          %504 = vst.msk [vmem:[#allocation3 + $0x28] sm:$0xff] %vm498, -inf
          %505 = vst.msk [vmem:[#allocation3 + $0x30] sm:$0xff] %vm498, -inf
          %506 = vst.msk [vmem:[#allocation3 + $0x38] sm:$0xff] %vm498, -inf
          %507 = vst.msk [vmem:[#allocation4] sm:$0xff] %vm498, 0.0
          %508 = vst.msk [vmem:[#allocation4 + $0x8] sm:$0xff] %vm498, 0.0
          %509 = vst.msk [vmem:[#allocation4 + $0x10] sm:$0xff] %vm498, 0.0
          %510 = vst.msk [vmem:[#allocation4 + $0x18] sm:$0xff] %vm498, 0.0
          %511 = vst.msk [vmem:[#allocation4 + $0x20] sm:$0xff] %vm498, 0.0
          %512 = vst.msk [vmem:[#allocation4 + $0x28] sm:$0xff] %vm498, 0.0
          %513 = vst.msk [vmem:[#allocation4 + $0x30] sm:$0xff] %vm498, 0.0
          %514 = vst.msk [vmem:[#allocation4 + $0x38] sm:$0xff] %vm498, 0.0
          %515 = vst.msk [vmem:[#allocation5] sm:$0xff] %vm489, 0.0
          %516 = vst.msk [vmem:[#allocation5 + $0x8] sm:$0xff] %vm489, 0.0
          %517 = vst.msk [vmem:[#allocation5 + $0x10] sm:$0xff] %vm489, 0.0
          %518 = vst.msk [vmem:[#allocation5 + $0x18] sm:$0xff] %vm489, 0.0
          %519 = vst.msk [vmem:[#allocation5 + $0x20] sm:$0xff] %vm489, 0.0
          %520 = vst.msk [vmem:[#allocation5 + $0x28] sm:$0xff] %vm489, 0.0
          %521 = vst.msk [vmem:[#allocation5 + $0x30] sm:$0xff] %vm489, 0.0
          %522 = vst.msk [vmem:[#allocation5 + $0x38] sm:$0xff] %vm489, 0.0
        $region68: #{tpu_custom_call.1} parent=43 // pred_fallthru
          _
        %s523 = smul.u32 %s34, 8
        %s524 = smul.u32 %s33, 8
        %s525 = sadd.s32 %s524, 7
        %p526 = scmp.le.s32.totalorder %s523, %s525
        // Predicated region
        $region69: #{tpu_custom_call.1} parent=43 // pred_check
          %p527 = pneg %p526
        $region70: #{tpu_custom_call.1} parent=43 // pred_check_branch
          %529 = sbr.rel (%p527) target = $region72
        $region71: #{tpu_custom_call.1} parent=43 // pred_region
          %v530 = vld [vmem:[%s330] sm:$0xff]
          %v531 = vld [vmem:[#allocation12] sm:$0xff]
          %v532 = vld [vmem:[#allocation12 + $0x8] sm:$0xff]
          %v533 = vld [vmem:[#allocation12 + $0x10] sm:$0xff]
          %v534 = vld [vmem:[#allocation12 + $0x18] sm:$0xff]
          %v535 = vld [vmem:[#allocation12 + $0x20] sm:$0xff]
          %v536 = vld [vmem:[#allocation12 + $0x28] sm:$0xff]
          %v537 = vld [vmem:[#allocation12 + $0x30] sm:$0xff]
          %v538 = vld [vmem:[#allocation12 + $0x38] sm:$0xff]
          %v539 = vld [vmem:[#allocation12 + $0x40] sm:$0xff]
          %v540 = vld [vmem:[#allocation12 + $0x48] sm:$0xff]
          %v541 = vld [vmem:[#allocation12 + $0x50] sm:$0xff]
          %v542 = vld [vmem:[#allocation12 + $0x58] sm:$0xff]
          %v543 = vld [vmem:[#allocation12 + $0x60] sm:$0xff]
          %v544 = vld [vmem:[#allocation12 + $0x68] sm:$0xff]
          %v545 = vld [vmem:[#allocation12 + $0x70] sm:$0xff]
          %v546 = vld [vmem:[#allocation12 + $0x78] sm:$0xff]
          %v547 = vld [vmem:[#allocation12 + $0x80] sm:$0xff]
          %v548 = vld [vmem:[#allocation12 + $0x88] sm:$0xff]
          %v549 = vld [vmem:[#allocation12 + $0x90] sm:$0xff]
          %v550 = vld [vmem:[#allocation12 + $0x98] sm:$0xff]
          %v551 = vld [vmem:[#allocation12 + $0xa0] sm:$0xff]
          %v552 = vld [vmem:[#allocation12 + $0xa8] sm:$0xff]
          %v553 = vld [vmem:[#allocation12 + $0xb0] sm:$0xff]
          %v554 = vld [vmem:[#allocation12 + $0xb8] sm:$0xff]
          %v555 = vld [vmem:[#allocation12 + $0xc0] sm:$0xff]
          %v556 = vld [vmem:[#allocation12 + $0xc8] sm:$0xff]
          %v557 = vld [vmem:[#allocation12 + $0xd0] sm:$0xff]
          %v558 = vld [vmem:[#allocation12 + $0xd8] sm:$0xff]
          %v559 = vld [vmem:[#allocation12 + $0xe0] sm:$0xff]
          %v560 = vld [vmem:[#allocation12 + $0xe8] sm:$0xff]
          %v561 = vld [vmem:[#allocation12 + $0xf0] sm:$0xff]
          %v562 = vld [vmem:[#allocation12 + $0xf8] sm:$0xff]
          %563 = vmatprep.subr.mxu0 %v562
          %564 = vmatpush1.msra.mxu0 %v561
          %565 = vmatprep.subr.mxu0 %v560
          %566 = vmatpush1.msra.mxu0 %v559
          %567 = vmatprep.subr.mxu0 %v558
          %568 = vmatpush1.msra.mxu0 %v557
          %569 = vmatprep.subr.mxu0 %v556
          %570 = vmatpush1.msra.mxu0 %v555
          %571 = vmatprep.subr.mxu0 %v554
          %572 = vmatpush1.msra.mxu0 %v553
          %573 = vmatprep.subr.mxu0 %v552
          %574 = vmatpush1.msra.mxu0 %v551
          %575 = vmatprep.subr.mxu0 %v550
          %576 = vmatpush1.msra.mxu0 %v549
          %577 = vmatprep.subr.mxu0 %v548
          %578 = vmatpush1.msra.mxu0 %v547
          %579 = vmatprep.subr.mxu0 %v546
          %580 = vmatpush1.msra.mxu0 %v545
          %581 = vmatprep.subr.mxu0 %v544
          %582 = vmatpush1.msra.mxu0 %v543
          %583 = vmatprep.subr.mxu0 %v542
          %584 = vmatpush1.msra.mxu0 %v541
          %585 = vmatprep.subr.mxu0 %v540
          %586 = vmatpush1.msra.mxu0 %v539
          %587 = vmatprep.subr.mxu0 %v538
          %588 = vmatpush1.msra.mxu0 %v537
          %589 = vmatprep.subr.mxu0 %v536
          %590 = vmatpush1.msra.mxu0 %v535
          %591 = vmatprep.subr.mxu0 %v534
          %592 = vmatpush1.msra.mxu0 %v533
          %593 = vmatprep.subr.mxu0 %v532
          %594 = vmatpush1.msra.mxu0 %v531
          %595 = vmatprep.subr.mxu0 0.0
          %596 = vmatpush2.msra.mxu0 0.0
          %597 = vmatprep.subr.mxu0 0.0
          %598 = vmatpush2.msra.mxu0 0.0
          %599 = vmatprep.subr.mxu0 0.0
          %600 = vmatpush2.msra.mxu0 0.0
          %601 = vmatprep.subr.mxu0 0.0
          %602 = vmatpush2.msra.mxu0 0.0
          %603 = vmatprep.subr.mxu0 0.0
          %604 = vmatpush2.msra.mxu0 0.0
          %605 = vmatprep.subr.mxu0 0.0
          %606 = vmatpush2.msra.mxu0 0.0
          %607 = vmatprep.subr.mxu0 0.0
          %608 = vmatpush2.msra.mxu0 0.0
          %609 = vmatprep.subr.mxu0 0.0
          %610 = vmatpush2.msra.mxu0 0.0
          %611 = vmatprep.subr.mxu0 0.0
          %612 = vmatpush2.msra.mxu0 0.0
          %613 = vmatprep.subr.mxu0 0.0
          %614 = vmatpush2.msra.mxu0 0.0
          %615 = vmatprep.subr.mxu0 0.0
          %616 = vmatpush2.msra.mxu0 0.0
          %617 = vmatprep.subr.mxu0 0.0
          %618 = vmatpush2.msra.mxu0 0.0
          %619 = vmatprep.subr.mxu0 0.0
          %620 = vmatpush2.msra.mxu0 0.0
          %621 = vmatprep.subr.mxu0 0.0
          %622 = vmatpush2.msra.mxu0 0.0
          %623 = vmatprep.subr.mxu0 0.0
          %624 = vmatpush2.msra.mxu0 0.0
          %625 = vmatprep.subr.mxu0 0.0
          %626 = vmatpush2.msra.mxu0 0.0
          %627 = vmatprep.mubr.f32.mxu0 0.0
          %628 = vmatmul.mubr.f32.gmra.mxu0 %v530
          %v629 = vpop.f32.mrf.mxu0
          %v630 = vadd.f32 0.0, %v629
          %v631 = vpop.f32.mrf.mxu0
          %v632 = vadd.f32 0.0, %v631
          %633 = vdwg.mxu0
          %635 = vrot.lane.b32.xlu0 %v630, 112
          %v636 = vpop.permute.xlu0 %635
          %637 = vrot.lane.b32.xlu0 %v630, 96
          %v638 = vpop.permute.xlu0 %637
          %639 = vrot.lane.b32.xlu0 %v630, 80
          %v640 = vpop.permute.xlu0 %639
          %641 = vrot.lane.b32.xlu0 %v630, 64
          %v642 = vpop.permute.xlu0 %641
          %643 = vrot.lane.b32.xlu0 %v630, 48
          %v644 = vpop.permute.xlu0 %643
          %645 = vrot.lane.b32.xlu0 %v630, 32
          %v646 = vpop.permute.xlu0 %645
          %647 = vrot.lane.b32.xlu0 %v630, 16
          %v648 = vpop.permute.xlu0 %647
          %650 = vrot.lane.b32.xlu0 %v632, 112
          %v651 = vpop.permute.xlu0 %650
          %653 = vrot.lane.b32.xlu0 %v632, 96
          %v654 = vpop.permute.xlu0 %653
          %656 = vrot.lane.b32.xlu0 %v632, 80
          %v657 = vpop.permute.xlu0 %656
          %659 = vrot.lane.b32.xlu0 %v632, 64
          %v660 = vpop.permute.xlu0 %659
          %662 = vrot.lane.b32.xlu0 %v632, 48
          %v663 = vpop.permute.xlu0 %662
          %665 = vrot.lane.b32.xlu0 %v632, 32
          %v666 = vpop.permute.xlu0 %665
          %668 = vrot.lane.b32.xlu0 %v632, 16
          %v669 = vpop.permute.xlu0 %668
          %v671 = vld [vmem:[#allocation2] sm:$0xff]
          %v672 = vld [vmem:[#allocation2 + $0x8] sm:$0xff]
          %v673 = vld [vmem:[#allocation2 + $0x10] sm:$0xff]
          %v674 = vld [vmem:[#allocation2 + $0x18] sm:$0xff]
          %v675 = vld [vmem:[#allocation2 + $0x20] sm:$0xff]
          %v676 = vld [vmem:[#allocation2 + $0x28] sm:$0xff]
          %v677 = vld [vmem:[#allocation2 + $0x30] sm:$0xff]
          %v678 = vld [vmem:[#allocation2 + $0x38] sm:$0xff]
          %vm679 = vcmask 130048
          %v681 = vsel %vm679, %v671, 0
          %v683 = vsel %vm679, %v630, 0
          %685 = vmatprep.subr.mxu0 0.0
          %686 = vmatpush1.xpose.msra.mxu0 0.0
          %687 = vmatprep.subr.mxu0 0.0
          %688 = vmatpush1.xpose.msra.mxu0 0.0
          %689 = vmatprep.subr.mxu0 0.0
          %690 = vmatpush1.xpose.msra.mxu0 0.0
          %691 = vmatprep.subr.mxu0 0.0
          %692 = vmatpush1.xpose.msra.mxu0 0.0
          %693 = vmatprep.subr.mxu0 0.0
          %694 = vmatpush1.xpose.msra.mxu0 0.0
          %695 = vmatprep.subr.mxu0 0.0
          %696 = vmatpush1.xpose.msra.mxu0 0.0
          %697 = vmatprep.subr.mxu0 0.0
          %698 = vmatpush1.xpose.msra.mxu0 0.0
          %699 = vmatprep.subr.mxu0 0.0
          %700 = vmatpush1.xpose.msra.mxu0 0.0
          %701 = vmatprep.subr.mxu0 0.0
          %702 = vmatpush1.xpose.msra.mxu0 0.0
          %703 = vmatprep.subr.mxu0 0.0
          %704 = vmatpush1.xpose.msra.mxu0 0.0
          %705 = vmatprep.subr.mxu0 0.0
          %706 = vmatpush1.xpose.msra.mxu0 0.0
          %707 = vmatprep.subr.mxu0 0.0
          %708 = vmatpush1.xpose.msra.mxu0 0.0
          %709 = vmatprep.subr.mxu0 0.0
          %710 = vmatpush1.xpose.msra.mxu0 0.0
          %711 = vmatprep.subr.mxu0 0.0
          %712 = vmatpush1.xpose.msra.mxu0 0.0
          %713 = vmatprep.subr.mxu0 0.0
          %714 = vmatpush1.xpose.msra.mxu0 0.0
          %715 = vmatprep.subr.mxu0 0.0
          %716 = vmatpush1.xpose.msra.mxu0 %v683
          %717 = vmatprep.subr.mxu0 0.0
          %718 = vmatpush2.xpose.msra.mxu0 0.0
          %719 = vmatprep.subr.mxu0 0.0
          %720 = vmatpush2.xpose.msra.mxu0 0.0
          %721 = vmatprep.subr.mxu0 0.0
          %722 = vmatpush2.xpose.msra.mxu0 0.0
          %723 = vmatprep.subr.mxu0 0.0
          %724 = vmatpush2.xpose.msra.mxu0 0.0
          %725 = vmatprep.subr.mxu0 0.0
          %726 = vmatpush2.xpose.msra.mxu0 0.0
          %727 = vmatprep.subr.mxu0 0.0
          %728 = vmatpush2.xpose.msra.mxu0 0.0
          %729 = vmatprep.subr.mxu0 0.0
          %730 = vmatpush2.xpose.msra.mxu0 0.0
          %731 = vmatprep.subr.mxu0 0.0
          %732 = vmatpush2.xpose.msra.mxu0 0.0
          %733 = vmatprep.subr.mxu0 0.0
          %734 = vmatpush2.xpose.msra.mxu0 0.0
          %735 = vmatprep.subr.mxu0 0.0
          %736 = vmatpush2.xpose.msra.mxu0 0.0
          %737 = vmatprep.subr.mxu0 0.0
          %738 = vmatpush2.xpose.msra.mxu0 0.0
          %739 = vmatprep.subr.mxu0 0.0
          %740 = vmatpush2.xpose.msra.mxu0 0.0
          %741 = vmatprep.subr.mxu0 0.0
          %742 = vmatpush2.xpose.msra.mxu0 0.0
          %743 = vmatprep.subr.mxu0 0.0
          %744 = vmatpush2.xpose.msra.mxu0 0.0
          %745 = vmatprep.subr.mxu0 0.0
          %746 = vmatpush2.xpose.msra.mxu0 0.0
          %747 = vmatprep.subr.mxu0 0.0
          %748 = vmatpush2.xpose.msra.mxu0 0.0
          %749 = vmatprep.mubr.f32.mxu0 0.0
          %750 = vmatmul.mubr.f32.gmra.mxu0 %v681
          %v751 = vpop.f32.mrf.mxu0
          %v752 = vadd.f32 0.0, %v751
          %v753 = vpop.f32.mrf.mxu0
          %754 = vdwg.mxu0
          %v756 = vsel %vm679, %v672, 0
          %v758 = vsel %vm679, %v636, 0
          %760 = vmatprep.subr.mxu0 0.0
          %761 = vmatpush1.xpose.msra.mxu0 0.0
          %762 = vmatprep.subr.mxu0 0.0
          %763 = vmatpush1.xpose.msra.mxu0 0.0
          %764 = vmatprep.subr.mxu0 0.0
          %765 = vmatpush1.xpose.msra.mxu0 0.0
          %766 = vmatprep.subr.mxu0 0.0
          %767 = vmatpush1.xpose.msra.mxu0 0.0
          %768 = vmatprep.subr.mxu0 0.0
          %769 = vmatpush1.xpose.msra.mxu0 0.0
          %770 = vmatprep.subr.mxu0 0.0
          %771 = vmatpush1.xpose.msra.mxu0 0.0
          %772 = vmatprep.subr.mxu0 0.0
          %773 = vmatpush1.xpose.msra.mxu0 0.0
          %774 = vmatprep.subr.mxu0 0.0
          %775 = vmatpush1.xpose.msra.mxu0 0.0
          %776 = vmatprep.subr.mxu0 0.0
          %777 = vmatpush1.xpose.msra.mxu0 0.0
          %778 = vmatprep.subr.mxu0 0.0
          %779 = vmatpush1.xpose.msra.mxu0 0.0
          %780 = vmatprep.subr.mxu0 0.0
          %781 = vmatpush1.xpose.msra.mxu0 0.0
          %782 = vmatprep.subr.mxu0 0.0
          %783 = vmatpush1.xpose.msra.mxu0 0.0
          %784 = vmatprep.subr.mxu0 0.0
          %785 = vmatpush1.xpose.msra.mxu0 0.0
          %786 = vmatprep.subr.mxu0 0.0
          %787 = vmatpush1.xpose.msra.mxu0 0.0
          %788 = vmatprep.subr.mxu0 0.0
          %789 = vmatpush1.xpose.msra.mxu0 0.0
          %790 = vmatprep.subr.mxu0 0.0
          %791 = vmatpush1.xpose.msra.mxu0 %v758
          %792 = vmatprep.subr.mxu0 0.0
          %793 = vmatpush2.xpose.msra.mxu0 0.0
          %794 = vmatprep.subr.mxu0 0.0
          %795 = vmatpush2.xpose.msra.mxu0 0.0
          %796 = vmatprep.subr.mxu0 0.0
          %797 = vmatpush2.xpose.msra.mxu0 0.0
          %798 = vmatprep.subr.mxu0 0.0
          %799 = vmatpush2.xpose.msra.mxu0 0.0
          %800 = vmatprep.subr.mxu0 0.0
          %801 = vmatpush2.xpose.msra.mxu0 0.0
          %802 = vmatprep.subr.mxu0 0.0
          %803 = vmatpush2.xpose.msra.mxu0 0.0
          %804 = vmatprep.subr.mxu0 0.0
          %805 = vmatpush2.xpose.msra.mxu0 0.0
          %806 = vmatprep.subr.mxu0 0.0
          %807 = vmatpush2.xpose.msra.mxu0 0.0
          %808 = vmatprep.subr.mxu0 0.0
          %809 = vmatpush2.xpose.msra.mxu0 0.0
          %810 = vmatprep.subr.mxu0 0.0
          %811 = vmatpush2.xpose.msra.mxu0 0.0
          %812 = vmatprep.subr.mxu0 0.0
          %813 = vmatpush2.xpose.msra.mxu0 0.0
          %814 = vmatprep.subr.mxu0 0.0
          %815 = vmatpush2.xpose.msra.mxu0 0.0
          %816 = vmatprep.subr.mxu0 0.0
          %817 = vmatpush2.xpose.msra.mxu0 0.0
          %818 = vmatprep.subr.mxu0 0.0
          %819 = vmatpush2.xpose.msra.mxu0 0.0
          %820 = vmatprep.subr.mxu0 0.0
          %821 = vmatpush2.xpose.msra.mxu0 0.0
          %822 = vmatprep.subr.mxu0 0.0
          %823 = vmatpush2.xpose.msra.mxu0 0.0
          %824 = vmatprep.mubr.f32.mxu0 0.0
          %825 = vmatmul.mubr.f32.gmra.mxu0 %v756
          %v826 = vpop.f32.mrf.mxu0
          %v827 = vadd.f32 0.0, %v826
          %v828 = vpop.f32.mrf.mxu0
          %829 = vdwg.mxu0
          %v831 = vsel %vm679, %v673, 0
          %v833 = vsel %vm679, %v638, 0
          %835 = vmatprep.subr.mxu0 0.0
          %836 = vmatpush1.xpose.msra.mxu0 0.0
          %837 = vmatprep.subr.mxu0 0.0
          %838 = vmatpush1.xpose.msra.mxu0 0.0
          %839 = vmatprep.subr.mxu0 0.0
          %840 = vmatpush1.xpose.msra.mxu0 0.0
          %841 = vmatprep.subr.mxu0 0.0
          %842 = vmatpush1.xpose.msra.mxu0 0.0
          %843 = vmatprep.subr.mxu0 0.0
          %844 = vmatpush1.xpose.msra.mxu0 0.0
          %845 = vmatprep.subr.mxu0 0.0
          %846 = vmatpush1.xpose.msra.mxu0 0.0
          %847 = vmatprep.subr.mxu0 0.0
          %848 = vmatpush1.xpose.msra.mxu0 0.0
          %849 = vmatprep.subr.mxu0 0.0
          %850 = vmatpush1.xpose.msra.mxu0 0.0
          %851 = vmatprep.subr.mxu0 0.0
          %852 = vmatpush1.xpose.msra.mxu0 0.0
          %853 = vmatprep.subr.mxu0 0.0
          %854 = vmatpush1.xpose.msra.mxu0 0.0
          %855 = vmatprep.subr.mxu0 0.0
          %856 = vmatpush1.xpose.msra.mxu0 0.0
          %857 = vmatprep.subr.mxu0 0.0
          %858 = vmatpush1.xpose.msra.mxu0 0.0
          %859 = vmatprep.subr.mxu0 0.0
          %860 = vmatpush1.xpose.msra.mxu0 0.0
          %861 = vmatprep.subr.mxu0 0.0
          %862 = vmatpush1.xpose.msra.mxu0 0.0
          %863 = vmatprep.subr.mxu0 0.0
          %864 = vmatpush1.xpose.msra.mxu0 0.0
          %865 = vmatprep.subr.mxu0 0.0
          %866 = vmatpush1.xpose.msra.mxu0 %v833
          %867 = vmatprep.subr.mxu0 0.0
          %868 = vmatpush2.xpose.msra.mxu0 0.0
          %869 = vmatprep.subr.mxu0 0.0
          %870 = vmatpush2.xpose.msra.mxu0 0.0
          %871 = vmatprep.subr.mxu0 0.0
          %872 = vmatpush2.xpose.msra.mxu0 0.0
          %873 = vmatprep.subr.mxu0 0.0
          %874 = vmatpush2.xpose.msra.mxu0 0.0
          %875 = vmatprep.subr.mxu0 0.0
          %876 = vmatpush2.xpose.msra.mxu0 0.0
          %877 = vmatprep.subr.mxu0 0.0
          %878 = vmatpush2.xpose.msra.mxu0 0.0
          %879 = vmatprep.subr.mxu0 0.0
          %880 = vmatpush2.xpose.msra.mxu0 0.0
          %881 = vmatprep.subr.mxu0 0.0
          %882 = vmatpush2.xpose.msra.mxu0 0.0
          %883 = vmatprep.subr.mxu0 0.0
          %884 = vmatpush2.xpose.msra.mxu0 0.0
          %885 = vmatprep.subr.mxu0 0.0
          %886 = vmatpush2.xpose.msra.mxu0 0.0
          %887 = vmatprep.subr.mxu0 0.0
          %888 = vmatpush2.xpose.msra.mxu0 0.0
          %889 = vmatprep.subr.mxu0 0.0
          %890 = vmatpush2.xpose.msra.mxu0 0.0
          %891 = vmatprep.subr.mxu0 0.0
          %892 = vmatpush2.xpose.msra.mxu0 0.0
          %893 = vmatprep.subr.mxu0 0.0
          %894 = vmatpush2.xpose.msra.mxu0 0.0
          %895 = vmatprep.subr.mxu0 0.0
          %896 = vmatpush2.xpose.msra.mxu0 0.0
          %897 = vmatprep.subr.mxu0 0.0
          %898 = vmatpush2.xpose.msra.mxu0 0.0
          %899 = vmatprep.mubr.f32.mxu0 0.0
          %900 = vmatmul.mubr.f32.gmra.mxu0 %v831
          %v901 = vpop.f32.mrf.mxu0
          %v902 = vadd.f32 0.0, %v901
          %v903 = vpop.f32.mrf.mxu0
          %904 = vdwg.mxu0
          %v906 = vsel %vm679, %v674, 0
          %v908 = vsel %vm679, %v640, 0
          %910 = vmatprep.subr.mxu0 0.0
          %911 = vmatpush1.xpose.msra.mxu0 0.0
          %912 = vmatprep.subr.mxu0 0.0
          %913 = vmatpush1.xpose.msra.mxu0 0.0
          %914 = vmatprep.subr.mxu0 0.0
          %915 = vmatpush1.xpose.msra.mxu0 0.0
          %916 = vmatprep.subr.mxu0 0.0
          %917 = vmatpush1.xpose.msra.mxu0 0.0
          %918 = vmatprep.subr.mxu0 0.0
          %919 = vmatpush1.xpose.msra.mxu0 0.0
          %920 = vmatprep.subr.mxu0 0.0
          %921 = vmatpush1.xpose.msra.mxu0 0.0
          %922 = vmatprep.subr.mxu0 0.0
          %923 = vmatpush1.xpose.msra.mxu0 0.0
          %924 = vmatprep.subr.mxu0 0.0
          %925 = vmatpush1.xpose.msra.mxu0 0.0
          %926 = vmatprep.subr.mxu0 0.0
          %927 = vmatpush1.xpose.msra.mxu0 0.0
          %928 = vmatprep.subr.mxu0 0.0
          %929 = vmatpush1.xpose.msra.mxu0 0.0
          %930 = vmatprep.subr.mxu0 0.0
          %931 = vmatpush1.xpose.msra.mxu0 0.0
          %932 = vmatprep.subr.mxu0 0.0
          %933 = vmatpush1.xpose.msra.mxu0 0.0
          %934 = vmatprep.subr.mxu0 0.0
          %935 = vmatpush1.xpose.msra.mxu0 0.0
          %936 = vmatprep.subr.mxu0 0.0
          %937 = vmatpush1.xpose.msra.mxu0 0.0
          %938 = vmatprep.subr.mxu0 0.0
          %939 = vmatpush1.xpose.msra.mxu0 0.0
          %940 = vmatprep.subr.mxu0 0.0
          %941 = vmatpush1.xpose.msra.mxu0 %v908
          %942 = vmatprep.subr.mxu0 0.0
          %943 = vmatpush2.xpose.msra.mxu0 0.0
          %944 = vmatprep.subr.mxu0 0.0
          %945 = vmatpush2.xpose.msra.mxu0 0.0
          %946 = vmatprep.subr.mxu0 0.0
          %947 = vmatpush2.xpose.msra.mxu0 0.0
          %948 = vmatprep.subr.mxu0 0.0
          %949 = vmatpush2.xpose.msra.mxu0 0.0
          %950 = vmatprep.subr.mxu0 0.0
          %951 = vmatpush2.xpose.msra.mxu0 0.0
          %952 = vmatprep.subr.mxu0 0.0
          %953 = vmatpush2.xpose.msra.mxu0 0.0
          %954 = vmatprep.subr.mxu0 0.0
          %955 = vmatpush2.xpose.msra.mxu0 0.0
          %956 = vmatprep.subr.mxu0 0.0
          %957 = vmatpush2.xpose.msra.mxu0 0.0
          %958 = vmatprep.subr.mxu0 0.0
          %959 = vmatpush2.xpose.msra.mxu0 0.0
          %960 = vmatprep.subr.mxu0 0.0
          %961 = vmatpush2.xpose.msra.mxu0 0.0
          %962 = vmatprep.subr.mxu0 0.0
          %963 = vmatpush2.xpose.msra.mxu0 0.0
          %964 = vmatprep.subr.mxu0 0.0
          %965 = vmatpush2.xpose.msra.mxu0 0.0
          %966 = vmatprep.subr.mxu0 0.0
          %967 = vmatpush2.xpose.msra.mxu0 0.0
          %968 = vmatprep.subr.mxu0 0.0
          %969 = vmatpush2.xpose.msra.mxu0 0.0
          %970 = vmatprep.subr.mxu0 0.0
          %971 = vmatpush2.xpose.msra.mxu0 0.0
          %972 = vmatprep.subr.mxu0 0.0
          %973 = vmatpush2.xpose.msra.mxu0 0.0
          %974 = vmatprep.mubr.f32.mxu0 0.0
          %975 = vmatmul.mubr.f32.gmra.mxu0 %v906
          %v976 = vpop.f32.mrf.mxu0
          %v977 = vadd.f32 0.0, %v976
          %v978 = vpop.f32.mrf.mxu0
          %979 = vdwg.mxu0
          %v981 = vsel %vm679, %v675, 0
          %v983 = vsel %vm679, %v642, 0
          %985 = vmatprep.subr.mxu0 0.0
          %986 = vmatpush1.xpose.msra.mxu0 0.0
          %987 = vmatprep.subr.mxu0 0.0
          %988 = vmatpush1.xpose.msra.mxu0 0.0
          %989 = vmatprep.subr.mxu0 0.0
          %990 = vmatpush1.xpose.msra.mxu0 0.0
          %991 = vmatprep.subr.mxu0 0.0
          %992 = vmatpush1.xpose.msra.mxu0 0.0
          %993 = vmatprep.subr.mxu0 0.0
          %994 = vmatpush1.xpose.msra.mxu0 0.0
          %995 = vmatprep.subr.mxu0 0.0
          %996 = vmatpush1.xpose.msra.mxu0 0.0
          %997 = vmatprep.subr.mxu0 0.0
          %998 = vmatpush1.xpose.msra.mxu0 0.0
          %999 = vmatprep.subr.mxu0 0.0
          %1000 = vmatpush1.xpose.msra.mxu0 0.0
          %1001 = vmatprep.subr.mxu0 0.0
          %1002 = vmatpush1.xpose.msra.mxu0 0.0
          %1003 = vmatprep.subr.mxu0 0.0
          %1004 = vmatpush1.xpose.msra.mxu0 0.0
          %1005 = vmatprep.subr.mxu0 0.0
          %1006 = vmatpush1.xpose.msra.mxu0 0.0
          %1007 = vmatprep.subr.mxu0 0.0
          %1008 = vmatpush1.xpose.msra.mxu0 0.0
          %1009 = vmatprep.subr.mxu0 0.0
          %1010 = vmatpush1.xpose.msra.mxu0 0.0
          %1011 = vmatprep.subr.mxu0 0.0
          %1012 = vmatpush1.xpose.msra.mxu0 0.0
          %1013 = vmatprep.subr.mxu0 0.0
          %1014 = vmatpush1.xpose.msra.mxu0 0.0
          %1015 = vmatprep.subr.mxu0 0.0
          %1016 = vmatpush1.xpose.msra.mxu0 %v983
          %1017 = vmatprep.subr.mxu0 0.0
          %1018 = vmatpush2.xpose.msra.mxu0 0.0
          %1019 = vmatprep.subr.mxu0 0.0
          %1020 = vmatpush2.xpose.msra.mxu0 0.0
          %1021 = vmatprep.subr.mxu0 0.0
          %1022 = vmatpush2.xpose.msra.mxu0 0.0
          %1023 = vmatprep.subr.mxu0 0.0
          %1024 = vmatpush2.xpose.msra.mxu0 0.0
          %1025 = vmatprep.subr.mxu0 0.0
          %1026 = vmatpush2.xpose.msra.mxu0 0.0
          %1027 = vmatprep.subr.mxu0 0.0
          %1028 = vmatpush2.xpose.msra.mxu0 0.0
          %1029 = vmatprep.subr.mxu0 0.0
          %1030 = vmatpush2.xpose.msra.mxu0 0.0
          %1031 = vmatprep.subr.mxu0 0.0
          %1032 = vmatpush2.xpose.msra.mxu0 0.0
          %1033 = vmatprep.subr.mxu0 0.0
          %1034 = vmatpush2.xpose.msra.mxu0 0.0
          %1035 = vmatprep.subr.mxu0 0.0
          %1036 = vmatpush2.xpose.msra.mxu0 0.0
          %1037 = vmatprep.subr.mxu0 0.0
          %1038 = vmatpush2.xpose.msra.mxu0 0.0
          %1039 = vmatprep.subr.mxu0 0.0
          %1040 = vmatpush2.xpose.msra.mxu0 0.0
          %1041 = vmatprep.subr.mxu0 0.0
          %1042 = vmatpush2.xpose.msra.mxu0 0.0
          %1043 = vmatprep.subr.mxu0 0.0
          %1044 = vmatpush2.xpose.msra.mxu0 0.0
          %1045 = vmatprep.subr.mxu0 0.0
          %1046 = vmatpush2.xpose.msra.mxu0 0.0
          %1047 = vmatprep.subr.mxu0 0.0
          %1048 = vmatpush2.xpose.msra.mxu0 0.0
          %1049 = vmatprep.mubr.f32.mxu0 0.0
          %1050 = vmatmul.mubr.f32.gmra.mxu0 %v981
          %v1051 = vpop.f32.mrf.mxu0
          %v1052 = vadd.f32 0.0, %v1051
          %v1053 = vpop.f32.mrf.mxu0
          %1054 = vdwg.mxu0
          %v1056 = vsel %vm679, %v676, 0
          %v1058 = vsel %vm679, %v644, 0
          %1060 = vmatprep.subr.mxu0 0.0
          %1061 = vmatpush1.xpose.msra.mxu0 0.0
          %1062 = vmatprep.subr.mxu0 0.0
          %1063 = vmatpush1.xpose.msra.mxu0 0.0
          %1064 = vmatprep.subr.mxu0 0.0
          %1065 = vmatpush1.xpose.msra.mxu0 0.0
          %1066 = vmatprep.subr.mxu0 0.0
          %1067 = vmatpush1.xpose.msra.mxu0 0.0
          %1068 = vmatprep.subr.mxu0 0.0
          %1069 = vmatpush1.xpose.msra.mxu0 0.0
          %1070 = vmatprep.subr.mxu0 0.0
          %1071 = vmatpush1.xpose.msra.mxu0 0.0
          %1072 = vmatprep.subr.mxu0 0.0
          %1073 = vmatpush1.xpose.msra.mxu0 0.0
          %1074 = vmatprep.subr.mxu0 0.0
          %1075 = vmatpush1.xpose.msra.mxu0 0.0
          %1076 = vmatprep.subr.mxu0 0.0
          %1077 = vmatpush1.xpose.msra.mxu0 0.0
          %1078 = vmatprep.subr.mxu0 0.0
          %1079 = vmatpush1.xpose.msra.mxu0 0.0
          %1080 = vmatprep.subr.mxu0 0.0
          %1081 = vmatpush1.xpose.msra.mxu0 0.0
          %1082 = vmatprep.subr.mxu0 0.0
          %1083 = vmatpush1.xpose.msra.mxu0 0.0
          %1084 = vmatprep.subr.mxu0 0.0
          %1085 = vmatpush1.xpose.msra.mxu0 0.0
          %1086 = vmatprep.subr.mxu0 0.0
          %1087 = vmatpush1.xpose.msra.mxu0 0.0
          %1088 = vmatprep.subr.mxu0 0.0
          %1089 = vmatpush1.xpose.msra.mxu0 0.0
          %1090 = vmatprep.subr.mxu0 0.0
          %1091 = vmatpush1.xpose.msra.mxu0 %v1058
          %1092 = vmatprep.subr.mxu0 0.0
          %1093 = vmatpush2.xpose.msra.mxu0 0.0
          %1094 = vmatprep.subr.mxu0 0.0
          %1095 = vmatpush2.xpose.msra.mxu0 0.0
          %1096 = vmatprep.subr.mxu0 0.0
          %1097 = vmatpush2.xpose.msra.mxu0 0.0
          %1098 = vmatprep.subr.mxu0 0.0
          %1099 = vmatpush2.xpose.msra.mxu0 0.0
          %1100 = vmatprep.subr.mxu0 0.0
          %1101 = vmatpush2.xpose.msra.mxu0 0.0
          %1102 = vmatprep.subr.mxu0 0.0
          %1103 = vmatpush2.xpose.msra.mxu0 0.0
          %1104 = vmatprep.subr.mxu0 0.0
          %1105 = vmatpush2.xpose.msra.mxu0 0.0
          %1106 = vmatprep.subr.mxu0 0.0
          %1107 = vmatpush2.xpose.msra.mxu0 0.0
          %1108 = vmatprep.subr.mxu0 0.0
          %1109 = vmatpush2.xpose.msra.mxu0 0.0
          %1110 = vmatprep.subr.mxu0 0.0
          %1111 = vmatpush2.xpose.msra.mxu0 0.0
          %1112 = vmatprep.subr.mxu0 0.0
          %1113 = vmatpush2.xpose.msra.mxu0 0.0
          %1114 = vmatprep.subr.mxu0 0.0
          %1115 = vmatpush2.xpose.msra.mxu0 0.0
          %1116 = vmatprep.subr.mxu0 0.0
          %1117 = vmatpush2.xpose.msra.mxu0 0.0
          %1118 = vmatprep.subr.mxu0 0.0
          %1119 = vmatpush2.xpose.msra.mxu0 0.0
          %1120 = vmatprep.subr.mxu0 0.0
          %1121 = vmatpush2.xpose.msra.mxu0 0.0
          %1122 = vmatprep.subr.mxu0 0.0
          %1123 = vmatpush2.xpose.msra.mxu0 0.0
          %1124 = vmatprep.mubr.f32.mxu0 0.0
          %1125 = vmatmul.mubr.f32.gmra.mxu0 %v1056
          %v1126 = vpop.f32.mrf.mxu0
          %v1127 = vadd.f32 0.0, %v1126
          %v1128 = vpop.f32.mrf.mxu0
          %1129 = vdwg.mxu0
          %v1131 = vsel %vm679, %v677, 0
          %v1133 = vsel %vm679, %v646, 0
          %1135 = vmatprep.subr.mxu0 0.0
          %1136 = vmatpush1.xpose.msra.mxu0 0.0
          %1137 = vmatprep.subr.mxu0 0.0
          %1138 = vmatpush1.xpose.msra.mxu0 0.0
          %1139 = vmatprep.subr.mxu0 0.0
          %1140 = vmatpush1.xpose.msra.mxu0 0.0
          %1141 = vmatprep.subr.mxu0 0.0
          %1142 = vmatpush1.xpose.msra.mxu0 0.0
          %1143 = vmatprep.subr.mxu0 0.0
          %1144 = vmatpush1.xpose.msra.mxu0 0.0
          %1145 = vmatprep.subr.mxu0 0.0
          %1146 = vmatpush1.xpose.msra.mxu0 0.0
          %1147 = vmatprep.subr.mxu0 0.0
          %1148 = vmatpush1.xpose.msra.mxu0 0.0
          %1149 = vmatprep.subr.mxu0 0.0
          %1150 = vmatpush1.xpose.msra.mxu0 0.0
          %1151 = vmatprep.subr.mxu0 0.0
          %1152 = vmatpush1.xpose.msra.mxu0 0.0
          %1153 = vmatprep.subr.mxu0 0.0
          %1154 = vmatpush1.xpose.msra.mxu0 0.0
          %1155 = vmatprep.subr.mxu0 0.0
          %1156 = vmatpush1.xpose.msra.mxu0 0.0
          %1157 = vmatprep.subr.mxu0 0.0
          %1158 = vmatpush1.xpose.msra.mxu0 0.0
          %1159 = vmatprep.subr.mxu0 0.0
          %1160 = vmatpush1.xpose.msra.mxu0 0.0
          %1161 = vmatprep.subr.mxu0 0.0
          %1162 = vmatpush1.xpose.msra.mxu0 0.0
          %1163 = vmatprep.subr.mxu0 0.0
          %1164 = vmatpush1.xpose.msra.mxu0 0.0
          %1165 = vmatprep.subr.mxu0 0.0
          %1166 = vmatpush1.xpose.msra.mxu0 %v1133
          %1167 = vmatprep.subr.mxu0 0.0
          %1168 = vmatpush2.xpose.msra.mxu0 0.0
          %1169 = vmatprep.subr.mxu0 0.0
          %1170 = vmatpush2.xpose.msra.mxu0 0.0
          %1171 = vmatprep.subr.mxu0 0.0
          %1172 = vmatpush2.xpose.msra.mxu0 0.0
          %1173 = vmatprep.subr.mxu0 0.0
          %1174 = vmatpush2.xpose.msra.mxu0 0.0
          %1175 = vmatprep.subr.mxu0 0.0
          %1176 = vmatpush2.xpose.msra.mxu0 0.0
          %1177 = vmatprep.subr.mxu0 0.0
          %1178 = vmatpush2.xpose.msra.mxu0 0.0
          %1179 = vmatprep.subr.mxu0 0.0
          %1180 = vmatpush2.xpose.msra.mxu0 0.0
          %1181 = vmatprep.subr.mxu0 0.0
          %1182 = vmatpush2.xpose.msra.mxu0 0.0
          %1183 = vmatprep.subr.mxu0 0.0
          %1184 = vmatpush2.xpose.msra.mxu0 0.0
          %1185 = vmatprep.subr.mxu0 0.0
          %1186 = vmatpush2.xpose.msra.mxu0 0.0
          %1187 = vmatprep.subr.mxu0 0.0
          %1188 = vmatpush2.xpose.msra.mxu0 0.0
          %1189 = vmatprep.subr.mxu0 0.0
          %1190 = vmatpush2.xpose.msra.mxu0 0.0
          %1191 = vmatprep.subr.mxu0 0.0
          %1192 = vmatpush2.xpose.msra.mxu0 0.0
          %1193 = vmatprep.subr.mxu0 0.0
          %1194 = vmatpush2.xpose.msra.mxu0 0.0
          %1195 = vmatprep.subr.mxu0 0.0
          %1196 = vmatpush2.xpose.msra.mxu0 0.0
          %1197 = vmatprep.subr.mxu0 0.0
          %1198 = vmatpush2.xpose.msra.mxu0 0.0
          %1199 = vmatprep.mubr.f32.mxu0 0.0
          %1200 = vmatmul.mubr.f32.gmra.mxu0 %v1131
          %v1201 = vpop.f32.mrf.mxu0
          %v1202 = vadd.f32 0.0, %v1201
          %v1203 = vpop.f32.mrf.mxu0
          %1204 = vdwg.mxu0
          %v1206 = vsel %vm679, %v678, 0
          %v1208 = vsel %vm679, %v648, 0
          %1210 = vmatprep.subr.mxu0 0.0
          %1211 = vmatpush1.xpose.msra.mxu0 0.0
          %1212 = vmatprep.subr.mxu0 0.0
          %1213 = vmatpush1.xpose.msra.mxu0 0.0
          %1214 = vmatprep.subr.mxu0 0.0
          %1215 = vmatpush1.xpose.msra.mxu0 0.0
          %1216 = vmatprep.subr.mxu0 0.0
          %1217 = vmatpush1.xpose.msra.mxu0 0.0
          %1218 = vmatprep.subr.mxu0 0.0
          %1219 = vmatpush1.xpose.msra.mxu0 0.0
          %1220 = vmatprep.subr.mxu0 0.0
          %1221 = vmatpush1.xpose.msra.mxu0 0.0
          %1222 = vmatprep.subr.mxu0 0.0
          %1223 = vmatpush1.xpose.msra.mxu0 0.0
          %1224 = vmatprep.subr.mxu0 0.0
          %1225 = vmatpush1.xpose.msra.mxu0 0.0
          %1226 = vmatprep.subr.mxu0 0.0
          %1227 = vmatpush1.xpose.msra.mxu0 0.0
          %1228 = vmatprep.subr.mxu0 0.0
          %1229 = vmatpush1.xpose.msra.mxu0 0.0
          %1230 = vmatprep.subr.mxu0 0.0
          %1231 = vmatpush1.xpose.msra.mxu0 0.0
          %1232 = vmatprep.subr.mxu0 0.0
          %1233 = vmatpush1.xpose.msra.mxu0 0.0
          %1234 = vmatprep.subr.mxu0 0.0
          %1235 = vmatpush1.xpose.msra.mxu0 0.0
          %1236 = vmatprep.subr.mxu0 0.0
          %1237 = vmatpush1.xpose.msra.mxu0 0.0
          %1238 = vmatprep.subr.mxu0 0.0
          %1239 = vmatpush1.xpose.msra.mxu0 0.0
          %1240 = vmatprep.subr.mxu0 0.0
          %1241 = vmatpush1.xpose.msra.mxu0 %v1208
          %1242 = vmatprep.subr.mxu0 0.0
          %1243 = vmatpush2.xpose.msra.mxu0 0.0
          %1244 = vmatprep.subr.mxu0 0.0
          %1245 = vmatpush2.xpose.msra.mxu0 0.0
          %1246 = vmatprep.subr.mxu0 0.0
          %1247 = vmatpush2.xpose.msra.mxu0 0.0
          %1248 = vmatprep.subr.mxu0 0.0
          %1249 = vmatpush2.xpose.msra.mxu0 0.0
          %1250 = vmatprep.subr.mxu0 0.0
          %1251 = vmatpush2.xpose.msra.mxu0 0.0
          %1252 = vmatprep.subr.mxu0 0.0
          %1253 = vmatpush2.xpose.msra.mxu0 0.0
          %1254 = vmatprep.subr.mxu0 0.0
          %1255 = vmatpush2.xpose.msra.mxu0 0.0
          %1256 = vmatprep.subr.mxu0 0.0
          %1257 = vmatpush2.xpose.msra.mxu0 0.0
          %1258 = vmatprep.subr.mxu0 0.0
          %1259 = vmatpush2.xpose.msra.mxu0 0.0
          %1260 = vmatprep.subr.mxu0 0.0
          %1261 = vmatpush2.xpose.msra.mxu0 0.0
          %1262 = vmatprep.subr.mxu0 0.0
          %1263 = vmatpush2.xpose.msra.mxu0 0.0
          %1264 = vmatprep.subr.mxu0 0.0
          %1265 = vmatpush2.xpose.msra.mxu0 0.0
          %1266 = vmatprep.subr.mxu0 0.0
          %1267 = vmatpush2.xpose.msra.mxu0 0.0
          %1268 = vmatprep.subr.mxu0 0.0
          %1269 = vmatpush2.xpose.msra.mxu0 0.0
          %1270 = vmatprep.subr.mxu0 0.0
          %1271 = vmatpush2.xpose.msra.mxu0 0.0
          %1272 = vmatprep.subr.mxu0 0.0
          %1273 = vmatpush2.xpose.msra.mxu0 0.0
          %1274 = vmatprep.mubr.f32.mxu0 0.0
          %1275 = vmatmul.mubr.f32.gmra.mxu0 %v1206
          %v1276 = vpop.f32.mrf.mxu0
          %v1277 = vadd.f32 0.0, %v1276
          %v1278 = vpop.f32.mrf.mxu0
          %1279 = vdwg.mxu0
          %v1280 = vlaneseq
          %v1281 = vshrl.u32 %v1280, 7
          %v1282 = vstv %s524
          %v1283 = vadd.s32 %v1282, %v1281
          %v1284 = vlaneseq
          %v1285 = vand.u32 %v1284, 127
          %v1286 = vstv %s523
          %v1287 = vadd.s32 %v1286, %v1285
          %vm1288 = vcmp.ge.s32.totalorder %v1283, %v1287
          %v1289 = vsel %vm1288, 1, 0
          %vm1290 = vcmp.eq.s32.totalorder %v1289, 1
          %v1291 = vsel %vm1290, %v752, -1e+30
          %v1292 = vsel %vm1290, %v827, -1e+30
          %v1293 = vsel %vm1290, %v902, -1e+30
          %v1294 = vsel %vm1290, %v977, -1e+30
          %v1295 = vsel %vm1290, %v1052, -1e+30
          %v1296 = vsel %vm1290, %v1127, -1e+30
          %v1297 = vsel %vm1290, %v1202, -1e+30
          %v1298 = vsel %vm1290, %v1277, -1e+30
          %v1299 = vld [vmem:[#allocation3] sm:$0xff]
          %v1300 = vld [vmem:[#allocation3 + $0x8] sm:$0xff]
          %v1301 = vld [vmem:[#allocation3 + $0x10] sm:$0xff]
          %v1302 = vld [vmem:[#allocation3 + $0x18] sm:$0xff]
          %v1303 = vld [vmem:[#allocation3 + $0x20] sm:$0xff]
          %v1304 = vld [vmem:[#allocation3 + $0x28] sm:$0xff]
          %v1305 = vld [vmem:[#allocation3 + $0x30] sm:$0xff]
          %v1306 = vld [vmem:[#allocation3 + $0x38] sm:$0xff]
          %vm1307 = vcmask 64512
          %v1308 = vsel %vm1307, %v1291, -inf
          %1309 = vmax.xlane.f32.xlu0 %v1308
          %v1310 = vpop.xlane.xlu0 %1309
          %v1311 = vsel %vm1307, %v1292, -inf
          %1312 = vmax.xlane.f32.xlu0 %v1311
          %v1313 = vpop.xlane.xlu0 %1312
          %v1314 = vsel %vm1307, %v1293, -inf
          %1315 = vmax.xlane.f32.xlu0 %v1314
          %v1316 = vpop.xlane.xlu0 %1315
          %v1317 = vsel %vm1307, %v1294, -inf
          %1318 = vmax.xlane.f32.xlu0 %v1317
          %v1319 = vpop.xlane.xlu0 %1318
          %v1320 = vsel %vm1307, %v1295, -inf
          %1321 = vmax.xlane.f32.xlu0 %v1320
          %v1322 = vpop.xlane.xlu0 %1321
          %v1323 = vsel %vm1307, %v1296, -inf
          %1324 = vmax.xlane.f32.xlu0 %v1323
          %v1325 = vpop.xlane.xlu0 %1324
          %v1326 = vsel %vm1307, %v1297, -inf
          %1327 = vmax.xlane.f32.xlu0 %v1326
          %v1328 = vpop.xlane.xlu0 %1327
          %v1329 = vsel %vm1307, %v1298, -inf
          %1330 = vmax.xlane.f32.xlu0 %v1329
          %v1331 = vpop.xlane.xlu0 %1330
          %v1332 = vmax.f32 %v1299, %v1310
          %v1333 = vmax.f32 %v1300, %v1313
          %v1334 = vmax.f32 %v1301, %v1316
          %v1335 = vmax.f32 %v1302, %v1319
          %v1336 = vmax.f32 %v1303, %v1322
          %v1337 = vmax.f32 %v1304, %v1325
          %v1338 = vmax.f32 %v1305, %v1328
          %v1339 = vmax.f32 %v1306, %v1331
          %v1340 = vsub.f32 %v1299, %v1332
          %v1341 = vsub.f32 %v1300, %v1333
          %v1342 = vsub.f32 %v1301, %v1334
          %v1343 = vsub.f32 %v1302, %v1335
          %v1344 = vsub.f32 %v1303, %v1336
          %v1345 = vsub.f32 %v1304, %v1337
          %v1346 = vsub.f32 %v1305, %v1338
          %v1347 = vsub.f32 %v1306, %v1339
          %v1348 = vmul.f32 %v1340, 1.442695
          %v1349 = vpow.pop %v1348
          %v1350 = vmul.f32 %v1341, 1.442695
          %v1351 = vpow.pop %v1350
          %v1352 = vmul.f32 %v1342, 1.442695
          %v1353 = vpow.pop %v1352
          %v1354 = vmul.f32 %v1343, 1.442695
          %v1355 = vpow.pop %v1354
          %v1356 = vmul.f32 %v1344, 1.442695
          %v1357 = vpow.pop %v1356
          %v1358 = vmul.f32 %v1345, 1.442695
          %v1359 = vpow.pop %v1358
          %v1360 = vmul.f32 %v1346, 1.442695
          %v1361 = vpow.pop %v1360
          %v1362 = vmul.f32 %v1347, 1.442695
          %v1363 = vpow.pop %v1362
          %1365 = vset.pattern.permute.xlu0 0
          %1366 = vperm.xlu0 %1365, %v1332
          %v1367 = vpop.permute.xlu0 %1366
          %1370 = vset.pattern.permute.xlu0 0
          %1371 = vperm.xlu0 %1370, %v1333
          %v1372 = vpop.permute.xlu0 %1371
          %1375 = vset.pattern.permute.xlu0 0
          %1376 = vperm.xlu0 %1375, %v1334
          %v1377 = vpop.permute.xlu0 %1376
          %1380 = vset.pattern.permute.xlu0 0
          %1381 = vperm.xlu0 %1380, %v1335
          %v1382 = vpop.permute.xlu0 %1381
          %1385 = vset.pattern.permute.xlu0 0
          %1386 = vperm.xlu0 %1385, %v1336
          %v1387 = vpop.permute.xlu0 %1386
          %1390 = vset.pattern.permute.xlu0 0
          %1391 = vperm.xlu0 %1390, %v1337
          %v1392 = vpop.permute.xlu0 %1391
          %1395 = vset.pattern.permute.xlu0 0
          %1396 = vperm.xlu0 %1395, %v1338
          %v1397 = vpop.permute.xlu0 %1396
          %1400 = vset.pattern.permute.xlu0 0
          %1401 = vperm.xlu0 %1400, %v1339
          %v1402 = vpop.permute.xlu0 %1401
          %v1404 = vsub.f32 %v1291, %v1367
          %v1405 = vsub.f32 %v1292, %v1372
          %v1406 = vsub.f32 %v1293, %v1377
          %v1407 = vsub.f32 %v1294, %v1382
          %v1408 = vsub.f32 %v1295, %v1387
          %v1409 = vsub.f32 %v1296, %v1392
          %v1410 = vsub.f32 %v1297, %v1397
          %v1411 = vsub.f32 %v1298, %v1402
          %v1412 = vmul.f32 %v1404, 1.442695
          %v1413 = vpow.pop %v1412
          %v1414 = vmul.f32 %v1405, 1.442695
          %v1415 = vpow.pop %v1414
          %v1416 = vmul.f32 %v1406, 1.442695
          %v1417 = vpow.pop %v1416
          %v1418 = vmul.f32 %v1407, 1.442695
          %v1419 = vpow.pop %v1418
          %v1420 = vmul.f32 %v1408, 1.442695
          %v1421 = vpow.pop %v1420
          %v1422 = vmul.f32 %v1409, 1.442695
          %v1423 = vpow.pop %v1422
          %v1424 = vmul.f32 %v1410, 1.442695
          %v1425 = vpow.pop %v1424
          %v1426 = vmul.f32 %v1411, 1.442695
          %v1427 = vpow.pop %v1426
          %v1428 = vld [vmem:[#allocation4] sm:$0xff]
          %v1429 = vld [vmem:[#allocation4 + $0x8] sm:$0xff]
          %v1430 = vld [vmem:[#allocation4 + $0x10] sm:$0xff]
          %v1431 = vld [vmem:[#allocation4 + $0x18] sm:$0xff]
          %v1432 = vld [vmem:[#allocation4 + $0x20] sm:$0xff]
          %v1433 = vld [vmem:[#allocation4 + $0x28] sm:$0xff]
          %v1434 = vld [vmem:[#allocation4 + $0x30] sm:$0xff]
          %v1435 = vld [vmem:[#allocation4 + $0x38] sm:$0xff]
          %v1436 = vmul.f32 %v1349, %v1428
          %v1437 = vmul.f32 %v1351, %v1429
          %v1438 = vmul.f32 %v1353, %v1430
          %v1439 = vmul.f32 %v1355, %v1431
          %v1440 = vmul.f32 %v1357, %v1432
          %v1441 = vmul.f32 %v1359, %v1433
          %v1442 = vmul.f32 %v1361, %v1434
          %v1443 = vmul.f32 %v1363, %v1435
          %v1444 = vsel %vm1307, %v1413, 0.0
          %1445 = vadd.xlane.f32.xlu0 %v1444
          %v1446 = vpop.xlane.xlu0 %1445
          %v1447 = vsel %vm1307, %v1415, 0.0
          %1448 = vadd.xlane.f32.xlu0 %v1447
          %v1449 = vpop.xlane.xlu0 %1448
          %v1450 = vsel %vm1307, %v1417, 0.0
          %1451 = vadd.xlane.f32.xlu0 %v1450
          %v1452 = vpop.xlane.xlu0 %1451
          %v1453 = vsel %vm1307, %v1419, 0.0
          %1454 = vadd.xlane.f32.xlu0 %v1453
          %v1455 = vpop.xlane.xlu0 %1454
          %v1456 = vsel %vm1307, %v1421, 0.0
          %1457 = vadd.xlane.f32.xlu0 %v1456
          %v1458 = vpop.xlane.xlu0 %1457
          %v1459 = vsel %vm1307, %v1423, 0.0
          %1460 = vadd.xlane.f32.xlu0 %v1459
          %v1461 = vpop.xlane.xlu0 %1460
          %v1462 = vsel %vm1307, %v1425, 0.0
          %1463 = vadd.xlane.f32.xlu0 %v1462
          %v1464 = vpop.xlane.xlu0 %1463
          %v1465 = vsel %vm1307, %v1427, 0.0
          %1466 = vadd.xlane.f32.xlu0 %v1465
          %v1467 = vpop.xlane.xlu0 %1466
          %v1468 = vadd.f32 %v1436, %v1446
          %v1469 = vadd.f32 %v1437, %v1449
          %v1470 = vadd.f32 %v1438, %v1452
          %v1471 = vadd.f32 %v1439, %v1455
          %v1472 = vadd.f32 %v1440, %v1458
          %v1473 = vadd.f32 %v1441, %v1461
          %v1474 = vadd.f32 %v1442, %v1464
          %v1475 = vadd.f32 %v1443, %v1467
          %vm1476 = vcmask 7168
          %1477 = vst.msk [vmem:[#allocation4] sm:$0xff] %vm1476, %v1468
          %1478 = vst.msk [vmem:[#allocation4 + $0x8] sm:$0xff] %vm1476, %v1469
          %1479 = vst.msk [vmem:[#allocation4 + $0x10] sm:$0xff] %vm1476, %v1470
          %1480 = vst.msk [vmem:[#allocation4 + $0x18] sm:$0xff] %vm1476, %v1471
          %1481 = vst.msk [vmem:[#allocation4 + $0x20] sm:$0xff] %vm1476, %v1472
          %1482 = vst.msk [vmem:[#allocation4 + $0x28] sm:$0xff] %vm1476, %v1473
          %1483 = vst.msk [vmem:[#allocation4 + $0x30] sm:$0xff] %vm1476, %v1474
          %1484 = vst.msk [vmem:[#allocation4 + $0x38] sm:$0xff] %vm1476, %v1475
          %v1485 = vld [vmem:[#allocation5] sm:$0xff]
          %v1486 = vld [vmem:[#allocation5 + $0x8] sm:$0xff]
          %v1487 = vld [vmem:[#allocation5 + $0x10] sm:$0xff]
          %v1488 = vld [vmem:[#allocation5 + $0x18] sm:$0xff]
          %v1489 = vld [vmem:[#allocation5 + $0x20] sm:$0xff]
          %v1490 = vld [vmem:[#allocation5 + $0x28] sm:$0xff]
          %v1491 = vld [vmem:[#allocation5 + $0x30] sm:$0xff]
          %v1492 = vld [vmem:[#allocation5 + $0x38] sm:$0xff]
          %1494 = vset.pattern.permute.xlu0 0
          %1495 = vperm.xlu0 %1494, %v1349
          %v1496 = vpop.permute.xlu0 %1495
          %1499 = vset.pattern.permute.xlu0 0
          %1500 = vperm.xlu0 %1499, %v1351
          %v1501 = vpop.permute.xlu0 %1500
          %1504 = vset.pattern.permute.xlu0 0
          %1505 = vperm.xlu0 %1504, %v1353
          %v1506 = vpop.permute.xlu0 %1505
          %1509 = vset.pattern.permute.xlu0 0
          %1510 = vperm.xlu0 %1509, %v1355
          %v1511 = vpop.permute.xlu0 %1510
          %1514 = vset.pattern.permute.xlu0 0
          %1515 = vperm.xlu0 %1514, %v1357
          %v1516 = vpop.permute.xlu0 %1515
          %1519 = vset.pattern.permute.xlu0 0
          %1520 = vperm.xlu0 %1519, %v1359
          %v1521 = vpop.permute.xlu0 %1520
          %1524 = vset.pattern.permute.xlu0 0
          %1525 = vperm.xlu0 %1524, %v1361
          %v1526 = vpop.permute.xlu0 %1525
          %1529 = vset.pattern.permute.xlu0 0
          %1530 = vperm.xlu0 %1529, %v1363
          %v1531 = vpop.permute.xlu0 %1530
          %v1533 = vmul.f32 %v1496, %v1485
          %v1534 = vmul.f32 %v1501, %v1486
          %v1535 = vmul.f32 %v1506, %v1487
          %v1536 = vmul.f32 %v1511, %v1488
          %v1537 = vmul.f32 %v1516, %v1489
          %v1538 = vmul.f32 %v1521, %v1490
          %v1539 = vmul.f32 %v1526, %v1491
          %v1540 = vmul.f32 %v1531, %v1492
          %v1542 = vsel %vm1307, %v1413, 0
          %1544 = vmatprep.subr.mxu0 0.0
          %1545 = vmatpush1.msra.mxu0 0.0
          %1546 = vmatprep.subr.mxu0 0.0
          %1547 = vmatpush1.msra.mxu0 0.0
          %1548 = vmatprep.subr.mxu0 0.0
          %1549 = vmatpush1.msra.mxu0 0.0
          %1550 = vmatprep.subr.mxu0 0.0
          %1551 = vmatpush1.msra.mxu0 0.0
          %1552 = vmatprep.subr.mxu0 0.0
          %1553 = vmatpush1.msra.mxu0 0.0
          %1554 = vmatprep.subr.mxu0 0.0
          %1555 = vmatpush1.msra.mxu0 0.0
          %1556 = vmatprep.subr.mxu0 0.0
          %1557 = vmatpush1.msra.mxu0 0.0
          %1558 = vmatprep.subr.mxu0 0.0
          %1559 = vmatpush1.msra.mxu0 0.0
          %1560 = vmatprep.subr.mxu0 0.0
          %1561 = vmatpush1.msra.mxu0 0.0
          %1562 = vmatprep.subr.mxu0 0.0
          %1563 = vmatpush1.msra.mxu0 0.0
          %1564 = vmatprep.subr.mxu0 0.0
          %1565 = vmatpush1.msra.mxu0 0.0
          %1566 = vmatprep.subr.mxu0 0.0
          %1567 = vmatpush1.msra.mxu0 0.0
          %1568 = vmatprep.subr.mxu0 0.0
          %1569 = vmatpush1.msra.mxu0 0.0
          %1570 = vmatprep.subr.mxu0 0.0
          %1571 = vmatpush1.msra.mxu0 0.0
          %1572 = vmatprep.subr.mxu0 0.0
          %1573 = vmatpush1.msra.mxu0 0.0
          %1574 = vmatprep.subr.mxu0 0.0
          %1575 = vmatpush1.msra.mxu0 %v632
          %1576 = vmatprep.subr.mxu0 0.0
          %1577 = vmatpush2.msra.mxu0 0.0
          %1578 = vmatprep.subr.mxu0 0.0
          %1579 = vmatpush2.msra.mxu0 0.0
          %1580 = vmatprep.subr.mxu0 0.0
          %1581 = vmatpush2.msra.mxu0 0.0
          %1582 = vmatprep.subr.mxu0 0.0
          %1583 = vmatpush2.msra.mxu0 0.0
          %1584 = vmatprep.subr.mxu0 0.0
          %1585 = vmatpush2.msra.mxu0 0.0
          %1586 = vmatprep.subr.mxu0 0.0
          %1587 = vmatpush2.msra.mxu0 0.0
          %1588 = vmatprep.subr.mxu0 0.0
          %1589 = vmatpush2.msra.mxu0 0.0
          %1590 = vmatprep.subr.mxu0 0.0
          %1591 = vmatpush2.msra.mxu0 0.0
          %1592 = vmatprep.subr.mxu0 0.0
          %1593 = vmatpush2.msra.mxu0 0.0
          %1594 = vmatprep.subr.mxu0 0.0
          %1595 = vmatpush2.msra.mxu0 0.0
          %1596 = vmatprep.subr.mxu0 0.0
          %1597 = vmatpush2.msra.mxu0 0.0
          %1598 = vmatprep.subr.mxu0 0.0
          %1599 = vmatpush2.msra.mxu0 0.0
          %1600 = vmatprep.subr.mxu0 0.0
          %1601 = vmatpush2.msra.mxu0 0.0
          %1602 = vmatprep.subr.mxu0 0.0
          %1603 = vmatpush2.msra.mxu0 0.0
          %1604 = vmatprep.subr.mxu0 0.0
          %1605 = vmatpush2.msra.mxu0 0.0
          %1606 = vmatprep.subr.mxu0 0.0
          %1607 = vmatpush2.msra.mxu0 0.0
          %1608 = vmatprep.mubr.f32.mxu0 0.0
          %1609 = vmatmul.mubr.f32.gmra.mxu0 %v1542
          %v1610 = vpop.f32.mrf.mxu0
          %v1611 = vadd.f32 0.0, %v1610
          %v1612 = vpop.f32.mrf.mxu0
          %1613 = vdwg.mxu0
          %v1615 = vsel %vm1307, %v1415, 0
          %1617 = vmatprep.subr.mxu0 0.0
          %1618 = vmatpush1.msra.mxu0 0.0
          %1619 = vmatprep.subr.mxu0 0.0
          %1620 = vmatpush1.msra.mxu0 0.0
          %1621 = vmatprep.subr.mxu0 0.0
          %1622 = vmatpush1.msra.mxu0 0.0
          %1623 = vmatprep.subr.mxu0 0.0
          %1624 = vmatpush1.msra.mxu0 0.0
          %1625 = vmatprep.subr.mxu0 0.0
          %1626 = vmatpush1.msra.mxu0 0.0
          %1627 = vmatprep.subr.mxu0 0.0
          %1628 = vmatpush1.msra.mxu0 0.0
          %1629 = vmatprep.subr.mxu0 0.0
          %1630 = vmatpush1.msra.mxu0 0.0
          %1631 = vmatprep.subr.mxu0 0.0
          %1632 = vmatpush1.msra.mxu0 0.0
          %1633 = vmatprep.subr.mxu0 0.0
          %1634 = vmatpush1.msra.mxu0 0.0
          %1635 = vmatprep.subr.mxu0 0.0
          %1636 = vmatpush1.msra.mxu0 0.0
          %1637 = vmatprep.subr.mxu0 0.0
          %1638 = vmatpush1.msra.mxu0 0.0
          %1639 = vmatprep.subr.mxu0 0.0
          %1640 = vmatpush1.msra.mxu0 0.0
          %1641 = vmatprep.subr.mxu0 0.0
          %1642 = vmatpush1.msra.mxu0 0.0
          %1643 = vmatprep.subr.mxu0 0.0
          %1644 = vmatpush1.msra.mxu0 0.0
          %1645 = vmatprep.subr.mxu0 0.0
          %1646 = vmatpush1.msra.mxu0 0.0
          %1647 = vmatprep.subr.mxu0 0.0
          %1648 = vmatpush1.msra.mxu0 %v651
          %1649 = vmatprep.subr.mxu0 0.0
          %1650 = vmatpush2.msra.mxu0 0.0
          %1651 = vmatprep.subr.mxu0 0.0
          %1652 = vmatpush2.msra.mxu0 0.0
          %1653 = vmatprep.subr.mxu0 0.0
          %1654 = vmatpush2.msra.mxu0 0.0
          %1655 = vmatprep.subr.mxu0 0.0
          %1656 = vmatpush2.msra.mxu0 0.0
          %1657 = vmatprep.subr.mxu0 0.0
          %1658 = vmatpush2.msra.mxu0 0.0
          %1659 = vmatprep.subr.mxu0 0.0
          %1660 = vmatpush2.msra.mxu0 0.0
          %1661 = vmatprep.subr.mxu0 0.0
          %1662 = vmatpush2.msra.mxu0 0.0
          %1663 = vmatprep.subr.mxu0 0.0
          %1664 = vmatpush2.msra.mxu0 0.0
          %1665 = vmatprep.subr.mxu0 0.0
          %1666 = vmatpush2.msra.mxu0 0.0
          %1667 = vmatprep.subr.mxu0 0.0
          %1668 = vmatpush2.msra.mxu0 0.0
          %1669 = vmatprep.subr.mxu0 0.0
          %1670 = vmatpush2.msra.mxu0 0.0
          %1671 = vmatprep.subr.mxu0 0.0
          %1672 = vmatpush2.msra.mxu0 0.0
          %1673 = vmatprep.subr.mxu0 0.0
          %1674 = vmatpush2.msra.mxu0 0.0
          %1675 = vmatprep.subr.mxu0 0.0
          %1676 = vmatpush2.msra.mxu0 0.0
          %1677 = vmatprep.subr.mxu0 0.0
          %1678 = vmatpush2.msra.mxu0 0.0
          %1679 = vmatprep.subr.mxu0 0.0
          %1680 = vmatpush2.msra.mxu0 0.0
          %1681 = vmatprep.mubr.f32.mxu0 0.0
          %1682 = vmatmul.mubr.f32.gmra.mxu0 %v1615
          %v1683 = vpop.f32.mrf.mxu0
          %v1684 = vadd.f32 0.0, %v1683
          %v1685 = vpop.f32.mrf.mxu0
          %1686 = vdwg.mxu0
          %v1688 = vsel %vm1307, %v1417, 0
          %1690 = vmatprep.subr.mxu0 0.0
          %1691 = vmatpush1.msra.mxu0 0.0
          %1692 = vmatprep.subr.mxu0 0.0
          %1693 = vmatpush1.msra.mxu0 0.0
          %1694 = vmatprep.subr.mxu0 0.0
          %1695 = vmatpush1.msra.mxu0 0.0
          %1696 = vmatprep.subr.mxu0 0.0
          %1697 = vmatpush1.msra.mxu0 0.0
          %1698 = vmatprep.subr.mxu0 0.0
          %1699 = vmatpush1.msra.mxu0 0.0
          %1700 = vmatprep.subr.mxu0 0.0
          %1701 = vmatpush1.msra.mxu0 0.0
          %1702 = vmatprep.subr.mxu0 0.0
          %1703 = vmatpush1.msra.mxu0 0.0
          %1704 = vmatprep.subr.mxu0 0.0
          %1705 = vmatpush1.msra.mxu0 0.0
          %1706 = vmatprep.subr.mxu0 0.0
          %1707 = vmatpush1.msra.mxu0 0.0
          %1708 = vmatprep.subr.mxu0 0.0
          %1709 = vmatpush1.msra.mxu0 0.0
          %1710 = vmatprep.subr.mxu0 0.0
          %1711 = vmatpush1.msra.mxu0 0.0
          %1712 = vmatprep.subr.mxu0 0.0
          %1713 = vmatpush1.msra.mxu0 0.0
          %1714 = vmatprep.subr.mxu0 0.0
          %1715 = vmatpush1.msra.mxu0 0.0
          %1716 = vmatprep.subr.mxu0 0.0
          %1717 = vmatpush1.msra.mxu0 0.0
          %1718 = vmatprep.subr.mxu0 0.0
          %1719 = vmatpush1.msra.mxu0 0.0
          %1720 = vmatprep.subr.mxu0 0.0
          %1721 = vmatpush1.msra.mxu0 %v654
          %1722 = vmatprep.subr.mxu0 0.0
          %1723 = vmatpush2.msra.mxu0 0.0
          %1724 = vmatprep.subr.mxu0 0.0
          %1725 = vmatpush2.msra.mxu0 0.0
          %1726 = vmatprep.subr.mxu0 0.0
          %1727 = vmatpush2.msra.mxu0 0.0
          %1728 = vmatprep.subr.mxu0 0.0
          %1729 = vmatpush2.msra.mxu0 0.0
          %1730 = vmatprep.subr.mxu0 0.0
          %1731 = vmatpush2.msra.mxu0 0.0
          %1732 = vmatprep.subr.mxu0 0.0
          %1733 = vmatpush2.msra.mxu0 0.0
          %1734 = vmatprep.subr.mxu0 0.0
          %1735 = vmatpush2.msra.mxu0 0.0
          %1736 = vmatprep.subr.mxu0 0.0
          %1737 = vmatpush2.msra.mxu0 0.0
          %1738 = vmatprep.subr.mxu0 0.0
          %1739 = vmatpush2.msra.mxu0 0.0
          %1740 = vmatprep.subr.mxu0 0.0
          %1741 = vmatpush2.msra.mxu0 0.0
          %1742 = vmatprep.subr.mxu0 0.0
          %1743 = vmatpush2.msra.mxu0 0.0
          %1744 = vmatprep.subr.mxu0 0.0
          %1745 = vmatpush2.msra.mxu0 0.0
          %1746 = vmatprep.subr.mxu0 0.0
          %1747 = vmatpush2.msra.mxu0 0.0
          %1748 = vmatprep.subr.mxu0 0.0
          %1749 = vmatpush2.msra.mxu0 0.0
          %1750 = vmatprep.subr.mxu0 0.0
          %1751 = vmatpush2.msra.mxu0 0.0
          %1752 = vmatprep.subr.mxu0 0.0
          %1753 = vmatpush2.msra.mxu0 0.0
          %1754 = vmatprep.mubr.f32.mxu0 0.0
          %1755 = vmatmul.mubr.f32.gmra.mxu0 %v1688
          %v1756 = vpop.f32.mrf.mxu0
          %v1757 = vadd.f32 0.0, %v1756
          %v1758 = vpop.f32.mrf.mxu0
          %1759 = vdwg.mxu0
          %v1761 = vsel %vm1307, %v1419, 0
          %1763 = vmatprep.subr.mxu0 0.0
          %1764 = vmatpush1.msra.mxu0 0.0
          %1765 = vmatprep.subr.mxu0 0.0
          %1766 = vmatpush1.msra.mxu0 0.0
          %1767 = vmatprep.subr.mxu0 0.0
          %1768 = vmatpush1.msra.mxu0 0.0
          %1769 = vmatprep.subr.mxu0 0.0
          %1770 = vmatpush1.msra.mxu0 0.0
          %1771 = vmatprep.subr.mxu0 0.0
          %1772 = vmatpush1.msra.mxu0 0.0
          %1773 = vmatprep.subr.mxu0 0.0
          %1774 = vmatpush1.msra.mxu0 0.0
          %1775 = vmatprep.subr.mxu0 0.0
          %1776 = vmatpush1.msra.mxu0 0.0
          %1777 = vmatprep.subr.mxu0 0.0
          %1778 = vmatpush1.msra.mxu0 0.0
          %1779 = vmatprep.subr.mxu0 0.0
          %1780 = vmatpush1.msra.mxu0 0.0
          %1781 = vmatprep.subr.mxu0 0.0
          %1782 = vmatpush1.msra.mxu0 0.0
          %1783 = vmatprep.subr.mxu0 0.0
          %1784 = vmatpush1.msra.mxu0 0.0
          %1785 = vmatprep.subr.mxu0 0.0
          %1786 = vmatpush1.msra.mxu0 0.0
          %1787 = vmatprep.subr.mxu0 0.0
          %1788 = vmatpush1.msra.mxu0 0.0
          %1789 = vmatprep.subr.mxu0 0.0
          %1790 = vmatpush1.msra.mxu0 0.0
          %1791 = vmatprep.subr.mxu0 0.0
          %1792 = vmatpush1.msra.mxu0 0.0
          %1793 = vmatprep.subr.mxu0 0.0
          %1794 = vmatpush1.msra.mxu0 %v657
          %1795 = vmatprep.subr.mxu0 0.0
          %1796 = vmatpush2.msra.mxu0 0.0
          %1797 = vmatprep.subr.mxu0 0.0
          %1798 = vmatpush2.msra.mxu0 0.0
          %1799 = vmatprep.subr.mxu0 0.0
          %1800 = vmatpush2.msra.mxu0 0.0
          %1801 = vmatprep.subr.mxu0 0.0
          %1802 = vmatpush2.msra.mxu0 0.0
          %1803 = vmatprep.subr.mxu0 0.0
          %1804 = vmatpush2.msra.mxu0 0.0
          %1805 = vmatprep.subr.mxu0 0.0
          %1806 = vmatpush2.msra.mxu0 0.0
          %1807 = vmatprep.subr.mxu0 0.0
          %1808 = vmatpush2.msra.mxu0 0.0
          %1809 = vmatprep.subr.mxu0 0.0
          %1810 = vmatpush2.msra.mxu0 0.0
          %1811 = vmatprep.subr.mxu0 0.0
          %1812 = vmatpush2.msra.mxu0 0.0
          %1813 = vmatprep.subr.mxu0 0.0
          %1814 = vmatpush2.msra.mxu0 0.0
          %1815 = vmatprep.subr.mxu0 0.0
          %1816 = vmatpush2.msra.mxu0 0.0
          %1817 = vmatprep.subr.mxu0 0.0
          %1818 = vmatpush2.msra.mxu0 0.0
          %1819 = vmatprep.subr.mxu0 0.0
          %1820 = vmatpush2.msra.mxu0 0.0
          %1821 = vmatprep.subr.mxu0 0.0
          %1822 = vmatpush2.msra.mxu0 0.0
          %1823 = vmatprep.subr.mxu0 0.0
          %1824 = vmatpush2.msra.mxu0 0.0
          %1825 = vmatprep.subr.mxu0 0.0
          %1826 = vmatpush2.msra.mxu0 0.0
          %1827 = vmatprep.mubr.f32.mxu0 0.0
          %1828 = vmatmul.mubr.f32.gmra.mxu0 %v1761
          %v1829 = vpop.f32.mrf.mxu0
          %v1830 = vadd.f32 0.0, %v1829
          %v1831 = vpop.f32.mrf.mxu0
          %1832 = vdwg.mxu0
          %v1834 = vsel %vm1307, %v1421, 0
          %1836 = vmatprep.subr.mxu0 0.0
          %1837 = vmatpush1.msra.mxu0 0.0
          %1838 = vmatprep.subr.mxu0 0.0
          %1839 = vmatpush1.msra.mxu0 0.0
          %1840 = vmatprep.subr.mxu0 0.0
          %1841 = vmatpush1.msra.mxu0 0.0
          %1842 = vmatprep.subr.mxu0 0.0
          %1843 = vmatpush1.msra.mxu0 0.0
          %1844 = vmatprep.subr.mxu0 0.0
          %1845 = vmatpush1.msra.mxu0 0.0
          %1846 = vmatprep.subr.mxu0 0.0
          %1847 = vmatpush1.msra.mxu0 0.0
          %1848 = vmatprep.subr.mxu0 0.0
          %1849 = vmatpush1.msra.mxu0 0.0
          %1850 = vmatprep.subr.mxu0 0.0
          %1851 = vmatpush1.msra.mxu0 0.0
          %1852 = vmatprep.subr.mxu0 0.0
          %1853 = vmatpush1.msra.mxu0 0.0
          %1854 = vmatprep.subr.mxu0 0.0
          %1855 = vmatpush1.msra.mxu0 0.0
          %1856 = vmatprep.subr.mxu0 0.0
          %1857 = vmatpush1.msra.mxu0 0.0
          %1858 = vmatprep.subr.mxu0 0.0
          %1859 = vmatpush1.msra.mxu0 0.0
          %1860 = vmatprep.subr.mxu0 0.0
          %1861 = vmatpush1.msra.mxu0 0.0
          %1862 = vmatprep.subr.mxu0 0.0
          %1863 = vmatpush1.msra.mxu0 0.0
          %1864 = vmatprep.subr.mxu0 0.0
          %1865 = vmatpush1.msra.mxu0 0.0
          %1866 = vmatprep.subr.mxu0 0.0
          %1867 = vmatpush1.msra.mxu0 %v660
          %1868 = vmatprep.subr.mxu0 0.0
          %1869 = vmatpush2.msra.mxu0 0.0
          %1870 = vmatprep.subr.mxu0 0.0
          %1871 = vmatpush2.msra.mxu0 0.0
          %1872 = vmatprep.subr.mxu0 0.0
          %1873 = vmatpush2.msra.mxu0 0.0
          %1874 = vmatprep.subr.mxu0 0.0
          %1875 = vmatpush2.msra.mxu0 0.0
          %1876 = vmatprep.subr.mxu0 0.0
          %1877 = vmatpush2.msra.mxu0 0.0
          %1878 = vmatprep.subr.mxu0 0.0
          %1879 = vmatpush2.msra.mxu0 0.0
          %1880 = vmatprep.subr.mxu0 0.0
          %1881 = vmatpush2.msra.mxu0 0.0
          %1882 = vmatprep.subr.mxu0 0.0
          %1883 = vmatpush2.msra.mxu0 0.0
          %1884 = vmatprep.subr.mxu0 0.0
          %1885 = vmatpush2.msra.mxu0 0.0
          %1886 = vmatprep.subr.mxu0 0.0
          %1887 = vmatpush2.msra.mxu0 0.0
          %1888 = vmatprep.subr.mxu0 0.0
          %1889 = vmatpush2.msra.mxu0 0.0
          %1890 = vmatprep.subr.mxu0 0.0
          %1891 = vmatpush2.msra.mxu0 0.0
          %1892 = vmatprep.subr.mxu0 0.0
          %1893 = vmatpush2.msra.mxu0 0.0
          %1894 = vmatprep.subr.mxu0 0.0
          %1895 = vmatpush2.msra.mxu0 0.0
          %1896 = vmatprep.subr.mxu0 0.0
          %1897 = vmatpush2.msra.mxu0 0.0
          %1898 = vmatprep.subr.mxu0 0.0
          %1899 = vmatpush2.msra.mxu0 0.0
          %1900 = vmatprep.mubr.f32.mxu0 0.0
          %1901 = vmatmul.mubr.f32.gmra.mxu0 %v1834
          %v1902 = vpop.f32.mrf.mxu0
          %v1903 = vadd.f32 0.0, %v1902
          %v1904 = vpop.f32.mrf.mxu0
          %1905 = vdwg.mxu0
          %v1907 = vsel %vm1307, %v1423, 0
          %1909 = vmatprep.subr.mxu0 0.0
          %1910 = vmatpush1.msra.mxu0 0.0
          %1911 = vmatprep.subr.mxu0 0.0
          %1912 = vmatpush1.msra.mxu0 0.0
          %1913 = vmatprep.subr.mxu0 0.0
          %1914 = vmatpush1.msra.mxu0 0.0
          %1915 = vmatprep.subr.mxu0 0.0
          %1916 = vmatpush1.msra.mxu0 0.0
          %1917 = vmatprep.subr.mxu0 0.0
          %1918 = vmatpush1.msra.mxu0 0.0
          %1919 = vmatprep.subr.mxu0 0.0
          %1920 = vmatpush1.msra.mxu0 0.0
          %1921 = vmatprep.subr.mxu0 0.0
          %1922 = vmatpush1.msra.mxu0 0.0
          %1923 = vmatprep.subr.mxu0 0.0
          %1924 = vmatpush1.msra.mxu0 0.0
          %1925 = vmatprep.subr.mxu0 0.0
          %1926 = vmatpush1.msra.mxu0 0.0
          %1927 = vmatprep.subr.mxu0 0.0
          %1928 = vmatpush1.msra.mxu0 0.0
          %1929 = vmatprep.subr.mxu0 0.0
          %1930 = vmatpush1.msra.mxu0 0.0
          %1931 = vmatprep.subr.mxu0 0.0
          %1932 = vmatpush1.msra.mxu0 0.0
          %1933 = vmatprep.subr.mxu0 0.0
          %1934 = vmatpush1.msra.mxu0 0.0
          %1935 = vmatprep.subr.mxu0 0.0
          %1936 = vmatpush1.msra.mxu0 0.0
          %1937 = vmatprep.subr.mxu0 0.0
          %1938 = vmatpush1.msra.mxu0 0.0
          %1939 = vmatprep.subr.mxu0 0.0
          %1940 = vmatpush1.msra.mxu0 %v663
          %1941 = vmatprep.subr.mxu0 0.0
          %1942 = vmatpush2.msra.mxu0 0.0
          %1943 = vmatprep.subr.mxu0 0.0
          %1944 = vmatpush2.msra.mxu0 0.0
          %1945 = vmatprep.subr.mxu0 0.0
          %1946 = vmatpush2.msra.mxu0 0.0
          %1947 = vmatprep.subr.mxu0 0.0
          %1948 = vmatpush2.msra.mxu0 0.0
          %1949 = vmatprep.subr.mxu0 0.0
          %1950 = vmatpush2.msra.mxu0 0.0
          %1951 = vmatprep.subr.mxu0 0.0
          %1952 = vmatpush2.msra.mxu0 0.0
          %1953 = vmatprep.subr.mxu0 0.0
          %1954 = vmatpush2.msra.mxu0 0.0
          %1955 = vmatprep.subr.mxu0 0.0
          %1956 = vmatpush2.msra.mxu0 0.0
          %1957 = vmatprep.subr.mxu0 0.0
          %1958 = vmatpush2.msra.mxu0 0.0
          %1959 = vmatprep.subr.mxu0 0.0
          %1960 = vmatpush2.msra.mxu0 0.0
          %1961 = vmatprep.subr.mxu0 0.0
          %1962 = vmatpush2.msra.mxu0 0.0
          %1963 = vmatprep.subr.mxu0 0.0
          %1964 = vmatpush2.msra.mxu0 0.0
          %1965 = vmatprep.subr.mxu0 0.0
          %1966 = vmatpush2.msra.mxu0 0.0
          %1967 = vmatprep.subr.mxu0 0.0
          %1968 = vmatpush2.msra.mxu0 0.0
          %1969 = vmatprep.subr.mxu0 0.0
          %1970 = vmatpush2.msra.mxu0 0.0
          %1971 = vmatprep.subr.mxu0 0.0
          %1972 = vmatpush2.msra.mxu0 0.0
          %1973 = vmatprep.mubr.f32.mxu0 0.0
          %1974 = vmatmul.mubr.f32.gmra.mxu0 %v1907
          %v1975 = vpop.f32.mrf.mxu0
          %v1976 = vadd.f32 0.0, %v1975
          %v1977 = vpop.f32.mrf.mxu0
          %1978 = vdwg.mxu0
          %v1980 = vsel %vm1307, %v1425, 0
          %1982 = vmatprep.subr.mxu0 0.0
          %1983 = vmatpush1.msra.mxu0 0.0
          %1984 = vmatprep.subr.mxu0 0.0
          %1985 = vmatpush1.msra.mxu0 0.0
          %1986 = vmatprep.subr.mxu0 0.0
          %1987 = vmatpush1.msra.mxu0 0.0
          %1988 = vmatprep.subr.mxu0 0.0
          %1989 = vmatpush1.msra.mxu0 0.0
          %1990 = vmatprep.subr.mxu0 0.0
          %1991 = vmatpush1.msra.mxu0 0.0
          %1992 = vmatprep.subr.mxu0 0.0
          %1993 = vmatpush1.msra.mxu0 0.0
          %1994 = vmatprep.subr.mxu0 0.0
          %1995 = vmatpush1.msra.mxu0 0.0
          %1996 = vmatprep.subr.mxu0 0.0
          %1997 = vmatpush1.msra.mxu0 0.0
          %1998 = vmatprep.subr.mxu0 0.0
          %1999 = vmatpush1.msra.mxu0 0.0
          %2000 = vmatprep.subr.mxu0 0.0
          %2001 = vmatpush1.msra.mxu0 0.0
          %2002 = vmatprep.subr.mxu0 0.0
          %2003 = vmatpush1.msra.mxu0 0.0
          %2004 = vmatprep.subr.mxu0 0.0
          %2005 = vmatpush1.msra.mxu0 0.0
          %2006 = vmatprep.subr.mxu0 0.0
          %2007 = vmatpush1.msra.mxu0 0.0
          %2008 = vmatprep.subr.mxu0 0.0
          %2009 = vmatpush1.msra.mxu0 0.0
          %2010 = vmatprep.subr.mxu0 0.0
          %2011 = vmatpush1.msra.mxu0 0.0
          %2012 = vmatprep.subr.mxu0 0.0
          %2013 = vmatpush1.msra.mxu0 %v666
          %2014 = vmatprep.subr.mxu0 0.0
          %2015 = vmatpush2.msra.mxu0 0.0
          %2016 = vmatprep.subr.mxu0 0.0
          %2017 = vmatpush2.msra.mxu0 0.0
          %2018 = vmatprep.subr.mxu0 0.0
          %2019 = vmatpush2.msra.mxu0 0.0
          %2020 = vmatprep.subr.mxu0 0.0
          %2021 = vmatpush2.msra.mxu0 0.0
          %2022 = vmatprep.subr.mxu0 0.0
          %2023 = vmatpush2.msra.mxu0 0.0
          %2024 = vmatprep.subr.mxu0 0.0
          %2025 = vmatpush2.msra.mxu0 0.0
          %2026 = vmatprep.subr.mxu0 0.0
          %2027 = vmatpush2.msra.mxu0 0.0
          %2028 = vmatprep.subr.mxu0 0.0
          %2029 = vmatpush2.msra.mxu0 0.0
          %2030 = vmatprep.subr.mxu0 0.0
          %2031 = vmatpush2.msra.mxu0 0.0
          %2032 = vmatprep.subr.mxu0 0.0
          %2033 = vmatpush2.msra.mxu0 0.0
          %2034 = vmatprep.subr.mxu0 0.0
          %2035 = vmatpush2.msra.mxu0 0.0
          %2036 = vmatprep.subr.mxu0 0.0
          %2037 = vmatpush2.msra.mxu0 0.0
          %2038 = vmatprep.subr.mxu0 0.0
          %2039 = vmatpush2.msra.mxu0 0.0
          %2040 = vmatprep.subr.mxu0 0.0
          %2041 = vmatpush2.msra.mxu0 0.0
          %2042 = vmatprep.subr.mxu0 0.0
          %2043 = vmatpush2.msra.mxu0 0.0
          %2044 = vmatprep.subr.mxu0 0.0
          %2045 = vmatpush2.msra.mxu0 0.0
          %2046 = vmatprep.mubr.f32.mxu0 0.0
          %2047 = vmatmul.mubr.f32.gmra.mxu0 %v1980
          %v2048 = vpop.f32.mrf.mxu0
          %v2049 = vadd.f32 0.0, %v2048
          %v2050 = vpop.f32.mrf.mxu0
          %2051 = vdwg.mxu0
          %v2053 = vsel %vm1307, %v1427, 0
          %2055 = vmatprep.subr.mxu0 0.0
          %2056 = vmatpush1.msra.mxu0 0.0
          %2057 = vmatprep.subr.mxu0 0.0
          %2058 = vmatpush1.msra.mxu0 0.0
          %2059 = vmatprep.subr.mxu0 0.0
          %2060 = vmatpush1.msra.mxu0 0.0
          %2061 = vmatprep.subr.mxu0 0.0
          %2062 = vmatpush1.msra.mxu0 0.0
          %2063 = vmatprep.subr.mxu0 0.0
          %2064 = vmatpush1.msra.mxu0 0.0
          %2065 = vmatprep.subr.mxu0 0.0
          %2066 = vmatpush1.msra.mxu0 0.0
          %2067 = vmatprep.subr.mxu0 0.0
          %2068 = vmatpush1.msra.mxu0 0.0
          %2069 = vmatprep.subr.mxu0 0.0
          %2070 = vmatpush1.msra.mxu0 0.0
          %2071 = vmatprep.subr.mxu0 0.0
          %2072 = vmatpush1.msra.mxu0 0.0
          %2073 = vmatprep.subr.mxu0 0.0
          %2074 = vmatpush1.msra.mxu0 0.0
          %2075 = vmatprep.subr.mxu0 0.0
          %2076 = vmatpush1.msra.mxu0 0.0
          %2077 = vmatprep.subr.mxu0 0.0
          %2078 = vmatpush1.msra.mxu0 0.0
          %2079 = vmatprep.subr.mxu0 0.0
          %2080 = vmatpush1.msra.mxu0 0.0
          %2081 = vmatprep.subr.mxu0 0.0
          %2082 = vmatpush1.msra.mxu0 0.0
          %2083 = vmatprep.subr.mxu0 0.0
          %2084 = vmatpush1.msra.mxu0 0.0
          %2085 = vmatprep.subr.mxu0 0.0
          %2086 = vmatpush1.msra.mxu0 %v669
          %2087 = vmatprep.subr.mxu0 0.0
          %2088 = vmatpush2.msra.mxu0 0.0
          %2089 = vmatprep.subr.mxu0 0.0
          %2090 = vmatpush2.msra.mxu0 0.0
          %2091 = vmatprep.subr.mxu0 0.0
          %2092 = vmatpush2.msra.mxu0 0.0
          %2093 = vmatprep.subr.mxu0 0.0
          %2094 = vmatpush2.msra.mxu0 0.0
          %2095 = vmatprep.subr.mxu0 0.0
          %2096 = vmatpush2.msra.mxu0 0.0
          %2097 = vmatprep.subr.mxu0 0.0
          %2098 = vmatpush2.msra.mxu0 0.0
          %2099 = vmatprep.subr.mxu0 0.0
          %2100 = vmatpush2.msra.mxu0 0.0
          %2101 = vmatprep.subr.mxu0 0.0
          %2102 = vmatpush2.msra.mxu0 0.0
          %2103 = vmatprep.subr.mxu0 0.0
          %2104 = vmatpush2.msra.mxu0 0.0
          %2105 = vmatprep.subr.mxu0 0.0
          %2106 = vmatpush2.msra.mxu0 0.0
          %2107 = vmatprep.subr.mxu0 0.0
          %2108 = vmatpush2.msra.mxu0 0.0
          %2109 = vmatprep.subr.mxu0 0.0
          %2110 = vmatpush2.msra.mxu0 0.0
          %2111 = vmatprep.subr.mxu0 0.0
          %2112 = vmatpush2.msra.mxu0 0.0
          %2113 = vmatprep.subr.mxu0 0.0
          %2114 = vmatpush2.msra.mxu0 0.0
          %2115 = vmatprep.subr.mxu0 0.0
          %2116 = vmatpush2.msra.mxu0 0.0
          %2117 = vmatprep.subr.mxu0 0.0
          %2118 = vmatpush2.msra.mxu0 0.0
          %2119 = vmatprep.mubr.f32.mxu0 0.0
          %2120 = vmatmul.mubr.f32.gmra.mxu0 %v2053
          %v2121 = vpop.f32.mrf.mxu0
          %v2122 = vadd.f32 0.0, %v2121
          %v2123 = vpop.f32.mrf.mxu0
          %2124 = vdwg.mxu0
          %v2125 = vadd.f32 %v1533, %v1611
          %v2126 = vadd.f32 %v1534, %v1684
          %v2127 = vadd.f32 %v1535, %v1757
          %v2128 = vadd.f32 %v1536, %v1830
          %v2129 = vadd.f32 %v1537, %v1903
          %v2130 = vadd.f32 %v1538, %v1976
          %v2131 = vadd.f32 %v1539, %v2049
          %v2132 = vadd.f32 %v1540, %v2122
          %2133 = vst.msk [vmem:[#allocation5] sm:$0xff] %vm679, %v2125
          %2134 = vst.msk [vmem:[#allocation5 + $0x8] sm:$0xff] %vm679, %v2126
          %2135 = vst.msk [vmem:[#allocation5 + $0x10] sm:$0xff] %vm679, %v2127
          %2136 = vst.msk [vmem:[#allocation5 + $0x18] sm:$0xff] %vm679, %v2128
          %2137 = vst.msk [vmem:[#allocation5 + $0x20] sm:$0xff] %vm679, %v2129
          %2138 = vst.msk [vmem:[#allocation5 + $0x28] sm:$0xff] %vm679, %v2130
          %2139 = vst.msk [vmem:[#allocation5 + $0x30] sm:$0xff] %vm679, %v2131
          %2140 = vst.msk [vmem:[#allocation5 + $0x38] sm:$0xff] %vm679, %v2132
          %2141 = vst.msk [vmem:[#allocation3] sm:$0xff] %vm1476, %v1332
          %2142 = vst.msk [vmem:[#allocation3 + $0x8] sm:$0xff] %vm1476, %v1333
          %2143 = vst.msk [vmem:[#allocation3 + $0x10] sm:$0xff] %vm1476, %v1334
          %2144 = vst.msk [vmem:[#allocation3 + $0x18] sm:$0xff] %vm1476, %v1335
          %2145 = vst.msk [vmem:[#allocation3 + $0x20] sm:$0xff] %vm1476, %v1336
          %2146 = vst.msk [vmem:[#allocation3 + $0x28] sm:$0xff] %vm1476, %v1337
          %2147 = vst.msk [vmem:[#allocation3 + $0x30] sm:$0xff] %vm1476, %v1338
          %2148 = vst.msk [vmem:[#allocation3 + $0x38] sm:$0xff] %vm1476, %v1339
        $region72: #{tpu_custom_call.1} parent=43 // pred_fallthru
          _
        %p2149 = scmp.eq.s32.totalorder %s34, 1
        // Predicated region
        $region73: #{tpu_custom_call.1} parent=43 // pred_check
          %p2150 = pneg %p2149
        $region74: #{tpu_custom_call.1} parent=43 // pred_check_branch
          %2152 = sbr.rel (%p2150) target = $region76
        $region75: #{tpu_custom_call.1} parent=43 // pred_region
          %v2153 = vld [vmem:[#allocation5] sm:$0xff]
          %v2154 = vld [vmem:[#allocation5 + $0x8] sm:$0xff]
          %v2155 = vld [vmem:[#allocation5 + $0x10] sm:$0xff]
          %v2156 = vld [vmem:[#allocation5 + $0x18] sm:$0xff]
          %v2157 = vld [vmem:[#allocation5 + $0x20] sm:$0xff]
          %v2158 = vld [vmem:[#allocation5 + $0x28] sm:$0xff]
          %v2159 = vld [vmem:[#allocation5 + $0x30] sm:$0xff]
          %v2160 = vld [vmem:[#allocation5 + $0x38] sm:$0xff]
          %v2161 = vld [vmem:[#allocation4] sm:$0xff]
          %v2162 = vld [vmem:[#allocation4 + $0x8] sm:$0xff]
          %v2163 = vld [vmem:[#allocation4 + $0x10] sm:$0xff]
          %v2164 = vld [vmem:[#allocation4 + $0x18] sm:$0xff]
          %v2165 = vld [vmem:[#allocation4 + $0x20] sm:$0xff]
          %v2166 = vld [vmem:[#allocation4 + $0x28] sm:$0xff]
          %v2167 = vld [vmem:[#allocation4 + $0x30] sm:$0xff]
          %v2168 = vld [vmem:[#allocation4 + $0x38] sm:$0xff]
          %v2169 = vrcp.pop %v2161
          %v2170 = vrcp.pop %v2162
          %v2171 = vrcp.pop %v2163
          %v2172 = vrcp.pop %v2164
          %v2173 = vrcp.pop %v2165
          %v2174 = vrcp.pop %v2166
          %v2175 = vrcp.pop %v2167
          %v2176 = vrcp.pop %v2168
          %2178 = vset.pattern.permute.xlu0 0
          %2179 = vperm.xlu0 %2178, %v2169
          %v2180 = vpop.permute.xlu0 %2179
          %2183 = vset.pattern.permute.xlu0 0
          %2184 = vperm.xlu0 %2183, %v2170
          %v2185 = vpop.permute.xlu0 %2184
          %2188 = vset.pattern.permute.xlu0 0
          %2189 = vperm.xlu0 %2188, %v2171
          %v2190 = vpop.permute.xlu0 %2189
          %2193 = vset.pattern.permute.xlu0 0
          %2194 = vperm.xlu0 %2193, %v2172
          %v2195 = vpop.permute.xlu0 %2194
          %2198 = vset.pattern.permute.xlu0 0
          %2199 = vperm.xlu0 %2198, %v2173
          %v2200 = vpop.permute.xlu0 %2199
          %2203 = vset.pattern.permute.xlu0 0
          %2204 = vperm.xlu0 %2203, %v2174
          %v2205 = vpop.permute.xlu0 %2204
          %2208 = vset.pattern.permute.xlu0 0
          %2209 = vperm.xlu0 %2208, %v2175
          %v2210 = vpop.permute.xlu0 %2209
          %2213 = vset.pattern.permute.xlu0 0
          %2214 = vperm.xlu0 %2213, %v2176
          %v2215 = vpop.permute.xlu0 %2214
          %v2217 = vmul.f32 %v2153, %v2180
          %v2218 = vmul.f32 %v2154, %v2185
          %v2219 = vmul.f32 %v2155, %v2190
          %v2220 = vmul.f32 %v2156, %v2195
          %v2221 = vmul.f32 %v2157, %v2200
          %v2222 = vmul.f32 %v2158, %v2205
          %v2223 = vmul.f32 %v2159, %v2210
          %v2224 = vmul.f32 %v2160, %v2215
          %v2225 = vld [vmem:[#allocation14] sm:$0xff]
          %v2226 = vld [vmem:[#allocation14 + $0x8] sm:$0xff]
          %v2227 = vld [vmem:[#allocation14 + $0x10] sm:$0xff]
          %v2228 = vld [vmem:[#allocation14 + $0x18] sm:$0xff]
          %v2229 = vld [vmem:[#allocation14 + $0x20] sm:$0xff]
          %v2230 = vld [vmem:[#allocation14 + $0x28] sm:$0xff]
          %v2231 = vld [vmem:[#allocation14 + $0x30] sm:$0xff]
          %v2232 = vld [vmem:[#allocation14 + $0x38] sm:$0xff]
          %v2233 = vld [vmem:[#allocation14 + $0x40] sm:$0xff]
          %v2234 = vld [vmem:[#allocation14 + $0x48] sm:$0xff]
          %v2235 = vld [vmem:[#allocation14 + $0x50] sm:$0xff]
          %v2236 = vld [vmem:[#allocation14 + $0x58] sm:$0xff]
          %v2237 = vld [vmem:[#allocation14 + $0x60] sm:$0xff]
          %v2238 = vld [vmem:[#allocation14 + $0x68] sm:$0xff]
          %v2239 = vld [vmem:[#allocation14 + $0x70] sm:$0xff]
          %v2240 = vld [vmem:[#allocation14 + $0x78] sm:$0xff]
          %vm2241 = vcmask 130048
          %v2243 = vsel %vm2241, %v2217, 0
          %2245 = vmatprep.subr.mxu0 0.0
          %2246 = vmatpush1.msra.mxu0 0.0
          %2247 = vmatprep.subr.mxu0 0.0
          %2248 = vmatpush1.msra.mxu0 0.0
          %2249 = vmatprep.subr.mxu0 0.0
          %2250 = vmatpush1.msra.mxu0 0.0
          %2251 = vmatprep.subr.mxu0 0.0
          %2252 = vmatpush1.msra.mxu0 0.0
          %2253 = vmatprep.subr.mxu0 0.0
          %2254 = vmatpush1.msra.mxu0 0.0
          %2255 = vmatprep.subr.mxu0 0.0
          %2256 = vmatpush1.msra.mxu0 0.0
          %2257 = vmatprep.subr.mxu0 0.0
          %2258 = vmatpush1.msra.mxu0 0.0
          %2259 = vmatprep.subr.mxu0 0.0
          %2260 = vmatpush1.msra.mxu0 0.0
          %2261 = vmatprep.subr.mxu0 0.0
          %2262 = vmatpush1.msra.mxu0 0.0
          %2263 = vmatprep.subr.mxu0 0.0
          %2264 = vmatpush1.msra.mxu0 0.0
          %2265 = vmatprep.subr.mxu0 0.0
          %2266 = vmatpush1.msra.mxu0 0.0
          %2267 = vmatprep.subr.mxu0 0.0
          %2268 = vmatpush1.msra.mxu0 0.0
          %2269 = vmatprep.subr.mxu0 0.0
          %2270 = vmatpush1.msra.mxu0 0.0
          %2271 = vmatprep.subr.mxu0 0.0
          %2272 = vmatpush1.msra.mxu0 0.0
          %2273 = vmatprep.subr.mxu0 0.0
          %2274 = vmatpush1.msra.mxu0 %v2226
          %2275 = vmatprep.subr.mxu0 0.0
          %2276 = vmatpush1.msra.mxu0 %v2225
          %2277 = vmatprep.subr.mxu0 0.0
          %2278 = vmatpush2.msra.mxu0 0.0
          %2279 = vmatprep.subr.mxu0 0.0
          %2280 = vmatpush2.msra.mxu0 0.0
          %2281 = vmatprep.subr.mxu0 0.0
          %2282 = vmatpush2.msra.mxu0 0.0
          %2283 = vmatprep.subr.mxu0 0.0
          %2284 = vmatpush2.msra.mxu0 0.0
          %2285 = vmatprep.subr.mxu0 0.0
          %2286 = vmatpush2.msra.mxu0 0.0
          %2287 = vmatprep.subr.mxu0 0.0
          %2288 = vmatpush2.msra.mxu0 0.0
          %2289 = vmatprep.subr.mxu0 0.0
          %2290 = vmatpush2.msra.mxu0 0.0
          %2291 = vmatprep.subr.mxu0 0.0
          %2292 = vmatpush2.msra.mxu0 0.0
          %2293 = vmatprep.subr.mxu0 0.0
          %2294 = vmatpush2.msra.mxu0 0.0
          %2295 = vmatprep.subr.mxu0 0.0
          %2296 = vmatpush2.msra.mxu0 0.0
          %2297 = vmatprep.subr.mxu0 0.0
          %2298 = vmatpush2.msra.mxu0 0.0
          %2299 = vmatprep.subr.mxu0 0.0
          %2300 = vmatpush2.msra.mxu0 0.0
          %2301 = vmatprep.subr.mxu0 0.0
          %2302 = vmatpush2.msra.mxu0 0.0
          %2303 = vmatprep.subr.mxu0 0.0
          %2304 = vmatpush2.msra.mxu0 0.0
          %2305 = vmatprep.subr.mxu0 0.0
          %2306 = vmatpush2.msra.mxu0 0.0
          %2307 = vmatprep.subr.mxu0 0.0
          %2308 = vmatpush2.msra.mxu0 0.0
          %2309 = vmatprep.mubr.f32.mxu0 0.0
          %2310 = vmatmul.mubr.f32.gmra.mxu0 %v2243
          %v2311 = vpop.f32.mrf.mxu0
          %v2312 = vadd.f32 0.0, %v2311
          %v2313 = vpop.f32.mrf.mxu0
          %2314 = vdwg.mxu0
          %v2316 = vsel %vm2241, %v2218, 0
          %2318 = vmatprep.subr.mxu0 0.0
          %2319 = vmatpush1.msra.mxu0 0.0
          %2320 = vmatprep.subr.mxu0 0.0
          %2321 = vmatpush1.msra.mxu0 0.0
          %2322 = vmatprep.subr.mxu0 0.0
          %2323 = vmatpush1.msra.mxu0 0.0
          %2324 = vmatprep.subr.mxu0 0.0
          %2325 = vmatpush1.msra.mxu0 0.0
          %2326 = vmatprep.subr.mxu0 0.0
          %2327 = vmatpush1.msra.mxu0 0.0
          %2328 = vmatprep.subr.mxu0 0.0
          %2329 = vmatpush1.msra.mxu0 0.0
          %2330 = vmatprep.subr.mxu0 0.0
          %2331 = vmatpush1.msra.mxu0 0.0
          %2332 = vmatprep.subr.mxu0 0.0
          %2333 = vmatpush1.msra.mxu0 0.0
          %2334 = vmatprep.subr.mxu0 0.0
          %2335 = vmatpush1.msra.mxu0 0.0
          %2336 = vmatprep.subr.mxu0 0.0
          %2337 = vmatpush1.msra.mxu0 0.0
          %2338 = vmatprep.subr.mxu0 0.0
          %2339 = vmatpush1.msra.mxu0 0.0
          %2340 = vmatprep.subr.mxu0 0.0
          %2341 = vmatpush1.msra.mxu0 0.0
          %2342 = vmatprep.subr.mxu0 0.0
          %2343 = vmatpush1.msra.mxu0 0.0
          %2344 = vmatprep.subr.mxu0 0.0
          %2345 = vmatpush1.msra.mxu0 0.0
          %2346 = vmatprep.subr.mxu0 0.0
          %2347 = vmatpush1.msra.mxu0 %v2228
          %2348 = vmatprep.subr.mxu0 0.0
          %2349 = vmatpush1.msra.mxu0 %v2227
          %2350 = vmatprep.subr.mxu0 0.0
          %2351 = vmatpush2.msra.mxu0 0.0
          %2352 = vmatprep.subr.mxu0 0.0
          %2353 = vmatpush2.msra.mxu0 0.0
          %2354 = vmatprep.subr.mxu0 0.0
          %2355 = vmatpush2.msra.mxu0 0.0
          %2356 = vmatprep.subr.mxu0 0.0
          %2357 = vmatpush2.msra.mxu0 0.0
          %2358 = vmatprep.subr.mxu0 0.0
          %2359 = vmatpush2.msra.mxu0 0.0
          %2360 = vmatprep.subr.mxu0 0.0
          %2361 = vmatpush2.msra.mxu0 0.0
          %2362 = vmatprep.subr.mxu0 0.0
          %2363 = vmatpush2.msra.mxu0 0.0
          %2364 = vmatprep.subr.mxu0 0.0
          %2365 = vmatpush2.msra.mxu0 0.0
          %2366 = vmatprep.subr.mxu0 0.0
          %2367 = vmatpush2.msra.mxu0 0.0
          %2368 = vmatprep.subr.mxu0 0.0
          %2369 = vmatpush2.msra.mxu0 0.0
          %2370 = vmatprep.subr.mxu0 0.0
          %2371 = vmatpush2.msra.mxu0 0.0
          %2372 = vmatprep.subr.mxu0 0.0
          %2373 = vmatpush2.msra.mxu0 0.0
          %2374 = vmatprep.subr.mxu0 0.0
          %2375 = vmatpush2.msra.mxu0 0.0
          %2376 = vmatprep.subr.mxu0 0.0
          %2377 = vmatpush2.msra.mxu0 0.0
          %2378 = vmatprep.subr.mxu0 0.0
          %2379 = vmatpush2.msra.mxu0 0.0
          %2380 = vmatprep.subr.mxu0 0.0
          %2381 = vmatpush2.msra.mxu0 0.0
          %2382 = vmatprep.mubr.f32.mxu0 0.0
          %2383 = vmatmul.mubr.f32.gmra.mxu0 %v2316
          %v2384 = vpop.f32.mrf.mxu0
          %v2385 = vadd.f32 0.0, %v2384
          %v2386 = vpop.f32.mrf.mxu0
          %2387 = vdwg.mxu0
          %v2389 = vsel %vm2241, %v2219, 0
          %2391 = vmatprep.subr.mxu0 0.0
          %2392 = vmatpush1.msra.mxu0 0.0
          %2393 = vmatprep.subr.mxu0 0.0
          %2394 = vmatpush1.msra.mxu0 0.0
          %2395 = vmatprep.subr.mxu0 0.0
          %2396 = vmatpush1.msra.mxu0 0.0
          %2397 = vmatprep.subr.mxu0 0.0
          %2398 = vmatpush1.msra.mxu0 0.0
          %2399 = vmatprep.subr.mxu0 0.0
          %2400 = vmatpush1.msra.mxu0 0.0
          %2401 = vmatprep.subr.mxu0 0.0
          %2402 = vmatpush1.msra.mxu0 0.0
          %2403 = vmatprep.subr.mxu0 0.0
          %2404 = vmatpush1.msra.mxu0 0.0
          %2405 = vmatprep.subr.mxu0 0.0
          %2406 = vmatpush1.msra.mxu0 0.0
          %2407 = vmatprep.subr.mxu0 0.0
          %2408 = vmatpush1.msra.mxu0 0.0
          %2409 = vmatprep.subr.mxu0 0.0
          %2410 = vmatpush1.msra.mxu0 0.0
          %2411 = vmatprep.subr.mxu0 0.0
          %2412 = vmatpush1.msra.mxu0 0.0
          %2413 = vmatprep.subr.mxu0 0.0
          %2414 = vmatpush1.msra.mxu0 0.0
          %2415 = vmatprep.subr.mxu0 0.0
          %2416 = vmatpush1.msra.mxu0 0.0
          %2417 = vmatprep.subr.mxu0 0.0
          %2418 = vmatpush1.msra.mxu0 0.0
          %2419 = vmatprep.subr.mxu0 0.0
          %2420 = vmatpush1.msra.mxu0 %v2230
          %2421 = vmatprep.subr.mxu0 0.0
          %2422 = vmatpush1.msra.mxu0 %v2229
          %2423 = vmatprep.subr.mxu0 0.0
          %2424 = vmatpush2.msra.mxu0 0.0
          %2425 = vmatprep.subr.mxu0 0.0
          %2426 = vmatpush2.msra.mxu0 0.0
          %2427 = vmatprep.subr.mxu0 0.0
          %2428 = vmatpush2.msra.mxu0 0.0
          %2429 = vmatprep.subr.mxu0 0.0
          %2430 = vmatpush2.msra.mxu0 0.0
          %2431 = vmatprep.subr.mxu0 0.0
          %2432 = vmatpush2.msra.mxu0 0.0
          %2433 = vmatprep.subr.mxu0 0.0
          %2434 = vmatpush2.msra.mxu0 0.0
          %2435 = vmatprep.subr.mxu0 0.0
          %2436 = vmatpush2.msra.mxu0 0.0
          %2437 = vmatprep.subr.mxu0 0.0
          %2438 = vmatpush2.msra.mxu0 0.0
          %2439 = vmatprep.subr.mxu0 0.0
          %2440 = vmatpush2.msra.mxu0 0.0
          %2441 = vmatprep.subr.mxu0 0.0
          %2442 = vmatpush2.msra.mxu0 0.0
          %2443 = vmatprep.subr.mxu0 0.0
          %2444 = vmatpush2.msra.mxu0 0.0
          %2445 = vmatprep.subr.mxu0 0.0
          %2446 = vmatpush2.msra.mxu0 0.0
          %2447 = vmatprep.subr.mxu0 0.0
          %2448 = vmatpush2.msra.mxu0 0.0
          %2449 = vmatprep.subr.mxu0 0.0
          %2450 = vmatpush2.msra.mxu0 0.0
          %2451 = vmatprep.subr.mxu0 0.0
          %2452 = vmatpush2.msra.mxu0 0.0
          %2453 = vmatprep.subr.mxu0 0.0
          %2454 = vmatpush2.msra.mxu0 0.0
          %2455 = vmatprep.mubr.f32.mxu0 0.0
          %2456 = vmatmul.mubr.f32.gmra.mxu0 %v2389
          %v2457 = vpop.f32.mrf.mxu0
          %v2458 = vadd.f32 0.0, %v2457
          %v2459 = vpop.f32.mrf.mxu0
          %2460 = vdwg.mxu0
          %v2462 = vsel %vm2241, %v2220, 0
          %2464 = vmatprep.subr.mxu0 0.0
          %2465 = vmatpush1.msra.mxu0 0.0
          %2466 = vmatprep.subr.mxu0 0.0
          %2467 = vmatpush1.msra.mxu0 0.0
          %2468 = vmatprep.subr.mxu0 0.0
          %2469 = vmatpush1.msra.mxu0 0.0
          %2470 = vmatprep.subr.mxu0 0.0
          %2471 = vmatpush1.msra.mxu0 0.0
          %2472 = vmatprep.subr.mxu0 0.0
          %2473 = vmatpush1.msra.mxu0 0.0
          %2474 = vmatprep.subr.mxu0 0.0
          %2475 = vmatpush1.msra.mxu0 0.0
          %2476 = vmatprep.subr.mxu0 0.0
          %2477 = vmatpush1.msra.mxu0 0.0
          %2478 = vmatprep.subr.mxu0 0.0
          %2479 = vmatpush1.msra.mxu0 0.0
          %2480 = vmatprep.subr.mxu0 0.0
          %2481 = vmatpush1.msra.mxu0 0.0
          %2482 = vmatprep.subr.mxu0 0.0
          %2483 = vmatpush1.msra.mxu0 0.0
          %2484 = vmatprep.subr.mxu0 0.0
          %2485 = vmatpush1.msra.mxu0 0.0
          %2486 = vmatprep.subr.mxu0 0.0
          %2487 = vmatpush1.msra.mxu0 0.0
          %2488 = vmatprep.subr.mxu0 0.0
          %2489 = vmatpush1.msra.mxu0 0.0
          %2490 = vmatprep.subr.mxu0 0.0
          %2491 = vmatpush1.msra.mxu0 0.0
          %2492 = vmatprep.subr.mxu0 0.0
          %2493 = vmatpush1.msra.mxu0 %v2232
          %2494 = vmatprep.subr.mxu0 0.0
          %2495 = vmatpush1.msra.mxu0 %v2231
          %2496 = vmatprep.subr.mxu0 0.0
          %2497 = vmatpush2.msra.mxu0 0.0
          %2498 = vmatprep.subr.mxu0 0.0
          %2499 = vmatpush2.msra.mxu0 0.0
          %2500 = vmatprep.subr.mxu0 0.0
          %2501 = vmatpush2.msra.mxu0 0.0
          %2502 = vmatprep.subr.mxu0 0.0
          %2503 = vmatpush2.msra.mxu0 0.0
          %2504 = vmatprep.subr.mxu0 0.0
          %2505 = vmatpush2.msra.mxu0 0.0
          %2506 = vmatprep.subr.mxu0 0.0
          %2507 = vmatpush2.msra.mxu0 0.0
          %2508 = vmatprep.subr.mxu0 0.0
          %2509 = vmatpush2.msra.mxu0 0.0
          %2510 = vmatprep.subr.mxu0 0.0
          %2511 = vmatpush2.msra.mxu0 0.0
          %2512 = vmatprep.subr.mxu0 0.0
          %2513 = vmatpush2.msra.mxu0 0.0
          %2514 = vmatprep.subr.mxu0 0.0
          %2515 = vmatpush2.msra.mxu0 0.0
          %2516 = vmatprep.subr.mxu0 0.0
          %2517 = vmatpush2.msra.mxu0 0.0
          %2518 = vmatprep.subr.mxu0 0.0
          %2519 = vmatpush2.msra.mxu0 0.0
          %2520 = vmatprep.subr.mxu0 0.0
          %2521 = vmatpush2.msra.mxu0 0.0
          %2522 = vmatprep.subr.mxu0 0.0
          %2523 = vmatpush2.msra.mxu0 0.0
          %2524 = vmatprep.subr.mxu0 0.0
          %2525 = vmatpush2.msra.mxu0 0.0
          %2526 = vmatprep.subr.mxu0 0.0
          %2527 = vmatpush2.msra.mxu0 0.0
          %2528 = vmatprep.mubr.f32.mxu0 0.0
          %2529 = vmatmul.mubr.f32.gmra.mxu0 %v2462
          %v2530 = vpop.f32.mrf.mxu0
          %v2531 = vadd.f32 0.0, %v2530
          %v2532 = vpop.f32.mrf.mxu0
          %2533 = vdwg.mxu0
          %v2535 = vsel %vm2241, %v2221, 0
          %2537 = vmatprep.subr.mxu0 0.0
          %2538 = vmatpush1.msra.mxu0 0.0
          %2539 = vmatprep.subr.mxu0 0.0
          %2540 = vmatpush1.msra.mxu0 0.0
          %2541 = vmatprep.subr.mxu0 0.0
          %2542 = vmatpush1.msra.mxu0 0.0
          %2543 = vmatprep.subr.mxu0 0.0
          %2544 = vmatpush1.msra.mxu0 0.0
          %2545 = vmatprep.subr.mxu0 0.0
          %2546 = vmatpush1.msra.mxu0 0.0
          %2547 = vmatprep.subr.mxu0 0.0
          %2548 = vmatpush1.msra.mxu0 0.0
          %2549 = vmatprep.subr.mxu0 0.0
          %2550 = vmatpush1.msra.mxu0 0.0
          %2551 = vmatprep.subr.mxu0 0.0
          %2552 = vmatpush1.msra.mxu0 0.0
          %2553 = vmatprep.subr.mxu0 0.0
          %2554 = vmatpush1.msra.mxu0 0.0
          %2555 = vmatprep.subr.mxu0 0.0
          %2556 = vmatpush1.msra.mxu0 0.0
          %2557 = vmatprep.subr.mxu0 0.0
          %2558 = vmatpush1.msra.mxu0 0.0
          %2559 = vmatprep.subr.mxu0 0.0
          %2560 = vmatpush1.msra.mxu0 0.0
          %2561 = vmatprep.subr.mxu0 0.0
          %2562 = vmatpush1.msra.mxu0 0.0
          %2563 = vmatprep.subr.mxu0 0.0
          %2564 = vmatpush1.msra.mxu0 0.0
          %2565 = vmatprep.subr.mxu0 0.0
          %2566 = vmatpush1.msra.mxu0 %v2234
          %2567 = vmatprep.subr.mxu0 0.0
          %2568 = vmatpush1.msra.mxu0 %v2233
          %2569 = vmatprep.subr.mxu0 0.0
          %2570 = vmatpush2.msra.mxu0 0.0
          %2571 = vmatprep.subr.mxu0 0.0
          %2572 = vmatpush2.msra.mxu0 0.0
          %2573 = vmatprep.subr.mxu0 0.0
          %2574 = vmatpush2.msra.mxu0 0.0
          %2575 = vmatprep.subr.mxu0 0.0
          %2576 = vmatpush2.msra.mxu0 0.0
          %2577 = vmatprep.subr.mxu0 0.0
          %2578 = vmatpush2.msra.mxu0 0.0
          %2579 = vmatprep.subr.mxu0 0.0
          %2580 = vmatpush2.msra.mxu0 0.0
          %2581 = vmatprep.subr.mxu0 0.0
          %2582 = vmatpush2.msra.mxu0 0.0
          %2583 = vmatprep.subr.mxu0 0.0
          %2584 = vmatpush2.msra.mxu0 0.0
          %2585 = vmatprep.subr.mxu0 0.0
          %2586 = vmatpush2.msra.mxu0 0.0
          %2587 = vmatprep.subr.mxu0 0.0
          %2588 = vmatpush2.msra.mxu0 0.0
          %2589 = vmatprep.subr.mxu0 0.0
          %2590 = vmatpush2.msra.mxu0 0.0
          %2591 = vmatprep.subr.mxu0 0.0
          %2592 = vmatpush2.msra.mxu0 0.0
          %2593 = vmatprep.subr.mxu0 0.0
          %2594 = vmatpush2.msra.mxu0 0.0
          %2595 = vmatprep.subr.mxu0 0.0
          %2596 = vmatpush2.msra.mxu0 0.0
          %2597 = vmatprep.subr.mxu0 0.0
          %2598 = vmatpush2.msra.mxu0 0.0
          %2599 = vmatprep.subr.mxu0 0.0
          %2600 = vmatpush2.msra.mxu0 0.0
          %2601 = vmatprep.mubr.f32.mxu0 0.0
          %2602 = vmatmul.mubr.f32.gmra.mxu0 %v2535
          %v2603 = vpop.f32.mrf.mxu0
          %v2604 = vadd.f32 0.0, %v2603
          %v2605 = vpop.f32.mrf.mxu0
          %2606 = vdwg.mxu0
          %v2608 = vsel %vm2241, %v2222, 0
          %2610 = vmatprep.subr.mxu0 0.0
          %2611 = vmatpush1.msra.mxu0 0.0
          %2612 = vmatprep.subr.mxu0 0.0
          %2613 = vmatpush1.msra.mxu0 0.0
          %2614 = vmatprep.subr.mxu0 0.0
          %2615 = vmatpush1.msra.mxu0 0.0
          %2616 = vmatprep.subr.mxu0 0.0
          %2617 = vmatpush1.msra.mxu0 0.0
          %2618 = vmatprep.subr.mxu0 0.0
          %2619 = vmatpush1.msra.mxu0 0.0
          %2620 = vmatprep.subr.mxu0 0.0
          %2621 = vmatpush1.msra.mxu0 0.0
          %2622 = vmatprep.subr.mxu0 0.0
          %2623 = vmatpush1.msra.mxu0 0.0
          %2624 = vmatprep.subr.mxu0 0.0
          %2625 = vmatpush1.msra.mxu0 0.0
          %2626 = vmatprep.subr.mxu0 0.0
          %2627 = vmatpush1.msra.mxu0 0.0
          %2628 = vmatprep.subr.mxu0 0.0
          %2629 = vmatpush1.msra.mxu0 0.0
          %2630 = vmatprep.subr.mxu0 0.0
          %2631 = vmatpush1.msra.mxu0 0.0
          %2632 = vmatprep.subr.mxu0 0.0
          %2633 = vmatpush1.msra.mxu0 0.0
          %2634 = vmatprep.subr.mxu0 0.0
          %2635 = vmatpush1.msra.mxu0 0.0
          %2636 = vmatprep.subr.mxu0 0.0
          %2637 = vmatpush1.msra.mxu0 0.0
          %2638 = vmatprep.subr.mxu0 0.0
          %2639 = vmatpush1.msra.mxu0 %v2236
          %2640 = vmatprep.subr.mxu0 0.0
          %2641 = vmatpush1.msra.mxu0 %v2235
          %2642 = vmatprep.subr.mxu0 0.0
          %2643 = vmatpush2.msra.mxu0 0.0
          %2644 = vmatprep.subr.mxu0 0.0
          %2645 = vmatpush2.msra.mxu0 0.0
          %2646 = vmatprep.subr.mxu0 0.0
          %2647 = vmatpush2.msra.mxu0 0.0
          %2648 = vmatprep.subr.mxu0 0.0
          %2649 = vmatpush2.msra.mxu0 0.0
          %2650 = vmatprep.subr.mxu0 0.0
          %2651 = vmatpush2.msra.mxu0 0.0
          %2652 = vmatprep.subr.mxu0 0.0
          %2653 = vmatpush2.msra.mxu0 0.0
          %2654 = vmatprep.subr.mxu0 0.0
          %2655 = vmatpush2.msra.mxu0 0.0
          %2656 = vmatprep.subr.mxu0 0.0
          %2657 = vmatpush2.msra.mxu0 0.0
          %2658 = vmatprep.subr.mxu0 0.0
          %2659 = vmatpush2.msra.mxu0 0.0
          %2660 = vmatprep.subr.mxu0 0.0
          %2661 = vmatpush2.msra.mxu0 0.0
          %2662 = vmatprep.subr.mxu0 0.0
          %2663 = vmatpush2.msra.mxu0 0.0
          %2664 = vmatprep.subr.mxu0 0.0
          %2665 = vmatpush2.msra.mxu0 0.0
          %2666 = vmatprep.subr.mxu0 0.0
          %2667 = vmatpush2.msra.mxu0 0.0
          %2668 = vmatprep.subr.mxu0 0.0
          %2669 = vmatpush2.msra.mxu0 0.0
          %2670 = vmatprep.subr.mxu0 0.0
          %2671 = vmatpush2.msra.mxu0 0.0
          %2672 = vmatprep.subr.mxu0 0.0
          %2673 = vmatpush2.msra.mxu0 0.0
          %2674 = vmatprep.mubr.f32.mxu0 0.0
          %2675 = vmatmul.mubr.f32.gmra.mxu0 %v2608
          %v2676 = vpop.f32.mrf.mxu0
          %v2677 = vadd.f32 0.0, %v2676
          %v2678 = vpop.f32.mrf.mxu0
          %2679 = vdwg.mxu0
          %v2681 = vsel %vm2241, %v2223, 0
          %2683 = vmatprep.subr.mxu0 0.0
          %2684 = vmatpush1.msra.mxu0 0.0
          %2685 = vmatprep.subr.mxu0 0.0
          %2686 = vmatpush1.msra.mxu0 0.0
          %2687 = vmatprep.subr.mxu0 0.0
          %2688 = vmatpush1.msra.mxu0 0.0
          %2689 = vmatprep.subr.mxu0 0.0
          %2690 = vmatpush1.msra.mxu0 0.0
          %2691 = vmatprep.subr.mxu0 0.0
          %2692 = vmatpush1.msra.mxu0 0.0
          %2693 = vmatprep.subr.mxu0 0.0
          %2694 = vmatpush1.msra.mxu0 0.0
          %2695 = vmatprep.subr.mxu0 0.0
          %2696 = vmatpush1.msra.mxu0 0.0
          %2697 = vmatprep.subr.mxu0 0.0
          %2698 = vmatpush1.msra.mxu0 0.0
          %2699 = vmatprep.subr.mxu0 0.0
          %2700 = vmatpush1.msra.mxu0 0.0
          %2701 = vmatprep.subr.mxu0 0.0
          %2702 = vmatpush1.msra.mxu0 0.0
          %2703 = vmatprep.subr.mxu0 0.0
          %2704 = vmatpush1.msra.mxu0 0.0
          %2705 = vmatprep.subr.mxu0 0.0
          %2706 = vmatpush1.msra.mxu0 0.0
          %2707 = vmatprep.subr.mxu0 0.0
          %2708 = vmatpush1.msra.mxu0 0.0
          %2709 = vmatprep.subr.mxu0 0.0
          %2710 = vmatpush1.msra.mxu0 0.0
          %2711 = vmatprep.subr.mxu0 0.0
          %2712 = vmatpush1.msra.mxu0 %v2238
          %2713 = vmatprep.subr.mxu0 0.0
          %2714 = vmatpush1.msra.mxu0 %v2237
          %2715 = vmatprep.subr.mxu0 0.0
          %2716 = vmatpush2.msra.mxu0 0.0
          %2717 = vmatprep.subr.mxu0 0.0
          %2718 = vmatpush2.msra.mxu0 0.0
          %2719 = vmatprep.subr.mxu0 0.0
          %2720 = vmatpush2.msra.mxu0 0.0
          %2721 = vmatprep.subr.mxu0 0.0
          %2722 = vmatpush2.msra.mxu0 0.0
          %2723 = vmatprep.subr.mxu0 0.0
          %2724 = vmatpush2.msra.mxu0 0.0
          %2725 = vmatprep.subr.mxu0 0.0
          %2726 = vmatpush2.msra.mxu0 0.0
          %2727 = vmatprep.subr.mxu0 0.0
          %2728 = vmatpush2.msra.mxu0 0.0
          %2729 = vmatprep.subr.mxu0 0.0
          %2730 = vmatpush2.msra.mxu0 0.0
          %2731 = vmatprep.subr.mxu0 0.0
          %2732 = vmatpush2.msra.mxu0 0.0
          %2733 = vmatprep.subr.mxu0 0.0
          %2734 = vmatpush2.msra.mxu0 0.0
          %2735 = vmatprep.subr.mxu0 0.0
          %2736 = vmatpush2.msra.mxu0 0.0
          %2737 = vmatprep.subr.mxu0 0.0
          %2738 = vmatpush2.msra.mxu0 0.0
          %2739 = vmatprep.subr.mxu0 0.0
          %2740 = vmatpush2.msra.mxu0 0.0
          %2741 = vmatprep.subr.mxu0 0.0
          %2742 = vmatpush2.msra.mxu0 0.0
          %2743 = vmatprep.subr.mxu0 0.0
          %2744 = vmatpush2.msra.mxu0 0.0
          %2745 = vmatprep.subr.mxu0 0.0
          %2746 = vmatpush2.msra.mxu0 0.0
          %2747 = vmatprep.mubr.f32.mxu0 0.0
          %2748 = vmatmul.mubr.f32.gmra.mxu0 %v2681
          %v2749 = vpop.f32.mrf.mxu0
          %v2750 = vadd.f32 0.0, %v2749
          %v2751 = vpop.f32.mrf.mxu0
          %2752 = vdwg.mxu0
          %v2754 = vsel %vm2241, %v2224, 0
          %2756 = vmatprep.subr.mxu0 0.0
          %2757 = vmatpush1.msra.mxu0 0.0
          %2758 = vmatprep.subr.mxu0 0.0
          %2759 = vmatpush1.msra.mxu0 0.0
          %2760 = vmatprep.subr.mxu0 0.0
          %2761 = vmatpush1.msra.mxu0 0.0
          %2762 = vmatprep.subr.mxu0 0.0
          %2763 = vmatpush1.msra.mxu0 0.0
          %2764 = vmatprep.subr.mxu0 0.0
          %2765 = vmatpush1.msra.mxu0 0.0
          %2766 = vmatprep.subr.mxu0 0.0
          %2767 = vmatpush1.msra.mxu0 0.0
          %2768 = vmatprep.subr.mxu0 0.0
          %2769 = vmatpush1.msra.mxu0 0.0
          %2770 = vmatprep.subr.mxu0 0.0
          %2771 = vmatpush1.msra.mxu0 0.0
          %2772 = vmatprep.subr.mxu0 0.0
          %2773 = vmatpush1.msra.mxu0 0.0
          %2774 = vmatprep.subr.mxu0 0.0
          %2775 = vmatpush1.msra.mxu0 0.0
          %2776 = vmatprep.subr.mxu0 0.0
          %2777 = vmatpush1.msra.mxu0 0.0
          %2778 = vmatprep.subr.mxu0 0.0
          %2779 = vmatpush1.msra.mxu0 0.0
          %2780 = vmatprep.subr.mxu0 0.0
          %2781 = vmatpush1.msra.mxu0 0.0
          %2782 = vmatprep.subr.mxu0 0.0
          %2783 = vmatpush1.msra.mxu0 0.0
          %2784 = vmatprep.subr.mxu0 0.0
          %2785 = vmatpush1.msra.mxu0 %v2240
          %2786 = vmatprep.subr.mxu0 0.0
          %2787 = vmatpush1.msra.mxu0 %v2239
          %2788 = vmatprep.subr.mxu0 0.0
          %2789 = vmatpush2.msra.mxu0 0.0
          %2790 = vmatprep.subr.mxu0 0.0
          %2791 = vmatpush2.msra.mxu0 0.0
          %2792 = vmatprep.subr.mxu0 0.0
          %2793 = vmatpush2.msra.mxu0 0.0
          %2794 = vmatprep.subr.mxu0 0.0
          %2795 = vmatpush2.msra.mxu0 0.0
          %2796 = vmatprep.subr.mxu0 0.0
          %2797 = vmatpush2.msra.mxu0 0.0
          %2798 = vmatprep.subr.mxu0 0.0
          %2799 = vmatpush2.msra.mxu0 0.0
          %2800 = vmatprep.subr.mxu0 0.0
          %2801 = vmatpush2.msra.mxu0 0.0
          %2802 = vmatprep.subr.mxu0 0.0
          %2803 = vmatpush2.msra.mxu0 0.0
          %2804 = vmatprep.subr.mxu0 0.0
          %2805 = vmatpush2.msra.mxu0 0.0
          %2806 = vmatprep.subr.mxu0 0.0
          %2807 = vmatpush2.msra.mxu0 0.0
          %2808 = vmatprep.subr.mxu0 0.0
          %2809 = vmatpush2.msra.mxu0 0.0
          %2810 = vmatprep.subr.mxu0 0.0
          %2811 = vmatpush2.msra.mxu0 0.0
          %2812 = vmatprep.subr.mxu0 0.0
          %2813 = vmatpush2.msra.mxu0 0.0
          %2814 = vmatprep.subr.mxu0 0.0
          %2815 = vmatpush2.msra.mxu0 0.0
          %2816 = vmatprep.subr.mxu0 0.0
          %2817 = vmatpush2.msra.mxu0 0.0
          %2818 = vmatprep.subr.mxu0 0.0
          %2819 = vmatpush2.msra.mxu0 0.0
          %2820 = vmatprep.mubr.f32.mxu0 0.0
          %2821 = vmatmul.mubr.f32.gmra.mxu0 %v2754
          %v2822 = vpop.f32.mrf.mxu0
          %v2823 = vadd.f32 0.0, %v2822
          %v2824 = vpop.f32.mrf.mxu0
          %2825 = vdwg.mxu0
          %v2826 = vadd.f32 %v2312, %v2385
          %v2827 = vadd.f32 %v2826, %v2458
          %v2828 = vadd.f32 %v2827, %v2531
          %v2829 = vadd.f32 %v2828, %v2604
          %v2830 = vadd.f32 %v2829, %v2677
          %v2831 = vadd.f32 %v2830, %v2750
          %v2832 = vadd.f32 %v2831, %v2823
          %v2833 = vld [vmem:[%s5] sm:$0x1]
          %v2835 = vlaneseq
          %v2836 = vshrl.u32 %v2835, 7
          %v2837 = vsub.s32 0, %v2836
          %v2838 = vrot.slane %v2833, %v2837
          %v2840 = vadd.f32 %v2832, %v2838
          %2841 = vst [vmem:[%s375] sm:$0xff] %v2840
        $region76: #{tpu_custom_call.1} parent=43 // pred_fallthru
          _
        %s2842 = sand.u32 %s196, 1
        %s2843 = scalar_lea.sflag [#allocation8], %s2842
        %s2844 = sand.u32 %s196, 1
        %s2845 = smul.addr %s2844, 8
        %s2846 = scalar_lea.vmem [#allocation15], %s2845
        // Predicated region
        $region77: #{tpu_custom_call.1} parent=43 // pred_check
          %p2847 = pneg %p206
        $region78: #{tpu_custom_call.1} parent=43 // pred_check_branch
          %2849 = sbr.rel (%p2847) target = $region80
        $region79: #{tpu_custom_call.1} parent=43 // pred_region
          %s2851 = ssub.s32 128, 128
          %2852 = vsyncadd %s2843, %s2851
          %s2853 = smul.addr %s32, 2
          %s2854 = sadd.s32 %s33, %s2853
          %s2855 = smul.addr %s2854, 128
          %s2856 = scalar_lea.hbm %s6, %s2855
          %s2858 = sshll.u32 %s2846, 4
          %s2859 = int_to_ptr.vmem [resolvable:$true] %s2858
          %2861 = dma.vmem_to_hbm [thread:$0]  %s2859, 128, %s2856, %s2843
        $region80: #{tpu_custom_call.1} parent=43 // pred_fallthru
          _
      $region44: #{tpu_custom_call.1} parent=5 // pred_fallthru
        _
      %p2862 = scmp.le.s32.totalorder 2, %s22
      // Predicated region
      $region81: #{tpu_custom_call.1} parent=5 // pred_check
        %p2863 = pneg %p2862
      $region82: #{tpu_custom_call.1} parent=5 // pred_check_branch
        %2865 = sbr.rel (%p2863) target = $region84
      $region83: #{tpu_custom_call.1} parent=5 // pred_region
        %s2866 = ssub.s32 %s22, 2
        // Predicated region
        $region85: #{tpu_custom_call.1} parent=83 // pred_check
          %p2867 = pneg %p212
        $region86: #{tpu_custom_call.1} parent=83 // pred_check_branch
          %2869 = sbr.rel (%p2867) target = $region88
        $region87: #{tpu_custom_call.1} parent=83 // pred_region
          %s2870 = sand.u32 %s197, 1
          %s2871 = scalar_lea.sflag [#allocation8], %s2870
          %s2872 = sand.u32 %s197, 1
          %s2873 = smul.addr %s2872, 8
          %s2874 = scalar_lea.vmem [#allocation15], %s2873
          %2875 = dma.done %s2871, 128
        $region88: #{tpu_custom_call.1} parent=83 // pred_fallthru
          _
      $region84: #{tpu_custom_call.1} parent=5 // pred_fallthru
        _
    $region6: #{tpu_custom_call.1} parent=1 // loop_footer
      %s26 = sadd.s32 1, %s22
    $region7: #{tpu_custom_call.1} parent=1 // loop_footer_branch
      %21 = sbr.rel target = $region3
    $region8: #{tpu_custom_call.1} parent=1 // loop_exit
      _
    %2876 = vsyncpa [#allocation7], 1
    %s2877 = scalar_lea.sflag [#allocation7], 1
    %2878 = vsyncpa %s2877, 1
    %2879 = vsyncpa [#allocation10], 1
    %s2880 = scalar_lea.sflag [#allocation10], 1
    %2881 = vsyncpa %s2880, 1
    %2882 = vsyncpa [#allocation13], 1
    %2883 = vsyncpa [#allocation8], 1
    %s2884 = scalar_lea.sflag [#allocation8], 1
    %2885 = vsyncpa %s2884, 1

</llo_original>
